<compile_context>
chip_gen: v5e
topology: v5e:2x2
jax: 0.10.0
libtpu: 0.0.40
codegen_flags: <defaults>
</compile_context>

<pallas_src>
import numpy as np
import jax
import jax.numpy as jnp
from jax.experimental import pallas as pl
from jax.experimental.pallas import tpu as pltpu


# ----------------------------------------------------------------------------
# Model config (small shapes)
# ----------------------------------------------------------------------------
IC_N = 4             # input channels
BB1_C = 8            # decoder_bic_n (low-level feature channels)
BB2_C = 16           # aspp_ic_n (high-level feature channels)
ASPP_C = 256         # ASPP c_n / oc_n (hard-coded 256 in the module)
OC_N = 16            # final output channels
DILATIONS = (1, 2, 3)
LANE = 128


# ----------------------------------------------------------------------------
# Pallas kernels
# ----------------------------------------------------------------------------
def _conv_kernel(p_ref, w_ref, b_ref, o_ref):
    """Generic conv-bn-relu: one matmul with taps folded into the contraction.

    p_ref: (1, HW, K) bf16 im2col patches (K = KH*KW*Cin)
    w_ref: (K, Cout_pad) bf16  (BN scale already folded into the weights)
    b_ref: (1, Cout_pad) f32 ; o_ref: (1, HW, Cout_pad) f32
    """
    acc = jnp.dot(p_ref[0], w_ref[...], preferred_element_type=jnp.float32)
    o_ref[0] = jnp.maximum(acc + b_ref[...], 0.0).astype(o_ref.dtype)


def _aspp_kernel(xc_ref, pd_ref, w1_ref, wd_ref, w5_ref, wb_ref, br_ref, bb_ref,
                 o_ref):
    """Fused ASPP: 1x1 + three dilated 3x3 + GAP branch + 1280->256 bottleneck.

    xc_ref: (1, HW, Cin) bf16            (flattened high-level features)
    pd_ref: (1, 3, HW, 9*Cin) bf16       (im2col per dilation, taps folded)
    w1_ref: (Cin, 256)  wd_ref: (3, 9*Cin, 256)  w5_ref: (Cin, 256)
    wb_ref: (5, 256, 256)                (bottleneck split per concat branch)
    br_ref: (5, 256) f32 branch biases ; bb_ref: (1, 256) f32 bottleneck bias
    o_ref : (1, HW, 256) bf16
    """
    xc = xc_ref[0]                                           # (HW, Cin)
    n_dil = wd_ref.shape[0]

    # 1x1 branch
    f = jnp.dot(xc, w1_ref[...], preferred_element_type=jnp.float32)
    feats = [jnp.maximum(f + br_ref[0:1, :], 0.0)]
    # dilated 3x3 branches (taps folded into a single K = 9*Cin contraction)
    for i in range(n_dil):
        f = jnp.dot(pd_ref[0, i], wd_ref[i], preferred_element_type=jnp.float32)
        feats.append(jnp.maximum(f + br_ref[i + 1:i + 2, :], 0.0))
    # global-average-pool branch: 1x1 conv on the pooled vector
    gap = jnp.mean(xc.astype(jnp.float32), axis=0, keepdims=True)      # (1, Cin)
    f5 = jnp.dot(gap.astype(jnp.bfloat16), w5_ref[...],
                 preferred_element_type=jnp.float32)
    f5 = jnp.maximum(f5 + br_ref[n_dil + 1:n_dil + 2, :], 0.0)         # (1, 256)

    # bottleneck 1x1 over the 5-way concat == sum of per-branch matmuls
    acc = jnp.dot(feats[0].astype(jnp.bfloat16), wb_ref[0],
                  preferred_element_type=jnp.float32)
    for i in range(1, n_dil + 1):
        acc = acc + jnp.dot(feats[i].astype(jnp.bfloat16), wb_ref[i],
                            preferred_element_type=jnp.float32)
    # GAP branch is spatially constant -> its contribution broadcasts over HW
    acc = acc + jnp.dot(f5.astype(jnp.bfloat16), wb_ref[n_dil + 1],
                        preferred_element_type=jnp.float32)
    o_ref[0] = jnp.maximum(acc + bb_ref[...], 0.0).astype(o_ref.dtype)


def _make_decoder_kernel(Hb, Wb):
    """Fused decoder: bilinear 2x upsample + conv1(1x1) + conv2(3x3) + conv3(3x3)."""
    HWb = Hb * Wb
    taps9 = [(ky, kx) for ky in range(3) for kx in range(3)]

    def kernel(b_ref, xa_ref, m_ref, w1_ref, b1_ref, w2x_ref, w2b_ref, b2_ref,
               w3_ref, b3_ref, o_ref, xup_pad, bf_pad, y_pad):
        C2 = xup_pad.shape[-1]          # 256: lane-aligned chunk of the concat
        C1 = bf_pad.shape[-1]           # 48 : low-level chunk of the concat
        Cp = o_ref.shape[-1]            # final Cout padded to a 128-lane slab

        # (1) bilinear 2x upsample of the ASPP output (align_corners=False),
        #     expressed exactly as an interpolation-matrix matmul.
        xup = jnp.dot(m_ref[...], xa_ref[0], preferred_element_type=jnp.float32)
        xup_pad[...] = jnp.zeros_like(xup_pad)
        xup_pad[1:1 + Hb, 1:1 + Wb, :] = xup.reshape(Hb, Wb, C2)

        # (2) decoder conv1: 1x1 (bic_n -> 48) + BN + ReLU on low-level features.
        bfeat = jnp.dot(b_ref[0], w1_ref[...], preferred_element_type=jnp.float32)
        bfeat = jnp.maximum(bfeat + b1_ref[...], 0.0)
        bf_pad[...] = jnp.zeros_like(bf_pad)
        bf_pad[1:1 + Hb, 1:1 + Wb, :] = bfeat.reshape(Hb, Wb, C1)

        # (3) conv2: 3x3 over cat([x_up(256), bfeat(48)]) WITHOUT materializing
        #     the 304-channel concat -- both chunks accumulate into one f32 acc.
        #     (The 48-ch taps are ~2% of conv2 FLOPs, so per-tap K=48 is fine.)
        acc = jnp.zeros((HWb, C2), jnp.float32)
        for t, (ky, kx) in enumerate(taps9):
            tap = xup_pad[ky:ky + Hb, kx:kx + Wb, :].reshape(HWb, C2)
            acc = acc + jnp.dot(tap.astype(jnp.bfloat16), w2x_ref[t],
                                preferred_element_type=jnp.float32)
            tapb = bf_pad[ky:ky + Hb, kx:kx + Wb, :].reshape(HWb, C1)
            acc = acc + jnp.dot(tapb.astype(jnp.bfloat16), w2b_ref[t],
                                preferred_element_type=jnp.float32)
        y = jnp.maximum(acc + b2_ref[...], 0.0)

        # (4) conv3: 3x3 (256 -> oc_n padded to 128 lanes) + BN + ReLU.
        y_pad[...] = jnp.zeros_like(y_pad)
        y_pad[1:1 + Hb, 1:1 + Wb, :] = y.reshape(Hb, Wb, C2)
        acc3 = jnp.zeros((HWb, Cp), jnp.float32)
        for t, (ky, kx) in enumerate(taps9):
            tap = y_pad[ky:ky + Hb, kx:kx + Wb, :].reshape(HWb, C2)
            acc3 = acc3 + jnp.dot(tap.astype(jnp.bfloat16), w3_ref[t],
                                  preferred_element_type=jnp.float32)
        o_ref[0] = jnp.maximum(acc3 + b3_ref[...], 0.0).astype(o_ref.dtype)

    return kernel


# ----------------------------------------------------------------------------
# Wrappers calling pallas_call
# ----------------------------------------------------------------------------
def conv_bn_relu(x, wmat, bias, *, KH, KW, dilation=1, padding=0, out_stride=1):
    """x: (N,H,W,Cin) f32. wmat: (KH*KW*Cin, Cout_pad) bf16 (BN scale folded).
    bias: (1, Cout_pad) f32. Stride-1 conv, optional output stride (== conv
    followed by [::s, ::s] downsample). Returns (N, Ho, Wo, Cout_pad) f32."""
    N, H, W, Cin = x.shape
    K, Cout_pad = wmat.shape
    xp = jnp.pad(x, ((0, 0), (padding, padding), (padding, padding), (0, 0)))
    Hc = H + 2 * padding - dilation * (KH - 1)
    Wc = W + 2 * padding - dilation * (KW - 1)
    Ho = -(-Hc // out_stride)
    Wo = -(-Wc // out_stride)
    HW = Ho * Wo

    # im2col taps concatenated along channels -> one K = KH*KW*Cin contraction.
    taps = []
    for ky in range(KH):
        for kx in range(KW):
            sl = xp[:, ky * dilation: ky * dilation + Hc: out_stride,
                       kx * dilation: kx * dilation + Wc: out_stride, :]
            taps.append(sl.reshape(N, HW, Cin))
    patches = jnp.concatenate(taps, axis=-1).astype(jnp.bfloat16)   # (N, HW, K)

    out = pl.pallas_call(
        _conv_kernel,
        out_shape=jax.ShapeDtypeStruct((N, HW, Cout_pad), jnp.float32),
        grid_spec=pltpu.PrefetchScalarGridSpec(
            num_scalar_prefetch=0,
            grid=(N,),
            in_specs=[
                pl.BlockSpec((1, HW, K), lambda n: (n, 0, 0)),
                pl.BlockSpec((K, Cout_pad), lambda n: (0, 0)),
                pl.BlockSpec((1, Cout_pad), lambda n: (0, 0)),
            ],
            out_specs=pl.BlockSpec((1, HW, Cout_pad), lambda n: (n, 0, 0)),
        ),
        compiler_params=pltpu.CompilerParams(dimension_semantics=("parallel",)),
    )(patches, wmat, bias)
    return out.reshape(N, Ho, Wo, Cout_pad)


def aspp_forward(xh, prm):
    """xh: (N,H,W,aspp_ic_n) f32 high-level features -> (N, H*W, 256) bf16."""
    N, H, W, Cin = xh.shape
    HW = H * W
    pad = max(DILATIONS)
    xp = jnp.pad(xh, ((0, 0), (pad, pad), (pad, pad), (0, 0)))
    # im2col for the dilated branches is done in JAX glue (tiny at 4x4x16).
    # TODO(synk): at real resolutions build these taps in-kernel from a padded
    # VMEM tile instead of duplicating the activation 9x in HBM.
    per_d = []
    for d in DILATIONS:
        taps = []
        for ky in range(3):
            for kx in range(3):
                sy = pad + (ky - 1) * d
                sx = pad + (kx - 1) * d
                taps.append(xp[:, sy:sy + H, sx:sx + W, :].reshape(N, HW, Cin))
        per_d.append(jnp.concatenate(taps, axis=-1))          # (N, HW, 9*Cin)
    pd = jnp.stack(per_d, axis=1).astype(jnp.bfloat16)        # (N, 3, HW, 9*Cin)
    xc = xh.reshape(N, HW, Cin).astype(jnp.bfloat16)

    out = pl.pallas_call(
        _aspp_kernel,
        out_shape=jax.ShapeDtypeStruct((N, HW, ASPP_C), jnp.bfloat16),
        grid_spec=pltpu.PrefetchScalarGridSpec(
            num_scalar_prefetch=0,
            grid=(N,),
            in_specs=[
                pl.BlockSpec((1, HW, Cin), lambda n: (n, 0, 0)),
                pl.BlockSpec((1, len(DILATIONS), HW, 9 * Cin),
                             lambda n: (n, 0, 0, 0)),
                pl.BlockSpec(prm["w1"].shape, lambda n: (0, 0)),
                pl.BlockSpec(prm["wd"].shape, lambda n: (0, 0, 0)),
                pl.BlockSpec(prm["w5"].shape, lambda n: (0, 0)),
                pl.BlockSpec(prm["wb"].shape, lambda n: (0, 0, 0)),
                pl.BlockSpec(prm["br"].shape, lambda n: (0, 0)),
                pl.BlockSpec(prm["bb"].shape, lambda n: (0, 0)),
            ],
            out_specs=pl.BlockSpec((1, HW, ASPP_C), lambda n: (n, 0, 0)),
        ),
        compiler_params=pltpu.CompilerParams(dimension_semantics=("parallel",)),
    )(xc, pd, prm["w1"], prm["wd"], prm["w5"], prm["wb"], prm["br"], prm["bb"])
    return out


def _bilinear_matrix(src, dst):
    """1-D bilinear interpolation matrix, half-pixel centers (align_corners=False)."""
    m = np.zeros((dst, src), np.float32)
    for o in range(dst):
        s = (o + 0.5) * src / dst - 0.5
        i0 = int(np.floor(s))
        w = s - i0
        i0c = min(max(i0, 0), src - 1)
        i1c = min(max(i0 + 1, 0), src - 1)
        m[o, i0c] += 1.0 - w
        m[o, i1c] += w
    return m


def _bilinear_matrix_2d(hs, ws, hd, wd):
    my = _bilinear_matrix(hs, hd)
    mx = _bilinear_matrix(ws, wd)
    return np.einsum("ai,bj->abij", my, mx).reshape(hd * wd, hs * ws)


def decoder_forward(b, x_aspp, aspp_hw, prm):
    """b: (N,Hb,Wb,bic_n) f32 low-level features; x_aspp: (N, ha*wa, 256) bf16."""
    N, Hb, Wb, Cb = b.shape
    ha, wa = aspp_hw
    HWb = Hb * Wb
    cout_pad = prm["b3"].shape[-1]
    b2d = b.reshape(N, HWb, Cb).astype(jnp.bfloat16)
    xa = x_aspp.astype(jnp.bfloat16)
    m = jnp.asarray(_bilinear_matrix_2d(ha, wa, Hb, Wb), jnp.bfloat16)   # (64,16)

    out = pl.pallas_call(
        _make_decoder_kernel(Hb, Wb),
        out_shape=jax.ShapeDtypeStruct((N, HWb, cout_pad), jnp.float32),
        grid_spec=pltpu.PrefetchScalarGridSpec(
            num_scalar_prefetch=0,
            grid=(N,),
            in_specs=[
                pl.BlockSpec((1, HWb, Cb), lambda n: (n, 0, 0)),
                pl.BlockSpec((1, ha * wa, ASPP_C), lambda n: (n, 0, 0)),
                pl.BlockSpec(m.shape, lambda n: (0, 0)),
                pl.BlockSpec(prm["w1"].shape, lambda n: (0, 0)),
                pl.BlockSpec(prm["b1"].shape, lambda n: (0, 0)),
                pl.BlockSpec(prm["w2x"].shape, lambda n: (0, 0, 0)),
                pl.BlockSpec(prm["w2b"].shape, lambda n: (0, 0, 0)),
                pl.BlockSpec(prm["b2"].shape, lambda n: (0, 0)),
                pl.BlockSpec(prm["w3"].shape, lambda n: (0, 0, 0)),
                pl.BlockSpec(prm["b3"].shape, lambda n: (0, 0)),
            ],
            out_specs=pl.BlockSpec((1, HWb, cout_pad), lambda n: (n, 0, 0)),
            scratch_shapes=[
                pltpu.VMEM((Hb + 2, Wb + 2, ASPP_C), jnp.float32),  # padded x_up
                pltpu.VMEM((Hb + 2, Wb + 2, 48), jnp.float32),      # padded bfeat
                pltpu.VMEM((Hb + 2, Wb + 2, ASPP_C), jnp.float32),  # padded conv2 out
            ],
        ),
        compiler_params=pltpu.CompilerParams(dimension_semantics=("parallel",)),
    )(b2d, xa, m, prm["w1"], prm["b1"], prm["w2x"], prm["w2b"],
      prm["b2"], prm["w3"], prm["b3"])
    return out[..., :OC_N].reshape(N, Hb, Wb, OC_N)


# ----------------------------------------------------------------------------
# Deterministic synthetic parameters (conv weight + folded eval-mode BN)
# ----------------------------------------------------------------------------
def _make_cbr_weights(key, KH, KW, Cin, Cout):
    kw, kb = jax.random.split(key)
    fan_in = KH * KW * Cin
    w = jax.random.normal(kw, (KH, KW, Cin, Cout), jnp.float32) / np.sqrt(fan_in)
    conv_b = 0.01 * jax.random.normal(kb, (Cout,), jnp.float32)
    # eval-mode BatchNorm folded: y = scale*(conv(x)+conv_b-rmean)+beta
    eps = 1e-5
    gamma = jnp.ones((Cout,), jnp.float32)
    beta = jnp.zeros((Cout,), jnp.float32)
    rmean = jnp.zeros((Cout,), jnp.float32)
    rvar = jnp.ones((Cout,), jnp.float32)
    scale = gamma / jnp.sqrt(rvar + eps)
    w_folded = w * scale                       # scale absorbed into weights
    bias = beta + scale * (conv_b - rmean)     # bias term unchanged by the fold
    return w_folded, bias


def _prep_mat(w_f, bias, cout_pad):
    """Reshape to (K, Cout) matmul layout, zero-pad Cout to a dense lane slab."""
    KH, KW, Cin, Cout = w_f.shape
    wm = w_f.reshape(KH * KW * Cin, Cout)
    wm = jnp.pad(wm, ((0, 0), (0, cout_pad - Cout))).astype(jnp.bfloat16)
    bm = jnp.pad(bias, (0, cout_pad - Cout)).reshape(1, cout_pad).astype(jnp.float32)
    return wm, bm


def init_params(key):
    ks = jax.random.split(key, 11)
    p = {}
    # synthetic backbone: two conv-bn-relu stages (each followed by 2x downsample)
    w, b = _make_cbr_weights(ks[0], 3, 3, IC_N, BB1_C)
    p["bb1_w"], p["bb1_b"] = _prep_mat(w, b, LANE)
    w, b = _make_cbr_weights(ks[1], 3, 3, BB1_C, BB2_C)
    p["bb2_w"], p["bb2_b"] = _prep_mat(w, b, LANE)

    # ASPP (c_n = oc_n = 256 as in the module)
    w1, b1 = _make_cbr_weights(ks[2], 1, 1, BB2_C, ASPP_C)
    w2, b2 = _make_cbr_weights(ks[3], 3, 3, BB2_C, ASPP_C)
    w3, b3 = _make_cbr_weights(ks[4], 3, 3, BB2_C, ASPP_C)
    w4, b4 = _make_cbr_weights(ks[5], 3, 3, BB2_C, ASPP_C)
    w5, b5 = _make_cbr_weights(ks[6], 1, 1, BB2_C, ASPP_C)          # GAP branch
    wbn, bbn = _make_cbr_weights(ks[7], 1, 1, 5 * ASPP_C, ASPP_C)   # bottleneck
    p["aspp"] = dict(
        w1=w1.reshape(BB2_C, ASPP_C).astype(jnp.bfloat16),
        wd=jnp.stack([wi.reshape(9 * BB2_C, ASPP_C) for wi in (w2, w3, w4)]
                     ).astype(jnp.bfloat16),
        w5=w5.reshape(BB2_C, ASPP_C).astype(jnp.bfloat16),
        wb=wbn.reshape(5, ASPP_C, ASPP_C).astype(jnp.bfloat16),
        br=jnp.stack([b1, b2, b3, b4, b5]).astype(jnp.float32),
        bb=bbn.reshape(1, ASPP_C).astype(jnp.float32),
    )

    # Decoder
    dw1, db1 = _make_cbr_weights(ks[8], 1, 1, BB1_C, 48)
    dw2, db2 = _make_cbr_weights(ks[9], 3, 3, ASPP_C + 48, 256)
    dw3, db3 = _make_cbr_weights(ks[10], 3, 3, 256, OC_N)
    w3p = jnp.pad(dw3, ((0, 0), (0, 0), (0, 0), (0, LANE - OC_N)))
    p["dec"] = dict(
        w1=dw1.reshape(BB1_C, 48).astype(jnp.bfloat16),
        b1=db1.reshape(1, 48).astype(jnp.float32),
        # conv2 input is cat([x_up(256), bfeat(48)], ch); split so the 256-wide
        # chunk stays lane-aligned and the concat never materializes.
        w2x=dw2[:, :, :ASPP_C, :].reshape(9, ASPP_C, 256).astype(jnp.bfloat16),
        w2b=dw2[:, :, ASPP_C:, :].reshape(9, 48, 256).astype(jnp.bfloat16),
        b2=db2.reshape(1, 256).astype(jnp.float32),
        w3=w3p.reshape(9, 256, LANE).astype(jnp.bfloat16),
        b3=jnp.pad(db3, (0, LANE - OC_N)).reshape(1, LANE).astype(jnp.float32),
    )
    return p


# ----------------------------------------------------------------------------
# Forward pass (DeepLabv3p_Base.forward)
# ----------------------------------------------------------------------------
def deeplabv3p_forward(params, x_nchw):
    x = jnp.transpose(x_nchw, (0, 2, 3, 1)).astype(jnp.float32)   # NCHW -> NHWC

    # --- synthetic backbone: xs = [b (low-level), xh (high-level)] ---
    b = conv_bn_relu(x, params["bb1_w"], params["bb1_b"],
                     KH=3, KW=3, padding=1, out_stride=2)[..., :BB1_C]   # (N,8,8,8)
    xh = conv_bn_relu(b, params["bb2_w"], params["bb2_b"],
                      KH=3, KW=3, padding=1, out_stride=2)[..., :BB2_C]  # (N,4,4,16)

    # --- ASPP (one fused kernel); dropout(0.5) is identity in eval mode ---
    xa = aspp_forward(xh, params["aspp"])                                # (N,16,256)

    # --- Decoder (one fused kernel: upsample + conv1/2/3); dropouts identity ---
    y = decoder_forward(b, xa, (xh.shape[1], xh.shape[2]), params["dec"])  # (N,8,8,16)

    return jnp.transpose(y, (0, 3, 1, 2))                                # NHWC -> NCHW


if __name__ == "__main__":
    key = jax.random.PRNGKey(0)
    kp, kx = jax.random.split(key)
    params = init_params(kp)
    x = jax.random.normal(kx, (2, IC_N, 16, 16), jnp.float32)   # NCHW like PyTorch

    fwd = jax.jit(deeplabv3p_forward)
    out = fwd(params, x)
    jax.block_until_ready(out)
    assert out.shape == (2, OC_N, 8, 8), out.shape
    assert bool(jnp.all(jnp.isfinite(out)))
    print("KERNEL_OK")
</pallas_src>

<mosaic_0001>
module attributes {stable_mosaic.version = 11 : i64} {
  func.func @_conv_kernel(%arg0: i32, %arg1: memref<1x64x36xbf16, #tpu.memory_space<vmem>>, %arg2: memref<36x128xbf16, #tpu.memory_space<vmem>>, %arg3: memref<1x128xf32, #tpu.memory_space<vmem>>, %arg4: memref<1x64x128xf32, #tpu.memory_space<vmem>>) attributes {dimension_semantics = [#tpu.dimension_semantics<parallel>], iteration_bounds = array<i64: 2>, scalar_prefetch = 0 : i64, scratch_operands = 0 : i64, tpu.core_type = #tpu.core_type<tc>, window_params = [{transform_indices = @transform_0, window_bounds = array<i64: 1, 64, 36>}, {pipeline_mode = #tpu.pipeline_mode<synchronous>, transform_indices = @transform_1, window_bounds = array<i64: 36, 128>}, {pipeline_mode = #tpu.pipeline_mode<synchronous>, transform_indices = @transform_2, window_bounds = array<i64: 1, 128>}, {transform_indices = @transform_3, window_bounds = array<i64: 1, 64, 128>}]} {
    %c0 = arith.constant 0 : index
    %c0_0 = arith.constant 0 : index
    %c0_1 = arith.constant 0 : index
    %0 = vector.load %arg1[%c0, %c0_0, %c0_1] : memref<1x64x36xbf16, #tpu.memory_space<vmem>>, vector<1x64x36xbf16>
    %1 = vector.shape_cast %0 : vector<1x64x36xbf16> to vector<64x36xbf16>
    %c0_2 = arith.constant 0 : index
    %c0_3 = arith.constant 0 : index
    %2 = vector.load %arg2[%c0_2, %c0_3] : memref<36x128xbf16, #tpu.memory_space<vmem>>, vector<36x128xbf16>
    %cst = arith.constant dense<0.000000e+00> : vector<64x128xf32>
    %3 = tpu.matmul %1, %2, %cst {dimension_numbers = #tpu.dot_dimension_numbers<[1], [0], [0], [1], [0, 0, 1, 1], [], []>} : vector<64x36xbf16>, vector<36x128xbf16>, vector<64x128xf32> -> vector<64x128xf32>
    %c0_4 = arith.constant 0 : index
    %c0_5 = arith.constant 0 : index
    %4 = vector.load %arg3[%c0_4, %c0_5] : memref<1x128xf32, #tpu.memory_space<vmem>>, vector<1x128xf32>
    %5 = vector.broadcast %4 : vector<1x128xf32> to vector<64x128xf32>
    %6 = arith.addf %3, %5 : vector<64x128xf32>
    %cst_6 = arith.constant 0.000000e+00 : f32
    %7 = vector.broadcast %cst_6 : f32 to vector<64x128xf32>
    %8 = arith.maximumf %6, %7 : vector<64x128xf32>
    %c0_7 = arith.constant 0 : index
    %c0_8 = arith.constant 0 : index
    %c0_9 = arith.constant 0 : index
    %9 = vector.load %arg4[%c0_7, %c0_8, %c0_9] : memref<1x64x128xf32, #tpu.memory_space<vmem>>, vector<1x64x128xf32>
    %10 = vector.shape_cast %9 : vector<1x64x128xf32> to vector<64x128xf32>
    %11 = vector.shape_cast %8 : vector<64x128xf32> to vector<1x64x128xf32>
    tpu.vector_store %arg4[%c0_7, %c0_8, %c0_9], %11 {strides = array<i32>} : memref<1x64x128xf32, #tpu.memory_space<vmem>>, vector<1x64x128xf32>,
    return
  }
  func.func @transform_0(%arg0: i32) -> (i32, i32, i32) {
    %c0_i32 = arith.constant 0 : i32
    %c0_i32_0 = arith.constant 0 : i32
    %c0_i32_1 = arith.constant 0 : i32
    return %arg0, %c0_i32, %c0_i32_0 : i32, i32, i32
  }
  func.func @transform_1(%arg0: i32) -> (i32, i32) {
    %c0_i32 = arith.constant 0 : i32
    %c0_i32_0 = arith.constant 0 : i32
    %c0_i32_1 = arith.constant 0 : i32
    return %c0_i32, %c0_i32_0 : i32, i32
  }
  func.func @transform_2(%arg0: i32) -> (i32, i32) {
    %c0_i32 = arith.constant 0 : i32
    %c0_i32_0 = arith.constant 0 : i32
    %c0_i32_1 = arith.constant 0 : i32
    return %c0_i32, %c0_i32_0 : i32, i32
  }
  func.func @transform_3(%arg0: i32) -> (i32, i32, i32) {
    %c0_i32 = arith.constant 0 : i32
    %c0_i32_0 = arith.constant 0 : i32
    %c0_i32_1 = arith.constant 0 : i32
    return %arg0, %c0_i32, %c0_i32_0 : i32, i32, i32
  }
}

module attributes {stable_mosaic.version = 11 : i64} {
  func.func @_conv_kernel(%arg0: i32, %arg1: memref<1x16x72xbf16, #tpu.memory_space<vmem>>, %arg2: memref<72x128xbf16, #tpu.memory_space<vmem>>, %arg3: memref<1x128xf32, #tpu.memory_space<vmem>>, %arg4: memref<1x16x128xf32, #tpu.memory_space<vmem>>) attributes {dimension_semantics = [#tpu.dimension_semantics<parallel>], iteration_bounds = array<i64: 2>, scalar_prefetch = 0 : i64, scratch_operands = 0 : i64, tpu.core_type = #tpu.core_type<tc>, window_params = [{transform_indices = @transform_0, window_bounds = array<i64: 1, 16, 72>}, {pipeline_mode = #tpu.pipeline_mode<synchronous>, transform_indices = @transform_1, window_bounds = array<i64: 72, 128>}, {pipeline_mode = #tpu.pipeline_mode<synchronous>, transform_indices = @transform_2, window_bounds = array<i64: 1, 128>}, {transform_indices = @transform_3, window_bounds = array<i64: 1, 16, 128>}]} {
    %c0 = arith.constant 0 : index
    %c0_0 = arith.constant 0 : index
    %c0_1 = arith.constant 0 : index
    %0 = vector.load %arg1[%c0, %c0_0, %c0_1] : memref<1x16x72xbf16, #tpu.memory_space<vmem>>, vector<1x16x72xbf16>
    %1 = vector.shape_cast %0 : vector<1x16x72xbf16> to vector<16x72xbf16>
    %c0_2 = arith.constant 0 : index
    %c0_3 = arith.constant 0 : index
    %2 = vector.load %arg2[%c0_2, %c0_3] : memref<72x128xbf16, #tpu.memory_space<vmem>>, vector<72x128xbf16>
    %cst = arith.constant dense<0.000000e+00> : vector<16x128xf32>
    %3 = tpu.matmul %1, %2, %cst {dimension_numbers = #tpu.dot_dimension_numbers<[1], [0], [0], [1], [0, 0, 1, 1], [], []>} : vector<16x72xbf16>, vector<72x128xbf16>, vector<16x128xf32> -> vector<16x128xf32>
    %c0_4 = arith.constant 0 : index
    %c0_5 = arith.constant 0 : index
    %4 = vector.load %arg3[%c0_4, %c0_5] : memref<1x128xf32, #tpu.memory_space<vmem>>, vector<1x128xf32>
    %5 = vector.broadcast %4 : vector<1x128xf32> to vector<16x128xf32>
    %6 = arith.addf %3, %5 : vector<16x128xf32>
    %cst_6 = arith.constant 0.000000e+00 : f32
    %7 = vector.broadcast %cst_6 : f32 to vector<16x128xf32>
    %8 = arith.maximumf %6, %7 : vector<16x128xf32>
    %c0_7 = arith.constant 0 : index
    %c0_8 = arith.constant 0 : index
    %c0_9 = arith.constant 0 : index
    %9 = vector.load %arg4[%c0_7, %c0_8, %c0_9] : memref<1x16x128xf32, #tpu.memory_space<vmem>>, vector<1x16x128xf32>
    %10 = vector.shape_cast %9 : vector<1x16x128xf32> to vector<16x128xf32>
    %11 = vector.shape_cast %8 : vector<16x128xf32> to vector<1x16x128xf32>
    tpu.vector_store %arg4[%c0_7, %c0_8, %c0_9], %11 {strides = array<i32>} : memref<1x16x128xf32, #tpu.memory_space<vmem>>, vector<1x16x128xf32>,
    return
  }
  func.func @transform_0(%arg0: i32) -> (i32, i32, i32) {
    %c0_i32 = arith.constant 0 : i32
    %c0_i32_0 = arith.constant 0 : i32
    %c0_i32_1 = arith.constant 0 : i32
    return %arg0, %c0_i32, %c0_i32_0 : i32, i32, i32
  }
  func.func @transform_1(%arg0: i32) -> (i32, i32) {
    %c0_i32 = arith.constant 0 : i32
    %c0_i32_0 = arith.constant 0 : i32
    %c0_i32_1 = arith.constant 0 : i32
    return %c0_i32, %c0_i32_0 : i32, i32
  }
  func.func @transform_2(%arg0: i32) -> (i32, i32) {
    %c0_i32 = arith.constant 0 : i32
    %c0_i32_0 = arith.constant 0 : i32
    %c0_i32_1 = arith.constant 0 : i32
    return %c0_i32, %c0_i32_0 : i32, i32
  }
  func.func @transform_3(%arg0: i32) -> (i32, i32, i32) {
    %c0_i32 = arith.constant 0 : i32
    %c0_i32_0 = arith.constant 0 : i32
    %c0_i32_1 = arith.constant 0 : i32
    return %arg0, %c0_i32, %c0_i32_0 : i32, i32, i32
  }
}

module attributes {stable_mosaic.version = 11 : i64} {
  func.func @_aspp_kernel(%arg0: i32, %arg1: memref<1x16x16xbf16, #tpu.memory_space<vmem>>, %arg2: memref<1x3x16x144xbf16, #tpu.memory_space<vmem>>, %arg3: memref<16x256xbf16, #tpu.memory_space<vmem>>, %arg4: memref<3x144x256xbf16, #tpu.memory_space<vmem>>, %arg5: memref<16x256xbf16, #tpu.memory_space<vmem>>, %arg6: memref<5x256x256xbf16, #tpu.memory_space<vmem>>, %arg7: memref<5x256xf32, #tpu.memory_space<vmem>>, %arg8: memref<1x256xf32, #tpu.memory_space<vmem>>, %arg9: memref<1x16x256xbf16, #tpu.memory_space<vmem>>) attributes {dimension_semantics = [#tpu.dimension_semantics<parallel>], iteration_bounds = array<i64: 2>, scalar_prefetch = 0 : i64, scratch_operands = 0 : i64, tpu.core_type = #tpu.core_type<tc>, window_params = [{transform_indices = @transform_0, window_bounds = array<i64: 1, 16, 16>}, {transform_indices = @transform_1, window_bounds = array<i64: 1, 3, 16, 144>}, {pipeline_mode = #tpu.pipeline_mode<synchronous>, transform_indices = @transform_2, window_bounds = array<i64: 16, 256>}, {pipeline_mode = #tpu.pipeline_mode<synchronous>, transform_indices = @transform_3, window_bounds = array<i64: 3, 144, 256>}, {pipeline_mode = #tpu.pipeline_mode<synchronous>, transform_indices = @transform_4, window_bounds = array<i64: 16, 256>}, {pipeline_mode = #tpu.pipeline_mode<synchronous>, transform_indices = @transform_5, window_bounds = array<i64: 5, 256, 256>}, {pipeline_mode = #tpu.pipeline_mode<synchronous>, transform_indices = @transform_6, window_bounds = array<i64: 5, 256>}, {pipeline_mode = #tpu.pipeline_mode<synchronous>, transform_indices = @transform_7, window_bounds = array<i64: 1, 256>}, {transform_indices = @transform_8, window_bounds = array<i64: 1, 16, 256>}]} {
    %c0 = arith.constant 0 : index
    %c0_0 = arith.constant 0 : index
    %c0_1 = arith.constant 0 : index
    %0 = vector.load %arg1[%c0, %c0_0, %c0_1] : memref<1x16x16xbf16, #tpu.memory_space<vmem>>, vector<1x16x16xbf16>
    %1 = vector.shape_cast %0 : vector<1x16x16xbf16> to vector<16x16xbf16>
    %c0_2 = arith.constant 0 : index
    %c0_3 = arith.constant 0 : index
    %2 = vector.load %arg3[%c0_2, %c0_3] : memref<16x256xbf16, #tpu.memory_space<vmem>>, vector<16x256xbf16>
    %cst = arith.constant dense<0.000000e+00> : vector<16x256xf32>
    %3 = tpu.matmul %1, %2, %cst {dimension_numbers = #tpu.dot_dimension_numbers<[1], [0], [0], [1], [0, 0, 1, 1], [], []>} : vector<16x16xbf16>, vector<16x256xbf16>, vector<16x256xf32> -> vector<16x256xf32>
    %c0_4 = arith.constant 0 : index
    %c0_5 = arith.constant 0 : index
    %4 = vector.load %arg7[%c0_4, %c0_5] : memref<5x256xf32, #tpu.memory_space<vmem>>, vector<1x256xf32>
    %5 = vector.broadcast %4 : vector<1x256xf32> to vector<16x256xf32>
    %6 = arith.addf %3, %5 : vector<16x256xf32>
    %cst_6 = arith.constant 0.000000e+00 : f32
    %7 = vector.broadcast %cst_6 : f32 to vector<16x256xf32>
    %8 = arith.maximumf %6, %7 : vector<16x256xf32>
    %c0_7 = arith.constant 0 : index
    %c0_8 = arith.constant 0 : index
    %c0_9 = arith.constant 0 : index
    %c0_10 = arith.constant 0 : index
    %9 = vector.load %arg2[%c0_7, %c0_8, %c0_9, %c0_10] : memref<1x3x16x144xbf16, #tpu.memory_space<vmem>>, vector<1x1x16x144xbf16>
    %10 = vector.shape_cast %9 : vector<1x1x16x144xbf16> to vector<16x144xbf16>
    %c0_11 = arith.constant 0 : index
    %c0_12 = arith.constant 0 : index
    %c0_13 = arith.constant 0 : index
    %11 = vector.load %arg4[%c0_11, %c0_12, %c0_13] : memref<3x144x256xbf16, #tpu.memory_space<vmem>>, vector<1x144x256xbf16>
    %12 = vector.shape_cast %11 : vector<1x144x256xbf16> to vector<144x256xbf16>
    %cst_14 = arith.constant dense<0.000000e+00> : vector<16x256xf32>
    %13 = tpu.matmul %10, %12, %cst_14 {dimension_numbers = #tpu.dot_dimension_numbers<[1], [0], [0], [1], [0, 0, 1, 1], [], []>} : vector<16x144xbf16>, vector<144x256xbf16>, vector<16x256xf32> -> vector<16x256xf32>
    %c1 = arith.constant 1 : index
    %c0_15 = arith.constant 0 : index
    %14 = vector.load %arg7[%c1, %c0_15] : memref<5x256xf32, #tpu.memory_space<vmem>>, vector<1x256xf32>
    %15 = vector.broadcast %14 : vector<1x256xf32> to vector<16x256xf32>
    %16 = arith.addf %13, %15 : vector<16x256xf32>
    %cst_16 = arith.constant 0.000000e+00 : f32
    %17 = vector.broadcast %cst_16 : f32 to vector<16x256xf32>
    %18 = arith.maximumf %16, %17 : vector<16x256xf32>
    %c0_17 = arith.constant 0 : index
    %c1_18 = arith.constant 1 : index
    %c0_19 = arith.constant 0 : index
    %c0_20 = arith.constant 0 : index
    %19 = vector.load %arg2[%c0_17, %c1_18, %c0_19, %c0_20] : memref<1x3x16x144xbf16, #tpu.memory_space<vmem>>, vector<1x1x16x144xbf16>
    %20 = vector.shape_cast %19 : vector<1x1x16x144xbf16> to vector<16x144xbf16>
    %c1_21 = arith.constant 1 : index
    %c0_22 = arith.constant 0 : index
    %c0_23 = arith.constant 0 : index
    %21 = vector.load %arg4[%c1_21, %c0_22, %c0_23] : memref<3x144x256xbf16, #tpu.memory_space<vmem>>, vector<1x144x256xbf16>
    %22 = vector.shape_cast %21 : vector<1x144x256xbf16> to vector<144x256xbf16>
    %cst_24 = arith.constant dense<0.000000e+00> : vector<16x256xf32>
    %23 = tpu.matmul %20, %22, %cst_24 {dimension_numbers = #tpu.dot_dimension_numbers<[1], [0], [0], [1], [0, 0, 1, 1], [], []>} : vector<16x144xbf16>, vector<144x256xbf16>, vector<16x256xf32> -> vector<16x256xf32>
    %c2 = arith.constant 2 : index
    %c0_25 = arith.constant 0 : index
    %24 = vector.load %arg7[%c2, %c0_25] : memref<5x256xf32, #tpu.memory_space<vmem>>, vector<1x256xf32>
    %25 = vector.broadcast %24 : vector<1x256xf32> to vector<16x256xf32>
    %26 = arith.addf %23, %25 : vector<16x256xf32>
    %cst_26 = arith.constant 0.000000e+00 : f32
    %27 = vector.broadcast %cst_26 : f32 to vector<16x256xf32>
    %28 = arith.maximumf %26, %27 : vector<16x256xf32>
    %c0_27 = arith.constant 0 : index
    %c2_28 = arith.constant 2 : index
    %c0_29 = arith.constant 0 : index
    %c0_30 = arith.constant 0 : index
    %29 = vector.load %arg2[%c0_27, %c2_28, %c0_29, %c0_30] : memref<1x3x16x144xbf16, #tpu.memory_space<vmem>>, vector<1x1x16x144xbf16>
    %30 = vector.shape_cast %29 : vector<1x1x16x144xbf16> to vector<16x144xbf16>
    %c2_31 = arith.constant 2 : index
    %c0_32 = arith.constant 0 : index
    %c0_33 = arith.constant 0 : index
    %31 = vector.load %arg4[%c2_31, %c0_32, %c0_33] : memref<3x144x256xbf16, #tpu.memory_space<vmem>>, vector<1x144x256xbf16>
    %32 = vector.shape_cast %31 : vector<1x144x256xbf16> to vector<144x256xbf16>
    %cst_34 = arith.constant dense<0.000000e+00> : vector<16x256xf32>
    %33 = tpu.matmul %30, %32, %cst_34 {dimension_numbers = #tpu.dot_dimension_numbers<[1], [0], [0], [1], [0, 0, 1, 1], [], []>} : vector<16x144xbf16>, vector<144x256xbf16>, vector<16x256xf32> -> vector<16x256xf32>
    %c3 = arith.constant 3 : index
    %c0_35 = arith.constant 0 : index
    %34 = vector.load %arg7[%c3, %c0_35] : memref<5x256xf32, #tpu.memory_space<vmem>>, vector<1x256xf32>
    %35 = vector.broadcast %34 : vector<1x256xf32> to vector<16x256xf32>
    %36 = arith.addf %33, %35 : vector<16x256xf32>
    %cst_36 = arith.constant 0.000000e+00 : f32
    %37 = vector.broadcast %cst_36 : f32 to vector<16x256xf32>
    %38 = arith.maximumf %36, %37 : vector<16x256xf32>
    %39 = arith.extf %1 : vector<16x16xbf16> to vector<16x16xf32>
    %cst_37 = arith.constant dense<0.000000e+00> : vector<16xf32>
    %40 = vector.multi_reduction <add>, %39, %cst_37 [0] : vector<16x16xf32> to vector<16xf32>
    %41 = vector.shape_cast %40 : vector<16xf32> to vector<1x16xf32>
    %cst_38 = arith.constant 1.600000e+01 : f32
    %42 = vector.broadcast %cst_38 : f32 to vector<1x16xf32>
    %43 = arith.divf %41, %42 : vector<1x16xf32>
    %44 = arith.truncf %43 : vector<1x16xf32> to vector<1x16xbf16>
    %c0_39 = arith.constant 0 : index
    %c0_40 = arith.constant 0 : index
    %45 = vector.load %arg5[%c0_39, %c0_40] : memref<16x256xbf16, #tpu.memory_space<vmem>>, vector<16x256xbf16>
    %cst_41 = arith.constant dense<0.000000e+00> : vector<1x256xf32>
    %46 = tpu.matmul %44, %45, %cst_41 {dimension_numbers = #tpu.dot_dimension_numbers<[1], [0], [0], [1], [0, 0, 1, 1], [], []>} : vector<1x16xbf16>, vector<16x256xbf16>, vector<1x256xf32> -> vector<1x256xf32>
    %c4 = arith.constant 4 : index
    %c0_42 = arith.constant 0 : index
    %47 = vector.load %arg7[%c4, %c0_42] : memref<5x256xf32, #tpu.memory_space<vmem>>, vector<1x256xf32>
    %48 = arith.addf %46, %47 : vector<1x256xf32>
    %cst_43 = arith.constant 0.000000e+00 : f32
    %49 = vector.broadcast %cst_43 : f32 to vector<1x256xf32>
    %50 = arith.maximumf %48, %49 : vector<1x256xf32>
    %51 = arith.truncf %8 : vector<16x256xf32> to vector<16x256xbf16>
    %c0_44 = arith.constant 0 : index
    %c0_45 = arith.constant 0 : index
    %c0_46 = arith.constant 0 : index
    %52 = vector.load %arg6[%c0_44, %c0_45, %c0_46] : memref<5x256x256xbf16, #tpu.memory_space<vmem>>, vector<1x256x256xbf16>
    %53 = vector.shape_cast %52 : vector<1x256x256xbf16> to vector<256x256xbf16>
    %cst_47 = arith.constant dense<0.000000e+00> : vector<16x256xf32>
    %54 = tpu.matmul %51, %53, %cst_47 {dimension_numbers = #tpu.dot_dimension_numbers<[1], [0], [0], [1], [0, 0, 1, 1], [], []>} : vector<16x256xbf16>, vector<256x256xbf16>, vector<16x256xf32> -> vector<16x256xf32>
    %55 = arith.truncf %18 : vector<16x256xf32> to vector<16x256xbf16>
    %c1_48 = arith.constant 1 : index
    %c0_49 = arith.constant 0 : index
    %c0_50 = arith.constant 0 : index
    %56 = vector.load %arg6[%c1_48, %c0_49, %c0_50] : memref<5x256x256xbf16, #tpu.memory_space<vmem>>, vector<1x256x256xbf16>
    %57 = vector.shape_cast %56 : vector<1x256x256xbf16> to vector<256x256xbf16>
    %cst_51 = arith.constant dense<0.000000e+00> : vector<16x256xf32>
    %58 = tpu.matmul %55, %57, %cst_51 {dimension_numbers = #tpu.dot_dimension_numbers<[1], [0], [0], [1], [0, 0, 1, 1], [], []>} : vector<16x256xbf16>, vector<256x256xbf16>, vector<16x256xf32> -> vector<16x256xf32>
    %59 = arith.addf %54, %58 : vector<16x256xf32>
    %60 = arith.truncf %28 : vector<16x256xf32> to vector<16x256xbf16>
    %c2_52 = arith.constant 2 : index
    %c0_53 = arith.constant 0 : index
    %c0_54 = arith.constant 0 : index
    %61 = vector.load %arg6[%c2_52, %c0_53, %c0_54] : memref<5x256x256xbf16, #tpu.memory_space<vmem>>, vector<1x256x256xbf16>
    %62 = vector.shape_cast %61 : vector<1x256x256xbf16> to vector<256x256xbf16>
    %cst_55 = arith.constant dense<0.000000e+00> : vector<16x256xf32>
    %63 = tpu.matmul %60, %62, %cst_55 {dimension_numbers = #tpu.dot_dimension_numbers<[1], [0], [0], [1], [0, 0, 1, 1], [], []>} : vector<16x256xbf16>, vector<256x256xbf16>, vector<16x256xf32> -> vector<16x256xf32>
    %64 = arith.addf %59, %63 : vector<16x256xf32>
    %65 = arith.truncf %38 : vector<16x256xf32> to vector<16x256xbf16>
    %c3_56 = arith.constant 3 : index
    %c0_57 = arith.constant 0 : index
    %c0_58 = arith.constant 0 : index
    %66 = vector.load %arg6[%c3_56, %c0_57, %c0_58] : memref<5x256x256xbf16, #tpu.memory_space<vmem>>, vector<1x256x256xbf16>
    %67 = vector.shape_cast %66 : vector<1x256x256xbf16> to vector<256x256xbf16>
    %cst_59 = arith.constant dense<0.000000e+00> : vector<16x256xf32>
    %68 = tpu.matmul %65, %67, %cst_59 {dimension_numbers = #tpu.dot_dimension_numbers<[1], [0], [0], [1], [0, 0, 1, 1], [], []>} : vector<16x256xbf16>, vector<256x256xbf16>, vector<16x256xf32> -> vector<16x256xf32>
    %69 = arith.addf %64, %68 : vector<16x256xf32>
    %70 = arith.truncf %50 : vector<1x256xf32> to vector<1x256xbf16>
    %c4_60 = arith.constant 4 : index
    %c0_61 = arith.constant 0 : index
    %c0_62 = arith.constant 0 : index
    %71 = vector.load %arg6[%c4_60, %c0_61, %c0_62] : memref<5x256x256xbf16, #tpu.memory_space<vmem>>, vector<1x256x256xbf16>
    %72 = vector.shape_cast %71 : vector<1x256x256xbf16> to vector<256x256xbf16>
    %cst_63 = arith.constant dense<0.000000e+00> : vector<1x256xf32>
    %73 = tpu.matmul %70, %72, %cst_63 {dimension_numbers = #tpu.dot_dimension_numbers<[1], [0], [0], [1], [0, 0, 1, 1], [], []>} : vector<1x256xbf16>, vector<256x256xbf16>, vector<1x256xf32> -> vector<1x256xf32>
    %74 = vector.broadcast %73 : vector<1x256xf32> to vector<16x256xf32>
    %75 = arith.addf %69, %74 : vector<16x256xf32>
    %c0_64 = arith.constant 0 : index
    %c0_65 = arith.constant 0 : index
    %76 = vector.load %arg8[%c0_64, %c0_65] : memref<1x256xf32, #tpu.memory_space<vmem>>, vector<1x256xf32>
    %77 = vector.broadcast %76 : vector<1x256xf32> to vector<16x256xf32>
    %78 = arith.addf %75, %77 : vector<16x256xf32>
    %cst_66 = arith.constant 0.000000e+00 : f32
    %79 = vector.broadcast %cst_66 : f32 to vector<16x256xf32>
    %80 = arith.maximumf %78, %79 : vector<16x256xf32>
    %81 = arith.truncf %80 : vector<16x256xf32> to vector<16x256xbf16>
    %c0_67 = arith.constant 0 : index
    %c0_68 = arith.constant 0 : index
    %c0_69 = arith.constant 0 : index
    %82 = vector.load %arg9[%c0_67, %c0_68, %c0_69] : memref<1x16x256xbf16, #tpu.memory_space<vmem>>, vector<1x16x256xbf16>
    %83 = vector.shape_cast %82 : vector<1x16x256xbf16> to vector<16x256xbf16>
    %84 = vector.shape_cast %81 : vector<16x256xbf16> to vector<1x16x256xbf16>
    tpu.vector_store %arg9[%c0_67, %c0_68, %c0_69], %84 {strides = array<i32>} : memref<1x16x256xbf16, #tpu.memory_space<vmem>>, vector<1x16x256xbf16>,
    return
  }
  func.func @transform_0(%arg0: i32) -> (i32, i32, i32) {
    %c0_i32 = arith.constant 0 : i32
    %c0_i32_0 = arith.constant 0 : i32
    %c0_i32_1 = arith.constant 0 : i32
    return %arg0, %c0_i32, %c0_i32_0 : i32, i32, i32
  }
  func.func @transform_1(%arg0: i32) -> (i32, i32, i32, i32) {
    %c0_i32 = arith.constant 0 : i32
    %c0_i32_0 = arith.constant 0 : i32
    %c0_i32_1 = arith.constant 0 : i32
    %c0_i32_2 = arith.constant 0 : i32
    return %arg0, %c0_i32, %c0_i32_0, %c0_i32_1 : i32, i32, i32, i32
  }
  func.func @transform_2(%arg0: i32) -> (i32, i32) {
    %c0_i32 = arith.constant 0 : i32
    %c0_i32_0 = arith.constant 0 : i32
    %c0_i32_1 = arith.constant 0 : i32
    return %c0_i32, %c0_i32_0 : i32, i32
  }
  func.func @transform_3(%arg0: i32) -> (i32, i32, i32) {
    %c0_i32 = arith.constant 0 : i32
    %c0_i32_0 = arith.constant 0 : i32
    %c0_i32_1 = arith.constant 0 : i32
    %c0_i32_2 = arith.constant 0 : i32
    return %c0_i32, %c0_i32_0, %c0_i32_1 : i32, i32, i32
  }
  func.func @transform_4(%arg0: i32) -> (i32, i32) {
    %c0_i32 = arith.constant 0 : i32
    %c0_i32_0 = arith.constant 0 : i32
    %c0_i32_1 = arith.constant 0 : i32
    return %c0_i32, %c0_i32_0 : i32, i32
  }
  func.func @transform_5(%arg0: i32) -> (i32, i32, i32) {
    %c0_i32 = arith.constant 0 : i32
    %c0_i32_0 = arith.constant 0 : i32
    %c0_i32_1 = arith.constant 0 : i32
    %c0_i32_2 = arith.constant 0 : i32
    return %c0_i32, %c0_i32_0, %c0_i32_1 : i32, i32, i32
  }
  func.func @transform_6(%arg0: i32) -> (i32, i32) {
    %c0_i32 = arith.constant 0 : i32
    %c0_i32_0 = arith.constant 0 : i32
    %c0_i32_1 = arith.constant 0 : i32
    return %c0_i32, %c0_i32_0 : i32, i32
  }
  func.func @transform_7(%arg0: i32) -> (i32, i32) {
    %c0_i32 = arith.constant 0 : i32
    %c0_i32_0 = arith.constant 0 : i32
    %c0_i32_1 = arith.constant 0 : i32
    return %c0_i32, %c0_i32_0 : i32, i32
  }
  func.func @transform_8(%arg0: i32) -> (i32, i32, i32) {
    %c0_i32 = arith.constant 0 : i32
    %c0_i32_0 = arith.constant 0 : i32
    %c0_i32_1 = arith.constant 0 : i32
    return %arg0, %c0_i32, %c0_i32_0 : i32, i32, i32
  }
}

module attributes {stable_mosaic.version = 11 : i64} {
  func.func @kernel(%arg0: i32, %arg1: memref<1x64x8xbf16, #tpu.memory_space<vmem>>, %arg2: memref<1x16x256xbf16, #tpu.memory_space<vmem>>, %arg3: memref<64x16xbf16, #tpu.memory_space<vmem>>, %arg4: memref<8x48xbf16, #tpu.memory_space<vmem>>, %arg5: memref<1x48xf32, #tpu.memory_space<vmem>>, %arg6: memref<9x256x256xbf16, #tpu.memory_space<vmem>>, %arg7: memref<9x48x256xbf16, #tpu.memory_space<vmem>>, %arg8: memref<1x256xf32, #tpu.memory_space<vmem>>, %arg9: memref<9x256x128xbf16, #tpu.memory_space<vmem>>, %arg10: memref<1x128xf32, #tpu.memory_space<vmem>>, %arg11: memref<1x64x128xf32, #tpu.memory_space<vmem>>, %arg12: memref<10x10x256xf32, #tpu.memory_space<vmem>>, %arg13: memref<10x10x48xf32, #tpu.memory_space<vmem>>, %arg14: memref<10x10x256xf32, #tpu.memory_space<vmem>>) attributes {dimension_semantics = [#tpu.dimension_semantics<parallel>], iteration_bounds = array<i64: 2>, scalar_prefetch = 0 : i64, scratch_operands = 3 : i64, tpu.core_type = #tpu.core_type<tc>, window_params = [{transform_indices = @transform_0, window_bounds = array<i64: 1, 64, 8>}, {transform_indices = @transform_1, window_bounds = array<i64: 1, 16, 256>}, {pipeline_mode = #tpu.pipeline_mode<synchronous>, transform_indices = @transform_2, window_bounds = array<i64: 64, 16>}, {pipeline_mode = #tpu.pipeline_mode<synchronous>, transform_indices = @transform_3, window_bounds = array<i64: 8, 48>}, {pipeline_mode = #tpu.pipeline_mode<synchronous>, transform_indices = @transform_4, window_bounds = array<i64: 1, 48>}, {pipeline_mode = #tpu.pipeline_mode<synchronous>, transform_indices = @transform_5, window_bounds = array<i64: 9, 256, 256>}, {pipeline_mode = #tpu.pipeline_mode<synchronous>, transform_indices = @transform_6, window_bounds = array<i64: 9, 48, 256>}, {pipeline_mode = #tpu.pipeline_mode<synchronous>, transform_indices = @transform_7, window_bounds = array<i64: 1, 256>}, {pipeline_mode = #tpu.pipeline_mode<synchronous>, transform_indices = @transform_8, window_bounds = array<i64: 9, 256, 128>}, {pipeline_mode = #tpu.pipeline_mode<synchronous>, transform_indices = @transform_9, window_bounds = array<i64: 1, 128>}, {transform_indices = @transform_10, window_bounds = array<i64: 1, 64, 128>}]} {
    %c0 = arith.constant 0 : index
    %c0_0 = arith.constant 0 : index
    %0 = vector.load %arg3[%c0, %c0_0] : memref<64x16xbf16, #tpu.memory_space<vmem>>, vector<64x16xbf16>
    %c0_1 = arith.constant 0 : index
    %c0_2 = arith.constant 0 : index
    %c0_3 = arith.constant 0 : index
    %1 = vector.load %arg2[%c0_1, %c0_2, %c0_3] : memref<1x16x256xbf16, #tpu.memory_space<vmem>>, vector<1x16x256xbf16>
    %2 = vector.shape_cast %1 : vector<1x16x256xbf16> to vector<16x256xbf16>
    %cst = arith.constant dense<0.000000e+00> : vector<64x256xf32>
    %3 = tpu.matmul %0, %2, %cst {dimension_numbers = #tpu.dot_dimension_numbers<[1], [0], [0], [1], [0, 0, 1, 1], [], []>} : vector<64x16xbf16>, vector<16x256xbf16>, vector<64x256xf32> -> vector<64x256xf32>
    %cst_4 = arith.constant 0.000000e+00 : f32
    %4 = vector.broadcast %cst_4 : f32 to vector<10x10x256xf32>
    %c0_5 = arith.constant 0 : index
    %c0_6 = arith.constant 0 : index
    %c0_7 = arith.constant 0 : index
    %5 = vector.load %arg12[%c0_5, %c0_6, %c0_7] : memref<10x10x256xf32, #tpu.memory_space<vmem>>, vector<10x10x256xf32>
    tpu.vector_store %arg12[%c0_5, %c0_6, %c0_7], %4 {strides = array<i32>} : memref<10x10x256xf32, #tpu.memory_space<vmem>>, vector<10x10x256xf32>,
    %6 = vector.shape_cast %3 : vector<64x256xf32> to vector<8x8x256xf32>
    %c1 = arith.constant 1 : index
    %c1_8 = arith.constant 1 : index
    %c0_9 = arith.constant 0 : index
    %7 = vector.load %arg12[%c1, %c1_8, %c0_9] : memref<10x10x256xf32, #tpu.memory_space<vmem>>, vector<8x8x256xf32>
    tpu.vector_store %arg12[%c1, %c1_8, %c0_9], %6 {strides = array<i32>} : memref<10x10x256xf32, #tpu.memory_space<vmem>>, vector<8x8x256xf32>,
    %c0_10 = arith.constant 0 : index
    %c0_11 = arith.constant 0 : index
    %c0_12 = arith.constant 0 : index
    %8 = vector.load %arg1[%c0_10, %c0_11, %c0_12] : memref<1x64x8xbf16, #tpu.memory_space<vmem>>, vector<1x64x8xbf16>
    %9 = vector.shape_cast %8 : vector<1x64x8xbf16> to vector<64x8xbf16>
    %c0_13 = arith.constant 0 : index
    %c0_14 = arith.constant 0 : index
    %10 = vector.load %arg4[%c0_13, %c0_14] : memref<8x48xbf16, #tpu.memory_space<vmem>>, vector<8x48xbf16>
    %cst_15 = arith.constant dense<0.000000e+00> : vector<64x48xf32>
    %11 = tpu.matmul %9, %10, %cst_15 {dimension_numbers = #tpu.dot_dimension_numbers<[1], [0], [0], [1], [0, 0, 1, 1], [], []>} : vector<64x8xbf16>, vector<8x48xbf16>, vector<64x48xf32> -> vector<64x48xf32>
    %c0_16 = arith.constant 0 : index
    %c0_17 = arith.constant 0 : index
    %12 = vector.load %arg5[%c0_16, %c0_17] : memref<1x48xf32, #tpu.memory_space<vmem>>, vector<1x48xf32>
    %13 = vector.broadcast %12 : vector<1x48xf32> to vector<64x48xf32>
    %14 = arith.addf %11, %13 : vector<64x48xf32>
    %cst_18 = arith.constant 0.000000e+00 : f32
    %15 = vector.broadcast %cst_18 : f32 to vector<64x48xf32>
    %16 = arith.maximumf %14, %15 : vector<64x48xf32>
    %cst_19 = arith.constant 0.000000e+00 : f32
    %17 = vector.broadcast %cst_19 : f32 to vector<10x10x48xf32>
    %c0_20 = arith.constant 0 : index
    %c0_21 = arith.constant 0 : index
    %c0_22 = arith.constant 0 : index
    %18 = vector.load %arg13[%c0_20, %c0_21, %c0_22] : memref<10x10x48xf32, #tpu.memory_space<vmem>>, vector<10x10x48xf32>
    tpu.vector_store %arg13[%c0_20, %c0_21, %c0_22], %17 {strides = array<i32>} : memref<10x10x48xf32, #tpu.memory_space<vmem>>, vector<10x10x48xf32>,
    %19 = vector.shape_cast %16 : vector<64x48xf32> to vector<8x8x48xf32>
    %c1_23 = arith.constant 1 : index
    %c1_24 = arith.constant 1 : index
    %c0_25 = arith.constant 0 : index
    %20 = vector.load %arg13[%c1_23, %c1_24, %c0_25] : memref<10x10x48xf32, #tpu.memory_space<vmem>>, vector<8x8x48xf32>
    tpu.vector_store %arg13[%c1_23, %c1_24, %c0_25], %19 {strides = array<i32>} : memref<10x10x48xf32, #tpu.memory_space<vmem>>, vector<8x8x48xf32>,
    %cst_26 = arith.constant 0.000000e+00 : f32
    %21 = vector.broadcast %cst_26 : f32 to vector<64x256xf32>
    %c0_27 = arith.constant 0 : index
    %c0_28 = arith.constant 0 : index
    %c0_29 = arith.constant 0 : index
    %22 = vector.load %arg12[%c0_27, %c0_28, %c0_29] : memref<10x10x256xf32, #tpu.memory_space<vmem>>, vector<8x8x256xf32>
    %23 = vector.shape_cast %22 : vector<8x8x256xf32> to vector<64x256xf32>
    %24 = arith.truncf %23 : vector<64x256xf32> to vector<64x256xbf16>
    %c0_30 = arith.constant 0 : index
    %c0_31 = arith.constant 0 : index
    %c0_32 = arith.constant 0 : index
    %25 = vector.load %arg6[%c0_30, %c0_31, %c0_32] : memref<9x256x256xbf16, #tpu.memory_space<vmem>>, vector<1x256x256xbf16>
    %26 = vector.shape_cast %25 : vector<1x256x256xbf16> to vector<256x256xbf16>
    %cst_33 = arith.constant dense<0.000000e+00> : vector<64x256xf32>
    %27 = tpu.matmul %24, %26, %cst_33 {dimension_numbers = #tpu.dot_dimension_numbers<[1], [0], [0], [1], [0, 0, 1, 1], [], []>} : vector<64x256xbf16>, vector<256x256xbf16>, vector<64x256xf32> -> vector<64x256xf32>
    %28 = arith.addf %21, %27 : vector<64x256xf32>
    %c0_34 = arith.constant 0 : index
    %c0_35 = arith.constant 0 : index
    %c0_36 = arith.constant 0 : index
    %29 = vector.load %arg13[%c0_34, %c0_35, %c0_36] : memref<10x10x48xf32, #tpu.memory_space<vmem>>, vector<8x8x48xf32>
    %30 = vector.shape_cast %29 : vector<8x8x48xf32> to vector<64x48xf32>
    %31 = arith.truncf %30 : vector<64x48xf32> to vector<64x48xbf16>
    %c0_37 = arith.constant 0 : index
    %c0_38 = arith.constant 0 : index
    %c0_39 = arith.constant 0 : index
    %32 = vector.load %arg7[%c0_37, %c0_38, %c0_39] : memref<9x48x256xbf16, #tpu.memory_space<vmem>>, vector<1x48x256xbf16>
    %33 = vector.shape_cast %32 : vector<1x48x256xbf16> to vector<48x256xbf16>
    %cst_40 = arith.constant dense<0.000000e+00> : vector<64x256xf32>
    %34 = tpu.matmul %31, %33, %cst_40 {dimension_numbers = #tpu.dot_dimension_numbers<[1], [0], [0], [1], [0, 0, 1, 1], [], []>} : vector<64x48xbf16>, vector<48x256xbf16>, vector<64x256xf32> -> vector<64x256xf32>
    %35 = arith.addf %28, %34 : vector<64x256xf32>
    %c0_41 = arith.constant 0 : index
    %c1_42 = arith.constant 1 : index
    %c0_43 = arith.constant 0 : index
    %36 = vector.load %arg12[%c0_41, %c1_42, %c0_43] : memref<10x10x256xf32, #tpu.memory_space<vmem>>, vector<8x8x256xf32>
    %37 = vector.shape_cast %36 : vector<8x8x256xf32> to vector<64x256xf32>
    %38 = arith.truncf %37 : vector<64x256xf32> to vector<64x256xbf16>
    %c1_44 = arith.constant 1 : index
    %c0_45 = arith.constant 0 : index
    %c0_46 = arith.constant 0 : index
    %39 = vector.load %arg6[%c1_44, %c0_45, %c0_46] : memref<9x256x256xbf16, #tpu.memory_space<vmem>>, vector<1x256x256xbf16>
    %40 = vector.shape_cast %39 : vector<1x256x256xbf16> to vector<256x256xbf16>
    %cst_47 = arith.constant dense<0.000000e+00> : vector<64x256xf32>
    %41 = tpu.matmul %38, %40, %cst_47 {dimension_numbers = #tpu.dot_dimension_numbers<[1], [0], [0], [1], [0, 0, 1, 1], [], []>} : vector<64x256xbf16>, vector<256x256xbf16>, vector<64x256xf32> -> vector<64x256xf32>
    %42 = arith.addf %35, %41 : vector<64x256xf32>
    %c0_48 = arith.constant 0 : index
    %c1_49 = arith.constant 1 : index
    %c0_50 = arith.constant 0 : index
    %43 = vector.load %arg13[%c0_48, %c1_49, %c0_50] : memref<10x10x48xf32, #tpu.memory_space<vmem>>, vector<8x8x48xf32>
    %44 = vector.shape_cast %43 : vector<8x8x48xf32> to vector<64x48xf32>
    %45 = arith.truncf %44 : vector<64x48xf32> to vector<64x48xbf16>
    %c1_51 = arith.constant 1 : index
    %c0_52 = arith.constant 0 : index
    %c0_53 = arith.constant 0 : index
    %46 = vector.load %arg7[%c1_51, %c0_52, %c0_53] : memref<9x48x256xbf16, #tpu.memory_space<vmem>>, vector<1x48x256xbf16>
    %47 = vector.shape_cast %46 : vector<1x48x256xbf16> to vector<48x256xbf16>
    %cst_54 = arith.constant dense<0.000000e+00> : vector<64x256xf32>
    %48 = tpu.matmul %45, %47, %cst_54 {dimension_numbers = #tpu.dot_dimension_numbers<[1], [0], [0], [1], [0, 0, 1, 1], [], []>} : vector<64x48xbf16>, vector<48x256xbf16>, vector<64x256xf32> -> vector<64x256xf32>
    %49 = arith.addf %42, %48 : vector<64x256xf32>
    %c0_55 = arith.constant 0 : index
    %c2 = arith.constant 2 : index
    %c0_56 = arith.constant 0 : index
    %50 = vector.load %arg12[%c0_55, %c2, %c0_56] : memref<10x10x256xf32, #tpu.memory_space<vmem>>, vector<8x8x256xf32>
    %51 = vector.shape_cast %50 : vector<8x8x256xf32> to vector<64x256xf32>
    %52 = arith.truncf %51 : vector<64x256xf32> to vector<64x256xbf16>
    %c2_57 = arith.constant 2 : index
    %c0_58 = arith.constant 0 : index
    %c0_59 = arith.constant 0 : index
    %53 = vector.load %arg6[%c2_57, %c0_58, %c0_59] : memref<9x256x256xbf16, #tpu.memory_space<vmem>>, vector<1x256x256xbf16>
    %54 = vector.shape_cast %53 : vector<1x256x256xbf16> to vector<256x256xbf16>
    %cst_60 = arith.constant dense<0.000000e+00> : vector<64x256xf32>
    %55 = tpu.matmul %52, %54, %cst_60 {dimension_numbers = #tpu.dot_dimension_numbers<[1], [0], [0], [1], [0, 0, 1, 1], [], []>} : vector<64x256xbf16>, vector<256x256xbf16>, vector<64x256xf32> -> vector<64x256xf32>
    %56 = arith.addf %49, %55 : vector<64x256xf32>
    %c0_61 = arith.constant 0 : index
    %c2_62 = arith.constant 2 : index
    %c0_63 = arith.constant 0 : index
    %57 = vector.load %arg13[%c0_61, %c2_62, %c0_63] : memref<10x10x48xf32, #tpu.memory_space<vmem>>, vector<8x8x48xf32>
    %58 = vector.shape_cast %57 : vector<8x8x48xf32> to vector<64x48xf32>
    %59 = arith.truncf %58 : vector<64x48xf32> to vector<64x48xbf16>
    %c2_64 = arith.constant 2 : index
    %c0_65 = arith.constant 0 : index
    %c0_66 = arith.constant 0 : index
    %60 = vector.load %arg7[%c2_64, %c0_65, %c0_66] : memref<9x48x256xbf16, #tpu.memory_space<vmem>>, vector<1x48x256xbf16>
    %61 = vector.shape_cast %60 : vector<1x48x256xbf16> to vector<48x256xbf16>
    %cst_67 = arith.constant dense<0.000000e+00> : vector<64x256xf32>
    %62 = tpu.matmul %59, %61, %cst_67 {dimension_numbers = #tpu.dot_dimension_numbers<[1], [0], [0], [1], [0, 0, 1, 1], [], []>} : vector<64x48xbf16>, vector<48x256xbf16>, vector<64x256xf32> -> vector<64x256xf32>
    %63 = arith.addf %56, %62 : vector<64x256xf32>
    %c1_68 = arith.constant 1 : index
    %c0_69 = arith.constant 0 : index
    %c0_70 = arith.constant 0 : index
    %64 = vector.load %arg12[%c1_68, %c0_69, %c0_70] : memref<10x10x256xf32, #tpu.memory_space<vmem>>, vector<8x8x256xf32>
    %65 = vector.shape_cast %64 : vector<8x8x256xf32> to vector<64x256xf32>
    %66 = arith.truncf %65 : vector<64x256xf32> to vector<64x256xbf16>
    %c3 = arith.constant 3 : index
    %c0_71 = arith.constant 0 : index
    %c0_72 = arith.constant 0 : index
    %67 = vector.load %arg6[%c3, %c0_71, %c0_72] : memref<9x256x256xbf16, #tpu.memory_space<vmem>>, vector<1x256x256xbf16>
    %68 = vector.shape_cast %67 : vector<1x256x256xbf16> to vector<256x256xbf16>
    %cst_73 = arith.constant dense<0.000000e+00> : vector<64x256xf32>
    %69 = tpu.matmul %66, %68, %cst_73 {dimension_numbers = #tpu.dot_dimension_numbers<[1], [0], [0], [1], [0, 0, 1, 1], [], []>} : vector<64x256xbf16>, vector<256x256xbf16>, vector<64x256xf32> -> vector<64x256xf32>
    %70 = arith.addf %63, %69 : vector<64x256xf32>
    %c1_74 = arith.constant 1 : index
    %c0_75 = arith.constant 0 : index
    %c0_76 = arith.constant 0 : index
    %71 = vector.load %arg13[%c1_74, %c0_75, %c0_76] : memref<10x10x48xf32, #tpu.memory_space<vmem>>, vector<8x8x48xf32>
    %72 = vector.shape_cast %71 : vector<8x8x48xf32> to vector<64x48xf32>
    %73 = arith.truncf %72 : vector<64x48xf32> to vector<64x48xbf16>
    %c3_77 = arith.constant 3 : index
    %c0_78 = arith.constant 0 : index
    %c0_79 = arith.constant 0 : index
    %74 = vector.load %arg7[%c3_77, %c0_78, %c0_79] : memref<9x48x256xbf16, #tpu.memory_space<vmem>>, vector<1x48x256xbf16>
    %75 = vector.shape_cast %74 : vector<1x48x256xbf16> to vector<48x256xbf16>
    %cst_80 = arith.constant dense<0.000000e+00> : vector<64x256xf32>
    %76 = tpu.matmul %73, %75, %cst_80 {dimension_numbers = #tpu.dot_dimension_numbers<[1], [0], [0], [1], [0, 0, 1, 1], [], []>} : vector<64x48xbf16>, vector<48x256xbf16>, vector<64x256xf32> -> vector<64x256xf32>
    %77 = arith.addf %70, %76 : vector<64x256xf32>
    %c1_81 = arith.constant 1 : index
    %c1_82 = arith.constant 1 : index
    %c0_83 = arith.constant 0 : index
    %78 = vector.load %arg12[%c1_81, %c1_82, %c0_83] : memref<10x10x256xf32, #tpu.memory_space<vmem>>, vector<8x8x256xf32>
    %79 = vector.shape_cast %78 : vector<8x8x256xf32> to vector<64x256xf32>
    %80 = arith.truncf %79 : vector<64x256xf32> to vector<64x256xbf16>
    %c4 = arith.constant 4 : index
    %c0_84 = arith.constant 0 : index
    %c0_85 = arith.constant 0 : index
    %81 = vector.load %arg6[%c4, %c0_84, %c0_85] : memref<9x256x256xbf16, #tpu.memory_space<vmem>>, vector<1x256x256xbf16>
    %82 = vector.shape_cast %81 : vector<1x256x256xbf16> to vector<256x256xbf16>
    %cst_86 = arith.constant dense<0.000000e+00> : vector<64x256xf32>
    %83 = tpu.matmul %80, %82, %cst_86 {dimension_numbers = #tpu.dot_dimension_numbers<[1], [0], [0], [1], [0, 0, 1, 1], [], []>} : vector<64x256xbf16>, vector<256x256xbf16>, vector<64x256xf32> -> vector<64x256xf32>
    %84 = arith.addf %77, %83 : vector<64x256xf32>
    %c1_87 = arith.constant 1 : index
    %c1_88 = arith.constant 1 : index
    %c0_89 = arith.constant 0 : index
    %85 = vector.load %arg13[%c1_87, %c1_88, %c0_89] : memref<10x10x48xf32, #tpu.memory_space<vmem>>, vector<8x8x48xf32>
    %86 = vector.shape_cast %85 : vector<8x8x48xf32> to vector<64x48xf32>
    %87 = arith.truncf %86 : vector<64x48xf32> to vector<64x48xbf16>
    %c4_90 = arith.constant 4 : index
    %c0_91 = arith.constant 0 : index
    %c0_92 = arith.constant 0 : index
    %88 = vector.load %arg7[%c4_90, %c0_91, %c0_92] : memref<9x48x256xbf16, #tpu.memory_space<vmem>>, vector<1x48x256xbf16>
    %89 = vector.shape_cast %88 : vector<1x48x256xbf16> to vector<48x256xbf16>
    %cst_93 = arith.constant dense<0.000000e+00> : vector<64x256xf32>
    %90 = tpu.matmul %87, %89, %cst_93 {dimension_numbers = #tpu.dot_dimension_numbers<[1], [0], [0], [1], [0, 0, 1, 1], [], []>} : vector<64x48xbf16>, vector<48x256xbf16>, vector<64x256xf32> -> vector<64x256xf32>
    %91 = arith.addf %84, %90 : vector<64x256xf32>
    %c1_94 = arith.constant 1 : index
    %c2_95 = arith.constant 2 : index
    %c0_96 = arith.constant 0 : index
    %92 = vector.load %arg12[%c1_94, %c2_95, %c0_96] : memref<10x10x256xf32, #tpu.memory_space<vmem>>, vector<8x8x256xf32>
    %93 = vector.shape_cast %92 : vector<8x8x256xf32> to vector<64x256xf32>
    %94 = arith.truncf %93 : vector<64x256xf32> to vector<64x256xbf16>
    %c5 = arith.constant 5 : index
    %c0_97 = arith.constant 0 : index
    %c0_98 = arith.constant 0 : index
    %95 = vector.load %arg6[%c5, %c0_97, %c0_98] : memref<9x256x256xbf16, #tpu.memory_space<vmem>>, vector<1x256x256xbf16>
    %96 = vector.shape_cast %95 : vector<1x256x256xbf16> to vector<256x256xbf16>
    %cst_99 = arith.constant dense<0.000000e+00> : vector<64x256xf32>
    %97 = tpu.matmul %94, %96, %cst_99 {dimension_numbers = #tpu.dot_dimension_numbers<[1], [0], [0], [1], [0, 0, 1, 1], [], []>} : vector<64x256xbf16>, vector<256x256xbf16>, vector<64x256xf32> -> vector<64x256xf32>
    %98 = arith.addf %91, %97 : vector<64x256xf32>
    %c1_100 = arith.constant 1 : index
    %c2_101 = arith.constant 2 : index
    %c0_102 = arith.constant 0 : index
    %99 = vector.load %arg13[%c1_100, %c2_101, %c0_102] : memref<10x10x48xf32, #tpu.memory_space<vmem>>, vector<8x8x48xf32>
    %100 = vector.shape_cast %99 : vector<8x8x48xf32> to vector<64x48xf32>
    %101 = arith.truncf %100 : vector<64x48xf32> to vector<64x48xbf16>
    %c5_103 = arith.constant 5 : index
    %c0_104 = arith.constant 0 : index
    %c0_105 = arith.constant 0 : index
    %102 = vector.load %arg7[%c5_103, %c0_104, %c0_105] : memref<9x48x256xbf16, #tpu.memory_space<vmem>>, vector<1x48x256xbf16>
    %103 = vector.shape_cast %102 : vector<1x48x256xbf16> to vector<48x256xbf16>
    %cst_106 = arith.constant dense<0.000000e+00> : vector<64x256xf32>
    %104 = tpu.matmul %101, %103, %cst_106 {dimension_numbers = #tpu.dot_dimension_numbers<[1], [0], [0], [1], [0, 0, 1, 1], [], []>} : vector<64x48xbf16>, vector<48x256xbf16>, vector<64x256xf32> -> vector<64x256xf32>
    %105 = arith.addf %98, %104 : vector<64x256xf32>
    %c2_107 = arith.constant 2 : index
    %c0_108 = arith.constant 0 : index
    %c0_109 = arith.constant 0 : index
    %106 = vector.load %arg12[%c2_107, %c0_108, %c0_109] : memref<10x10x256xf32, #tpu.memory_space<vmem>>, vector<8x8x256xf32>
    %107 = vector.shape_cast %106 : vector<8x8x256xf32> to vector<64x256xf32>
    %108 = arith.truncf %107 : vector<64x256xf32> to vector<64x256xbf16>
    %c6 = arith.constant 6 : index
    %c0_110 = arith.constant 0 : index
    %c0_111 = arith.constant 0 : index
    %109 = vector.load %arg6[%c6, %c0_110, %c0_111] : memref<9x256x256xbf16, #tpu.memory_space<vmem>>, vector<1x256x256xbf16>
    %110 = vector.shape_cast %109 : vector<1x256x256xbf16> to vector<256x256xbf16>
    %cst_112 = arith.constant dense<0.000000e+00> : vector<64x256xf32>
    %111 = tpu.matmul %108, %110, %cst_112 {dimension_numbers = #tpu.dot_dimension_numbers<[1], [0], [0], [1], [0, 0, 1, 1], [], []>} : vector<64x256xbf16>, vector<256x256xbf16>, vector<64x256xf32> -> vector<64x256xf32>
    %112 = arith.addf %105, %111 : vector<64x256xf32>
    %c2_113 = arith.constant 2 : index
    %c0_114 = arith.constant 0 : index
    %c0_115 = arith.constant 0 : index
    %113 = vector.load %arg13[%c2_113, %c0_114, %c0_115] : memref<10x10x48xf32, #tpu.memory_space<vmem>>, vector<8x8x48xf32>
    %114 = vector.shape_cast %113 : vector<8x8x48xf32> to vector<64x48xf32>
    %115 = arith.truncf %114 : vector<64x48xf32> to vector<64x48xbf16>
    %c6_116 = arith.constant 6 : index
    %c0_117 = arith.constant 0 : index
    %c0_118 = arith.constant 0 : index
    %116 = vector.load %arg7[%c6_116, %c0_117, %c0_118] : memref<9x48x256xbf16, #tpu.memory_space<vmem>>, vector<1x48x256xbf16>
    %117 = vector.shape_cast %116 : vector<1x48x256xbf16> to vector<48x256xbf16>
    %cst_119 = arith.constant dense<0.000000e+00> : vector<64x256xf32>
    %118 = tpu.matmul %115, %117, %cst_119 {dimension_numbers = #tpu.dot_dimension_numbers<[1], [0], [0], [1], [0, 0, 1, 1], [], []>} : vector<64x48xbf16>, vector<48x256xbf16>, vector<64x256xf32> -> vector<64x256xf32>
    %119 = arith.addf %112, %118 : vector<64x256xf32>
    %c2_120 = arith.constant 2 : index
    %c1_121 = arith.constant 1 : index
    %c0_122 = arith.constant 0 : index
    %120 = vector.load %arg12[%c2_120, %c1_121, %c0_122] : memref<10x10x256xf32, #tpu.memory_space<vmem>>, vector<8x8x256xf32>
    %121 = vector.shape_cast %120 : vector<8x8x256xf32> to vector<64x256xf32>
    %122 = arith.truncf %121 : vector<64x256xf32> to vector<64x256xbf16>
    %c7 = arith.constant 7 : index
    %c0_123 = arith.constant 0 : index
    %c0_124 = arith.constant 0 : index
    %123 = vector.load %arg6[%c7, %c0_123, %c0_124] : memref<9x256x256xbf16, #tpu.memory_space<vmem>>, vector<1x256x256xbf16>
    %124 = vector.shape_cast %123 : vector<1x256x256xbf16> to vector<256x256xbf16>
    %cst_125 = arith.constant dense<0.000000e+00> : vector<64x256xf32>
    %125 = tpu.matmul %122, %124, %cst_125 {dimension_numbers = #tpu.dot_dimension_numbers<[1], [0], [0], [1], [0, 0, 1, 1], [], []>} : vector<64x256xbf16>, vector<256x256xbf16>, vector<64x256xf32> -> vector<64x256xf32>
    %126 = arith.addf %119, %125 : vector<64x256xf32>
    %c2_126 = arith.constant 2 : index
    %c1_127 = arith.constant 1 : index
    %c0_128 = arith.constant 0 : index
    %127 = vector.load %arg13[%c2_126, %c1_127, %c0_128] : memref<10x10x48xf32, #tpu.memory_space<vmem>>, vector<8x8x48xf32>
    %128 = vector.shape_cast %127 : vector<8x8x48xf32> to vector<64x48xf32>
    %129 = arith.truncf %128 : vector<64x48xf32> to vector<64x48xbf16>
    %c7_129 = arith.constant 7 : index
    %c0_130 = arith.constant 0 : index
    %c0_131 = arith.constant 0 : index
    %130 = vector.load %arg7[%c7_129, %c0_130, %c0_131] : memref<9x48x256xbf16, #tpu.memory_space<vmem>>, vector<1x48x256xbf16>
    %131 = vector.shape_cast %130 : vector<1x48x256xbf16> to vector<48x256xbf16>
    %cst_132 = arith.constant dense<0.000000e+00> : vector<64x256xf32>
    %132 = tpu.matmul %129, %131, %cst_132 {dimension_numbers = #tpu.dot_dimension_numbers<[1], [0], [0], [1], [0, 0, 1, 1], [], []>} : vector<64x48xbf16>, vector<48x256xbf16>, vector<64x256xf32> -> vector<64x256xf32>
    %133 = arith.addf %126, %132 : vector<64x256xf32>
    %c2_133 = arith.constant 2 : index
    %c2_134 = arith.constant 2 : index
    %c0_135 = arith.constant 0 : index
    %134 = vector.load %arg12[%c2_133, %c2_134, %c0_135] : memref<10x10x256xf32, #tpu.memory_space<vmem>>, vector<8x8x256xf32>
    %135 = vector.shape_cast %134 : vector<8x8x256xf32> to vector<64x256xf32>
    %136 = arith.truncf %135 : vector<64x256xf32> to vector<64x256xbf16>
    %c8 = arith.constant 8 : index
    %c0_136 = arith.constant 0 : index
    %c0_137 = arith.constant 0 : index
    %137 = vector.load %arg6[%c8, %c0_136, %c0_137] : memref<9x256x256xbf16, #tpu.memory_space<vmem>>, vector<1x256x256xbf16>
    %138 = vector.shape_cast %137 : vector<1x256x256xbf16> to vector<256x256xbf16>
    %cst_138 = arith.constant dense<0.000000e+00> : vector<64x256xf32>
    %139 = tpu.matmul %136, %138, %cst_138 {dimension_numbers = #tpu.dot_dimension_numbers<[1], [0], [0], [1], [0, 0, 1, 1], [], []>} : vector<64x256xbf16>, vector<256x256xbf16>, vector<64x256xf32> -> vector<64x256xf32>
    %140 = arith.addf %133, %139 : vector<64x256xf32>
    %c2_139 = arith.constant 2 : index
    %c2_140 = arith.constant 2 : index
    %c0_141 = arith.constant 0 : index
    %141 = vector.load %arg13[%c2_139, %c2_140, %c0_141] : memref<10x10x48xf32, #tpu.memory_space<vmem>>, vector<8x8x48xf32>
    %142 = vector.shape_cast %141 : vector<8x8x48xf32> to vector<64x48xf32>
    %143 = arith.truncf %142 : vector<64x48xf32> to vector<64x48xbf16>
    %c8_142 = arith.constant 8 : index
    %c0_143 = arith.constant 0 : index
    %c0_144 = arith.constant 0 : index
    %144 = vector.load %arg7[%c8_142, %c0_143, %c0_144] : memref<9x48x256xbf16, #tpu.memory_space<vmem>>, vector<1x48x256xbf16>
    %145 = vector.shape_cast %144 : vector<1x48x256xbf16> to vector<48x256xbf16>
    %cst_145 = arith.constant dense<0.000000e+00> : vector<64x256xf32>
    %146 = tpu.matmul %143, %145, %cst_145 {dimension_numbers = #tpu.dot_dimension_numbers<[1], [0], [0], [1], [0, 0, 1, 1], [], []>} : vector<64x48xbf16>, vector<48x256xbf16>, vector<64x256xf32> -> vector<64x256xf32>
    %147 = arith.addf %140, %146 : vector<64x256xf32>
    %c0_146 = arith.constant 0 : index
    %c0_147 = arith.constant 0 : index
    %148 = vector.load %arg8[%c0_146, %c0_147] : memref<1x256xf32, #tpu.memory_space<vmem>>, vector<1x256xf32>
    %149 = vector.broadcast %148 : vector<1x256xf32> to vector<64x256xf32>
    %150 = arith.addf %147, %149 : vector<64x256xf32>
    %cst_148 = arith.constant 0.000000e+00 : f32
    %151 = vector.broadcast %cst_148 : f32 to vector<64x256xf32>
    %152 = arith.maximumf %150, %151 : vector<64x256xf32>
    %cst_149 = arith.constant 0.000000e+00 : f32
    %153 = vector.broadcast %cst_149 : f32 to vector<10x10x256xf32>
    %c0_150 = arith.constant 0 : index
    %c0_151 = arith.constant 0 : index
    %c0_152 = arith.constant 0 : index
    %154 = vector.load %arg14[%c0_150, %c0_151, %c0_152] : memref<10x10x256xf32, #tpu.memory_space<vmem>>, vector<10x10x256xf32>
    tpu.vector_store %arg14[%c0_150, %c0_151, %c0_152], %153 {strides = array<i32>} : memref<10x10x256xf32, #tpu.memory_space<vmem>>, vector<10x10x256xf32>,
    %155 = vector.shape_cast %152 : vector<64x256xf32> to vector<8x8x256xf32>
    %c1_153 = arith.constant 1 : index
    %c1_154 = arith.constant 1 : index
    %c0_155 = arith.constant 0 : index
    %156 = vector.load %arg14[%c1_153, %c1_154, %c0_155] : memref<10x10x256xf32, #tpu.memory_space<vmem>>, vector<8x8x256xf32>
    tpu.vector_store %arg14[%c1_153, %c1_154, %c0_155], %155 {strides = array<i32>} : memref<10x10x256xf32, #tpu.memory_space<vmem>>, vector<8x8x256xf32>,
    %cst_156 = arith.constant 0.000000e+00 : f32
    %157 = vector.broadcast %cst_156 : f32 to vector<64x128xf32>
    %c0_157 = arith.constant 0 : index
    %c0_158 = arith.constant 0 : index
    %c0_159 = arith.constant 0 : index
    %158 = vector.load %arg14[%c0_157, %c0_158, %c0_159] : memref<10x10x256xf32, #tpu.memory_space<vmem>>, vector<8x8x256xf32>
    %159 = vector.shape_cast %158 : vector<8x8x256xf32> to vector<64x256xf32>
    %160 = arith.truncf %159 : vector<64x256xf32> to vector<64x256xbf16>
    %c0_160 = arith.constant 0 : index
    %c0_161 = arith.constant 0 : index
    %c0_162 = arith.constant 0 : index
    %161 = vector.load %arg9[%c0_160, %c0_161, %c0_162] : memref<9x256x128xbf16, #tpu.memory_space<vmem>>, vector<1x256x128xbf16>
    %162 = vector.shape_cast %161 : vector<1x256x128xbf16> to vector<256x128xbf16>
    %cst_163 = arith.constant dense<0.000000e+00> : vector<64x128xf32>
    %163 = tpu.matmul %160, %162, %cst_163 {dimension_numbers = #tpu.dot_dimension_numbers<[1], [0], [0], [1], [0, 0, 1, 1], [], []>} : vector<64x256xbf16>, vector<256x128xbf16>, vector<64x128xf32> -> vector<64x128xf32>
    %164 = arith.addf %157, %163 : vector<64x128xf32>
    %c0_164 = arith.constant 0 : index
    %c1_165 = arith.constant 1 : index
    %c0_166 = arith.constant 0 : index
    %165 = vector.load %arg14[%c0_164, %c1_165, %c0_166] : memref<10x10x256xf32, #tpu.memory_space<vmem>>, vector<8x8x256xf32>
    %166 = vector.shape_cast %165 : vector<8x8x256xf32> to vector<64x256xf32>
    %167 = arith.truncf %166 : vector<64x256xf32> to vector<64x256xbf16>
    %c1_167 = arith.constant 1 : index
    %c0_168 = arith.constant 0 : index
    %c0_169 = arith.constant 0 : index
    %168 = vector.load %arg9[%c1_167, %c0_168, %c0_169] : memref<9x256x128xbf16, #tpu.memory_space<vmem>>, vector<1x256x128xbf16>
    %169 = vector.shape_cast %168 : vector<1x256x128xbf16> to vector<256x128xbf16>
    %cst_170 = arith.constant dense<0.000000e+00> : vector<64x128xf32>
    %170 = tpu.matmul %167, %169, %cst_170 {dimension_numbers = #tpu.dot_dimension_numbers<[1], [0], [0], [1], [0, 0, 1, 1], [], []>} : vector<64x256xbf16>, vector<256x128xbf16>, vector<64x128xf32> -> vector<64x128xf32>
    %171 = arith.addf %164, %170 : vector<64x128xf32>
    %c0_171 = arith.constant 0 : index
    %c2_172 = arith.constant 2 : index
    %c0_173 = arith.constant 0 : index
    %172 = vector.load %arg14[%c0_171, %c2_172, %c0_173] : memref<10x10x256xf32, #tpu.memory_space<vmem>>, vector<8x8x256xf32>
    %173 = vector.shape_cast %172 : vector<8x8x256xf32> to vector<64x256xf32>
    %174 = arith.truncf %173 : vector<64x256xf32> to vector<64x256xbf16>
    %c2_174 = arith.constant 2 : index
    %c0_175 = arith.constant 0 : index
    %c0_176 = arith.constant 0 : index
    %175 = vector.load %arg9[%c2_174, %c0_175, %c0_176] : memref<9x256x128xbf16, #tpu.memory_space<vmem>>, vector<1x256x128xbf16>
    %176 = vector.shape_cast %175 : vector<1x256x128xbf16> to vector<256x128xbf16>
    %cst_177 = arith.constant dense<0.000000e+00> : vector<64x128xf32>
    %177 = tpu.matmul %174, %176, %cst_177 {dimension_numbers = #tpu.dot_dimension_numbers<[1], [0], [0], [1], [0, 0, 1, 1], [], []>} : vector<64x256xbf16>, vector<256x128xbf16>, vector<64x128xf32> -> vector<64x128xf32>
    %178 = arith.addf %171, %177 : vector<64x128xf32>
    %c1_178 = arith.constant 1 : index
    %c0_179 = arith.constant 0 : index
    %c0_180 = arith.constant 0 : index
    %179 = vector.load %arg14[%c1_178, %c0_179, %c0_180] : memref<10x10x256xf32, #tpu.memory_space<vmem>>, vector<8x8x256xf32>
    %180 = vector.shape_cast %179 : vector<8x8x256xf32> to vector<64x256xf32>
    %181 = arith.truncf %180 : vector<64x256xf32> to vector<64x256xbf16>
    %c3_181 = arith.constant 3 : index
    %c0_182 = arith.constant 0 : index
    %c0_183 = arith.constant 0 : index
    %182 = vector.load %arg9[%c3_181, %c0_182, %c0_183] : memref<9x256x128xbf16, #tpu.memory_space<vmem>>, vector<1x256x128xbf16>
    %183 = vector.shape_cast %182 : vector<1x256x128xbf16> to vector<256x128xbf16>
    %cst_184 = arith.constant dense<0.000000e+00> : vector<64x128xf32>
    %184 = tpu.matmul %181, %183, %cst_184 {dimension_numbers = #tpu.dot_dimension_numbers<[1], [0], [0], [1], [0, 0, 1, 1], [], []>} : vector<64x256xbf16>, vector<256x128xbf16>, vector<64x128xf32> -> vector<64x128xf32>
    %185 = arith.addf %178, %184 : vector<64x128xf32>
    %c1_185 = arith.constant 1 : index
    %c1_186 = arith.constant 1 : index
    %c0_187 = arith.constant 0 : index
    %186 = vector.load %arg14[%c1_185, %c1_186, %c0_187] : memref<10x10x256xf32, #tpu.memory_space<vmem>>, vector<8x8x256xf32>
    %187 = vector.shape_cast %186 : vector<8x8x256xf32> to vector<64x256xf32>
    %188 = arith.truncf %187 : vector<64x256xf32> to vector<64x256xbf16>
    %c4_188 = arith.constant 4 : index
    %c0_189 = arith.constant 0 : index
    %c0_190 = arith.constant 0 : index
    %189 = vector.load %arg9[%c4_188, %c0_189, %c0_190] : memref<9x256x128xbf16, #tpu.memory_space<vmem>>, vector<1x256x128xbf16>
    %190 = vector.shape_cast %189 : vector<1x256x128xbf16> to vector<256x128xbf16>
    %cst_191 = arith.constant dense<0.000000e+00> : vector<64x128xf32>
    %191 = tpu.matmul %188, %190, %cst_191 {dimension_numbers = #tpu.dot_dimension_numbers<[1], [0], [0], [1], [0, 0, 1, 1], [], []>} : vector<64x256xbf16>, vector<256x128xbf16>, vector<64x128xf32> -> vector<64x128xf32>
    %192 = arith.addf %185, %191 : vector<64x128xf32>
    %c1_192 = arith.constant 1 : index
    %c2_193 = arith.constant 2 : index
    %c0_194 = arith.constant 0 : index
    %193 = vector.load %arg14[%c1_192, %c2_193, %c0_194] : memref<10x10x256xf32, #tpu.memory_space<vmem>>, vector<8x8x256xf32>
    %194 = vector.shape_cast %193 : vector<8x8x256xf32> to vector<64x256xf32>
    %195 = arith.truncf %194 : vector<64x256xf32> to vector<64x256xbf16>
    %c5_195 = arith.constant 5 : index
    %c0_196 = arith.constant 0 : index
    %c0_197 = arith.constant 0 : index
    %196 = vector.load %arg9[%c5_195, %c0_196, %c0_197] : memref<9x256x128xbf16, #tpu.memory_space<vmem>>, vector<1x256x128xbf16>
    %197 = vector.shape_cast %196 : vector<1x256x128xbf16> to vector<256x128xbf16>
    %cst_198 = arith.constant dense<0.000000e+00> : vector<64x128xf32>
    %198 = tpu.matmul %195, %197, %cst_198 {dimension_numbers = #tpu.dot_dimension_numbers<[1], [0], [0], [1], [0, 0, 1, 1], [], []>} : vector<64x256xbf16>, vector<256x128xbf16>, vector<64x128xf32> -> vector<64x128xf32>
    %199 = arith.addf %192, %198 : vector<64x128xf32>
    %c2_199 = arith.constant 2 : index
    %c0_200 = arith.constant 0 : index
    %c0_201 = arith.constant 0 : index
    %200 = vector.load %arg14[%c2_199, %c0_200, %c0_201] : memref<10x10x256xf32, #tpu.memory_space<vmem>>, vector<8x8x256xf32>
    %201 = vector.shape_cast %200 : vector<8x8x256xf32> to vector<64x256xf32>
    %202 = arith.truncf %201 : vector<64x256xf32> to vector<64x256xbf16>
    %c6_202 = arith.constant 6 : index
    %c0_203 = arith.constant 0 : index
    %c0_204 = arith.constant 0 : index
    %203 = vector.load %arg9[%c6_202, %c0_203, %c0_204] : memref<9x256x128xbf16, #tpu.memory_space<vmem>>, vector<1x256x128xbf16>
    %204 = vector.shape_cast %203 : vector<1x256x128xbf16> to vector<256x128xbf16>
    %cst_205 = arith.constant dense<0.000000e+00> : vector<64x128xf32>
    %205 = tpu.matmul %202, %204, %cst_205 {dimension_numbers = #tpu.dot_dimension_numbers<[1], [0], [0], [1], [0, 0, 1, 1], [], []>} : vector<64x256xbf16>, vector<256x128xbf16>, vector<64x128xf32> -> vector<64x128xf32>
    %206 = arith.addf %199, %205 : vector<64x128xf32>
    %c2_206 = arith.constant 2 : index
    %c1_207 = arith.constant 1 : index
    %c0_208 = arith.constant 0 : index
    %207 = vector.load %arg14[%c2_206, %c1_207, %c0_208] : memref<10x10x256xf32, #tpu.memory_space<vmem>>, vector<8x8x256xf32>
    %208 = vector.shape_cast %207 : vector<8x8x256xf32> to vector<64x256xf32>
    %209 = arith.truncf %208 : vector<64x256xf32> to vector<64x256xbf16>
    %c7_209 = arith.constant 7 : index
    %c0_210 = arith.constant 0 : index
    %c0_211 = arith.constant 0 : index
    %210 = vector.load %arg9[%c7_209, %c0_210, %c0_211] : memref<9x256x128xbf16, #tpu.memory_space<vmem>>, vector<1x256x128xbf16>
    %211 = vector.shape_cast %210 : vector<1x256x128xbf16> to vector<256x128xbf16>
    %cst_212 = arith.constant dense<0.000000e+00> : vector<64x128xf32>
    %212 = tpu.matmul %209, %211, %cst_212 {dimension_numbers = #tpu.dot_dimension_numbers<[1], [0], [0], [1], [0, 0, 1, 1], [], []>} : vector<64x256xbf16>, vector<256x128xbf16>, vector<64x128xf32> -> vector<64x128xf32>
    %213 = arith.addf %206, %212 : vector<64x128xf32>
    %c2_213 = arith.constant 2 : index
    %c2_214 = arith.constant 2 : index
    %c0_215 = arith.constant 0 : index
    %214 = vector.load %arg14[%c2_213, %c2_214, %c0_215] : memref<10x10x256xf32, #tpu.memory_space<vmem>>, vector<8x8x256xf32>
    %215 = vector.shape_cast %214 : vector<8x8x256xf32> to vector<64x256xf32>
    %216 = arith.truncf %215 : vector<64x256xf32> to vector<64x256xbf16>
    %c8_216 = arith.constant 8 : index
    %c0_217 = arith.constant 0 : index
    %c0_218 = arith.constant 0 : index
    %217 = vector.load %arg9[%c8_216, %c0_217, %c0_218] : memref<9x256x128xbf16, #tpu.memory_space<vmem>>, vector<1x256x128xbf16>
    %218 = vector.shape_cast %217 : vector<1x256x128xbf16> to vector<256x128xbf16>
    %cst_219 = arith.constant dense<0.000000e+00> : vector<64x128xf32>
    %219 = tpu.matmul %216, %218, %cst_219 {dimension_numbers = #tpu.dot_dimension_numbers<[1], [0], [0], [1], [0, 0, 1, 1], [], []>} : vector<64x256xbf16>, vector<256x128xbf16>, vector<64x128xf32> -> vector<64x128xf32>
    %220 = arith.addf %213, %219 : vector<64x128xf32>
    %c0_220 = arith.constant 0 : index
    %c0_221 = arith.constant 0 : index
    %221 = vector.load %arg10[%c0_220, %c0_221] : memref<1x128xf32, #tpu.memory_space<vmem>>, vector<1x128xf32>
    %222 = vector.broadcast %221 : vector<1x128xf32> to vector<64x128xf32>
    %223 = arith.addf %220, %222 : vector<64x128xf32>
    %cst_222 = arith.constant 0.000000e+00 : f32
    %224 = vector.broadcast %cst_222 : f32 to vector<64x128xf32>
    %225 = arith.maximumf %223, %224 : vector<64x128xf32>
    %c0_223 = arith.constant 0 : index
    %c0_224 = arith.constant 0 : index
    %c0_225 = arith.constant 0 : index
    %226 = vector.load %arg11[%c0_223, %c0_224, %c0_225] : memref<1x64x128xf32, #tpu.memory_space<vmem>>, vector<1x64x128xf32>
    %227 = vector.shape_cast %226 : vector<1x64x128xf32> to vector<64x128xf32>
    %228 = vector.shape_cast %225 : vector<64x128xf32> to vector<1x64x128xf32>
    tpu.vector_store %arg11[%c0_223, %c0_224, %c0_225], %228 {strides = array<i32>} : memref<1x64x128xf32, #tpu.memory_space<vmem>>, vector<1x64x128xf32>,
    return
  }
  func.func @transform_0(%arg0: i32) -> (i32, i32, i32) {
    %c0_i32 = arith.constant 0 : i32
    %c0_i32_0 = arith.constant 0 : i32
    %c0_i32_1 = arith.constant 0 : i32
    return %arg0, %c0_i32, %c0_i32_0 : i32, i32, i32
  }
  func.func @transform_1(%arg0: i32) -> (i32, i32, i32) {
    %c0_i32 = arith.constant 0 : i32
    %c0_i32_0 = arith.constant 0 : i32
    %c0_i32_1 = arith.constant 0 : i32
    return %arg0, %c0_i32, %c0_i32_0 : i32, i32, i32
  }
  func.func @transform_2(%arg0: i32) -> (i32, i32) {
    %c0_i32 = arith.constant 0 : i32
    %c0_i32_0 = arith.constant 0 : i32
    %c0_i32_1 = arith.constant 0 : i32
    return %c0_i32, %c0_i32_0 : i32, i32
  }
  func.func @transform_3(%arg0: i32) -> (i32, i32) {
    %c0_i32 = arith.constant 0 : i32
    %c0_i32_0 = arith.constant 0 : i32
    %c0_i32_1 = arith.constant 0 : i32
    return %c0_i32, %c0_i32_0 : i32, i32
  }
  func.func @transform_4(%arg0: i32) -> (i32, i32) {
    %c0_i32 = arith.constant 0 : i32
    %c0_i32_0 = arith.constant 0 : i32
    %c0_i32_1 = arith.constant 0 : i32
    return %c0_i32, %c0_i32_0 : i32, i32
  }
  func.func @transform_5(%arg0: i32) -> (i32, i32, i32) {
    %c0_i32 = arith.constant 0 : i32
    %c0_i32_0 = arith.constant 0 : i32
    %c0_i32_1 = arith.constant 0 : i32
    %c0_i32_2 = arith.constant 0 : i32
    return %c0_i32, %c0_i32_0, %c0_i32_1 : i32, i32, i32
  }
  func.func @transform_6(%arg0: i32) -> (i32, i32, i32) {
    %c0_i32 = arith.constant 0 : i32
    %c0_i32_0 = arith.constant 0 : i32
    %c0_i32_1 = arith.constant 0 : i32
    %c0_i32_2 = arith.constant 0 : i32
    return %c0_i32, %c0_i32_0, %c0_i32_1 : i32, i32, i32
  }
  func.func @transform_7(%arg0: i32) -> (i32, i32) {
    %c0_i32 = arith.constant 0 : i32
    %c0_i32_0 = arith.constant 0 : i32
    %c0_i32_1 = arith.constant 0 : i32
    return %c0_i32, %c0_i32_0 : i32, i32
  }
  func.func @transform_8(%arg0: i32) -> (i32, i32, i32) {
    %c0_i32 = arith.constant 0 : i32
    %c0_i32_0 = arith.constant 0 : i32
    %c0_i32_1 = arith.constant 0 : i32
    %c0_i32_2 = arith.constant 0 : i32
    return %c0_i32, %c0_i32_0, %c0_i32_1 : i32, i32, i32
  }
  func.func @transform_9(%arg0: i32) -> (i32, i32) {
    %c0_i32 = arith.constant 0 : i32
    %c0_i32_0 = arith.constant 0 : i32
    %c0_i32_1 = arith.constant 0 : i32
    return %c0_i32, %c0_i32_0 : i32, i32
  }
  func.func @transform_10(%arg0: i32) -> (i32, i32, i32) {
    %c0_i32 = arith.constant 0 : i32
    %c0_i32_0 = arith.constant 0 : i32
    %c0_i32_1 = arith.constant 0 : i32
    return %arg0, %c0_i32, %c0_i32_0 : i32, i32, i32
  }
}

</mosaic_0001>

<llo_original>
// kernel: deeplabv3p_forward.4
$region0: #{deeplabv3p_forward.4}
  #allocation0 [shape = 'u32[]', space=smem, size = 0x4, offset = 0x4, fixed_abs, tag = 'smem constant byte address 0x4 - core index']
  #allocation1 [shape = 'u32[72,128]{1,0:T(1,128)}', space=vmem, size = 0x9000, scoped, tag = 'internal scratch']
  %s0 = inlined_call_operand.vmem [shape: bf16[2,64,36], index: 0, kind: input, shape index: {}]
  %s1 = inlined_call_operand.vmem [shape: bf16[36,128], index: 1, kind: input, shape index: {}]
  %s2 = inlined_call_operand.vmem [shape: f32[1,128], index: 2, kind: input, shape index: {}]
  %s3 = inlined_call_operand.vmem [shape: f32[2,64,128], index: 3, kind: output, shape index: {}]
  %s4 = sld [smem:[#allocation0]]
  $region45: #{deeplabv3p_forward.4} parent=0
    _
  %s6 = ssub.s32 1, %s4
  %s7 = scalar_select 0, %s6, %s4
  loop: start=0, step=1, limit=4
  $region2: #{deeplabv3p_forward.4} parent=0 // loop_pre_header
    _
  $region3: #{deeplabv3p_forward.4} parent=0 // loop_header
    %s9 = sphi 0, %s13
    %p10 = scmp.ge.s32.totalorder %s9, 4
    %s19 = sphi 0, %s21
    %s22 = sphi 0, %s19
    %s23 = sphi 0, %s22
    %s39 = sphi 0, %s23
    %s43 = sphi 0, %s43
    %s45 = sphi 0, %s43
    %s46 = sphi 0, %s45
    %s60 = sphi 0, %s46
    %s64 = sphi 0, %s64
    %s66 = sphi 0, %s64
    %s67 = sphi 0, %s66
    %s81 = sphi 0, %s67
    %s87 = sphi 0, %s89
    %s90 = sphi 0, %s87
    %s91 = sphi 0, %s90
    %s107 = sphi 0, %s91
  $region4: #{deeplabv3p_forward.4} parent=0 // loop_header_branch
    %12 = sbr.rel (%p10) target = $region8
  $region5: #{deeplabv3p_forward.4} parent=0 // loop_body
    %s14 = ssub.s32 %s9, 1
    %s15 = ssub.s32 %s9, 2
    %s16 = sadd.s32 %s9, 1
    %s17 = ssub.s32 %s9, %s16
    %p18 = scmp.eq.s32.totalorder %s17, 0
    %s20 = sadd.s32 %s19, 1
    %s21 = scalar_select %p18, %s19, %s20
    %p24 = pneg %p18
    %p25 = scmp.eq.s32.totalorder %s9, 1
    %p26 = por %p24, %p25
    %p27 = scmp.ne.s32.totalorder %s19, %s22
    %p28 = scmp.eq.s32.totalorder %s9, 0
    %p29 = por %p27, %p28
    %p30 = scmp.ne.s32.totalorder %s19, %s22
    %p31 = scmp.eq.s32.totalorder %s14, 1
    %p32 = por %p30, %p31
    %p33 = scmp.ne.s32.totalorder %s22, %s23
    %p34 = scmp.eq.s32.totalorder %s14, 0
    %p35 = por %p33, %p34
    %p36 = scmp.ne.s32.totalorder %s22, %s23
    %p37 = scmp.eq.s32.totalorder %s15, 1
    %p38 = por %p36, %p37
    %p40 = scmp.ne.s32.totalorder %s23, %s39
    %p41 = scmp.eq.s32.totalorder %s15, 0
    %p42 = por %p40, %p41
    %s44 = sadd.s32 %s43, 1
    %p47 = scmp.eq.s32.totalorder %s9, 1
    %p48 = scmp.ne.s32.totalorder %s43, %s45
    %p49 = scmp.eq.s32.totalorder %s9, 0
    %p50 = por %p48, %p49
    %p51 = scmp.ne.s32.totalorder %s43, %s45
    %p52 = scmp.eq.s32.totalorder %s14, 1
    %p53 = por %p51, %p52
    %p54 = scmp.ne.s32.totalorder %s45, %s46
    %p55 = scmp.eq.s32.totalorder %s14, 0
    %p56 = por %p54, %p55
    %p57 = scmp.ne.s32.totalorder %s45, %s46
    %p58 = scmp.eq.s32.totalorder %s15, 1
    %p59 = por %p57, %p58
    %p61 = scmp.ne.s32.totalorder %s46, %s60
    %p62 = scmp.eq.s32.totalorder %s15, 0
    %p63 = por %p61, %p62
    %s65 = sadd.s32 %s64, 1
    %p68 = scmp.eq.s32.totalorder %s9, 1
    %p69 = scmp.ne.s32.totalorder %s64, %s66
    %p70 = scmp.eq.s32.totalorder %s9, 0
    %p71 = por %p69, %p70
    %p72 = scmp.ne.s32.totalorder %s64, %s66
    %p73 = scmp.eq.s32.totalorder %s14, 1
    %p74 = por %p72, %p73
    %p75 = scmp.ne.s32.totalorder %s66, %s67
    %p76 = scmp.eq.s32.totalorder %s14, 0
    %p77 = por %p75, %p76
    %p78 = scmp.ne.s32.totalorder %s66, %s67
    %p79 = scmp.eq.s32.totalorder %s15, 1
    %p80 = por %p78, %p79
    %p82 = scmp.ne.s32.totalorder %s67, %s81
    %p83 = scmp.eq.s32.totalorder %s15, 0
    %p84 = por %p82, %p83
    %s85 = ssub.s32 %s9, %s16
    %p86 = scmp.eq.s32.totalorder %s85, 0
    %s88 = sadd.s32 %s87, 1
    %s89 = scalar_select %p86, %s87, %s88
    %p92 = pneg %p86
    %p93 = scmp.eq.s32.totalorder %s9, 1
    %p94 = por %p92, %p93
    %p95 = scmp.ne.s32.totalorder %s87, %s90
    %p96 = scmp.eq.s32.totalorder %s9, 0
    %p97 = por %p95, %p96
    %p98 = scmp.ne.s32.totalorder %s87, %s90
    %p99 = scmp.eq.s32.totalorder %s14, 1
    %p100 = por %p98, %p99
    %p101 = scmp.ne.s32.totalorder %s90, %s91
    %p102 = scmp.eq.s32.totalorder %s14, 0
    %p103 = por %p101, %p102
    %p104 = scmp.ne.s32.totalorder %s90, %s91
    %p105 = scmp.eq.s32.totalorder %s15, 1
    %p106 = por %p104, %p105
    %p108 = scmp.ne.s32.totalorder %s91, %s107
    %p109 = scmp.eq.s32.totalorder %s15, 0
    %p110 = por %p108, %p109
    %p111 = scmp.le.s32.totalorder 1, %s9
    %p112 = scmp.lt.s32.totalorder %s9, 3
    %p113 = pnand %p111, %p112
    %p114 = pneg %p113
    // Predicated region
    $region9: #{deeplabv3p_forward.4} parent=5 // pred_check
      _
    $region10: #{deeplabv3p_forward.4} parent=5 // pred_check_branch
      %116 = sbr.rel (%p113) target = $region12
    $region11: #{deeplabv3p_forward.4} parent=5 // pred_region
      %s117 = ssub.s32 %s9, 1
      // Predicated region
      $region13: #{deeplabv3p_forward.4} parent=11 // pred_check
        %p118 = pneg %p56
      $region14: #{deeplabv3p_forward.4} parent=11 // pred_check_branch
        %120 = sbr.rel (%p118) target = $region16
      $region15: #{deeplabv3p_forward.4} parent=11 // pred_region
        _
      $region16: #{deeplabv3p_forward.4} parent=11 // pred_fallthru
        _
      // Predicated region
      $region17: #{deeplabv3p_forward.4} parent=11 // pred_check
        %p121 = pneg %p77
      $region18: #{deeplabv3p_forward.4} parent=11 // pred_check_branch
        %123 = sbr.rel (%p121) target = $region20
      $region19: #{deeplabv3p_forward.4} parent=11 // pred_region
        _
      $region20: #{deeplabv3p_forward.4} parent=11 // pred_fallthru
        _
    $region12: #{deeplabv3p_forward.4} parent=5 // pred_fallthru
      _
    %p124 = scmp.lt.s32.totalorder %s9, 2
    // Predicated region
    $region21: #{deeplabv3p_forward.4} parent=5 // pred_check
      %p125 = pneg %p124
    $region22: #{deeplabv3p_forward.4} parent=5 // pred_check_branch
      %127 = sbr.rel (%p125) target = $region24
    $region23: #{deeplabv3p_forward.4} parent=5 // pred_region
      // Predicated region
      $region25: #{deeplabv3p_forward.4} parent=23 // pred_check
        %p128 = pneg %p29
      $region26: #{deeplabv3p_forward.4} parent=23 // pred_check_branch
        %130 = sbr.rel (%p128) target = $region28
      $region27: #{deeplabv3p_forward.4} parent=23 // pred_region
        %p131 = scmp.lt.s32.totalorder %s9, 1
        %s132 = scalar_select %p131, %s9, 1
        %s133 = smul.addr %s132, 8
        %s134 = smul.addr %s133, 4
        %s135 = scalar_lea.vmem %s0, %s134
      $region28: #{deeplabv3p_forward.4} parent=23 // pred_fallthru
        _
    $region24: #{deeplabv3p_forward.4} parent=5 // pred_fallthru
      _
    %p136 = scmp.le.s32.totalorder 1, %s9
    %p137 = scmp.lt.s32.totalorder %s9, 3
    %p138 = pnand %p136, %p137
    %p139 = pneg %p138
    // Predicated region
    $region29: #{deeplabv3p_forward.4} parent=5 // pred_check
      _
    $region30: #{deeplabv3p_forward.4} parent=5 // pred_check_branch
      %141 = sbr.rel (%p138) target = $region32
    $region31: #{deeplabv3p_forward.4} parent=5 // pred_region
      %s142 = ssub.s32 %s9, 1
      %p143 = scmp.lt.s32.totalorder %s14, 1
      %s144 = scalar_select %p143, %s14, 1
      %s145 = smul.addr %s144, 8
      %s146 = smul.addr %s145, 4
      %s147 = scalar_lea.vmem %s0, %s146
      %p148 = pneg %p35
      %p149 = pneg %p32
      %p150 = pneg %p56
      %p151 = pneg %p53
      %p152 = pneg %p77
      %p153 = pneg %p74
      %p154 = pneg %p103
      %p155 = pneg %p100
      %p156 = scmp.lt.s32.totalorder %s14, 1
      %s157 = scalar_select %p156, %s14, 1
      %s158 = smul.addr %s157, 8
      %s159 = smul.addr %s158, 8
      %s160 = scalar_lea.vmem %s3, %s159
      %p161 = scmp.lt.s32.totalorder %s14, 1
      %s162 = scalar_select %p161, %s14, 1
      %s163 = smul.addr %s162, 8
      %s164 = smul.addr %s163, 4
      %s165 = scalar_lea.vmem %s0, %s164
      %p166 = scmp.lt.s32.totalorder %s14, 1
      %s167 = scalar_select %p166, %s14, 1
      %s168 = smul.addr %s167, 8
      %s169 = smul.addr %s168, 8
      %s170 = scalar_lea.vmem %s3, %s169
      %v172 = vld [vmem:[%s165] sm:$0xf]
      %v173 = vld [vmem:[%s165 + $0x4] sm:$0xf]
      %v174 = vld [vmem:[%s165 + $0x8] sm:$0xf]
      %v175 = vld [vmem:[%s165 + $0xc] sm:$0xf]
      %v176 = vld [vmem:[%s165 + $0x10] sm:$0xf]
      %v177 = vld [vmem:[%s165 + $0x14] sm:$0xf]
      %v178 = vld [vmem:[%s165 + $0x18] sm:$0xf]
      %v179 = vld [vmem:[%s165 + $0x1c] sm:$0xf]
      %v180 = vld [vmem:[%s1] sm:$0xf]
      %v181 = vld [vmem:[%s1 + $0x4] sm:$0xf]
      %v182 = vld [vmem:[%s1 + $0x8] sm:$0xf]
      %v183 = vld [vmem:[%s1 + $0xc] sm:$0xf]
      %v184 = vld [vmem:[%s1 + $0x10] sm:$0x3]
      %v185 = vld [vmem:[%s2] sm:$0x1]
      %v187 = vperm.slane %v185, 0
      %v197 = vunpack.c.l.b16 %v172
      %v198 = vunpack.c.l.b16 %v173
      %v199 = vunpack.c.l.b16 %v174
      %v200 = vunpack.c.l.b16 %v175
      %v201 = vunpack.c.l.b16 %v176
      %v202 = vunpack.c.l.b16 %v177
      %v203 = vunpack.c.l.b16 %v178
      %v204 = vunpack.c.l.b16 %v179
      %v205 = vpack.c.b16 %v198, %v197
      %v206 = vpack.c.b16 %v200, %v199
      %v207 = vpack.c.b16 %v202, %v201
      %v208 = vpack.c.b16 %v204, %v203
      %v214 = vunpack.c.l.b16 %v180
      %v215 = vunpack.c.l.b16 %v181
      %v216 = vunpack.c.l.b16 %v182
      %v217 = vunpack.c.l.b16 %v183
      %v218 = vunpack.c.l.b16 %v184
      %v219 = vpack.c.b16 %v215, %v214
      %v220 = vpack.c.b16 %v217, %v216
      %v221 = vpack.c.b16 %v218, %v218
      %vm224 = vcmask 293888
      %v226 = vsel %vm224, %v205, 0
      %v229 = vsel %vm224, %v206, 0
      %v232 = vsel %vm224, %v207, 0
      %v235 = vsel %vm224, %v208, 0
      %vm237 = vcmask 1041408
      %v239 = vsel %vm237, %v221, 0
      %241 = vmatpush.bf16.msra.mxu0 0
      %242 = vmatpush.bf16.msra.mxu0 0
      %243 = vmatpush.bf16.msra.mxu0 0
      %244 = vmatpush.bf16.msra.mxu0 0
      %245 = vmatpush.bf16.msra.mxu0 0
      %246 = vmatpush.bf16.msra.mxu0 %v239
      %247 = vmatpush.bf16.msra.mxu0 %v220
      %248 = vmatpush.bf16.msra.mxu0 %v219
      %249 = vmatmul.bf16.gmra.mxu0 %v226
      %v250 = vpop.f32.mrf.mxu0
      %v251 = vadd.f32 %v187, %v250
      %v252 = vpop.f32.mrf.mxu0
      %v253 = vadd.f32 %v187, %v252
      %254 = vmatmul.bf16.gmra.mxu0 %v229
      %v255 = vpop.f32.mrf.mxu0
      %v256 = vadd.f32 %v187, %v255
      %v257 = vpop.f32.mrf.mxu0
      %v258 = vadd.f32 %v187, %v257
      %259 = vmatmul.bf16.gmra.mxu0 %v232
      %v260 = vpop.f32.mrf.mxu0
      %v261 = vadd.f32 %v187, %v260
      %v262 = vpop.f32.mrf.mxu0
      %v263 = vadd.f32 %v187, %v262
      %264 = vmatmul.bf16.gmra.mxu0 %v235
      %v265 = vpop.f32.mrf.mxu0
      %v266 = vadd.f32 %v187, %v265
      %v267 = vpop.f32.mrf.mxu0
      %v268 = vadd.f32 %v187, %v267
      %269 = vdwg.mxu0
      %v270 = vmax.f32 %v251, 0.0
      %v271 = vmax.f32 %v253, 0.0
      %v272 = vmax.f32 %v256, 0.0
      %v273 = vmax.f32 %v258, 0.0
      %v274 = vmax.f32 %v261, 0.0
      %v275 = vmax.f32 %v263, 0.0
      %v276 = vmax.f32 %v266, 0.0
      %v277 = vmax.f32 %v268, 0.0
      %278 = vst [vmem:[%s170] sm:$0xff] %v270
      %279 = vst [vmem:[%s170 + $0x8] sm:$0xff] %v271
      %280 = vst [vmem:[%s170 + $0x10] sm:$0xff] %v272
      %281 = vst [vmem:[%s170 + $0x18] sm:$0xff] %v273
      %282 = vst [vmem:[%s170 + $0x20] sm:$0xff] %v274
      %283 = vst [vmem:[%s170 + $0x28] sm:$0xff] %v275
      %284 = vst [vmem:[%s170 + $0x30] sm:$0xff] %v276
      %285 = vst [vmem:[%s170 + $0x38] sm:$0xff] %v277
      %p286 = scmp.lt.s32.totalorder %s14, 1
      %s287 = scalar_select %p286, %s14, 1
      %s288 = smul.addr %s287, 8
      %s289 = smul.addr %s288, 8
      %s290 = scalar_lea.vmem %s3, %s289
      // Predicated region
      $region33: #{deeplabv3p_forward.4} parent=31 // pred_check
        %p291 = pneg %p100
      $region34: #{deeplabv3p_forward.4} parent=31 // pred_check_branch
        %293 = sbr.rel (%p291) target = $region36
      $region35: #{deeplabv3p_forward.4} parent=31 // pred_region
        _
      $region36: #{deeplabv3p_forward.4} parent=31 // pred_fallthru
        _
    $region32: #{deeplabv3p_forward.4} parent=5 // pred_fallthru
      _
    %p294 = scmp.le.s32.totalorder 2, %s9
    // Predicated region
    $region37: #{deeplabv3p_forward.4} parent=5 // pred_check
      %p295 = pneg %p294
    $region38: #{deeplabv3p_forward.4} parent=5 // pred_check_branch
      %297 = sbr.rel (%p295) target = $region40
    $region39: #{deeplabv3p_forward.4} parent=5 // pred_region
      %s298 = ssub.s32 %s9, 2
      // Predicated region
      $region41: #{deeplabv3p_forward.4} parent=39 // pred_check
        %p299 = pneg %p106
      $region42: #{deeplabv3p_forward.4} parent=39 // pred_check_branch
        %301 = sbr.rel (%p299) target = $region44
      $region43: #{deeplabv3p_forward.4} parent=39 // pred_region
        %p302 = scmp.lt.s32.totalorder %s15, 1
        %s303 = scalar_select %p302, %s15, 1
        %s304 = smul.addr %s303, 8
        %s305 = smul.addr %s304, 8
        %s306 = scalar_lea.vmem %s3, %s305
      $region44: #{deeplabv3p_forward.4} parent=39 // pred_fallthru
        _
    $region40: #{deeplabv3p_forward.4} parent=5 // pred_fallthru
      _
  $region6: #{deeplabv3p_forward.4} parent=0 // loop_footer
    %s13 = sadd.s32 1, %s9
  $region7: #{deeplabv3p_forward.4} parent=0 // loop_footer_branch
    %8 = sbr.rel target = $region3
  $region8: #{deeplabv3p_forward.4} parent=0 // loop_exit
    _

// kernel: deeplabv3p_forward.5
$region0: #{deeplabv3p_forward.5}
  #allocation0 [shape = 'u32[]', space=smem, size = 0x4, offset = 0x4, fixed_abs, tag = 'smem constant byte address 0x4 - core index']
  #allocation1 [shape = 'u32[72,128]{1,0:T(1,128)}', space=vmem, size = 0x9000, scoped, tag = 'internal scratch']
  %s0 = inlined_call_operand.vmem [shape: bf16[2,16,72], index: 0, kind: input, shape index: {}]
  %s1 = inlined_call_operand.vmem [shape: bf16[72,128], index: 1, kind: input, shape index: {}]
  %s2 = inlined_call_operand.vmem [shape: f32[1,128], index: 2, kind: input, shape index: {}]
  %s3 = inlined_call_operand.vmem [shape: f32[2,16,128], index: 3, kind: output, shape index: {}]
  %s4 = sld [smem:[#allocation0]]
  $region45: #{deeplabv3p_forward.5} parent=0
    _
  %s6 = ssub.s32 1, %s4
  %s7 = scalar_select 0, %s6, %s4
  loop: start=0, step=1, limit=4
  $region2: #{deeplabv3p_forward.5} parent=0 // loop_pre_header
    _
  $region3: #{deeplabv3p_forward.5} parent=0 // loop_header
    %s9 = sphi 0, %s13
    %p10 = scmp.ge.s32.totalorder %s9, 4
    %s19 = sphi 0, %s21
    %s22 = sphi 0, %s19
    %s23 = sphi 0, %s22
    %s39 = sphi 0, %s23
    %s43 = sphi 0, %s43
    %s45 = sphi 0, %s43
    %s46 = sphi 0, %s45
    %s60 = sphi 0, %s46
    %s64 = sphi 0, %s64
    %s66 = sphi 0, %s64
    %s67 = sphi 0, %s66
    %s81 = sphi 0, %s67
    %s87 = sphi 0, %s89
    %s90 = sphi 0, %s87
    %s91 = sphi 0, %s90
    %s107 = sphi 0, %s91
  $region4: #{deeplabv3p_forward.5} parent=0 // loop_header_branch
    %12 = sbr.rel (%p10) target = $region8
  $region5: #{deeplabv3p_forward.5} parent=0 // loop_body
    %s14 = ssub.s32 %s9, 1
    %s15 = ssub.s32 %s9, 2
    %s16 = sadd.s32 %s9, 1
    %s17 = ssub.s32 %s9, %s16
    %p18 = scmp.eq.s32.totalorder %s17, 0
    %s20 = sadd.s32 %s19, 1
    %s21 = scalar_select %p18, %s19, %s20
    %p24 = pneg %p18
    %p25 = scmp.eq.s32.totalorder %s9, 1
    %p26 = por %p24, %p25
    %p27 = scmp.ne.s32.totalorder %s19, %s22
    %p28 = scmp.eq.s32.totalorder %s9, 0
    %p29 = por %p27, %p28
    %p30 = scmp.ne.s32.totalorder %s19, %s22
    %p31 = scmp.eq.s32.totalorder %s14, 1
    %p32 = por %p30, %p31
    %p33 = scmp.ne.s32.totalorder %s22, %s23
    %p34 = scmp.eq.s32.totalorder %s14, 0
    %p35 = por %p33, %p34
    %p36 = scmp.ne.s32.totalorder %s22, %s23
    %p37 = scmp.eq.s32.totalorder %s15, 1
    %p38 = por %p36, %p37
    %p40 = scmp.ne.s32.totalorder %s23, %s39
    %p41 = scmp.eq.s32.totalorder %s15, 0
    %p42 = por %p40, %p41
    %s44 = sadd.s32 %s43, 1
    %p47 = scmp.eq.s32.totalorder %s9, 1
    %p48 = scmp.ne.s32.totalorder %s43, %s45
    %p49 = scmp.eq.s32.totalorder %s9, 0
    %p50 = por %p48, %p49
    %p51 = scmp.ne.s32.totalorder %s43, %s45
    %p52 = scmp.eq.s32.totalorder %s14, 1
    %p53 = por %p51, %p52
    %p54 = scmp.ne.s32.totalorder %s45, %s46
    %p55 = scmp.eq.s32.totalorder %s14, 0
    %p56 = por %p54, %p55
    %p57 = scmp.ne.s32.totalorder %s45, %s46
    %p58 = scmp.eq.s32.totalorder %s15, 1
    %p59 = por %p57, %p58
    %p61 = scmp.ne.s32.totalorder %s46, %s60
    %p62 = scmp.eq.s32.totalorder %s15, 0
    %p63 = por %p61, %p62
    %s65 = sadd.s32 %s64, 1
    %p68 = scmp.eq.s32.totalorder %s9, 1
    %p69 = scmp.ne.s32.totalorder %s64, %s66
    %p70 = scmp.eq.s32.totalorder %s9, 0
    %p71 = por %p69, %p70
    %p72 = scmp.ne.s32.totalorder %s64, %s66
    %p73 = scmp.eq.s32.totalorder %s14, 1
    %p74 = por %p72, %p73
    %p75 = scmp.ne.s32.totalorder %s66, %s67
    %p76 = scmp.eq.s32.totalorder %s14, 0
    %p77 = por %p75, %p76
    %p78 = scmp.ne.s32.totalorder %s66, %s67
    %p79 = scmp.eq.s32.totalorder %s15, 1
    %p80 = por %p78, %p79
    %p82 = scmp.ne.s32.totalorder %s67, %s81
    %p83 = scmp.eq.s32.totalorder %s15, 0
    %p84 = por %p82, %p83
    %s85 = ssub.s32 %s9, %s16
    %p86 = scmp.eq.s32.totalorder %s85, 0
    %s88 = sadd.s32 %s87, 1
    %s89 = scalar_select %p86, %s87, %s88
    %p92 = pneg %p86
    %p93 = scmp.eq.s32.totalorder %s9, 1
    %p94 = por %p92, %p93
    %p95 = scmp.ne.s32.totalorder %s87, %s90
    %p96 = scmp.eq.s32.totalorder %s9, 0
    %p97 = por %p95, %p96
    %p98 = scmp.ne.s32.totalorder %s87, %s90
    %p99 = scmp.eq.s32.totalorder %s14, 1
    %p100 = por %p98, %p99
    %p101 = scmp.ne.s32.totalorder %s90, %s91
    %p102 = scmp.eq.s32.totalorder %s14, 0
    %p103 = por %p101, %p102
    %p104 = scmp.ne.s32.totalorder %s90, %s91
    %p105 = scmp.eq.s32.totalorder %s15, 1
    %p106 = por %p104, %p105
    %p108 = scmp.ne.s32.totalorder %s91, %s107
    %p109 = scmp.eq.s32.totalorder %s15, 0
    %p110 = por %p108, %p109
    %p111 = scmp.le.s32.totalorder 1, %s9
    %p112 = scmp.lt.s32.totalorder %s9, 3
    %p113 = pnand %p111, %p112
    %p114 = pneg %p113
    // Predicated region
    $region9: #{deeplabv3p_forward.5} parent=5 // pred_check
      _
    $region10: #{deeplabv3p_forward.5} parent=5 // pred_check_branch
      %116 = sbr.rel (%p113) target = $region12
    $region11: #{deeplabv3p_forward.5} parent=5 // pred_region
      %s117 = ssub.s32 %s9, 1
      // Predicated region
      $region13: #{deeplabv3p_forward.5} parent=11 // pred_check
        %p118 = pneg %p56
      $region14: #{deeplabv3p_forward.5} parent=11 // pred_check_branch
        %120 = sbr.rel (%p118) target = $region16
      $region15: #{deeplabv3p_forward.5} parent=11 // pred_region
        _
      $region16: #{deeplabv3p_forward.5} parent=11 // pred_fallthru
        _
      // Predicated region
      $region17: #{deeplabv3p_forward.5} parent=11 // pred_check
        %p121 = pneg %p77
      $region18: #{deeplabv3p_forward.5} parent=11 // pred_check_branch
        %123 = sbr.rel (%p121) target = $region20
      $region19: #{deeplabv3p_forward.5} parent=11 // pred_region
        _
      $region20: #{deeplabv3p_forward.5} parent=11 // pred_fallthru
        _
    $region12: #{deeplabv3p_forward.5} parent=5 // pred_fallthru
      _
    %p124 = scmp.lt.s32.totalorder %s9, 2
    // Predicated region
    $region21: #{deeplabv3p_forward.5} parent=5 // pred_check
      %p125 = pneg %p124
    $region22: #{deeplabv3p_forward.5} parent=5 // pred_check_branch
      %127 = sbr.rel (%p125) target = $region24
    $region23: #{deeplabv3p_forward.5} parent=5 // pred_region
      // Predicated region
      $region25: #{deeplabv3p_forward.5} parent=23 // pred_check
        %p128 = pneg %p29
      $region26: #{deeplabv3p_forward.5} parent=23 // pred_check_branch
        %130 = sbr.rel (%p128) target = $region28
      $region27: #{deeplabv3p_forward.5} parent=23 // pred_region
        %p131 = scmp.lt.s32.totalorder %s9, 1
        %s132 = scalar_select %p131, %s9, 1
        %s133 = smul.addr %s132, 2
        %s134 = smul.addr %s133, 4
        %s135 = scalar_lea.vmem %s0, %s134
      $region28: #{deeplabv3p_forward.5} parent=23 // pred_fallthru
        _
    $region24: #{deeplabv3p_forward.5} parent=5 // pred_fallthru
      _
    %p136 = scmp.le.s32.totalorder 1, %s9
    %p137 = scmp.lt.s32.totalorder %s9, 3
    %p138 = pnand %p136, %p137
    %p139 = pneg %p138
    // Predicated region
    $region29: #{deeplabv3p_forward.5} parent=5 // pred_check
      _
    $region30: #{deeplabv3p_forward.5} parent=5 // pred_check_branch
      %141 = sbr.rel (%p138) target = $region32
    $region31: #{deeplabv3p_forward.5} parent=5 // pred_region
      %s142 = ssub.s32 %s9, 1
      %p143 = scmp.lt.s32.totalorder %s14, 1
      %s144 = scalar_select %p143, %s14, 1
      %s145 = smul.addr %s144, 2
      %s146 = smul.addr %s145, 4
      %s147 = scalar_lea.vmem %s0, %s146
      %p148 = pneg %p35
      %p149 = pneg %p32
      %p150 = pneg %p56
      %p151 = pneg %p53
      %p152 = pneg %p77
      %p153 = pneg %p74
      %p154 = pneg %p103
      %p155 = pneg %p100
      %p156 = scmp.lt.s32.totalorder %s14, 1
      %s157 = scalar_select %p156, %s14, 1
      %s158 = smul.addr %s157, 2
      %s159 = smul.addr %s158, 8
      %s160 = scalar_lea.vmem %s3, %s159
      %p161 = scmp.lt.s32.totalorder %s14, 1
      %s162 = scalar_select %p161, %s14, 1
      %s163 = smul.addr %s162, 2
      %s164 = smul.addr %s163, 4
      %s165 = scalar_lea.vmem %s0, %s164
      %p166 = scmp.lt.s32.totalorder %s14, 1
      %s167 = scalar_select %p166, %s14, 1
      %s168 = smul.addr %s167, 2
      %s169 = smul.addr %s168, 8
      %s170 = scalar_lea.vmem %s3, %s169
      %v172 = vld [vmem:[%s165] sm:$0xf]
      %v173 = vld [vmem:[%s165 + $0x4] sm:$0xf]
      %v174 = vld [vmem:[%s1] sm:$0xf]
      %v175 = vld [vmem:[%s1 + $0x4] sm:$0xf]
      %v176 = vld [vmem:[%s1 + $0x8] sm:$0xf]
      %v177 = vld [vmem:[%s1 + $0xc] sm:$0xf]
      %v178 = vld [vmem:[%s1 + $0x10] sm:$0xf]
      %v179 = vld [vmem:[%s1 + $0x14] sm:$0xf]
      %v180 = vld [vmem:[%s1 + $0x18] sm:$0xf]
      %v181 = vld [vmem:[%s1 + $0x1c] sm:$0xf]
      %v182 = vld [vmem:[%s1 + $0x20] sm:$0xf]
      %v183 = vld [vmem:[%s2] sm:$0x1]
      %v185 = vperm.slane %v183, 0
      %v189 = vunpack.c.l.b16 %v172
      %v190 = vunpack.c.l.b16 %v173
      %v191 = vpack.c.b16 %v190, %v189
      %v201 = vunpack.c.l.b16 %v174
      %v202 = vunpack.c.l.b16 %v175
      %v203 = vunpack.c.l.b16 %v176
      %v204 = vunpack.c.l.b16 %v177
      %v205 = vunpack.c.l.b16 %v178
      %v206 = vunpack.c.l.b16 %v179
      %v207 = vunpack.c.l.b16 %v180
      %v208 = vunpack.c.l.b16 %v181
      %v209 = vunpack.c.l.b16 %v182
      %v210 = vpack.c.b16 %v202, %v201
      %v211 = vpack.c.b16 %v204, %v203
      %v212 = vpack.c.b16 %v206, %v205
      %v213 = vpack.c.b16 %v208, %v207
      %v214 = vpack.c.b16 %v209, %v209
      %vm219 = vcmask 588800
      %v221 = vsel %vm219, %v191, 0
      %vm223 = vcmask 1043456
      %v225 = vsel %vm223, %v214, 0
      %227 = vmatpush.bf16.msra.mxu0 0
      %228 = vmatpush.bf16.msra.mxu0 0
      %229 = vmatpush.bf16.msra.mxu0 0
      %230 = vmatpush.bf16.msra.mxu0 %v225
      %231 = vmatpush.bf16.msra.mxu0 %v213
      %232 = vmatpush.bf16.msra.mxu0 %v212
      %233 = vmatpush.bf16.msra.mxu0 %v211
      %234 = vmatpush.bf16.msra.mxu0 %v210
      %235 = vmatmul.bf16.gmra.mxu0 %v221
      %v236 = vpop.f32.mrf.mxu0
      %v237 = vadd.f32 %v185, %v236
      %v238 = vpop.f32.mrf.mxu0
      %v239 = vadd.f32 %v185, %v238
      %240 = vdwg.mxu0
      %v241 = vmax.f32 %v237, 0.0
      %v242 = vmax.f32 %v239, 0.0
      %243 = vst [vmem:[%s170] sm:$0xff] %v241
      %244 = vst [vmem:[%s170 + $0x8] sm:$0xff] %v242
      %p245 = scmp.lt.s32.totalorder %s14, 1
      %s246 = scalar_select %p245, %s14, 1
      %s247 = smul.addr %s246, 2
      %s248 = smul.addr %s247, 8
      %s249 = scalar_lea.vmem %s3, %s248
      // Predicated region
      $region33: #{deeplabv3p_forward.5} parent=31 // pred_check
        %p250 = pneg %p100
      $region34: #{deeplabv3p_forward.5} parent=31 // pred_check_branch
        %252 = sbr.rel (%p250) target = $region36
      $region35: #{deeplabv3p_forward.5} parent=31 // pred_region
        _
      $region36: #{deeplabv3p_forward.5} parent=31 // pred_fallthru
        _
    $region32: #{deeplabv3p_forward.5} parent=5 // pred_fallthru
      _
    %p253 = scmp.le.s32.totalorder 2, %s9
    // Predicated region
    $region37: #{deeplabv3p_forward.5} parent=5 // pred_check
      %p254 = pneg %p253
    $region38: #{deeplabv3p_forward.5} parent=5 // pred_check_branch
      %256 = sbr.rel (%p254) target = $region40
    $region39: #{deeplabv3p_forward.5} parent=5 // pred_region
      %s257 = ssub.s32 %s9, 2
      // Predicated region
      $region41: #{deeplabv3p_forward.5} parent=39 // pred_check
        %p258 = pneg %p106
      $region42: #{deeplabv3p_forward.5} parent=39 // pred_check_branch
        %260 = sbr.rel (%p258) target = $region44
      $region43: #{deeplabv3p_forward.5} parent=39 // pred_region
        %p261 = scmp.lt.s32.totalorder %s15, 1
        %s262 = scalar_select %p261, %s15, 1
        %s263 = smul.addr %s262, 2
        %s264 = smul.addr %s263, 8
        %s265 = scalar_lea.vmem %s3, %s264
      $region44: #{deeplabv3p_forward.5} parent=39 // pred_fallthru
        _
    $region40: #{deeplabv3p_forward.5} parent=5 // pred_fallthru
      _
  $region6: #{deeplabv3p_forward.5} parent=0 // loop_footer
    %s13 = sadd.s32 1, %s9
  $region7: #{deeplabv3p_forward.5} parent=0 // loop_footer_branch
    %8 = sbr.rel target = $region3
  $region8: #{deeplabv3p_forward.5} parent=0 // loop_exit
    _

// kernel: deeplabv3p_forward.6
$region0: #{deeplabv3p_forward.6}
  #allocation0 [shape = 'u32[]', space=smem, size = 0x4, offset = 0x4, fixed_abs, tag = 'smem constant byte address 0x4 - core index']
  #allocation1 [shape = 'u32[72,128]{1,0:T(1,128)}', space=vmem, size = 0x9000, scoped, tag = 'internal scratch']
  %s0 = inlined_call_operand.vmem [shape: bf16[2,16,16], index: 0, kind: input, shape index: {}]
  %s1 = inlined_call_operand.vmem [shape: bf16[2,3,16,144], index: 1, kind: input, shape index: {}]
  %s2 = inlined_call_operand.vmem [shape: bf16[16,256], index: 2, kind: input, shape index: {}]
  %s3 = inlined_call_operand.hbm [shape: bf16[3,144,256], index: 3, kind: input, shape index: {}]
  %s4 = inlined_call_operand.vmem [shape: bf16[16,256], index: 4, kind: input, shape index: {}]
  %s5 = inlined_call_operand.vmem [shape: bf16[5,256,256], index: 5, kind: input, shape index: {}]
  %s6 = inlined_call_operand.vmem [shape: f32[5,256], index: 6, kind: input, shape index: {}]
  %s7 = inlined_call_operand.vmem [shape: f32[1,256], index: 7, kind: input, shape index: {}]
  %s8 = inlined_call_operand.vmem [shape: bf16[2,16,256], index: 8, kind: output, shape index: {}]
  %s9 = sld [smem:[#allocation0]]
  $region69: #{deeplabv3p_forward.6} parent=0
    _
  %s11 = ssub.s32 1, %s9
  %s12 = scalar_select 0, %s11, %s9
  $region1: #{deeplabv3p_forward.6} parent=0
    #allocation2 [shape = 'u8[221184]{0}', space=vmem, size = 0x36000, scoped, tag = 'input window, operand 3, single buffered']
    #allocation3 [shape = 's32[2]{0}', space=sflag, size = 0x8, scoped, tag = 'scoped memory for deeplabv3p_forward.6']
    %13 = vsyncpa [#allocation3], 0
    loop: start=0, step=1, limit=4
    $region2: #{deeplabv3p_forward.6} parent=1 // loop_pre_header
      _
    $region3: #{deeplabv3p_forward.6} parent=1 // loop_header
      %s15 = sphi 0, %s19
      %p16 = scmp.ge.s32.totalorder %s15, 4
      %s25 = sphi 0, %s27
      %s28 = sphi 0, %s25
      %s29 = sphi 0, %s28
      %s45 = sphi 0, %s29
      %s51 = sphi 0, %s53
      %s54 = sphi 0, %s51
      %s55 = sphi 0, %s54
      %s71 = sphi 0, %s55
      %s75 = sphi 0, %s75
      %s77 = sphi 0, %s75
      %s78 = sphi 0, %s77
      %s92 = sphi 0, %s78
      %s96 = sphi 0, %s96
      %s98 = sphi 0, %s96
      %s99 = sphi 0, %s98
      %s113 = sphi 0, %s99
      %s117 = sphi 0, %s117
      %s119 = sphi 0, %s117
      %s120 = sphi 0, %s119
      %s134 = sphi 0, %s120
      %s138 = sphi 0, %s138
      %s140 = sphi 0, %s138
      %s141 = sphi 0, %s140
      %s155 = sphi 0, %s141
      %s159 = sphi 0, %s159
      %s161 = sphi 0, %s159
      %s162 = sphi 0, %s161
      %s176 = sphi 0, %s162
      %s180 = sphi 0, %s180
      %s182 = sphi 0, %s180
      %s183 = sphi 0, %s182
      %s197 = sphi 0, %s183
      %s203 = sphi 0, %s205
      %s206 = sphi 0, %s203
      %s207 = sphi 0, %s206
      %s223 = sphi 0, %s207
    $region4: #{deeplabv3p_forward.6} parent=1 // loop_header_branch
      %18 = sbr.rel (%p16) target = $region8
    $region5: #{deeplabv3p_forward.6} parent=1 // loop_body
      %s20 = ssub.s32 %s15, 1
      %s21 = ssub.s32 %s15, 2
      %s22 = sadd.s32 %s15, 1
      %s23 = ssub.s32 %s15, %s22
      %p24 = scmp.eq.s32.totalorder %s23, 0
      %s26 = sadd.s32 %s25, 1
      %s27 = scalar_select %p24, %s25, %s26
      %p30 = pneg %p24
      %p31 = scmp.eq.s32.totalorder %s15, 1
      %p32 = por %p30, %p31
      %p33 = scmp.ne.s32.totalorder %s25, %s28
      %p34 = scmp.eq.s32.totalorder %s15, 0
      %p35 = por %p33, %p34
      %p36 = scmp.ne.s32.totalorder %s25, %s28
      %p37 = scmp.eq.s32.totalorder %s20, 1
      %p38 = por %p36, %p37
      %p39 = scmp.ne.s32.totalorder %s28, %s29
      %p40 = scmp.eq.s32.totalorder %s20, 0
      %p41 = por %p39, %p40
      %p42 = scmp.ne.s32.totalorder %s28, %s29
      %p43 = scmp.eq.s32.totalorder %s21, 1
      %p44 = por %p42, %p43
      %p46 = scmp.ne.s32.totalorder %s29, %s45
      %p47 = scmp.eq.s32.totalorder %s21, 0
      %p48 = por %p46, %p47
      %s49 = ssub.s32 %s15, %s22
      %p50 = scmp.eq.s32.totalorder %s49, 0
      %s52 = sadd.s32 %s51, 1
      %s53 = scalar_select %p50, %s51, %s52
      %p56 = pneg %p50
      %p57 = scmp.eq.s32.totalorder %s15, 1
      %p58 = por %p56, %p57
      %p59 = scmp.ne.s32.totalorder %s51, %s54
      %p60 = scmp.eq.s32.totalorder %s15, 0
      %p61 = por %p59, %p60
      %p62 = scmp.ne.s32.totalorder %s51, %s54
      %p63 = scmp.eq.s32.totalorder %s20, 1
      %p64 = por %p62, %p63
      %p65 = scmp.ne.s32.totalorder %s54, %s55
      %p66 = scmp.eq.s32.totalorder %s20, 0
      %p67 = por %p65, %p66
      %p68 = scmp.ne.s32.totalorder %s54, %s55
      %p69 = scmp.eq.s32.totalorder %s21, 1
      %p70 = por %p68, %p69
      %p72 = scmp.ne.s32.totalorder %s55, %s71
      %p73 = scmp.eq.s32.totalorder %s21, 0
      %p74 = por %p72, %p73
      %s76 = sadd.s32 %s75, 1
      %p79 = scmp.eq.s32.totalorder %s15, 1
      %p80 = scmp.ne.s32.totalorder %s75, %s77
      %p81 = scmp.eq.s32.totalorder %s15, 0
      %p82 = por %p80, %p81
      %p83 = scmp.ne.s32.totalorder %s75, %s77
      %p84 = scmp.eq.s32.totalorder %s20, 1
      %p85 = por %p83, %p84
      %p86 = scmp.ne.s32.totalorder %s77, %s78
      %p87 = scmp.eq.s32.totalorder %s20, 0
      %p88 = por %p86, %p87
      %p89 = scmp.ne.s32.totalorder %s77, %s78
      %p90 = scmp.eq.s32.totalorder %s21, 1
      %p91 = por %p89, %p90
      %p93 = scmp.ne.s32.totalorder %s78, %s92
      %p94 = scmp.eq.s32.totalorder %s21, 0
      %p95 = por %p93, %p94
      %s97 = sadd.s32 %s96, 1
      %p100 = scmp.eq.s32.totalorder %s15, 1
      %p101 = scmp.ne.s32.totalorder %s96, %s98
      %p102 = scmp.eq.s32.totalorder %s15, 0
      %p103 = por %p101, %p102
      %p104 = scmp.ne.s32.totalorder %s96, %s98
      %p105 = scmp.eq.s32.totalorder %s20, 1
      %p106 = por %p104, %p105
      %p107 = scmp.ne.s32.totalorder %s98, %s99
      %p108 = scmp.eq.s32.totalorder %s20, 0
      %p109 = por %p107, %p108
      %p110 = scmp.ne.s32.totalorder %s98, %s99
      %p111 = scmp.eq.s32.totalorder %s21, 1
      %p112 = por %p110, %p111
      %p114 = scmp.ne.s32.totalorder %s99, %s113
      %p115 = scmp.eq.s32.totalorder %s21, 0
      %p116 = por %p114, %p115
      %s118 = sadd.s32 %s117, 1
      %p121 = scmp.eq.s32.totalorder %s15, 1
      %p122 = scmp.ne.s32.totalorder %s117, %s119
      %p123 = scmp.eq.s32.totalorder %s15, 0
      %p124 = por %p122, %p123
      %p125 = scmp.ne.s32.totalorder %s117, %s119
      %p126 = scmp.eq.s32.totalorder %s20, 1
      %p127 = por %p125, %p126
      %p128 = scmp.ne.s32.totalorder %s119, %s120
      %p129 = scmp.eq.s32.totalorder %s20, 0
      %p130 = por %p128, %p129
      %p131 = scmp.ne.s32.totalorder %s119, %s120
      %p132 = scmp.eq.s32.totalorder %s21, 1
      %p133 = por %p131, %p132
      %p135 = scmp.ne.s32.totalorder %s120, %s134
      %p136 = scmp.eq.s32.totalorder %s21, 0
      %p137 = por %p135, %p136
      %s139 = sadd.s32 %s138, 1
      %p142 = scmp.eq.s32.totalorder %s15, 1
      %p143 = scmp.ne.s32.totalorder %s138, %s140
      %p144 = scmp.eq.s32.totalorder %s15, 0
      %p145 = por %p143, %p144
      %p146 = scmp.ne.s32.totalorder %s138, %s140
      %p147 = scmp.eq.s32.totalorder %s20, 1
      %p148 = por %p146, %p147
      %p149 = scmp.ne.s32.totalorder %s140, %s141
      %p150 = scmp.eq.s32.totalorder %s20, 0
      %p151 = por %p149, %p150
      %p152 = scmp.ne.s32.totalorder %s140, %s141
      %p153 = scmp.eq.s32.totalorder %s21, 1
      %p154 = por %p152, %p153
      %p156 = scmp.ne.s32.totalorder %s141, %s155
      %p157 = scmp.eq.s32.totalorder %s21, 0
      %p158 = por %p156, %p157
      %s160 = sadd.s32 %s159, 1
      %p163 = scmp.eq.s32.totalorder %s15, 1
      %p164 = scmp.ne.s32.totalorder %s159, %s161
      %p165 = scmp.eq.s32.totalorder %s15, 0
      %p166 = por %p164, %p165
      %p167 = scmp.ne.s32.totalorder %s159, %s161
      %p168 = scmp.eq.s32.totalorder %s20, 1
      %p169 = por %p167, %p168
      %p170 = scmp.ne.s32.totalorder %s161, %s162
      %p171 = scmp.eq.s32.totalorder %s20, 0
      %p172 = por %p170, %p171
      %p173 = scmp.ne.s32.totalorder %s161, %s162
      %p174 = scmp.eq.s32.totalorder %s21, 1
      %p175 = por %p173, %p174
      %p177 = scmp.ne.s32.totalorder %s162, %s176
      %p178 = scmp.eq.s32.totalorder %s21, 0
      %p179 = por %p177, %p178
      %s181 = sadd.s32 %s180, 1
      %p184 = scmp.eq.s32.totalorder %s15, 1
      %p185 = scmp.ne.s32.totalorder %s180, %s182
      %p186 = scmp.eq.s32.totalorder %s15, 0
      %p187 = por %p185, %p186
      %p188 = scmp.ne.s32.totalorder %s180, %s182
      %p189 = scmp.eq.s32.totalorder %s20, 1
      %p190 = por %p188, %p189
      %p191 = scmp.ne.s32.totalorder %s182, %s183
      %p192 = scmp.eq.s32.totalorder %s20, 0
      %p193 = por %p191, %p192
      %p194 = scmp.ne.s32.totalorder %s182, %s183
      %p195 = scmp.eq.s32.totalorder %s21, 1
      %p196 = por %p194, %p195
      %p198 = scmp.ne.s32.totalorder %s183, %s197
      %p199 = scmp.eq.s32.totalorder %s21, 0
      %p200 = por %p198, %p199
      %s201 = ssub.s32 %s15, %s22
      %p202 = scmp.eq.s32.totalorder %s201, 0
      %s204 = sadd.s32 %s203, 1
      %s205 = scalar_select %p202, %s203, %s204
      %p208 = pneg %p202
      %p209 = scmp.eq.s32.totalorder %s15, 1
      %p210 = por %p208, %p209
      %p211 = scmp.ne.s32.totalorder %s203, %s206
      %p212 = scmp.eq.s32.totalorder %s15, 0
      %p213 = por %p211, %p212
      %p214 = scmp.ne.s32.totalorder %s203, %s206
      %p215 = scmp.eq.s32.totalorder %s20, 1
      %p216 = por %p214, %p215
      %p217 = scmp.ne.s32.totalorder %s206, %s207
      %p218 = scmp.eq.s32.totalorder %s20, 0
      %p219 = por %p217, %p218
      %p220 = scmp.ne.s32.totalorder %s206, %s207
      %p221 = scmp.eq.s32.totalorder %s21, 1
      %p222 = por %p220, %p221
      %p224 = scmp.ne.s32.totalorder %s207, %s223
      %p225 = scmp.eq.s32.totalorder %s21, 0
      %p226 = por %p224, %p225
      %p227 = scmp.le.s32.totalorder 1, %s15
      %p228 = scmp.lt.s32.totalorder %s15, 3
      %p229 = pnand %p227, %p228
      %p230 = pneg %p229
      // Predicated region
      $region9: #{deeplabv3p_forward.6} parent=5 // pred_check
        _
      $region10: #{deeplabv3p_forward.6} parent=5 // pred_check_branch
        %232 = sbr.rel (%p229) target = $region12
      $region11: #{deeplabv3p_forward.6} parent=5 // pred_region
        %s233 = ssub.s32 %s15, 1
        // Predicated region
        $region13: #{deeplabv3p_forward.6} parent=11 // pred_check
          %p234 = pneg %p88
        $region14: #{deeplabv3p_forward.6} parent=11 // pred_check_branch
          %236 = sbr.rel (%p234) target = $region16
        $region15: #{deeplabv3p_forward.6} parent=11 // pred_region
          _
        $region16: #{deeplabv3p_forward.6} parent=11 // pred_fallthru
          _
        // Predicated region
        $region17: #{deeplabv3p_forward.6} parent=11 // pred_check
          %p237 = pneg %p109
        $region18: #{deeplabv3p_forward.6} parent=11 // pred_check_branch
          %239 = sbr.rel (%p237) target = $region20
        $region19: #{deeplabv3p_forward.6} parent=11 // pred_region
          %241 = vsyncadd [#allocation3], 0
          %s242 = sshll.u32 %s3, 4
          %s243 = int_to_ptr.hbm [resolvable:$true] %s242
          %s244 = sshll.u32 [#allocation2], 4
          %s245 = int_to_ptr.vmem [resolvable:$true] %s244
          %250 = dma.hbm_to_vmem [thread:$0]  %s243, 6912, %s245, [#allocation3], 128, 128, 8
        $region20: #{deeplabv3p_forward.6} parent=11 // pred_fallthru
          _
        // Predicated region
        $region21: #{deeplabv3p_forward.6} parent=11 // pred_check
          %p251 = pneg %p130
        $region22: #{deeplabv3p_forward.6} parent=11 // pred_check_branch
          %253 = sbr.rel (%p251) target = $region24
        $region23: #{deeplabv3p_forward.6} parent=11 // pred_region
          _
        $region24: #{deeplabv3p_forward.6} parent=11 // pred_fallthru
          _
        // Predicated region
        $region25: #{deeplabv3p_forward.6} parent=11 // pred_check
          %p254 = pneg %p151
        $region26: #{deeplabv3p_forward.6} parent=11 // pred_check_branch
          %256 = sbr.rel (%p254) target = $region28
        $region27: #{deeplabv3p_forward.6} parent=11 // pred_region
          _
        $region28: #{deeplabv3p_forward.6} parent=11 // pred_fallthru
          _
        // Predicated region
        $region29: #{deeplabv3p_forward.6} parent=11 // pred_check
          %p257 = pneg %p172
        $region30: #{deeplabv3p_forward.6} parent=11 // pred_check_branch
          %259 = sbr.rel (%p257) target = $region32
        $region31: #{deeplabv3p_forward.6} parent=11 // pred_region
          _
        $region32: #{deeplabv3p_forward.6} parent=11 // pred_fallthru
          _
        // Predicated region
        $region33: #{deeplabv3p_forward.6} parent=11 // pred_check
          %p260 = pneg %p193
        $region34: #{deeplabv3p_forward.6} parent=11 // pred_check_branch
          %262 = sbr.rel (%p260) target = $region36
        $region35: #{deeplabv3p_forward.6} parent=11 // pred_region
          _
        $region36: #{deeplabv3p_forward.6} parent=11 // pred_fallthru
          _
      $region12: #{deeplabv3p_forward.6} parent=5 // pred_fallthru
        _
      %p263 = scmp.lt.s32.totalorder %s15, 2
      // Predicated region
      $region37: #{deeplabv3p_forward.6} parent=5 // pred_check
        %p264 = pneg %p263
      $region38: #{deeplabv3p_forward.6} parent=5 // pred_check_branch
        %266 = sbr.rel (%p264) target = $region40
      $region39: #{deeplabv3p_forward.6} parent=5 // pred_region
        // Predicated region
        $region41: #{deeplabv3p_forward.6} parent=39 // pred_check
          %p267 = pneg %p35
        $region42: #{deeplabv3p_forward.6} parent=39 // pred_check_branch
          %269 = sbr.rel (%p267) target = $region44
        $region43: #{deeplabv3p_forward.6} parent=39 // pred_region
          %p270 = scmp.lt.s32.totalorder %s15, 1
          %s271 = scalar_select %p270, %s15, 1
          %s272 = smul.addr %s271, 2
          %s273 = smul.addr %s272, 4
          %s274 = scalar_lea.vmem %s0, %s273
        $region44: #{deeplabv3p_forward.6} parent=39 // pred_fallthru
          _
        // Predicated region
        $region45: #{deeplabv3p_forward.6} parent=39 // pred_check
          %p275 = pneg %p61
        $region46: #{deeplabv3p_forward.6} parent=39 // pred_check_branch
          %277 = sbr.rel (%p275) target = $region48
        $region47: #{deeplabv3p_forward.6} parent=39 // pred_region
          %p278 = scmp.lt.s32.totalorder %s15, 1
          %s279 = scalar_select %p278, %s15, 1
          %s280 = smul.addr %s279, 12
          %s281 = smul.addr %s280, 4
          %s282 = scalar_lea.vmem %s1, %s281
        $region48: #{deeplabv3p_forward.6} parent=39 // pred_fallthru
          _
      $region40: #{deeplabv3p_forward.6} parent=5 // pred_fallthru
        _
      %p283 = scmp.le.s32.totalorder 1, %s15
      %p284 = scmp.lt.s32.totalorder %s15, 3
      %p285 = pnand %p283, %p284
      %p286 = pneg %p285
      // Predicated region
      $region49: #{deeplabv3p_forward.6} parent=5 // pred_check
        _
      $region50: #{deeplabv3p_forward.6} parent=5 // pred_check_branch
        %288 = sbr.rel (%p285) target = $region52
      $region51: #{deeplabv3p_forward.6} parent=5 // pred_region
        %s289 = ssub.s32 %s15, 1
        // Predicated region
        $region53: #{deeplabv3p_forward.6} parent=51 // pred_check
          %p290 = pneg %p109
        $region54: #{deeplabv3p_forward.6} parent=51 // pred_check_branch
          %292 = sbr.rel (%p290) target = $region56
        $region55: #{deeplabv3p_forward.6} parent=51 // pred_region
          %294 = dma.done [#allocation3], 6912
        $region56: #{deeplabv3p_forward.6} parent=51 // pred_fallthru
          _
        %p295 = scmp.lt.s32.totalorder %s20, 1
        %s296 = scalar_select %p295, %s20, 1
        %s297 = smul.addr %s296, 2
        %s298 = smul.addr %s297, 4
        %s299 = scalar_lea.vmem %s0, %s298
        %p300 = pneg %p41
        %p301 = pneg %p38
        %p302 = scmp.lt.s32.totalorder %s20, 1
        %s303 = scalar_select %p302, %s20, 1
        %s304 = smul.addr %s303, 12
        %s305 = smul.addr %s304, 4
        %s306 = scalar_lea.vmem %s1, %s305
        %p307 = pneg %p67
        %p308 = pneg %p64
        %p309 = pneg %p88
        %p310 = pneg %p85
        %p311 = pneg %p109
        %p312 = pneg %p106
        %p313 = pneg %p130
        %p314 = pneg %p127
        %p315 = pneg %p151
        %p316 = pneg %p148
        %p317 = pneg %p172
        %p318 = pneg %p169
        %p319 = pneg %p193
        %p320 = pneg %p190
        %p321 = pneg %p219
        %p322 = pneg %p216
        %p323 = scmp.lt.s32.totalorder %s20, 1
        %s324 = scalar_select %p323, %s20, 1
        %s325 = smul.addr %s324, 4
        %s326 = smul.addr %s325, 4
        %s327 = scalar_lea.vmem %s8, %s326
        %p328 = scmp.lt.s32.totalorder %s20, 1
        %s329 = scalar_select %p328, %s20, 1
        %s330 = smul.addr %s329, 2
        %s331 = smul.addr %s330, 4
        %s332 = scalar_lea.vmem %s0, %s331
        %p333 = scmp.lt.s32.totalorder %s20, 1
        %s334 = scalar_select %p333, %s20, 1
        %s335 = smul.addr %s334, 12
        %s336 = smul.addr %s335, 4
        %s337 = scalar_lea.vmem %s1, %s336
        %p338 = scmp.lt.s32.totalorder %s20, 1
        %s339 = scalar_select %p338, %s20, 1
        %s340 = smul.addr %s339, 4
        %s341 = smul.addr %s340, 4
        %s342 = scalar_lea.vmem %s8, %s341
        %v344 = vld [vmem:[%s332] sm:$0xf]
        %v345 = vld [vmem:[%s332 + $0x4] sm:$0xf]
        %v346 = vld [vmem:[%s2] sm:$0xff]
        %v347 = vld [vmem:[%s2 + $0x8] sm:$0xff]
        %v348 = vld [vmem:[%s6] ss:$8 sm:$0x3]
        %v350 = vperm.slane %v348, 0
        %v351 = vperm.slane %v348, 1
        %v356 = vunpack.c.l.b16 %v344
        %v357 = vunpack.c.l.b16 %v345
        %v358 = vpack.c.b16 %v357, %v356
        %v361 = vunpack.c.l.b16 %v346
        %v362 = vunpack.c.h.b16 %v346
        %v363 = vunpack.c.l.b16 %v347
        %v364 = vunpack.c.h.b16 %v347
        %v365 = vpack.c.b16 %v363, %v361
        %v366 = vpack.c.b16 %v364, %v362
        %vm369 = vcmask 130048
        %v371 = vsel %vm369, %v358, 0
        %373 = vmatpush.bf16.msra.mxu0 0
        %374 = vmatpush.bf16.msra.mxu0 0
        %375 = vmatpush.bf16.msra.mxu0 0
        %376 = vmatpush.bf16.msra.mxu0 0
        %377 = vmatpush.bf16.msra.mxu0 0
        %378 = vmatpush.bf16.msra.mxu0 0
        %379 = vmatpush.bf16.msra.mxu0 0
        %380 = vmatpush.bf16.msra.mxu0 %v365
        %381 = vmatmul.bf16.gmra.mxu0 %v371
        %v382 = vpop.f32.mrf.mxu0
        %v383 = vadd.f32 %v350, %v382
        %v384 = vpop.f32.mrf.mxu0
        %v385 = vadd.f32 %v350, %v384
        %386 = vdwg.mxu0
        %387 = vmatpush.bf16.msra.mxu0 0
        %388 = vmatpush.bf16.msra.mxu0 0
        %389 = vmatpush.bf16.msra.mxu0 0
        %390 = vmatpush.bf16.msra.mxu0 0
        %391 = vmatpush.bf16.msra.mxu0 0
        %392 = vmatpush.bf16.msra.mxu0 0
        %393 = vmatpush.bf16.msra.mxu0 0
        %394 = vmatpush.bf16.msra.mxu0 %v366
        %395 = vmatmul.bf16.gmra.mxu0 %v371
        %v396 = vpop.f32.mrf.mxu0
        %v397 = vadd.f32 %v351, %v396
        %v398 = vpop.f32.mrf.mxu0
        %v399 = vadd.f32 %v351, %v398
        %400 = vdwg.mxu0
        %v401 = vmax.f32 %v383, 0.0
        %v402 = vmax.f32 %v397, 0.0
        %v403 = vmax.f32 %v385, 0.0
        %v404 = vmax.f32 %v399, 0.0
        %v405 = vld [vmem:[%s337] sm:$0xff]
        %v406 = vld [vmem:[%s337 + $0x8] sm:$0xff]
        %v407 = vld [vmem:[#allocation2] sm:$0xff]
        %v408 = vld [vmem:[#allocation2 + $0x8] sm:$0xff]
        %v409 = vld [vmem:[#allocation2 + $0x10] sm:$0xff]
        %v410 = vld [vmem:[#allocation2 + $0x18] sm:$0xff]
        %v411 = vld [vmem:[#allocation2 + $0x20] sm:$0xff]
        %v412 = vld [vmem:[#allocation2 + $0x28] sm:$0xff]
        %v413 = vld [vmem:[#allocation2 + $0x30] sm:$0xff]
        %v414 = vld [vmem:[#allocation2 + $0x38] sm:$0xff]
        %v415 = vld [vmem:[#allocation2 + $0x40] sm:$0xff]
        %v416 = vld [vmem:[#allocation2 + $0x48] sm:$0xff]
        %v417 = vld [vmem:[#allocation2 + $0x50] sm:$0xff]
        %v418 = vld [vmem:[#allocation2 + $0x58] sm:$0xff]
        %v419 = vld [vmem:[#allocation2 + $0x60] sm:$0xff]
        %v420 = vld [vmem:[#allocation2 + $0x68] sm:$0xff]
        %v421 = vld [vmem:[#allocation2 + $0x70] sm:$0xff]
        %v422 = vld [vmem:[#allocation2 + $0x78] sm:$0xff]
        %v423 = vld [vmem:[#allocation2 + $0x80] sm:$0xff]
        %v424 = vld [vmem:[#allocation2 + $0x88] sm:$0xff]
        %s425 = scalar_lea.vmem %s6, 1
        %v426 = vld [vmem:[%s425] ss:$8 sm:$0x3]
        %v428 = vperm.slane %v426, 0
        %v429 = vperm.slane %v426, 1
        %v434 = vunpack.c.l.b16 %v405
        %v435 = vunpack.c.h.b16 %v405
        %v436 = vunpack.c.l.b16 %v406
        %v437 = vunpack.c.h.b16 %v406
        %v438 = vpack.c.b16 %v436, %v434
        %v439 = vpack.c.b16 %v437, %v435
        %v459 = vunpack.c.l.b16 %v407
        %v460 = vunpack.c.h.b16 %v407
        %v461 = vunpack.c.l.b16 %v408
        %v462 = vunpack.c.h.b16 %v408
        %v463 = vunpack.c.l.b16 %v409
        %v464 = vunpack.c.h.b16 %v409
        %v465 = vunpack.c.l.b16 %v410
        %v466 = vunpack.c.h.b16 %v410
        %v467 = vunpack.c.l.b16 %v411
        %v468 = vunpack.c.h.b16 %v411
        %v469 = vunpack.c.l.b16 %v412
        %v470 = vunpack.c.h.b16 %v412
        %v471 = vunpack.c.l.b16 %v413
        %v472 = vunpack.c.h.b16 %v413
        %v473 = vunpack.c.l.b16 %v414
        %v474 = vunpack.c.h.b16 %v414
        %v475 = vunpack.c.l.b16 %v415
        %v476 = vunpack.c.h.b16 %v415
        %v477 = vunpack.c.l.b16 %v416
        %v478 = vunpack.c.h.b16 %v416
        %v479 = vunpack.c.l.b16 %v417
        %v480 = vunpack.c.h.b16 %v417
        %v481 = vunpack.c.l.b16 %v418
        %v482 = vunpack.c.h.b16 %v418
        %v483 = vunpack.c.l.b16 %v419
        %v484 = vunpack.c.h.b16 %v419
        %v485 = vunpack.c.l.b16 %v420
        %v486 = vunpack.c.h.b16 %v420
        %v487 = vunpack.c.l.b16 %v421
        %v488 = vunpack.c.h.b16 %v421
        %v489 = vunpack.c.l.b16 %v422
        %v490 = vunpack.c.h.b16 %v422
        %v491 = vunpack.c.l.b16 %v423
        %v492 = vunpack.c.h.b16 %v423
        %v493 = vunpack.c.l.b16 %v424
        %v494 = vunpack.c.h.b16 %v424
        %v495 = vpack.c.b16 %v461, %v459
        %v496 = vpack.c.b16 %v462, %v460
        %v497 = vpack.c.b16 %v465, %v463
        %v498 = vpack.c.b16 %v466, %v464
        %v499 = vpack.c.b16 %v469, %v467
        %v500 = vpack.c.b16 %v470, %v468
        %v501 = vpack.c.b16 %v473, %v471
        %v502 = vpack.c.b16 %v474, %v472
        %v503 = vpack.c.b16 %v477, %v475
        %v504 = vpack.c.b16 %v478, %v476
        %v505 = vpack.c.b16 %v481, %v479
        %v506 = vpack.c.b16 %v482, %v480
        %v507 = vpack.c.b16 %v485, %v483
        %v508 = vpack.c.b16 %v486, %v484
        %v509 = vpack.c.b16 %v489, %v487
        %v510 = vpack.c.b16 %v490, %v488
        %v511 = vpack.c.b16 %v493, %v491
        %v512 = vpack.c.b16 %v494, %v492
        %v532 = vsel %vm369, %v439, 0
        %534 = vmatpush.bf16.msra.mxu0 %v509
        %535 = vmatpush.bf16.msra.mxu0 %v507
        %536 = vmatpush.bf16.msra.mxu0 %v505
        %537 = vmatpush.bf16.msra.mxu0 %v503
        %538 = vmatpush.bf16.msra.mxu0 %v501
        %539 = vmatpush.bf16.msra.mxu0 %v499
        %540 = vmatpush.bf16.msra.mxu0 %v497
        %541 = vmatpush.bf16.msra.mxu0 %v495
        %542 = vmatmul.bf16.gmra.mxu0 %v438
        %v543 = vpop.f32.mrf.mxu0
        %v544 = vadd.f32 %v428, %v543
        %v545 = vpop.f32.mrf.mxu0
        %v546 = vadd.f32 %v428, %v545
        %547 = vdwg.mxu0
        %548 = vmatpush.bf16.msra.mxu0 0
        %549 = vmatpush.bf16.msra.mxu0 0
        %550 = vmatpush.bf16.msra.mxu0 0
        %551 = vmatpush.bf16.msra.mxu0 0
        %552 = vmatpush.bf16.msra.mxu0 0
        %553 = vmatpush.bf16.msra.mxu0 0
        %554 = vmatpush.bf16.msra.mxu0 0
        %555 = vmatpush.bf16.msra.mxu0 %v511
        %556 = vmatmul.bf16.gmra.mxu0 %v532
        %v557 = vpop.f32.mrf.mxu0
        %v558 = vadd.f32 %v544, %v557
        %v559 = vpop.f32.mrf.mxu0
        %v560 = vadd.f32 %v546, %v559
        %561 = vdwg.mxu0
        %562 = vmatpush.bf16.msra.mxu0 %v510
        %563 = vmatpush.bf16.msra.mxu0 %v508
        %564 = vmatpush.bf16.msra.mxu0 %v506
        %565 = vmatpush.bf16.msra.mxu0 %v504
        %566 = vmatpush.bf16.msra.mxu0 %v502
        %567 = vmatpush.bf16.msra.mxu0 %v500
        %568 = vmatpush.bf16.msra.mxu0 %v498
        %569 = vmatpush.bf16.msra.mxu0 %v496
        %570 = vmatmul.bf16.gmra.mxu0 %v438
        %v571 = vpop.f32.mrf.mxu0
        %v572 = vadd.f32 %v429, %v571
        %v573 = vpop.f32.mrf.mxu0
        %v574 = vadd.f32 %v429, %v573
        %575 = vdwg.mxu0
        %576 = vmatpush.bf16.msra.mxu0 0
        %577 = vmatpush.bf16.msra.mxu0 0
        %578 = vmatpush.bf16.msra.mxu0 0
        %579 = vmatpush.bf16.msra.mxu0 0
        %580 = vmatpush.bf16.msra.mxu0 0
        %581 = vmatpush.bf16.msra.mxu0 0
        %582 = vmatpush.bf16.msra.mxu0 0
        %583 = vmatpush.bf16.msra.mxu0 %v512
        %584 = vmatmul.bf16.gmra.mxu0 %v532
        %v585 = vpop.f32.mrf.mxu0
        %v586 = vadd.f32 %v572, %v585
        %v587 = vpop.f32.mrf.mxu0
        %v588 = vadd.f32 %v574, %v587
        %589 = vdwg.mxu0
        %v590 = vmax.f32 %v558, 0.0
        %v591 = vmax.f32 %v586, 0.0
        %v592 = vmax.f32 %v560, 0.0
        %v593 = vmax.f32 %v588, 0.0
        %s594 = scalar_lea.vmem %s337, 16
        %v595 = vld [vmem:[%s594] sm:$0xff]
        %v596 = vld [vmem:[%s594 + $0x8] sm:$0xff]
        %s597 = scalar_lea.vmem [#allocation2], 144
        %v598 = vld [vmem:[%s597] sm:$0xff]
        %v599 = vld [vmem:[%s597 + $0x8] sm:$0xff]
        %v600 = vld [vmem:[%s597 + $0x10] sm:$0xff]
        %v601 = vld [vmem:[%s597 + $0x18] sm:$0xff]
        %v602 = vld [vmem:[%s597 + $0x20] sm:$0xff]
        %v603 = vld [vmem:[%s597 + $0x28] sm:$0xff]
        %v604 = vld [vmem:[%s597 + $0x30] sm:$0xff]
        %v605 = vld [vmem:[%s597 + $0x38] sm:$0xff]
        %v606 = vld [vmem:[%s597 + $0x40] sm:$0xff]
        %v607 = vld [vmem:[%s597 + $0x48] sm:$0xff]
        %v608 = vld [vmem:[%s597 + $0x50] sm:$0xff]
        %v609 = vld [vmem:[%s597 + $0x58] sm:$0xff]
        %v610 = vld [vmem:[%s597 + $0x60] sm:$0xff]
        %v611 = vld [vmem:[%s597 + $0x68] sm:$0xff]
        %v612 = vld [vmem:[%s597 + $0x70] sm:$0xff]
        %v613 = vld [vmem:[%s597 + $0x78] sm:$0xff]
        %v614 = vld [vmem:[%s597 + $0x80] sm:$0xff]
        %v615 = vld [vmem:[%s597 + $0x88] sm:$0xff]
        %s616 = scalar_lea.vmem %s6, 2
        %v617 = vld [vmem:[%s616] ss:$8 sm:$0x3]
        %v619 = vperm.slane %v617, 0
        %v620 = vperm.slane %v617, 1
        %v625 = vunpack.c.l.b16 %v595
        %v626 = vunpack.c.h.b16 %v595
        %v627 = vunpack.c.l.b16 %v596
        %v628 = vunpack.c.h.b16 %v596
        %v629 = vpack.c.b16 %v627, %v625
        %v630 = vpack.c.b16 %v628, %v626
        %v650 = vunpack.c.l.b16 %v598
        %v651 = vunpack.c.h.b16 %v598
        %v652 = vunpack.c.l.b16 %v599
        %v653 = vunpack.c.h.b16 %v599
        %v654 = vunpack.c.l.b16 %v600
        %v655 = vunpack.c.h.b16 %v600
        %v656 = vunpack.c.l.b16 %v601
        %v657 = vunpack.c.h.b16 %v601
        %v658 = vunpack.c.l.b16 %v602
        %v659 = vunpack.c.h.b16 %v602
        %v660 = vunpack.c.l.b16 %v603
        %v661 = vunpack.c.h.b16 %v603
        %v662 = vunpack.c.l.b16 %v604
        %v663 = vunpack.c.h.b16 %v604
        %v664 = vunpack.c.l.b16 %v605
        %v665 = vunpack.c.h.b16 %v605
        %v666 = vunpack.c.l.b16 %v606
        %v667 = vunpack.c.h.b16 %v606
        %v668 = vunpack.c.l.b16 %v607
        %v669 = vunpack.c.h.b16 %v607
        %v670 = vunpack.c.l.b16 %v608
        %v671 = vunpack.c.h.b16 %v608
        %v672 = vunpack.c.l.b16 %v609
        %v673 = vunpack.c.h.b16 %v609
        %v674 = vunpack.c.l.b16 %v610
        %v675 = vunpack.c.h.b16 %v610
        %v676 = vunpack.c.l.b16 %v611
        %v677 = vunpack.c.h.b16 %v611
        %v678 = vunpack.c.l.b16 %v612
        %v679 = vunpack.c.h.b16 %v612
        %v680 = vunpack.c.l.b16 %v613
        %v681 = vunpack.c.h.b16 %v613
        %v682 = vunpack.c.l.b16 %v614
        %v683 = vunpack.c.h.b16 %v614
        %v684 = vunpack.c.l.b16 %v615
        %v685 = vunpack.c.h.b16 %v615
        %v686 = vpack.c.b16 %v652, %v650
        %v687 = vpack.c.b16 %v653, %v651
        %v688 = vpack.c.b16 %v656, %v654
        %v689 = vpack.c.b16 %v657, %v655
        %v690 = vpack.c.b16 %v660, %v658
        %v691 = vpack.c.b16 %v661, %v659
        %v692 = vpack.c.b16 %v664, %v662
        %v693 = vpack.c.b16 %v665, %v663
        %v694 = vpack.c.b16 %v668, %v666
        %v695 = vpack.c.b16 %v669, %v667
        %v696 = vpack.c.b16 %v672, %v670
        %v697 = vpack.c.b16 %v673, %v671
        %v698 = vpack.c.b16 %v676, %v674
        %v699 = vpack.c.b16 %v677, %v675
        %v700 = vpack.c.b16 %v680, %v678
        %v701 = vpack.c.b16 %v681, %v679
        %v702 = vpack.c.b16 %v684, %v682
        %v703 = vpack.c.b16 %v685, %v683
        %v723 = vsel %vm369, %v630, 0
        %725 = vmatpush.bf16.msra.mxu0 %v700
        %726 = vmatpush.bf16.msra.mxu0 %v698
        %727 = vmatpush.bf16.msra.mxu0 %v696
        %728 = vmatpush.bf16.msra.mxu0 %v694
        %729 = vmatpush.bf16.msra.mxu0 %v692
        %730 = vmatpush.bf16.msra.mxu0 %v690
        %731 = vmatpush.bf16.msra.mxu0 %v688
        %732 = vmatpush.bf16.msra.mxu0 %v686
        %733 = vmatmul.bf16.gmra.mxu0 %v629
        %v734 = vpop.f32.mrf.mxu0
        %v735 = vadd.f32 %v619, %v734
        %v736 = vpop.f32.mrf.mxu0
        %v737 = vadd.f32 %v619, %v736
        %738 = vdwg.mxu0
        %739 = vmatpush.bf16.msra.mxu0 0
        %740 = vmatpush.bf16.msra.mxu0 0
        %741 = vmatpush.bf16.msra.mxu0 0
        %742 = vmatpush.bf16.msra.mxu0 0
        %743 = vmatpush.bf16.msra.mxu0 0
        %744 = vmatpush.bf16.msra.mxu0 0
        %745 = vmatpush.bf16.msra.mxu0 0
        %746 = vmatpush.bf16.msra.mxu0 %v702
        %747 = vmatmul.bf16.gmra.mxu0 %v723
        %v748 = vpop.f32.mrf.mxu0
        %v749 = vadd.f32 %v735, %v748
        %v750 = vpop.f32.mrf.mxu0
        %v751 = vadd.f32 %v737, %v750
        %752 = vdwg.mxu0
        %753 = vmatpush.bf16.msra.mxu0 %v701
        %754 = vmatpush.bf16.msra.mxu0 %v699
        %755 = vmatpush.bf16.msra.mxu0 %v697
        %756 = vmatpush.bf16.msra.mxu0 %v695
        %757 = vmatpush.bf16.msra.mxu0 %v693
        %758 = vmatpush.bf16.msra.mxu0 %v691
        %759 = vmatpush.bf16.msra.mxu0 %v689
        %760 = vmatpush.bf16.msra.mxu0 %v687
        %761 = vmatmul.bf16.gmra.mxu0 %v629
        %v762 = vpop.f32.mrf.mxu0
        %v763 = vadd.f32 %v620, %v762
        %v764 = vpop.f32.mrf.mxu0
        %v765 = vadd.f32 %v620, %v764
        %766 = vdwg.mxu0
        %767 = vmatpush.bf16.msra.mxu0 0
        %768 = vmatpush.bf16.msra.mxu0 0
        %769 = vmatpush.bf16.msra.mxu0 0
        %770 = vmatpush.bf16.msra.mxu0 0
        %771 = vmatpush.bf16.msra.mxu0 0
        %772 = vmatpush.bf16.msra.mxu0 0
        %773 = vmatpush.bf16.msra.mxu0 0
        %774 = vmatpush.bf16.msra.mxu0 %v703
        %775 = vmatmul.bf16.gmra.mxu0 %v723
        %v776 = vpop.f32.mrf.mxu0
        %v777 = vadd.f32 %v763, %v776
        %v778 = vpop.f32.mrf.mxu0
        %v779 = vadd.f32 %v765, %v778
        %780 = vdwg.mxu0
        %v781 = vmax.f32 %v749, 0.0
        %v782 = vmax.f32 %v777, 0.0
        %v783 = vmax.f32 %v751, 0.0
        %v784 = vmax.f32 %v779, 0.0
        %s785 = scalar_lea.vmem %s337, 32
        %v786 = vld [vmem:[%s785] sm:$0xff]
        %v787 = vld [vmem:[%s785 + $0x8] sm:$0xff]
        %s788 = scalar_lea.vmem [#allocation2], 288
        %v789 = vld [vmem:[%s788] sm:$0xff]
        %v790 = vld [vmem:[%s788 + $0x8] sm:$0xff]
        %v791 = vld [vmem:[%s788 + $0x10] sm:$0xff]
        %v792 = vld [vmem:[%s788 + $0x18] sm:$0xff]
        %v793 = vld [vmem:[%s788 + $0x20] sm:$0xff]
        %v794 = vld [vmem:[%s788 + $0x28] sm:$0xff]
        %v795 = vld [vmem:[%s788 + $0x30] sm:$0xff]
        %v796 = vld [vmem:[%s788 + $0x38] sm:$0xff]
        %v797 = vld [vmem:[%s788 + $0x40] sm:$0xff]
        %v798 = vld [vmem:[%s788 + $0x48] sm:$0xff]
        %v799 = vld [vmem:[%s788 + $0x50] sm:$0xff]
        %v800 = vld [vmem:[%s788 + $0x58] sm:$0xff]
        %v801 = vld [vmem:[%s788 + $0x60] sm:$0xff]
        %v802 = vld [vmem:[%s788 + $0x68] sm:$0xff]
        %v803 = vld [vmem:[%s788 + $0x70] sm:$0xff]
        %v804 = vld [vmem:[%s788 + $0x78] sm:$0xff]
        %v805 = vld [vmem:[%s788 + $0x80] sm:$0xff]
        %v806 = vld [vmem:[%s788 + $0x88] sm:$0xff]
        %s807 = scalar_lea.vmem %s6, 3
        %v808 = vld [vmem:[%s807] ss:$8 sm:$0x3]
        %v810 = vperm.slane %v808, 0
        %v811 = vperm.slane %v808, 1
        %v816 = vunpack.c.l.b16 %v786
        %v817 = vunpack.c.h.b16 %v786
        %v818 = vunpack.c.l.b16 %v787
        %v819 = vunpack.c.h.b16 %v787
        %v820 = vpack.c.b16 %v818, %v816
        %v821 = vpack.c.b16 %v819, %v817
        %v841 = vunpack.c.l.b16 %v789
        %v842 = vunpack.c.h.b16 %v789
        %v843 = vunpack.c.l.b16 %v790
        %v844 = vunpack.c.h.b16 %v790
        %v845 = vunpack.c.l.b16 %v791
        %v846 = vunpack.c.h.b16 %v791
        %v847 = vunpack.c.l.b16 %v792
        %v848 = vunpack.c.h.b16 %v792
        %v849 = vunpack.c.l.b16 %v793
        %v850 = vunpack.c.h.b16 %v793
        %v851 = vunpack.c.l.b16 %v794
        %v852 = vunpack.c.h.b16 %v794
        %v853 = vunpack.c.l.b16 %v795
        %v854 = vunpack.c.h.b16 %v795
        %v855 = vunpack.c.l.b16 %v796
        %v856 = vunpack.c.h.b16 %v796
        %v857 = vunpack.c.l.b16 %v797
        %v858 = vunpack.c.h.b16 %v797
        %v859 = vunpack.c.l.b16 %v798
        %v860 = vunpack.c.h.b16 %v798
        %v861 = vunpack.c.l.b16 %v799
        %v862 = vunpack.c.h.b16 %v799
        %v863 = vunpack.c.l.b16 %v800
        %v864 = vunpack.c.h.b16 %v800
        %v865 = vunpack.c.l.b16 %v801
        %v866 = vunpack.c.h.b16 %v801
        %v867 = vunpack.c.l.b16 %v802
        %v868 = vunpack.c.h.b16 %v802
        %v869 = vunpack.c.l.b16 %v803
        %v870 = vunpack.c.h.b16 %v803
        %v871 = vunpack.c.l.b16 %v804
        %v872 = vunpack.c.h.b16 %v804
        %v873 = vunpack.c.l.b16 %v805
        %v874 = vunpack.c.h.b16 %v805
        %v875 = vunpack.c.l.b16 %v806
        %v876 = vunpack.c.h.b16 %v806
        %v877 = vpack.c.b16 %v843, %v841
        %v878 = vpack.c.b16 %v844, %v842
        %v879 = vpack.c.b16 %v847, %v845
        %v880 = vpack.c.b16 %v848, %v846
        %v881 = vpack.c.b16 %v851, %v849
        %v882 = vpack.c.b16 %v852, %v850
        %v883 = vpack.c.b16 %v855, %v853
        %v884 = vpack.c.b16 %v856, %v854
        %v885 = vpack.c.b16 %v859, %v857
        %v886 = vpack.c.b16 %v860, %v858
        %v887 = vpack.c.b16 %v863, %v861
        %v888 = vpack.c.b16 %v864, %v862
        %v889 = vpack.c.b16 %v867, %v865
        %v890 = vpack.c.b16 %v868, %v866
        %v891 = vpack.c.b16 %v871, %v869
        %v892 = vpack.c.b16 %v872, %v870
        %v893 = vpack.c.b16 %v875, %v873
        %v894 = vpack.c.b16 %v876, %v874
        %v914 = vsel %vm369, %v821, 0
        %916 = vmatpush.bf16.msra.mxu0 %v891
        %917 = vmatpush.bf16.msra.mxu0 %v889
        %918 = vmatpush.bf16.msra.mxu0 %v887
        %919 = vmatpush.bf16.msra.mxu0 %v885
        %920 = vmatpush.bf16.msra.mxu0 %v883
        %921 = vmatpush.bf16.msra.mxu0 %v881
        %922 = vmatpush.bf16.msra.mxu0 %v879
        %923 = vmatpush.bf16.msra.mxu0 %v877
        %924 = vmatmul.bf16.gmra.mxu0 %v820
        %v925 = vpop.f32.mrf.mxu0
        %v926 = vadd.f32 %v810, %v925
        %v927 = vpop.f32.mrf.mxu0
        %v928 = vadd.f32 %v810, %v927
        %929 = vdwg.mxu0
        %930 = vmatpush.bf16.msra.mxu0 0
        %931 = vmatpush.bf16.msra.mxu0 0
        %932 = vmatpush.bf16.msra.mxu0 0
        %933 = vmatpush.bf16.msra.mxu0 0
        %934 = vmatpush.bf16.msra.mxu0 0
        %935 = vmatpush.bf16.msra.mxu0 0
        %936 = vmatpush.bf16.msra.mxu0 0
        %937 = vmatpush.bf16.msra.mxu0 %v893
        %938 = vmatmul.bf16.gmra.mxu0 %v914
        %v939 = vpop.f32.mrf.mxu0
        %v940 = vadd.f32 %v926, %v939
        %v941 = vpop.f32.mrf.mxu0
        %v942 = vadd.f32 %v928, %v941
        %943 = vdwg.mxu0
        %944 = vmatpush.bf16.msra.mxu0 %v892
        %945 = vmatpush.bf16.msra.mxu0 %v890
        %946 = vmatpush.bf16.msra.mxu0 %v888
        %947 = vmatpush.bf16.msra.mxu0 %v886
        %948 = vmatpush.bf16.msra.mxu0 %v884
        %949 = vmatpush.bf16.msra.mxu0 %v882
        %950 = vmatpush.bf16.msra.mxu0 %v880
        %951 = vmatpush.bf16.msra.mxu0 %v878
        %952 = vmatmul.bf16.gmra.mxu0 %v820
        %v953 = vpop.f32.mrf.mxu0
        %v954 = vadd.f32 %v811, %v953
        %v955 = vpop.f32.mrf.mxu0
        %v956 = vadd.f32 %v811, %v955
        %957 = vdwg.mxu0
        %958 = vmatpush.bf16.msra.mxu0 0
        %959 = vmatpush.bf16.msra.mxu0 0
        %960 = vmatpush.bf16.msra.mxu0 0
        %961 = vmatpush.bf16.msra.mxu0 0
        %962 = vmatpush.bf16.msra.mxu0 0
        %963 = vmatpush.bf16.msra.mxu0 0
        %964 = vmatpush.bf16.msra.mxu0 0
        %965 = vmatpush.bf16.msra.mxu0 %v894
        %966 = vmatmul.bf16.gmra.mxu0 %v914
        %v967 = vpop.f32.mrf.mxu0
        %v968 = vadd.f32 %v954, %v967
        %v969 = vpop.f32.mrf.mxu0
        %v970 = vadd.f32 %v956, %v969
        %971 = vdwg.mxu0
        %v972 = vmax.f32 %v940, 0.0
        %v973 = vmax.f32 %v968, 0.0
        %v974 = vmax.f32 %v942, 0.0
        %v975 = vmax.f32 %v970, 0.0
        %v976 = vunpack.c.l.bf16 %v344
        %v977 = vunpack.c.l.bf16 %v345
        %v978 = vsel %vm369, %v976, 0.0
        %v979 = vsel %vm369, %v977, 0.0
        %v980 = vadd.f32 %v978, %v979
        %v981 = vrot.slane %v980, 4
        %v982 = vadd.f32 %v980, %v981
        %v983 = vrot.slane %v982, 2
        %v984 = vadd.f32 %v982, %v983
        %v985 = vrot.slane %v984, 1
        %v986 = vadd.f32 %v984, %v985
        %v987 = vrcp.pop 16.0
        %v988 = vmul.f32 16.0, %v987
        %v989 = vsub.f32 1.0, %v988
        %v990 = vmul.f32 %v987, %v989
        %v991 = vadd.f32 %v987, %v990
        %vm992 = vweird.f32 %v987
        %v993 = vsel %vm992, %v987, %v991
        %v994 = vmul.f32 %v986, %v993
        %v995 = vpack.c.bf16 %v994, %v994
        %v996 = vld [vmem:[%s4] sm:$0xff]
        %v997 = vld [vmem:[%s4 + $0x8] sm:$0xff]
        %s998 = scalar_lea.vmem %s6, 4
        %v999 = vld [vmem:[%s998] ss:$8 sm:$0x3]
        %v1002 = vunpack.c.l.b16 %v996
        %v1003 = vunpack.c.h.b16 %v996
        %v1004 = vunpack.c.l.b16 %v997
        %v1005 = vunpack.c.h.b16 %v997
        %v1006 = vpack.c.b16 %v1004, %v1002
        %v1007 = vpack.c.b16 %v1005, %v1003
        %v1011 = vperm.slane %v999, 0
        %v1012 = vperm.slane %v999, 1
        %v1016 = vsel %vm369, %v995, 0
        %1018 = vmatpush.bf16.msra.mxu0 0
        %1019 = vmatpush.bf16.msra.mxu0 0
        %1020 = vmatpush.bf16.msra.mxu0 0
        %1021 = vmatpush.bf16.msra.mxu0 0
        %1022 = vmatpush.bf16.msra.mxu0 0
        %1023 = vmatpush.bf16.msra.mxu0 0
        %1024 = vmatpush.bf16.msra.mxu0 0
        %1025 = vmatpush.bf16.msra.mxu0 %v1006
        %1026 = vmatmul.bf16.gmra.mxu0 %v1016
        %v1027 = vpop.f32.mrf.mxu0
        %v1028 = vadd.f32 %v1011, %v1027
        %v1029 = vpop.f32.mrf.mxu0
        %1030 = vdwg.mxu0
        %1031 = vmatpush.bf16.msra.mxu0 0
        %1032 = vmatpush.bf16.msra.mxu0 0
        %1033 = vmatpush.bf16.msra.mxu0 0
        %1034 = vmatpush.bf16.msra.mxu0 0
        %1035 = vmatpush.bf16.msra.mxu0 0
        %1036 = vmatpush.bf16.msra.mxu0 0
        %1037 = vmatpush.bf16.msra.mxu0 0
        %1038 = vmatpush.bf16.msra.mxu0 %v1007
        %1039 = vmatmul.bf16.gmra.mxu0 %v1016
        %v1040 = vpop.f32.mrf.mxu0
        %v1041 = vadd.f32 %v1012, %v1040
        %v1042 = vpop.f32.mrf.mxu0
        %1043 = vdwg.mxu0
        %v1044 = vmax.f32 %v1028, 0.0
        %v1045 = vmax.f32 %v1041, 0.0
        %v1046 = vpack.c.bf16 %v403, %v401
        %v1047 = vpack.c.bf16 %v404, %v402
        %v1048 = vld [vmem:[%s5] sm:$0xff]
        %v1049 = vld [vmem:[%s5 + $0x8] sm:$0xff]
        %v1050 = vld [vmem:[%s5 + $0x10] sm:$0xff]
        %v1051 = vld [vmem:[%s5 + $0x18] sm:$0xff]
        %v1052 = vld [vmem:[%s5 + $0x20] sm:$0xff]
        %v1053 = vld [vmem:[%s5 + $0x28] sm:$0xff]
        %v1054 = vld [vmem:[%s5 + $0x30] sm:$0xff]
        %v1055 = vld [vmem:[%s5 + $0x38] sm:$0xff]
        %v1056 = vld [vmem:[%s5 + $0x40] sm:$0xff]
        %v1057 = vld [vmem:[%s5 + $0x48] sm:$0xff]
        %v1058 = vld [vmem:[%s5 + $0x50] sm:$0xff]
        %v1059 = vld [vmem:[%s5 + $0x58] sm:$0xff]
        %v1060 = vld [vmem:[%s5 + $0x60] sm:$0xff]
        %v1061 = vld [vmem:[%s5 + $0x68] sm:$0xff]
        %v1062 = vld [vmem:[%s5 + $0x70] sm:$0xff]
        %v1063 = vld [vmem:[%s5 + $0x78] sm:$0xff]
        %v1064 = vld [vmem:[%s5 + $0x80] sm:$0xff]
        %v1065 = vld [vmem:[%s5 + $0x88] sm:$0xff]
        %v1066 = vld [vmem:[%s5 + $0x90] sm:$0xff]
        %v1067 = vld [vmem:[%s5 + $0x98] sm:$0xff]
        %v1068 = vld [vmem:[%s5 + $0xa0] sm:$0xff]
        %v1069 = vld [vmem:[%s5 + $0xa8] sm:$0xff]
        %v1070 = vld [vmem:[%s5 + $0xb0] sm:$0xff]
        %v1071 = vld [vmem:[%s5 + $0xb8] sm:$0xff]
        %v1072 = vld [vmem:[%s5 + $0xc0] sm:$0xff]
        %v1073 = vld [vmem:[%s5 + $0xc8] sm:$0xff]
        %v1074 = vld [vmem:[%s5 + $0xd0] sm:$0xff]
        %v1075 = vld [vmem:[%s5 + $0xd8] sm:$0xff]
        %v1076 = vld [vmem:[%s5 + $0xe0] sm:$0xff]
        %v1077 = vld [vmem:[%s5 + $0xe8] sm:$0xff]
        %v1078 = vld [vmem:[%s5 + $0xf0] sm:$0xff]
        %v1079 = vld [vmem:[%s5 + $0xf8] sm:$0xff]
        %v1080 = vpack.c.bf16 %v592, %v590
        %v1081 = vpack.c.bf16 %v593, %v591
        %s1082 = scalar_lea.vmem %s5, 256
        %v1083 = vld [vmem:[%s1082] sm:$0xff]
        %v1084 = vld [vmem:[%s1082 + $0x8] sm:$0xff]
        %v1085 = vld [vmem:[%s1082 + $0x10] sm:$0xff]
        %v1086 = vld [vmem:[%s1082 + $0x18] sm:$0xff]
        %v1087 = vld [vmem:[%s1082 + $0x20] sm:$0xff]
        %v1088 = vld [vmem:[%s1082 + $0x28] sm:$0xff]
        %v1089 = vld [vmem:[%s1082 + $0x30] sm:$0xff]
        %v1090 = vld [vmem:[%s1082 + $0x38] sm:$0xff]
        %v1091 = vld [vmem:[%s1082 + $0x40] sm:$0xff]
        %v1092 = vld [vmem:[%s1082 + $0x48] sm:$0xff]
        %v1093 = vld [vmem:[%s1082 + $0x50] sm:$0xff]
        %v1094 = vld [vmem:[%s1082 + $0x58] sm:$0xff]
        %v1095 = vld [vmem:[%s1082 + $0x60] sm:$0xff]
        %v1096 = vld [vmem:[%s1082 + $0x68] sm:$0xff]
        %v1097 = vld [vmem:[%s1082 + $0x70] sm:$0xff]
        %v1098 = vld [vmem:[%s1082 + $0x78] sm:$0xff]
        %v1099 = vld [vmem:[%s1082 + $0x80] sm:$0xff]
        %v1100 = vld [vmem:[%s1082 + $0x88] sm:$0xff]
        %v1101 = vld [vmem:[%s1082 + $0x90] sm:$0xff]
        %v1102 = vld [vmem:[%s1082 + $0x98] sm:$0xff]
        %v1103 = vld [vmem:[%s1082 + $0xa0] sm:$0xff]
        %v1104 = vld [vmem:[%s1082 + $0xa8] sm:$0xff]
        %v1105 = vld [vmem:[%s1082 + $0xb0] sm:$0xff]
        %v1106 = vld [vmem:[%s1082 + $0xb8] sm:$0xff]
        %v1107 = vld [vmem:[%s1082 + $0xc0] sm:$0xff]
        %v1108 = vld [vmem:[%s1082 + $0xc8] sm:$0xff]
        %v1109 = vld [vmem:[%s1082 + $0xd0] sm:$0xff]
        %v1110 = vld [vmem:[%s1082 + $0xd8] sm:$0xff]
        %v1111 = vld [vmem:[%s1082 + $0xe0] sm:$0xff]
        %v1112 = vld [vmem:[%s1082 + $0xe8] sm:$0xff]
        %v1113 = vld [vmem:[%s1082 + $0xf0] sm:$0xff]
        %v1114 = vld [vmem:[%s1082 + $0xf8] sm:$0xff]
        %v1147 = vunpack.c.l.b16 %v1083
        %v1148 = vunpack.c.h.b16 %v1083
        %v1149 = vunpack.c.l.b16 %v1084
        %v1150 = vunpack.c.h.b16 %v1084
        %v1151 = vunpack.c.l.b16 %v1085
        %v1152 = vunpack.c.h.b16 %v1085
        %v1153 = vunpack.c.l.b16 %v1086
        %v1154 = vunpack.c.h.b16 %v1086
        %v1155 = vunpack.c.l.b16 %v1087
        %v1156 = vunpack.c.h.b16 %v1087
        %v1157 = vunpack.c.l.b16 %v1088
        %v1158 = vunpack.c.h.b16 %v1088
        %v1159 = vunpack.c.l.b16 %v1089
        %v1160 = vunpack.c.h.b16 %v1089
        %v1161 = vunpack.c.l.b16 %v1090
        %v1162 = vunpack.c.h.b16 %v1090
        %v1163 = vunpack.c.l.b16 %v1091
        %v1164 = vunpack.c.h.b16 %v1091
        %v1165 = vunpack.c.l.b16 %v1092
        %v1166 = vunpack.c.h.b16 %v1092
        %v1167 = vunpack.c.l.b16 %v1093
        %v1168 = vunpack.c.h.b16 %v1093
        %v1169 = vunpack.c.l.b16 %v1094
        %v1170 = vunpack.c.h.b16 %v1094
        %v1171 = vunpack.c.l.b16 %v1095
        %v1172 = vunpack.c.h.b16 %v1095
        %v1173 = vunpack.c.l.b16 %v1096
        %v1174 = vunpack.c.h.b16 %v1096
        %v1175 = vunpack.c.l.b16 %v1097
        %v1176 = vunpack.c.h.b16 %v1097
        %v1177 = vunpack.c.l.b16 %v1098
        %v1178 = vunpack.c.h.b16 %v1098
        %v1179 = vunpack.c.l.b16 %v1099
        %v1180 = vunpack.c.h.b16 %v1099
        %v1181 = vunpack.c.l.b16 %v1100
        %v1182 = vunpack.c.h.b16 %v1100
        %v1183 = vunpack.c.l.b16 %v1101
        %v1184 = vunpack.c.h.b16 %v1101
        %v1185 = vunpack.c.l.b16 %v1102
        %v1186 = vunpack.c.h.b16 %v1102
        %v1187 = vunpack.c.l.b16 %v1103
        %v1188 = vunpack.c.h.b16 %v1103
        %v1189 = vunpack.c.l.b16 %v1104
        %v1190 = vunpack.c.h.b16 %v1104
        %v1191 = vunpack.c.l.b16 %v1105
        %v1192 = vunpack.c.h.b16 %v1105
        %v1193 = vunpack.c.l.b16 %v1106
        %v1194 = vunpack.c.h.b16 %v1106
        %v1195 = vunpack.c.l.b16 %v1107
        %v1196 = vunpack.c.h.b16 %v1107
        %v1197 = vunpack.c.l.b16 %v1108
        %v1198 = vunpack.c.h.b16 %v1108
        %v1199 = vunpack.c.l.b16 %v1109
        %v1200 = vunpack.c.h.b16 %v1109
        %v1201 = vunpack.c.l.b16 %v1110
        %v1202 = vunpack.c.h.b16 %v1110
        %v1203 = vunpack.c.l.b16 %v1111
        %v1204 = vunpack.c.h.b16 %v1111
        %v1205 = vunpack.c.l.b16 %v1112
        %v1206 = vunpack.c.h.b16 %v1112
        %v1207 = vunpack.c.l.b16 %v1113
        %v1208 = vunpack.c.h.b16 %v1113
        %v1209 = vunpack.c.l.b16 %v1114
        %v1210 = vunpack.c.h.b16 %v1114
        %v1211 = vpack.c.b16 %v1149, %v1147
        %v1212 = vpack.c.b16 %v1150, %v1148
        %v1213 = vpack.c.b16 %v1153, %v1151
        %v1214 = vpack.c.b16 %v1154, %v1152
        %v1215 = vpack.c.b16 %v1157, %v1155
        %v1216 = vpack.c.b16 %v1158, %v1156
        %v1217 = vpack.c.b16 %v1161, %v1159
        %v1218 = vpack.c.b16 %v1162, %v1160
        %v1219 = vpack.c.b16 %v1165, %v1163
        %v1220 = vpack.c.b16 %v1166, %v1164
        %v1221 = vpack.c.b16 %v1169, %v1167
        %v1222 = vpack.c.b16 %v1170, %v1168
        %v1223 = vpack.c.b16 %v1173, %v1171
        %v1224 = vpack.c.b16 %v1174, %v1172
        %v1225 = vpack.c.b16 %v1177, %v1175
        %v1226 = vpack.c.b16 %v1178, %v1176
        %v1227 = vpack.c.b16 %v1181, %v1179
        %v1228 = vpack.c.b16 %v1182, %v1180
        %v1229 = vpack.c.b16 %v1185, %v1183
        %v1230 = vpack.c.b16 %v1186, %v1184
        %v1231 = vpack.c.b16 %v1189, %v1187
        %v1232 = vpack.c.b16 %v1190, %v1188
        %v1233 = vpack.c.b16 %v1193, %v1191
        %v1234 = vpack.c.b16 %v1194, %v1192
        %v1235 = vpack.c.b16 %v1197, %v1195
        %v1236 = vpack.c.b16 %v1198, %v1196
        %v1237 = vpack.c.b16 %v1201, %v1199
        %v1238 = vpack.c.b16 %v1202, %v1200
        %v1239 = vpack.c.b16 %v1205, %v1203
        %v1240 = vpack.c.b16 %v1206, %v1204
        %v1241 = vpack.c.b16 %v1209, %v1207
        %v1242 = vpack.c.b16 %v1210, %v1208
        %1275 = vmatpush.bf16.msra.mxu0 %v1225
        %1276 = vmatpush.bf16.msra.mxu0 %v1223
        %1277 = vmatpush.bf16.msra.mxu0 %v1221
        %1278 = vmatpush.bf16.msra.mxu0 %v1219
        %1279 = vmatpush.bf16.msra.mxu0 %v1217
        %1280 = vmatpush.bf16.msra.mxu0 %v1215
        %1281 = vmatpush.bf16.msra.mxu0 %v1213
        %1282 = vmatpush.bf16.msra.mxu0 %v1211
        %1283 = vmatmul.bf16.gmra.mxu0 %v1080
        %v1284 = vpop.f32.mrf.mxu0
        %v1285 = vadd.f32 0.0, %v1284
        %v1286 = vpop.f32.mrf.mxu0
        %v1287 = vadd.f32 0.0, %v1286
        %1288 = vdwg.mxu0
        %1289 = vmatpush.bf16.msra.mxu0 %v1241
        %1290 = vmatpush.bf16.msra.mxu0 %v1239
        %1291 = vmatpush.bf16.msra.mxu0 %v1237
        %1292 = vmatpush.bf16.msra.mxu0 %v1235
        %1293 = vmatpush.bf16.msra.mxu0 %v1233
        %1294 = vmatpush.bf16.msra.mxu0 %v1231
        %1295 = vmatpush.bf16.msra.mxu0 %v1229
        %1296 = vmatpush.bf16.msra.mxu0 %v1227
        %1297 = vmatmul.bf16.gmra.mxu0 %v1081
        %v1298 = vpop.f32.mrf.mxu0
        %v1299 = vadd.f32 %v1285, %v1298
        %v1300 = vpop.f32.mrf.mxu0
        %v1301 = vadd.f32 %v1287, %v1300
        %1302 = vdwg.mxu0
        %1303 = vmatpush.bf16.msra.mxu0 %v1226
        %1304 = vmatpush.bf16.msra.mxu0 %v1224
        %1305 = vmatpush.bf16.msra.mxu0 %v1222
        %1306 = vmatpush.bf16.msra.mxu0 %v1220
        %1307 = vmatpush.bf16.msra.mxu0 %v1218
        %1308 = vmatpush.bf16.msra.mxu0 %v1216
        %1309 = vmatpush.bf16.msra.mxu0 %v1214
        %1310 = vmatpush.bf16.msra.mxu0 %v1212
        %1311 = vmatmul.bf16.gmra.mxu0 %v1080
        %v1312 = vpop.f32.mrf.mxu0
        %v1313 = vadd.f32 0.0, %v1312
        %v1314 = vpop.f32.mrf.mxu0
        %v1315 = vadd.f32 0.0, %v1314
        %1316 = vdwg.mxu0
        %1317 = vmatpush.bf16.msra.mxu0 %v1242
        %1318 = vmatpush.bf16.msra.mxu0 %v1240
        %1319 = vmatpush.bf16.msra.mxu0 %v1238
        %1320 = vmatpush.bf16.msra.mxu0 %v1236
        %1321 = vmatpush.bf16.msra.mxu0 %v1234
        %1322 = vmatpush.bf16.msra.mxu0 %v1232
        %1323 = vmatpush.bf16.msra.mxu0 %v1230
        %1324 = vmatpush.bf16.msra.mxu0 %v1228
        %1325 = vmatmul.bf16.gmra.mxu0 %v1081
        %v1326 = vpop.f32.mrf.mxu0
        %v1327 = vadd.f32 %v1313, %v1326
        %v1328 = vpop.f32.mrf.mxu0
        %v1329 = vadd.f32 %v1315, %v1328
        %1330 = vdwg.mxu0
        %v1363 = vunpack.c.l.b16 %v1048
        %v1364 = vunpack.c.h.b16 %v1048
        %v1365 = vunpack.c.l.b16 %v1049
        %v1366 = vunpack.c.h.b16 %v1049
        %v1367 = vunpack.c.l.b16 %v1050
        %v1368 = vunpack.c.h.b16 %v1050
        %v1369 = vunpack.c.l.b16 %v1051
        %v1370 = vunpack.c.h.b16 %v1051
        %v1371 = vunpack.c.l.b16 %v1052
        %v1372 = vunpack.c.h.b16 %v1052
        %v1373 = vunpack.c.l.b16 %v1053
        %v1374 = vunpack.c.h.b16 %v1053
        %v1375 = vunpack.c.l.b16 %v1054
        %v1376 = vunpack.c.h.b16 %v1054
        %v1377 = vunpack.c.l.b16 %v1055
        %v1378 = vunpack.c.h.b16 %v1055
        %v1379 = vunpack.c.l.b16 %v1056
        %v1380 = vunpack.c.h.b16 %v1056
        %v1381 = vunpack.c.l.b16 %v1057
        %v1382 = vunpack.c.h.b16 %v1057
        %v1383 = vunpack.c.l.b16 %v1058
        %v1384 = vunpack.c.h.b16 %v1058
        %v1385 = vunpack.c.l.b16 %v1059
        %v1386 = vunpack.c.h.b16 %v1059
        %v1387 = vunpack.c.l.b16 %v1060
        %v1388 = vunpack.c.h.b16 %v1060
        %v1389 = vunpack.c.l.b16 %v1061
        %v1390 = vunpack.c.h.b16 %v1061
        %v1391 = vunpack.c.l.b16 %v1062
        %v1392 = vunpack.c.h.b16 %v1062
        %v1393 = vunpack.c.l.b16 %v1063
        %v1394 = vunpack.c.h.b16 %v1063
        %v1395 = vunpack.c.l.b16 %v1064
        %v1396 = vunpack.c.h.b16 %v1064
        %v1397 = vunpack.c.l.b16 %v1065
        %v1398 = vunpack.c.h.b16 %v1065
        %v1399 = vunpack.c.l.b16 %v1066
        %v1400 = vunpack.c.h.b16 %v1066
        %v1401 = vunpack.c.l.b16 %v1067
        %v1402 = vunpack.c.h.b16 %v1067
        %v1403 = vunpack.c.l.b16 %v1068
        %v1404 = vunpack.c.h.b16 %v1068
        %v1405 = vunpack.c.l.b16 %v1069
        %v1406 = vunpack.c.h.b16 %v1069
        %v1407 = vunpack.c.l.b16 %v1070
        %v1408 = vunpack.c.h.b16 %v1070
        %v1409 = vunpack.c.l.b16 %v1071
        %v1410 = vunpack.c.h.b16 %v1071
        %v1411 = vunpack.c.l.b16 %v1072
        %v1412 = vunpack.c.h.b16 %v1072
        %v1413 = vunpack.c.l.b16 %v1073
        %v1414 = vunpack.c.h.b16 %v1073
        %v1415 = vunpack.c.l.b16 %v1074
        %v1416 = vunpack.c.h.b16 %v1074
        %v1417 = vunpack.c.l.b16 %v1075
        %v1418 = vunpack.c.h.b16 %v1075
        %v1419 = vunpack.c.l.b16 %v1076
        %v1420 = vunpack.c.h.b16 %v1076
        %v1421 = vunpack.c.l.b16 %v1077
        %v1422 = vunpack.c.h.b16 %v1077
        %v1423 = vunpack.c.l.b16 %v1078
        %v1424 = vunpack.c.h.b16 %v1078
        %v1425 = vunpack.c.l.b16 %v1079
        %v1426 = vunpack.c.h.b16 %v1079
        %v1427 = vpack.c.b16 %v1365, %v1363
        %v1428 = vpack.c.b16 %v1366, %v1364
        %v1429 = vpack.c.b16 %v1369, %v1367
        %v1430 = vpack.c.b16 %v1370, %v1368
        %v1431 = vpack.c.b16 %v1373, %v1371
        %v1432 = vpack.c.b16 %v1374, %v1372
        %v1433 = vpack.c.b16 %v1377, %v1375
        %v1434 = vpack.c.b16 %v1378, %v1376
        %v1435 = vpack.c.b16 %v1381, %v1379
        %v1436 = vpack.c.b16 %v1382, %v1380
        %v1437 = vpack.c.b16 %v1385, %v1383
        %v1438 = vpack.c.b16 %v1386, %v1384
        %v1439 = vpack.c.b16 %v1389, %v1387
        %v1440 = vpack.c.b16 %v1390, %v1388
        %v1441 = vpack.c.b16 %v1393, %v1391
        %v1442 = vpack.c.b16 %v1394, %v1392
        %v1443 = vpack.c.b16 %v1397, %v1395
        %v1444 = vpack.c.b16 %v1398, %v1396
        %v1445 = vpack.c.b16 %v1401, %v1399
        %v1446 = vpack.c.b16 %v1402, %v1400
        %v1447 = vpack.c.b16 %v1405, %v1403
        %v1448 = vpack.c.b16 %v1406, %v1404
        %v1449 = vpack.c.b16 %v1409, %v1407
        %v1450 = vpack.c.b16 %v1410, %v1408
        %v1451 = vpack.c.b16 %v1413, %v1411
        %v1452 = vpack.c.b16 %v1414, %v1412
        %v1453 = vpack.c.b16 %v1417, %v1415
        %v1454 = vpack.c.b16 %v1418, %v1416
        %v1455 = vpack.c.b16 %v1421, %v1419
        %v1456 = vpack.c.b16 %v1422, %v1420
        %v1457 = vpack.c.b16 %v1425, %v1423
        %v1458 = vpack.c.b16 %v1426, %v1424
        %1491 = vmatpush.bf16.msra.mxu0 %v1441
        %1492 = vmatpush.bf16.msra.mxu0 %v1439
        %1493 = vmatpush.bf16.msra.mxu0 %v1437
        %1494 = vmatpush.bf16.msra.mxu0 %v1435
        %1495 = vmatpush.bf16.msra.mxu0 %v1433
        %1496 = vmatpush.bf16.msra.mxu0 %v1431
        %1497 = vmatpush.bf16.msra.mxu0 %v1429
        %1498 = vmatpush.bf16.msra.mxu0 %v1427
        %1499 = vmatmul.bf16.gmra.mxu0 %v1046
        %v1500 = vpop.f32.mrf.mxu0
        %v1501 = vadd.f32 %v1299, %v1500
        %v1502 = vpop.f32.mrf.mxu0
        %v1503 = vadd.f32 %v1301, %v1502
        %1504 = vdwg.mxu0
        %1505 = vmatpush.bf16.msra.mxu0 %v1457
        %1506 = vmatpush.bf16.msra.mxu0 %v1455
        %1507 = vmatpush.bf16.msra.mxu0 %v1453
        %1508 = vmatpush.bf16.msra.mxu0 %v1451
        %1509 = vmatpush.bf16.msra.mxu0 %v1449
        %1510 = vmatpush.bf16.msra.mxu0 %v1447
        %1511 = vmatpush.bf16.msra.mxu0 %v1445
        %1512 = vmatpush.bf16.msra.mxu0 %v1443
        %1513 = vmatmul.bf16.gmra.mxu0 %v1047
        %v1514 = vpop.f32.mrf.mxu0
        %v1515 = vadd.f32 %v1501, %v1514
        %v1516 = vpop.f32.mrf.mxu0
        %v1517 = vadd.f32 %v1503, %v1516
        %1518 = vdwg.mxu0
        %1519 = vmatpush.bf16.msra.mxu0 %v1442
        %1520 = vmatpush.bf16.msra.mxu0 %v1440
        %1521 = vmatpush.bf16.msra.mxu0 %v1438
        %1522 = vmatpush.bf16.msra.mxu0 %v1436
        %1523 = vmatpush.bf16.msra.mxu0 %v1434
        %1524 = vmatpush.bf16.msra.mxu0 %v1432
        %1525 = vmatpush.bf16.msra.mxu0 %v1430
        %1526 = vmatpush.bf16.msra.mxu0 %v1428
        %1527 = vmatmul.bf16.gmra.mxu0 %v1046
        %v1528 = vpop.f32.mrf.mxu0
        %v1529 = vadd.f32 %v1327, %v1528
        %v1530 = vpop.f32.mrf.mxu0
        %v1531 = vadd.f32 %v1329, %v1530
        %1532 = vdwg.mxu0
        %1533 = vmatpush.bf16.msra.mxu0 %v1458
        %1534 = vmatpush.bf16.msra.mxu0 %v1456
        %1535 = vmatpush.bf16.msra.mxu0 %v1454
        %1536 = vmatpush.bf16.msra.mxu0 %v1452
        %1537 = vmatpush.bf16.msra.mxu0 %v1450
        %1538 = vmatpush.bf16.msra.mxu0 %v1448
        %1539 = vmatpush.bf16.msra.mxu0 %v1446
        %1540 = vmatpush.bf16.msra.mxu0 %v1444
        %1541 = vmatmul.bf16.gmra.mxu0 %v1047
        %v1542 = vpop.f32.mrf.mxu0
        %v1543 = vadd.f32 %v1529, %v1542
        %v1544 = vpop.f32.mrf.mxu0
        %v1545 = vadd.f32 %v1531, %v1544
        %1546 = vdwg.mxu0
        %v1547 = vpack.c.bf16 %v783, %v781
        %v1548 = vpack.c.bf16 %v784, %v782
        %s1549 = scalar_lea.vmem %s5, 512
        %v1550 = vld [vmem:[%s1549] sm:$0xff]
        %v1551 = vld [vmem:[%s1549 + $0x8] sm:$0xff]
        %v1552 = vld [vmem:[%s1549 + $0x10] sm:$0xff]
        %v1553 = vld [vmem:[%s1549 + $0x18] sm:$0xff]
        %v1554 = vld [vmem:[%s1549 + $0x20] sm:$0xff]
        %v1555 = vld [vmem:[%s1549 + $0x28] sm:$0xff]
        %v1556 = vld [vmem:[%s1549 + $0x30] sm:$0xff]
        %v1557 = vld [vmem:[%s1549 + $0x38] sm:$0xff]
        %v1558 = vld [vmem:[%s1549 + $0x40] sm:$0xff]
        %v1559 = vld [vmem:[%s1549 + $0x48] sm:$0xff]
        %v1560 = vld [vmem:[%s1549 + $0x50] sm:$0xff]
        %v1561 = vld [vmem:[%s1549 + $0x58] sm:$0xff]
        %v1562 = vld [vmem:[%s1549 + $0x60] sm:$0xff]
        %v1563 = vld [vmem:[%s1549 + $0x68] sm:$0xff]
        %v1564 = vld [vmem:[%s1549 + $0x70] sm:$0xff]
        %v1565 = vld [vmem:[%s1549 + $0x78] sm:$0xff]
        %v1566 = vld [vmem:[%s1549 + $0x80] sm:$0xff]
        %v1567 = vld [vmem:[%s1549 + $0x88] sm:$0xff]
        %v1568 = vld [vmem:[%s1549 + $0x90] sm:$0xff]
        %v1569 = vld [vmem:[%s1549 + $0x98] sm:$0xff]
        %v1570 = vld [vmem:[%s1549 + $0xa0] sm:$0xff]
        %v1571 = vld [vmem:[%s1549 + $0xa8] sm:$0xff]
        %v1572 = vld [vmem:[%s1549 + $0xb0] sm:$0xff]
        %v1573 = vld [vmem:[%s1549 + $0xb8] sm:$0xff]
        %v1574 = vld [vmem:[%s1549 + $0xc0] sm:$0xff]
        %v1575 = vld [vmem:[%s1549 + $0xc8] sm:$0xff]
        %v1576 = vld [vmem:[%s1549 + $0xd0] sm:$0xff]
        %v1577 = vld [vmem:[%s1549 + $0xd8] sm:$0xff]
        %v1578 = vld [vmem:[%s1549 + $0xe0] sm:$0xff]
        %v1579 = vld [vmem:[%s1549 + $0xe8] sm:$0xff]
        %v1580 = vld [vmem:[%s1549 + $0xf0] sm:$0xff]
        %v1581 = vld [vmem:[%s1549 + $0xf8] sm:$0xff]
        %v1614 = vunpack.c.l.b16 %v1550
        %v1615 = vunpack.c.h.b16 %v1550
        %v1616 = vunpack.c.l.b16 %v1551
        %v1617 = vunpack.c.h.b16 %v1551
        %v1618 = vunpack.c.l.b16 %v1552
        %v1619 = vunpack.c.h.b16 %v1552
        %v1620 = vunpack.c.l.b16 %v1553
        %v1621 = vunpack.c.h.b16 %v1553
        %v1622 = vunpack.c.l.b16 %v1554
        %v1623 = vunpack.c.h.b16 %v1554
        %v1624 = vunpack.c.l.b16 %v1555
        %v1625 = vunpack.c.h.b16 %v1555
        %v1626 = vunpack.c.l.b16 %v1556
        %v1627 = vunpack.c.h.b16 %v1556
        %v1628 = vunpack.c.l.b16 %v1557
        %v1629 = vunpack.c.h.b16 %v1557
        %v1630 = vunpack.c.l.b16 %v1558
        %v1631 = vunpack.c.h.b16 %v1558
        %v1632 = vunpack.c.l.b16 %v1559
        %v1633 = vunpack.c.h.b16 %v1559
        %v1634 = vunpack.c.l.b16 %v1560
        %v1635 = vunpack.c.h.b16 %v1560
        %v1636 = vunpack.c.l.b16 %v1561
        %v1637 = vunpack.c.h.b16 %v1561
        %v1638 = vunpack.c.l.b16 %v1562
        %v1639 = vunpack.c.h.b16 %v1562
        %v1640 = vunpack.c.l.b16 %v1563
        %v1641 = vunpack.c.h.b16 %v1563
        %v1642 = vunpack.c.l.b16 %v1564
        %v1643 = vunpack.c.h.b16 %v1564
        %v1644 = vunpack.c.l.b16 %v1565
        %v1645 = vunpack.c.h.b16 %v1565
        %v1646 = vunpack.c.l.b16 %v1566
        %v1647 = vunpack.c.h.b16 %v1566
        %v1648 = vunpack.c.l.b16 %v1567
        %v1649 = vunpack.c.h.b16 %v1567
        %v1650 = vunpack.c.l.b16 %v1568
        %v1651 = vunpack.c.h.b16 %v1568
        %v1652 = vunpack.c.l.b16 %v1569
        %v1653 = vunpack.c.h.b16 %v1569
        %v1654 = vunpack.c.l.b16 %v1570
        %v1655 = vunpack.c.h.b16 %v1570
        %v1656 = vunpack.c.l.b16 %v1571
        %v1657 = vunpack.c.h.b16 %v1571
        %v1658 = vunpack.c.l.b16 %v1572
        %v1659 = vunpack.c.h.b16 %v1572
        %v1660 = vunpack.c.l.b16 %v1573
        %v1661 = vunpack.c.h.b16 %v1573
        %v1662 = vunpack.c.l.b16 %v1574
        %v1663 = vunpack.c.h.b16 %v1574
        %v1664 = vunpack.c.l.b16 %v1575
        %v1665 = vunpack.c.h.b16 %v1575
        %v1666 = vunpack.c.l.b16 %v1576
        %v1667 = vunpack.c.h.b16 %v1576
        %v1668 = vunpack.c.l.b16 %v1577
        %v1669 = vunpack.c.h.b16 %v1577
        %v1670 = vunpack.c.l.b16 %v1578
        %v1671 = vunpack.c.h.b16 %v1578
        %v1672 = vunpack.c.l.b16 %v1579
        %v1673 = vunpack.c.h.b16 %v1579
        %v1674 = vunpack.c.l.b16 %v1580
        %v1675 = vunpack.c.h.b16 %v1580
        %v1676 = vunpack.c.l.b16 %v1581
        %v1677 = vunpack.c.h.b16 %v1581
        %v1678 = vpack.c.b16 %v1616, %v1614
        %v1679 = vpack.c.b16 %v1617, %v1615
        %v1680 = vpack.c.b16 %v1620, %v1618
        %v1681 = vpack.c.b16 %v1621, %v1619
        %v1682 = vpack.c.b16 %v1624, %v1622
        %v1683 = vpack.c.b16 %v1625, %v1623
        %v1684 = vpack.c.b16 %v1628, %v1626
        %v1685 = vpack.c.b16 %v1629, %v1627
        %v1686 = vpack.c.b16 %v1632, %v1630
        %v1687 = vpack.c.b16 %v1633, %v1631
        %v1688 = vpack.c.b16 %v1636, %v1634
        %v1689 = vpack.c.b16 %v1637, %v1635
        %v1690 = vpack.c.b16 %v1640, %v1638
        %v1691 = vpack.c.b16 %v1641, %v1639
        %v1692 = vpack.c.b16 %v1644, %v1642
        %v1693 = vpack.c.b16 %v1645, %v1643
        %v1694 = vpack.c.b16 %v1648, %v1646
        %v1695 = vpack.c.b16 %v1649, %v1647
        %v1696 = vpack.c.b16 %v1652, %v1650
        %v1697 = vpack.c.b16 %v1653, %v1651
        %v1698 = vpack.c.b16 %v1656, %v1654
        %v1699 = vpack.c.b16 %v1657, %v1655
        %v1700 = vpack.c.b16 %v1660, %v1658
        %v1701 = vpack.c.b16 %v1661, %v1659
        %v1702 = vpack.c.b16 %v1664, %v1662
        %v1703 = vpack.c.b16 %v1665, %v1663
        %v1704 = vpack.c.b16 %v1668, %v1666
        %v1705 = vpack.c.b16 %v1669, %v1667
        %v1706 = vpack.c.b16 %v1672, %v1670
        %v1707 = vpack.c.b16 %v1673, %v1671
        %v1708 = vpack.c.b16 %v1676, %v1674
        %v1709 = vpack.c.b16 %v1677, %v1675
        %1742 = vmatpush.bf16.msra.mxu0 %v1692
        %1743 = vmatpush.bf16.msra.mxu0 %v1690
        %1744 = vmatpush.bf16.msra.mxu0 %v1688
        %1745 = vmatpush.bf16.msra.mxu0 %v1686
        %1746 = vmatpush.bf16.msra.mxu0 %v1684
        %1747 = vmatpush.bf16.msra.mxu0 %v1682
        %1748 = vmatpush.bf16.msra.mxu0 %v1680
        %1749 = vmatpush.bf16.msra.mxu0 %v1678
        %1750 = vmatmul.bf16.gmra.mxu0 %v1547
        %v1751 = vpop.f32.mrf.mxu0
        %v1752 = vadd.f32 0.0, %v1751
        %v1753 = vpop.f32.mrf.mxu0
        %v1754 = vadd.f32 0.0, %v1753
        %1755 = vdwg.mxu0
        %1756 = vmatpush.bf16.msra.mxu0 %v1708
        %1757 = vmatpush.bf16.msra.mxu0 %v1706
        %1758 = vmatpush.bf16.msra.mxu0 %v1704
        %1759 = vmatpush.bf16.msra.mxu0 %v1702
        %1760 = vmatpush.bf16.msra.mxu0 %v1700
        %1761 = vmatpush.bf16.msra.mxu0 %v1698
        %1762 = vmatpush.bf16.msra.mxu0 %v1696
        %1763 = vmatpush.bf16.msra.mxu0 %v1694
        %1764 = vmatmul.bf16.gmra.mxu0 %v1548
        %v1765 = vpop.f32.mrf.mxu0
        %v1766 = vadd.f32 %v1752, %v1765
        %v1767 = vpop.f32.mrf.mxu0
        %v1768 = vadd.f32 %v1754, %v1767
        %1769 = vdwg.mxu0
        %1770 = vmatpush.bf16.msra.mxu0 %v1693
        %1771 = vmatpush.bf16.msra.mxu0 %v1691
        %1772 = vmatpush.bf16.msra.mxu0 %v1689
        %1773 = vmatpush.bf16.msra.mxu0 %v1687
        %1774 = vmatpush.bf16.msra.mxu0 %v1685
        %1775 = vmatpush.bf16.msra.mxu0 %v1683
        %1776 = vmatpush.bf16.msra.mxu0 %v1681
        %1777 = vmatpush.bf16.msra.mxu0 %v1679
        %1778 = vmatmul.bf16.gmra.mxu0 %v1547
        %v1779 = vpop.f32.mrf.mxu0
        %v1780 = vadd.f32 0.0, %v1779
        %v1781 = vpop.f32.mrf.mxu0
        %v1782 = vadd.f32 0.0, %v1781
        %1783 = vdwg.mxu0
        %1784 = vmatpush.bf16.msra.mxu0 %v1709
        %1785 = vmatpush.bf16.msra.mxu0 %v1707
        %1786 = vmatpush.bf16.msra.mxu0 %v1705
        %1787 = vmatpush.bf16.msra.mxu0 %v1703
        %1788 = vmatpush.bf16.msra.mxu0 %v1701
        %1789 = vmatpush.bf16.msra.mxu0 %v1699
        %1790 = vmatpush.bf16.msra.mxu0 %v1697
        %1791 = vmatpush.bf16.msra.mxu0 %v1695
        %1792 = vmatmul.bf16.gmra.mxu0 %v1548
        %v1793 = vpop.f32.mrf.mxu0
        %v1794 = vadd.f32 %v1780, %v1793
        %v1795 = vpop.f32.mrf.mxu0
        %v1796 = vadd.f32 %v1782, %v1795
        %1797 = vdwg.mxu0
        %v1798 = vadd.f32 %v1515, %v1766
        %v1799 = vadd.f32 %v1543, %v1794
        %v1800 = vadd.f32 %v1517, %v1768
        %v1801 = vadd.f32 %v1545, %v1796
        %v1802 = vpack.c.bf16 %v974, %v972
        %v1803 = vpack.c.bf16 %v975, %v973
        %s1804 = scalar_lea.vmem %s5, 768
        %v1805 = vld [vmem:[%s1804] sm:$0xff]
        %v1806 = vld [vmem:[%s1804 + $0x8] sm:$0xff]
        %v1807 = vld [vmem:[%s1804 + $0x10] sm:$0xff]
        %v1808 = vld [vmem:[%s1804 + $0x18] sm:$0xff]
        %v1809 = vld [vmem:[%s1804 + $0x20] sm:$0xff]
        %v1810 = vld [vmem:[%s1804 + $0x28] sm:$0xff]
        %v1811 = vld [vmem:[%s1804 + $0x30] sm:$0xff]
        %v1812 = vld [vmem:[%s1804 + $0x38] sm:$0xff]
        %v1813 = vld [vmem:[%s1804 + $0x40] sm:$0xff]
        %v1814 = vld [vmem:[%s1804 + $0x48] sm:$0xff]
        %v1815 = vld [vmem:[%s1804 + $0x50] sm:$0xff]
        %v1816 = vld [vmem:[%s1804 + $0x58] sm:$0xff]
        %v1817 = vld [vmem:[%s1804 + $0x60] sm:$0xff]
        %v1818 = vld [vmem:[%s1804 + $0x68] sm:$0xff]
        %v1819 = vld [vmem:[%s1804 + $0x70] sm:$0xff]
        %v1820 = vld [vmem:[%s1804 + $0x78] sm:$0xff]
        %v1821 = vld [vmem:[%s1804 + $0x80] sm:$0xff]
        %v1822 = vld [vmem:[%s1804 + $0x88] sm:$0xff]
        %v1823 = vld [vmem:[%s1804 + $0x90] sm:$0xff]
        %v1824 = vld [vmem:[%s1804 + $0x98] sm:$0xff]
        %v1825 = vld [vmem:[%s1804 + $0xa0] sm:$0xff]
        %v1826 = vld [vmem:[%s1804 + $0xa8] sm:$0xff]
        %v1827 = vld [vmem:[%s1804 + $0xb0] sm:$0xff]
        %v1828 = vld [vmem:[%s1804 + $0xb8] sm:$0xff]
        %v1829 = vld [vmem:[%s1804 + $0xc0] sm:$0xff]
        %v1830 = vld [vmem:[%s1804 + $0xc8] sm:$0xff]
        %v1831 = vld [vmem:[%s1804 + $0xd0] sm:$0xff]
        %v1832 = vld [vmem:[%s1804 + $0xd8] sm:$0xff]
        %v1833 = vld [vmem:[%s1804 + $0xe0] sm:$0xff]
        %v1834 = vld [vmem:[%s1804 + $0xe8] sm:$0xff]
        %v1835 = vld [vmem:[%s1804 + $0xf0] sm:$0xff]
        %v1836 = vld [vmem:[%s1804 + $0xf8] sm:$0xff]
        %v1869 = vunpack.c.l.b16 %v1805
        %v1870 = vunpack.c.h.b16 %v1805
        %v1871 = vunpack.c.l.b16 %v1806
        %v1872 = vunpack.c.h.b16 %v1806
        %v1873 = vunpack.c.l.b16 %v1807
        %v1874 = vunpack.c.h.b16 %v1807
        %v1875 = vunpack.c.l.b16 %v1808
        %v1876 = vunpack.c.h.b16 %v1808
        %v1877 = vunpack.c.l.b16 %v1809
        %v1878 = vunpack.c.h.b16 %v1809
        %v1879 = vunpack.c.l.b16 %v1810
        %v1880 = vunpack.c.h.b16 %v1810
        %v1881 = vunpack.c.l.b16 %v1811
        %v1882 = vunpack.c.h.b16 %v1811
        %v1883 = vunpack.c.l.b16 %v1812
        %v1884 = vunpack.c.h.b16 %v1812
        %v1885 = vunpack.c.l.b16 %v1813
        %v1886 = vunpack.c.h.b16 %v1813
        %v1887 = vunpack.c.l.b16 %v1814
        %v1888 = vunpack.c.h.b16 %v1814
        %v1889 = vunpack.c.l.b16 %v1815
        %v1890 = vunpack.c.h.b16 %v1815
        %v1891 = vunpack.c.l.b16 %v1816
        %v1892 = vunpack.c.h.b16 %v1816
        %v1893 = vunpack.c.l.b16 %v1817
        %v1894 = vunpack.c.h.b16 %v1817
        %v1895 = vunpack.c.l.b16 %v1818
        %v1896 = vunpack.c.h.b16 %v1818
        %v1897 = vunpack.c.l.b16 %v1819
        %v1898 = vunpack.c.h.b16 %v1819
        %v1899 = vunpack.c.l.b16 %v1820
        %v1900 = vunpack.c.h.b16 %v1820
        %v1901 = vunpack.c.l.b16 %v1821
        %v1902 = vunpack.c.h.b16 %v1821
        %v1903 = vunpack.c.l.b16 %v1822
        %v1904 = vunpack.c.h.b16 %v1822
        %v1905 = vunpack.c.l.b16 %v1823
        %v1906 = vunpack.c.h.b16 %v1823
        %v1907 = vunpack.c.l.b16 %v1824
        %v1908 = vunpack.c.h.b16 %v1824
        %v1909 = vunpack.c.l.b16 %v1825
        %v1910 = vunpack.c.h.b16 %v1825
        %v1911 = vunpack.c.l.b16 %v1826
        %v1912 = vunpack.c.h.b16 %v1826
        %v1913 = vunpack.c.l.b16 %v1827
        %v1914 = vunpack.c.h.b16 %v1827
        %v1915 = vunpack.c.l.b16 %v1828
        %v1916 = vunpack.c.h.b16 %v1828
        %v1917 = vunpack.c.l.b16 %v1829
        %v1918 = vunpack.c.h.b16 %v1829
        %v1919 = vunpack.c.l.b16 %v1830
        %v1920 = vunpack.c.h.b16 %v1830
        %v1921 = vunpack.c.l.b16 %v1831
        %v1922 = vunpack.c.h.b16 %v1831
        %v1923 = vunpack.c.l.b16 %v1832
        %v1924 = vunpack.c.h.b16 %v1832
        %v1925 = vunpack.c.l.b16 %v1833
        %v1926 = vunpack.c.h.b16 %v1833
        %v1927 = vunpack.c.l.b16 %v1834
        %v1928 = vunpack.c.h.b16 %v1834
        %v1929 = vunpack.c.l.b16 %v1835
        %v1930 = vunpack.c.h.b16 %v1835
        %v1931 = vunpack.c.l.b16 %v1836
        %v1932 = vunpack.c.h.b16 %v1836
        %v1933 = vpack.c.b16 %v1871, %v1869
        %v1934 = vpack.c.b16 %v1872, %v1870
        %v1935 = vpack.c.b16 %v1875, %v1873
        %v1936 = vpack.c.b16 %v1876, %v1874
        %v1937 = vpack.c.b16 %v1879, %v1877
        %v1938 = vpack.c.b16 %v1880, %v1878
        %v1939 = vpack.c.b16 %v1883, %v1881
        %v1940 = vpack.c.b16 %v1884, %v1882
        %v1941 = vpack.c.b16 %v1887, %v1885
        %v1942 = vpack.c.b16 %v1888, %v1886
        %v1943 = vpack.c.b16 %v1891, %v1889
        %v1944 = vpack.c.b16 %v1892, %v1890
        %v1945 = vpack.c.b16 %v1895, %v1893
        %v1946 = vpack.c.b16 %v1896, %v1894
        %v1947 = vpack.c.b16 %v1899, %v1897
        %v1948 = vpack.c.b16 %v1900, %v1898
        %v1949 = vpack.c.b16 %v1903, %v1901
        %v1950 = vpack.c.b16 %v1904, %v1902
        %v1951 = vpack.c.b16 %v1907, %v1905
        %v1952 = vpack.c.b16 %v1908, %v1906
        %v1953 = vpack.c.b16 %v1911, %v1909
        %v1954 = vpack.c.b16 %v1912, %v1910
        %v1955 = vpack.c.b16 %v1915, %v1913
        %v1956 = vpack.c.b16 %v1916, %v1914
        %v1957 = vpack.c.b16 %v1919, %v1917
        %v1958 = vpack.c.b16 %v1920, %v1918
        %v1959 = vpack.c.b16 %v1923, %v1921
        %v1960 = vpack.c.b16 %v1924, %v1922
        %v1961 = vpack.c.b16 %v1927, %v1925
        %v1962 = vpack.c.b16 %v1928, %v1926
        %v1963 = vpack.c.b16 %v1931, %v1929
        %v1964 = vpack.c.b16 %v1932, %v1930
        %1997 = vmatpush.bf16.msra.mxu0 %v1947
        %1998 = vmatpush.bf16.msra.mxu0 %v1945
        %1999 = vmatpush.bf16.msra.mxu0 %v1943
        %2000 = vmatpush.bf16.msra.mxu0 %v1941
        %2001 = vmatpush.bf16.msra.mxu0 %v1939
        %2002 = vmatpush.bf16.msra.mxu0 %v1937
        %2003 = vmatpush.bf16.msra.mxu0 %v1935
        %2004 = vmatpush.bf16.msra.mxu0 %v1933
        %2005 = vmatmul.bf16.gmra.mxu0 %v1802
        %v2006 = vpop.f32.mrf.mxu0
        %v2007 = vadd.f32 0.0, %v2006
        %v2008 = vpop.f32.mrf.mxu0
        %v2009 = vadd.f32 0.0, %v2008
        %2010 = vdwg.mxu0
        %2011 = vmatpush.bf16.msra.mxu0 %v1963
        %2012 = vmatpush.bf16.msra.mxu0 %v1961
        %2013 = vmatpush.bf16.msra.mxu0 %v1959
        %2014 = vmatpush.bf16.msra.mxu0 %v1957
        %2015 = vmatpush.bf16.msra.mxu0 %v1955
        %2016 = vmatpush.bf16.msra.mxu0 %v1953
        %2017 = vmatpush.bf16.msra.mxu0 %v1951
        %2018 = vmatpush.bf16.msra.mxu0 %v1949
        %2019 = vmatmul.bf16.gmra.mxu0 %v1803
        %v2020 = vpop.f32.mrf.mxu0
        %v2021 = vadd.f32 %v2007, %v2020
        %v2022 = vpop.f32.mrf.mxu0
        %v2023 = vadd.f32 %v2009, %v2022
        %2024 = vdwg.mxu0
        %2025 = vmatpush.bf16.msra.mxu0 %v1948
        %2026 = vmatpush.bf16.msra.mxu0 %v1946
        %2027 = vmatpush.bf16.msra.mxu0 %v1944
        %2028 = vmatpush.bf16.msra.mxu0 %v1942
        %2029 = vmatpush.bf16.msra.mxu0 %v1940
        %2030 = vmatpush.bf16.msra.mxu0 %v1938
        %2031 = vmatpush.bf16.msra.mxu0 %v1936
        %2032 = vmatpush.bf16.msra.mxu0 %v1934
        %2033 = vmatmul.bf16.gmra.mxu0 %v1802
        %v2034 = vpop.f32.mrf.mxu0
        %v2035 = vadd.f32 0.0, %v2034
        %v2036 = vpop.f32.mrf.mxu0
        %v2037 = vadd.f32 0.0, %v2036
        %2038 = vdwg.mxu0
        %2039 = vmatpush.bf16.msra.mxu0 %v1964
        %2040 = vmatpush.bf16.msra.mxu0 %v1962
        %2041 = vmatpush.bf16.msra.mxu0 %v1960
        %2042 = vmatpush.bf16.msra.mxu0 %v1958
        %2043 = vmatpush.bf16.msra.mxu0 %v1956
        %2044 = vmatpush.bf16.msra.mxu0 %v1954
        %2045 = vmatpush.bf16.msra.mxu0 %v1952
        %2046 = vmatpush.bf16.msra.mxu0 %v1950
        %2047 = vmatmul.bf16.gmra.mxu0 %v1803
        %v2048 = vpop.f32.mrf.mxu0
        %v2049 = vadd.f32 %v2035, %v2048
        %v2050 = vpop.f32.mrf.mxu0
        %v2051 = vadd.f32 %v2037, %v2050
        %2052 = vdwg.mxu0
        %v2053 = vadd.f32 %v1798, %v2021
        %v2054 = vadd.f32 %v1799, %v2049
        %v2055 = vadd.f32 %v1800, %v2023
        %v2056 = vadd.f32 %v1801, %v2051
        %v2057 = vpack.c.bf16 %v1044, %v1044
        %v2058 = vpack.c.bf16 %v1045, %v1045
        %s2059 = scalar_lea.vmem %s5, 1024
        %v2060 = vld [vmem:[%s2059] sm:$0xff]
        %v2061 = vld [vmem:[%s2059 + $0x8] sm:$0xff]
        %v2062 = vld [vmem:[%s2059 + $0x10] sm:$0xff]
        %v2063 = vld [vmem:[%s2059 + $0x18] sm:$0xff]
        %v2064 = vld [vmem:[%s2059 + $0x20] sm:$0xff]
        %v2065 = vld [vmem:[%s2059 + $0x28] sm:$0xff]
        %v2066 = vld [vmem:[%s2059 + $0x30] sm:$0xff]
        %v2067 = vld [vmem:[%s2059 + $0x38] sm:$0xff]
        %v2068 = vld [vmem:[%s2059 + $0x40] sm:$0xff]
        %v2069 = vld [vmem:[%s2059 + $0x48] sm:$0xff]
        %v2070 = vld [vmem:[%s2059 + $0x50] sm:$0xff]
        %v2071 = vld [vmem:[%s2059 + $0x58] sm:$0xff]
        %v2072 = vld [vmem:[%s2059 + $0x60] sm:$0xff]
        %v2073 = vld [vmem:[%s2059 + $0x68] sm:$0xff]
        %v2074 = vld [vmem:[%s2059 + $0x70] sm:$0xff]
        %v2075 = vld [vmem:[%s2059 + $0x78] sm:$0xff]
        %v2076 = vld [vmem:[%s2059 + $0x80] sm:$0xff]
        %v2077 = vld [vmem:[%s2059 + $0x88] sm:$0xff]
        %v2078 = vld [vmem:[%s2059 + $0x90] sm:$0xff]
        %v2079 = vld [vmem:[%s2059 + $0x98] sm:$0xff]
        %v2080 = vld [vmem:[%s2059 + $0xa0] sm:$0xff]
        %v2081 = vld [vmem:[%s2059 + $0xa8] sm:$0xff]
        %v2082 = vld [vmem:[%s2059 + $0xb0] sm:$0xff]
        %v2083 = vld [vmem:[%s2059 + $0xb8] sm:$0xff]
        %v2084 = vld [vmem:[%s2059 + $0xc0] sm:$0xff]
        %v2085 = vld [vmem:[%s2059 + $0xc8] sm:$0xff]
        %v2086 = vld [vmem:[%s2059 + $0xd0] sm:$0xff]
        %v2087 = vld [vmem:[%s2059 + $0xd8] sm:$0xff]
        %v2088 = vld [vmem:[%s2059 + $0xe0] sm:$0xff]
        %v2089 = vld [vmem:[%s2059 + $0xe8] sm:$0xff]
        %v2090 = vld [vmem:[%s2059 + $0xf0] sm:$0xff]
        %v2091 = vld [vmem:[%s2059 + $0xf8] sm:$0xff]
        %v2124 = vunpack.c.l.b16 %v2060
        %v2125 = vunpack.c.h.b16 %v2060
        %v2126 = vunpack.c.l.b16 %v2061
        %v2127 = vunpack.c.h.b16 %v2061
        %v2128 = vunpack.c.l.b16 %v2062
        %v2129 = vunpack.c.h.b16 %v2062
        %v2130 = vunpack.c.l.b16 %v2063
        %v2131 = vunpack.c.h.b16 %v2063
        %v2132 = vunpack.c.l.b16 %v2064
        %v2133 = vunpack.c.h.b16 %v2064
        %v2134 = vunpack.c.l.b16 %v2065
        %v2135 = vunpack.c.h.b16 %v2065
        %v2136 = vunpack.c.l.b16 %v2066
        %v2137 = vunpack.c.h.b16 %v2066
        %v2138 = vunpack.c.l.b16 %v2067
        %v2139 = vunpack.c.h.b16 %v2067
        %v2140 = vunpack.c.l.b16 %v2068
        %v2141 = vunpack.c.h.b16 %v2068
        %v2142 = vunpack.c.l.b16 %v2069
        %v2143 = vunpack.c.h.b16 %v2069
        %v2144 = vunpack.c.l.b16 %v2070
        %v2145 = vunpack.c.h.b16 %v2070
        %v2146 = vunpack.c.l.b16 %v2071
        %v2147 = vunpack.c.h.b16 %v2071
        %v2148 = vunpack.c.l.b16 %v2072
        %v2149 = vunpack.c.h.b16 %v2072
        %v2150 = vunpack.c.l.b16 %v2073
        %v2151 = vunpack.c.h.b16 %v2073
        %v2152 = vunpack.c.l.b16 %v2074
        %v2153 = vunpack.c.h.b16 %v2074
        %v2154 = vunpack.c.l.b16 %v2075
        %v2155 = vunpack.c.h.b16 %v2075
        %v2156 = vunpack.c.l.b16 %v2076
        %v2157 = vunpack.c.h.b16 %v2076
        %v2158 = vunpack.c.l.b16 %v2077
        %v2159 = vunpack.c.h.b16 %v2077
        %v2160 = vunpack.c.l.b16 %v2078
        %v2161 = vunpack.c.h.b16 %v2078
        %v2162 = vunpack.c.l.b16 %v2079
        %v2163 = vunpack.c.h.b16 %v2079
        %v2164 = vunpack.c.l.b16 %v2080
        %v2165 = vunpack.c.h.b16 %v2080
        %v2166 = vunpack.c.l.b16 %v2081
        %v2167 = vunpack.c.h.b16 %v2081
        %v2168 = vunpack.c.l.b16 %v2082
        %v2169 = vunpack.c.h.b16 %v2082
        %v2170 = vunpack.c.l.b16 %v2083
        %v2171 = vunpack.c.h.b16 %v2083
        %v2172 = vunpack.c.l.b16 %v2084
        %v2173 = vunpack.c.h.b16 %v2084
        %v2174 = vunpack.c.l.b16 %v2085
        %v2175 = vunpack.c.h.b16 %v2085
        %v2176 = vunpack.c.l.b16 %v2086
        %v2177 = vunpack.c.h.b16 %v2086
        %v2178 = vunpack.c.l.b16 %v2087
        %v2179 = vunpack.c.h.b16 %v2087
        %v2180 = vunpack.c.l.b16 %v2088
        %v2181 = vunpack.c.h.b16 %v2088
        %v2182 = vunpack.c.l.b16 %v2089
        %v2183 = vunpack.c.h.b16 %v2089
        %v2184 = vunpack.c.l.b16 %v2090
        %v2185 = vunpack.c.h.b16 %v2090
        %v2186 = vunpack.c.l.b16 %v2091
        %v2187 = vunpack.c.h.b16 %v2091
        %v2188 = vpack.c.b16 %v2126, %v2124
        %v2189 = vpack.c.b16 %v2127, %v2125
        %v2190 = vpack.c.b16 %v2130, %v2128
        %v2191 = vpack.c.b16 %v2131, %v2129
        %v2192 = vpack.c.b16 %v2134, %v2132
        %v2193 = vpack.c.b16 %v2135, %v2133
        %v2194 = vpack.c.b16 %v2138, %v2136
        %v2195 = vpack.c.b16 %v2139, %v2137
        %v2196 = vpack.c.b16 %v2142, %v2140
        %v2197 = vpack.c.b16 %v2143, %v2141
        %v2198 = vpack.c.b16 %v2146, %v2144
        %v2199 = vpack.c.b16 %v2147, %v2145
        %v2200 = vpack.c.b16 %v2150, %v2148
        %v2201 = vpack.c.b16 %v2151, %v2149
        %v2202 = vpack.c.b16 %v2154, %v2152
        %v2203 = vpack.c.b16 %v2155, %v2153
        %v2204 = vpack.c.b16 %v2158, %v2156
        %v2205 = vpack.c.b16 %v2159, %v2157
        %v2206 = vpack.c.b16 %v2162, %v2160
        %v2207 = vpack.c.b16 %v2163, %v2161
        %v2208 = vpack.c.b16 %v2166, %v2164
        %v2209 = vpack.c.b16 %v2167, %v2165
        %v2210 = vpack.c.b16 %v2170, %v2168
        %v2211 = vpack.c.b16 %v2171, %v2169
        %v2212 = vpack.c.b16 %v2174, %v2172
        %v2213 = vpack.c.b16 %v2175, %v2173
        %v2214 = vpack.c.b16 %v2178, %v2176
        %v2215 = vpack.c.b16 %v2179, %v2177
        %v2216 = vpack.c.b16 %v2182, %v2180
        %v2217 = vpack.c.b16 %v2183, %v2181
        %v2218 = vpack.c.b16 %v2186, %v2184
        %v2219 = vpack.c.b16 %v2187, %v2185
        %2252 = vmatpush.bf16.msra.mxu0 %v2202
        %2253 = vmatpush.bf16.msra.mxu0 %v2200
        %2254 = vmatpush.bf16.msra.mxu0 %v2198
        %2255 = vmatpush.bf16.msra.mxu0 %v2196
        %2256 = vmatpush.bf16.msra.mxu0 %v2194
        %2257 = vmatpush.bf16.msra.mxu0 %v2192
        %2258 = vmatpush.bf16.msra.mxu0 %v2190
        %2259 = vmatpush.bf16.msra.mxu0 %v2188
        %2260 = vmatmul.bf16.gmra.mxu0 %v2057
        %v2261 = vpop.f32.mrf.mxu0
        %v2262 = vadd.f32 0.0, %v2261
        %v2263 = vpop.f32.mrf.mxu0
        %2264 = vdwg.mxu0
        %2265 = vmatpush.bf16.msra.mxu0 %v2218
        %2266 = vmatpush.bf16.msra.mxu0 %v2216
        %2267 = vmatpush.bf16.msra.mxu0 %v2214
        %2268 = vmatpush.bf16.msra.mxu0 %v2212
        %2269 = vmatpush.bf16.msra.mxu0 %v2210
        %2270 = vmatpush.bf16.msra.mxu0 %v2208
        %2271 = vmatpush.bf16.msra.mxu0 %v2206
        %2272 = vmatpush.bf16.msra.mxu0 %v2204
        %2273 = vmatmul.bf16.gmra.mxu0 %v2058
        %v2274 = vpop.f32.mrf.mxu0
        %v2275 = vadd.f32 %v2262, %v2274
        %v2276 = vpop.f32.mrf.mxu0
        %2277 = vdwg.mxu0
        %2278 = vmatpush.bf16.msra.mxu0 %v2203
        %2279 = vmatpush.bf16.msra.mxu0 %v2201
        %2280 = vmatpush.bf16.msra.mxu0 %v2199
        %2281 = vmatpush.bf16.msra.mxu0 %v2197
        %2282 = vmatpush.bf16.msra.mxu0 %v2195
        %2283 = vmatpush.bf16.msra.mxu0 %v2193
        %2284 = vmatpush.bf16.msra.mxu0 %v2191
        %2285 = vmatpush.bf16.msra.mxu0 %v2189
        %2286 = vmatmul.bf16.gmra.mxu0 %v2057
        %v2287 = vpop.f32.mrf.mxu0
        %v2288 = vadd.f32 0.0, %v2287
        %v2289 = vpop.f32.mrf.mxu0
        %2290 = vdwg.mxu0
        %2291 = vmatpush.bf16.msra.mxu0 %v2219
        %2292 = vmatpush.bf16.msra.mxu0 %v2217
        %2293 = vmatpush.bf16.msra.mxu0 %v2215
        %2294 = vmatpush.bf16.msra.mxu0 %v2213
        %2295 = vmatpush.bf16.msra.mxu0 %v2211
        %2296 = vmatpush.bf16.msra.mxu0 %v2209
        %2297 = vmatpush.bf16.msra.mxu0 %v2207
        %2298 = vmatpush.bf16.msra.mxu0 %v2205
        %2299 = vmatmul.bf16.gmra.mxu0 %v2058
        %v2300 = vpop.f32.mrf.mxu0
        %v2301 = vadd.f32 %v2288, %v2300
        %v2302 = vpop.f32.mrf.mxu0
        %2303 = vdwg.mxu0
        %v2304 = vperm.slane %v2275, 0
        %v2305 = vperm.slane %v2301, 0
        %v2306 = vadd.f32 %v2053, %v2304
        %v2307 = vadd.f32 %v2054, %v2305
        %v2308 = vadd.f32 %v2055, %v2304
        %v2309 = vadd.f32 %v2056, %v2305
        %v2310 = vld [vmem:[%s7] sm:$0x3]
        %v2312 = vperm.slane %v2310, 0
        %v2313 = vperm.slane %v2310, 1
        %v2316 = vadd.f32 %v2306, %v2312
        %v2317 = vadd.f32 %v2307, %v2313
        %v2318 = vadd.f32 %v2308, %v2312
        %v2319 = vadd.f32 %v2309, %v2313
        %v2320 = vmax.f32 %v2316, 0.0
        %v2321 = vmax.f32 %v2317, 0.0
        %v2322 = vmax.f32 %v2318, 0.0
        %v2323 = vmax.f32 %v2319, 0.0
        %v2324 = vpack.c.bf16 %v2321, %v2320
        %v2325 = vpack.c.bf16 %v2323, %v2322
        %2326 = vst [vmem:[%s342] sm:$0xff] %v2324
        %2327 = vst [vmem:[%s342 + $0x8] sm:$0xff] %v2325
        %p2328 = scmp.lt.s32.totalorder %s20, 1
        %s2329 = scalar_select %p2328, %s20, 1
        %s2330 = smul.addr %s2329, 4
        %s2331 = smul.addr %s2330, 4
        %s2332 = scalar_lea.vmem %s8, %s2331
        // Predicated region
        $region57: #{deeplabv3p_forward.6} parent=51 // pred_check
          %p2333 = pneg %p216
        $region58: #{deeplabv3p_forward.6} parent=51 // pred_check_branch
          %2335 = sbr.rel (%p2333) target = $region60
        $region59: #{deeplabv3p_forward.6} parent=51 // pred_region
          _
        $region60: #{deeplabv3p_forward.6} parent=51 // pred_fallthru
          _
      $region52: #{deeplabv3p_forward.6} parent=5 // pred_fallthru
        _
      %p2336 = scmp.le.s32.totalorder 2, %s15
      // Predicated region
      $region61: #{deeplabv3p_forward.6} parent=5 // pred_check
        %p2337 = pneg %p2336
      $region62: #{deeplabv3p_forward.6} parent=5 // pred_check_branch
        %2339 = sbr.rel (%p2337) target = $region64
      $region63: #{deeplabv3p_forward.6} parent=5 // pred_region
        %s2340 = ssub.s32 %s15, 2
        // Predicated region
        $region65: #{deeplabv3p_forward.6} parent=63 // pred_check
          %p2341 = pneg %p222
        $region66: #{deeplabv3p_forward.6} parent=63 // pred_check_branch
          %2343 = sbr.rel (%p2341) target = $region68
        $region67: #{deeplabv3p_forward.6} parent=63 // pred_region
          %p2344 = scmp.lt.s32.totalorder %s21, 1
          %s2345 = scalar_select %p2344, %s21, 1
          %s2346 = smul.addr %s2345, 4
          %s2347 = smul.addr %s2346, 4
          %s2348 = scalar_lea.vmem %s8, %s2347
        $region68: #{deeplabv3p_forward.6} parent=63 // pred_fallthru
          _
      $region64: #{deeplabv3p_forward.6} parent=5 // pred_fallthru
        _
    $region6: #{deeplabv3p_forward.6} parent=1 // loop_footer
      %s19 = sadd.s32 1, %s15
    $region7: #{deeplabv3p_forward.6} parent=1 // loop_footer_branch
      %14 = sbr.rel target = $region3
    $region8: #{deeplabv3p_forward.6} parent=1 // loop_exit
      _
    %2349 = vsyncpa [#allocation3], 1
    %s2350 = scalar_lea.sflag [#allocation3], 1
    %2351 = vsyncpa %s2350, 1

// kernel: deeplabv3p_forward.7
$region0: #{deeplabv3p_forward.7}
  #allocation0 [shape = 'u32[]', space=smem, size = 0x4, offset = 0x4, fixed_abs, tag = 'smem constant byte address 0x4 - core index']
  #allocation1 [shape = 'u32[72,128]{1,0:T(1,128)}', space=vmem, size = 0x9000, scoped, tag = 'internal scratch']
  #allocation2 [shape = 'f32[10,10,256]{2,1,0:T(8,128)}', space=vmem, size = 0x28000, scoped, tag = 'scratch operand']
  #allocation3 [shape = 'f32[10,10,48]{2,1,0:T(8,128)}', space=vmem, size = 0x14000, scoped, tag = 'scratch operand']
  #allocation4 [shape = 'f32[10,10,256]{2,1,0:T(8,128)}', space=vmem, size = 0x28000, scoped, tag = 'scratch operand']
  %s0 = inlined_call_operand.vmem [shape: bf16[2,64,8], index: 0, kind: input, shape index: {}]
  %s1 = inlined_call_operand.vmem [shape: bf16[2,16,256], index: 1, kind: input, shape index: {}]
  %s2 = inlined_call_operand.vmem [shape: bf16[64,16], index: 2, kind: input, shape index: {}]
  %s3 = inlined_call_operand.vmem [shape: bf16[8,48], index: 3, kind: input, shape index: {}]
  %s4 = inlined_call_operand.vmem [shape: f32[1,48], index: 4, kind: input, shape index: {}]
  %s5 = inlined_call_operand.vmem [shape: bf16[9,256,256], index: 5, kind: input, shape index: {}]
  %s6 = inlined_call_operand.hbm [shape: bf16[9,48,256], index: 6, kind: input, shape index: {}]
  %s7 = inlined_call_operand.vmem [shape: f32[1,256], index: 7, kind: input, shape index: {}]
  %s8 = inlined_call_operand.vmem [shape: bf16[9,256,128], index: 8, kind: input, shape index: {}]
  %s9 = inlined_call_operand.vmem [shape: f32[1,128], index: 9, kind: input, shape index: {}]
  %s10 = inlined_call_operand.vmem [shape: f32[2,64,128], index: 10, kind: output, shape index: {}]
  %s11 = sld [smem:[#allocation0]]
  $region77: #{deeplabv3p_forward.7} parent=0
    _
  %s13 = ssub.s32 1, %s11
  %s14 = scalar_select 0, %s13, %s11
  $region1: #{deeplabv3p_forward.7} parent=0
    #allocation5 [shape = 'u8[221184]{0}', space=vmem, size = 0x36000, scoped, tag = 'input window, operand 6, single buffered']
    #allocation6 [shape = 's32[2]{0}', space=sflag, size = 0x8, scoped, tag = 'scoped memory for deeplabv3p_forward.7']
    %15 = vsyncpa [#allocation6], 0
    loop: start=0, step=1, limit=4
    $region2: #{deeplabv3p_forward.7} parent=1 // loop_pre_header
      _
    $region3: #{deeplabv3p_forward.7} parent=1 // loop_header
      %s17 = sphi 0, %s21
      %p18 = scmp.ge.s32.totalorder %s17, 4
      %s27 = sphi 0, %s29
      %s30 = sphi 0, %s27
      %s31 = sphi 0, %s30
      %s47 = sphi 0, %s31
      %s53 = sphi 0, %s55
      %s56 = sphi 0, %s53
      %s57 = sphi 0, %s56
      %s73 = sphi 0, %s57
      %s77 = sphi 0, %s77
      %s79 = sphi 0, %s77
      %s80 = sphi 0, %s79
      %s94 = sphi 0, %s80
      %s98 = sphi 0, %s98
      %s100 = sphi 0, %s98
      %s101 = sphi 0, %s100
      %s115 = sphi 0, %s101
      %s119 = sphi 0, %s119
      %s121 = sphi 0, %s119
      %s122 = sphi 0, %s121
      %s136 = sphi 0, %s122
      %s140 = sphi 0, %s140
      %s142 = sphi 0, %s140
      %s143 = sphi 0, %s142
      %s157 = sphi 0, %s143
      %s161 = sphi 0, %s161
      %s163 = sphi 0, %s161
      %s164 = sphi 0, %s163
      %s178 = sphi 0, %s164
      %s182 = sphi 0, %s182
      %s184 = sphi 0, %s182
      %s185 = sphi 0, %s184
      %s199 = sphi 0, %s185
      %s203 = sphi 0, %s203
      %s205 = sphi 0, %s203
      %s206 = sphi 0, %s205
      %s220 = sphi 0, %s206
      %s224 = sphi 0, %s224
      %s226 = sphi 0, %s224
      %s227 = sphi 0, %s226
      %s241 = sphi 0, %s227
      %s247 = sphi 0, %s249
      %s250 = sphi 0, %s247
      %s251 = sphi 0, %s250
      %s267 = sphi 0, %s251
    $region4: #{deeplabv3p_forward.7} parent=1 // loop_header_branch
      %20 = sbr.rel (%p18) target = $region8
    $region5: #{deeplabv3p_forward.7} parent=1 // loop_body
      %s22 = ssub.s32 %s17, 1
      %s23 = ssub.s32 %s17, 2
      %s24 = sadd.s32 %s17, 1
      %s25 = ssub.s32 %s17, %s24
      %p26 = scmp.eq.s32.totalorder %s25, 0
      %s28 = sadd.s32 %s27, 1
      %s29 = scalar_select %p26, %s27, %s28
      %p32 = pneg %p26
      %p33 = scmp.eq.s32.totalorder %s17, 1
      %p34 = por %p32, %p33
      %p35 = scmp.ne.s32.totalorder %s27, %s30
      %p36 = scmp.eq.s32.totalorder %s17, 0
      %p37 = por %p35, %p36
      %p38 = scmp.ne.s32.totalorder %s27, %s30
      %p39 = scmp.eq.s32.totalorder %s22, 1
      %p40 = por %p38, %p39
      %p41 = scmp.ne.s32.totalorder %s30, %s31
      %p42 = scmp.eq.s32.totalorder %s22, 0
      %p43 = por %p41, %p42
      %p44 = scmp.ne.s32.totalorder %s30, %s31
      %p45 = scmp.eq.s32.totalorder %s23, 1
      %p46 = por %p44, %p45
      %p48 = scmp.ne.s32.totalorder %s31, %s47
      %p49 = scmp.eq.s32.totalorder %s23, 0
      %p50 = por %p48, %p49
      %s51 = ssub.s32 %s17, %s24
      %p52 = scmp.eq.s32.totalorder %s51, 0
      %s54 = sadd.s32 %s53, 1
      %s55 = scalar_select %p52, %s53, %s54
      %p58 = pneg %p52
      %p59 = scmp.eq.s32.totalorder %s17, 1
      %p60 = por %p58, %p59
      %p61 = scmp.ne.s32.totalorder %s53, %s56
      %p62 = scmp.eq.s32.totalorder %s17, 0
      %p63 = por %p61, %p62
      %p64 = scmp.ne.s32.totalorder %s53, %s56
      %p65 = scmp.eq.s32.totalorder %s22, 1
      %p66 = por %p64, %p65
      %p67 = scmp.ne.s32.totalorder %s56, %s57
      %p68 = scmp.eq.s32.totalorder %s22, 0
      %p69 = por %p67, %p68
      %p70 = scmp.ne.s32.totalorder %s56, %s57
      %p71 = scmp.eq.s32.totalorder %s23, 1
      %p72 = por %p70, %p71
      %p74 = scmp.ne.s32.totalorder %s57, %s73
      %p75 = scmp.eq.s32.totalorder %s23, 0
      %p76 = por %p74, %p75
      %s78 = sadd.s32 %s77, 1
      %p81 = scmp.eq.s32.totalorder %s17, 1
      %p82 = scmp.ne.s32.totalorder %s77, %s79
      %p83 = scmp.eq.s32.totalorder %s17, 0
      %p84 = por %p82, %p83
      %p85 = scmp.ne.s32.totalorder %s77, %s79
      %p86 = scmp.eq.s32.totalorder %s22, 1
      %p87 = por %p85, %p86
      %p88 = scmp.ne.s32.totalorder %s79, %s80
      %p89 = scmp.eq.s32.totalorder %s22, 0
      %p90 = por %p88, %p89
      %p91 = scmp.ne.s32.totalorder %s79, %s80
      %p92 = scmp.eq.s32.totalorder %s23, 1
      %p93 = por %p91, %p92
      %p95 = scmp.ne.s32.totalorder %s80, %s94
      %p96 = scmp.eq.s32.totalorder %s23, 0
      %p97 = por %p95, %p96
      %s99 = sadd.s32 %s98, 1
      %p102 = scmp.eq.s32.totalorder %s17, 1
      %p103 = scmp.ne.s32.totalorder %s98, %s100
      %p104 = scmp.eq.s32.totalorder %s17, 0
      %p105 = por %p103, %p104
      %p106 = scmp.ne.s32.totalorder %s98, %s100
      %p107 = scmp.eq.s32.totalorder %s22, 1
      %p108 = por %p106, %p107
      %p109 = scmp.ne.s32.totalorder %s100, %s101
      %p110 = scmp.eq.s32.totalorder %s22, 0
      %p111 = por %p109, %p110
      %p112 = scmp.ne.s32.totalorder %s100, %s101
      %p113 = scmp.eq.s32.totalorder %s23, 1
      %p114 = por %p112, %p113
      %p116 = scmp.ne.s32.totalorder %s101, %s115
      %p117 = scmp.eq.s32.totalorder %s23, 0
      %p118 = por %p116, %p117
      %s120 = sadd.s32 %s119, 1
      %p123 = scmp.eq.s32.totalorder %s17, 1
      %p124 = scmp.ne.s32.totalorder %s119, %s121
      %p125 = scmp.eq.s32.totalorder %s17, 0
      %p126 = por %p124, %p125
      %p127 = scmp.ne.s32.totalorder %s119, %s121
      %p128 = scmp.eq.s32.totalorder %s22, 1
      %p129 = por %p127, %p128
      %p130 = scmp.ne.s32.totalorder %s121, %s122
      %p131 = scmp.eq.s32.totalorder %s22, 0
      %p132 = por %p130, %p131
      %p133 = scmp.ne.s32.totalorder %s121, %s122
      %p134 = scmp.eq.s32.totalorder %s23, 1
      %p135 = por %p133, %p134
      %p137 = scmp.ne.s32.totalorder %s122, %s136
      %p138 = scmp.eq.s32.totalorder %s23, 0
      %p139 = por %p137, %p138
      %s141 = sadd.s32 %s140, 1
      %p144 = scmp.eq.s32.totalorder %s17, 1
      %p145 = scmp.ne.s32.totalorder %s140, %s142
      %p146 = scmp.eq.s32.totalorder %s17, 0
      %p147 = por %p145, %p146
      %p148 = scmp.ne.s32.totalorder %s140, %s142
      %p149 = scmp.eq.s32.totalorder %s22, 1
      %p150 = por %p148, %p149
      %p151 = scmp.ne.s32.totalorder %s142, %s143
      %p152 = scmp.eq.s32.totalorder %s22, 0
      %p153 = por %p151, %p152
      %p154 = scmp.ne.s32.totalorder %s142, %s143
      %p155 = scmp.eq.s32.totalorder %s23, 1
      %p156 = por %p154, %p155
      %p158 = scmp.ne.s32.totalorder %s143, %s157
      %p159 = scmp.eq.s32.totalorder %s23, 0
      %p160 = por %p158, %p159
      %s162 = sadd.s32 %s161, 1
      %p165 = scmp.eq.s32.totalorder %s17, 1
      %p166 = scmp.ne.s32.totalorder %s161, %s163
      %p167 = scmp.eq.s32.totalorder %s17, 0
      %p168 = por %p166, %p167
      %p169 = scmp.ne.s32.totalorder %s161, %s163
      %p170 = scmp.eq.s32.totalorder %s22, 1
      %p171 = por %p169, %p170
      %p172 = scmp.ne.s32.totalorder %s163, %s164
      %p173 = scmp.eq.s32.totalorder %s22, 0
      %p174 = por %p172, %p173
      %p175 = scmp.ne.s32.totalorder %s163, %s164
      %p176 = scmp.eq.s32.totalorder %s23, 1
      %p177 = por %p175, %p176
      %p179 = scmp.ne.s32.totalorder %s164, %s178
      %p180 = scmp.eq.s32.totalorder %s23, 0
      %p181 = por %p179, %p180
      %s183 = sadd.s32 %s182, 1
      %p186 = scmp.eq.s32.totalorder %s17, 1
      %p187 = scmp.ne.s32.totalorder %s182, %s184
      %p188 = scmp.eq.s32.totalorder %s17, 0
      %p189 = por %p187, %p188
      %p190 = scmp.ne.s32.totalorder %s182, %s184
      %p191 = scmp.eq.s32.totalorder %s22, 1
      %p192 = por %p190, %p191
      %p193 = scmp.ne.s32.totalorder %s184, %s185
      %p194 = scmp.eq.s32.totalorder %s22, 0
      %p195 = por %p193, %p194
      %p196 = scmp.ne.s32.totalorder %s184, %s185
      %p197 = scmp.eq.s32.totalorder %s23, 1
      %p198 = por %p196, %p197
      %p200 = scmp.ne.s32.totalorder %s185, %s199
      %p201 = scmp.eq.s32.totalorder %s23, 0
      %p202 = por %p200, %p201
      %s204 = sadd.s32 %s203, 1
      %p207 = scmp.eq.s32.totalorder %s17, 1
      %p208 = scmp.ne.s32.totalorder %s203, %s205
      %p209 = scmp.eq.s32.totalorder %s17, 0
      %p210 = por %p208, %p209
      %p211 = scmp.ne.s32.totalorder %s203, %s205
      %p212 = scmp.eq.s32.totalorder %s22, 1
      %p213 = por %p211, %p212
      %p214 = scmp.ne.s32.totalorder %s205, %s206
      %p215 = scmp.eq.s32.totalorder %s22, 0
      %p216 = por %p214, %p215
      %p217 = scmp.ne.s32.totalorder %s205, %s206
      %p218 = scmp.eq.s32.totalorder %s23, 1
      %p219 = por %p217, %p218
      %p221 = scmp.ne.s32.totalorder %s206, %s220
      %p222 = scmp.eq.s32.totalorder %s23, 0
      %p223 = por %p221, %p222
      %s225 = sadd.s32 %s224, 1
      %p228 = scmp.eq.s32.totalorder %s17, 1
      %p229 = scmp.ne.s32.totalorder %s224, %s226
      %p230 = scmp.eq.s32.totalorder %s17, 0
      %p231 = por %p229, %p230
      %p232 = scmp.ne.s32.totalorder %s224, %s226
      %p233 = scmp.eq.s32.totalorder %s22, 1
      %p234 = por %p232, %p233
      %p235 = scmp.ne.s32.totalorder %s226, %s227
      %p236 = scmp.eq.s32.totalorder %s22, 0
      %p237 = por %p235, %p236
      %p238 = scmp.ne.s32.totalorder %s226, %s227
      %p239 = scmp.eq.s32.totalorder %s23, 1
      %p240 = por %p238, %p239
      %p242 = scmp.ne.s32.totalorder %s227, %s241
      %p243 = scmp.eq.s32.totalorder %s23, 0
      %p244 = por %p242, %p243
      %s245 = ssub.s32 %s17, %s24
      %p246 = scmp.eq.s32.totalorder %s245, 0
      %s248 = sadd.s32 %s247, 1
      %s249 = scalar_select %p246, %s247, %s248
      %p252 = pneg %p246
      %p253 = scmp.eq.s32.totalorder %s17, 1
      %p254 = por %p252, %p253
      %p255 = scmp.ne.s32.totalorder %s247, %s250
      %p256 = scmp.eq.s32.totalorder %s17, 0
      %p257 = por %p255, %p256
      %p258 = scmp.ne.s32.totalorder %s247, %s250
      %p259 = scmp.eq.s32.totalorder %s22, 1
      %p260 = por %p258, %p259
      %p261 = scmp.ne.s32.totalorder %s250, %s251
      %p262 = scmp.eq.s32.totalorder %s22, 0
      %p263 = por %p261, %p262
      %p264 = scmp.ne.s32.totalorder %s250, %s251
      %p265 = scmp.eq.s32.totalorder %s23, 1
      %p266 = por %p264, %p265
      %p268 = scmp.ne.s32.totalorder %s251, %s267
      %p269 = scmp.eq.s32.totalorder %s23, 0
      %p270 = por %p268, %p269
      %p271 = scmp.le.s32.totalorder 1, %s17
      %p272 = scmp.lt.s32.totalorder %s17, 3
      %p273 = pnand %p271, %p272
      %p274 = pneg %p273
      // Predicated region
      $region9: #{deeplabv3p_forward.7} parent=5 // pred_check
        _
      $region10: #{deeplabv3p_forward.7} parent=5 // pred_check_branch
        %276 = sbr.rel (%p273) target = $region12
      $region11: #{deeplabv3p_forward.7} parent=5 // pred_region
        %s277 = ssub.s32 %s17, 1
        // Predicated region
        $region13: #{deeplabv3p_forward.7} parent=11 // pred_check
          %p278 = pneg %p90
        $region14: #{deeplabv3p_forward.7} parent=11 // pred_check_branch
          %280 = sbr.rel (%p278) target = $region16
        $region15: #{deeplabv3p_forward.7} parent=11 // pred_region
          _
        $region16: #{deeplabv3p_forward.7} parent=11 // pred_fallthru
          _
        // Predicated region
        $region17: #{deeplabv3p_forward.7} parent=11 // pred_check
          %p281 = pneg %p111
        $region18: #{deeplabv3p_forward.7} parent=11 // pred_check_branch
          %283 = sbr.rel (%p281) target = $region20
        $region19: #{deeplabv3p_forward.7} parent=11 // pred_region
          _
        $region20: #{deeplabv3p_forward.7} parent=11 // pred_fallthru
          _
        // Predicated region
        $region21: #{deeplabv3p_forward.7} parent=11 // pred_check
          %p284 = pneg %p132
        $region22: #{deeplabv3p_forward.7} parent=11 // pred_check_branch
          %286 = sbr.rel (%p284) target = $region24
        $region23: #{deeplabv3p_forward.7} parent=11 // pred_region
          _
        $region24: #{deeplabv3p_forward.7} parent=11 // pred_fallthru
          _
        // Predicated region
        $region25: #{deeplabv3p_forward.7} parent=11 // pred_check
          %p287 = pneg %p153
        $region26: #{deeplabv3p_forward.7} parent=11 // pred_check_branch
          %289 = sbr.rel (%p287) target = $region28
        $region27: #{deeplabv3p_forward.7} parent=11 // pred_region
          _
        $region28: #{deeplabv3p_forward.7} parent=11 // pred_fallthru
          _
        // Predicated region
        $region29: #{deeplabv3p_forward.7} parent=11 // pred_check
          %p290 = pneg %p174
        $region30: #{deeplabv3p_forward.7} parent=11 // pred_check_branch
          %292 = sbr.rel (%p290) target = $region32
        $region31: #{deeplabv3p_forward.7} parent=11 // pred_region
          %294 = vsyncadd [#allocation6], 0
          %s295 = sshll.u32 %s6, 4
          %s296 = int_to_ptr.hbm [resolvable:$true] %s295
          %s297 = sshll.u32 [#allocation5], 4
          %s298 = int_to_ptr.vmem [resolvable:$true] %s297
          %303 = dma.hbm_to_vmem [thread:$0]  %s296, 6912, %s298, [#allocation6], 128, 128, 8
        $region32: #{deeplabv3p_forward.7} parent=11 // pred_fallthru
          _
        // Predicated region
        $region33: #{deeplabv3p_forward.7} parent=11 // pred_check
          %p304 = pneg %p195
        $region34: #{deeplabv3p_forward.7} parent=11 // pred_check_branch
          %306 = sbr.rel (%p304) target = $region36
        $region35: #{deeplabv3p_forward.7} parent=11 // pred_region
          _
        $region36: #{deeplabv3p_forward.7} parent=11 // pred_fallthru
          _
        // Predicated region
        $region37: #{deeplabv3p_forward.7} parent=11 // pred_check
          %p307 = pneg %p216
        $region38: #{deeplabv3p_forward.7} parent=11 // pred_check_branch
          %309 = sbr.rel (%p307) target = $region40
        $region39: #{deeplabv3p_forward.7} parent=11 // pred_region
          _
        $region40: #{deeplabv3p_forward.7} parent=11 // pred_fallthru
          _
        // Predicated region
        $region41: #{deeplabv3p_forward.7} parent=11 // pred_check
          %p310 = pneg %p237
        $region42: #{deeplabv3p_forward.7} parent=11 // pred_check_branch
          %312 = sbr.rel (%p310) target = $region44
        $region43: #{deeplabv3p_forward.7} parent=11 // pred_region
          _
        $region44: #{deeplabv3p_forward.7} parent=11 // pred_fallthru
          _
      $region12: #{deeplabv3p_forward.7} parent=5 // pred_fallthru
        _
      %p313 = scmp.lt.s32.totalorder %s17, 2
      // Predicated region
      $region45: #{deeplabv3p_forward.7} parent=5 // pred_check
        %p314 = pneg %p313
      $region46: #{deeplabv3p_forward.7} parent=5 // pred_check_branch
        %316 = sbr.rel (%p314) target = $region48
      $region47: #{deeplabv3p_forward.7} parent=5 // pred_region
        // Predicated region
        $region49: #{deeplabv3p_forward.7} parent=47 // pred_check
          %p317 = pneg %p37
        $region50: #{deeplabv3p_forward.7} parent=47 // pred_check_branch
          %319 = sbr.rel (%p317) target = $region52
        $region51: #{deeplabv3p_forward.7} parent=47 // pred_region
          %p320 = scmp.lt.s32.totalorder %s17, 1
          %s321 = scalar_select %p320, %s17, 1
          %s322 = smul.addr %s321, 8
          %s323 = smul.addr %s322, 4
          %s324 = scalar_lea.vmem %s0, %s323
        $region52: #{deeplabv3p_forward.7} parent=47 // pred_fallthru
          _
        // Predicated region
        $region53: #{deeplabv3p_forward.7} parent=47 // pred_check
          %p325 = pneg %p63
        $region54: #{deeplabv3p_forward.7} parent=47 // pred_check_branch
          %327 = sbr.rel (%p325) target = $region56
        $region55: #{deeplabv3p_forward.7} parent=47 // pred_region
          %p328 = scmp.lt.s32.totalorder %s17, 1
          %s329 = scalar_select %p328, %s17, 1
          %s330 = smul.addr %s329, 4
          %s331 = smul.addr %s330, 4
          %s332 = scalar_lea.vmem %s1, %s331
        $region56: #{deeplabv3p_forward.7} parent=47 // pred_fallthru
          _
      $region48: #{deeplabv3p_forward.7} parent=5 // pred_fallthru
        _
      %p333 = scmp.le.s32.totalorder 1, %s17
      %p334 = scmp.lt.s32.totalorder %s17, 3
      %p335 = pnand %p333, %p334
      %p336 = pneg %p335
      // Predicated region
      $region57: #{deeplabv3p_forward.7} parent=5 // pred_check
        _
      $region58: #{deeplabv3p_forward.7} parent=5 // pred_check_branch
        %338 = sbr.rel (%p335) target = $region60
      $region59: #{deeplabv3p_forward.7} parent=5 // pred_region
        %s339 = ssub.s32 %s17, 1
        // Predicated region
        $region61: #{deeplabv3p_forward.7} parent=59 // pred_check
          %p340 = pneg %p174
        $region62: #{deeplabv3p_forward.7} parent=59 // pred_check_branch
          %342 = sbr.rel (%p340) target = $region64
        $region63: #{deeplabv3p_forward.7} parent=59 // pred_region
          %344 = dma.done [#allocation6], 6912
        $region64: #{deeplabv3p_forward.7} parent=59 // pred_fallthru
          _
        %p345 = scmp.lt.s32.totalorder %s22, 1
        %s346 = scalar_select %p345, %s22, 1
        %s347 = smul.addr %s346, 8
        %s348 = smul.addr %s347, 4
        %s349 = scalar_lea.vmem %s0, %s348
        %p350 = pneg %p43
        %p351 = pneg %p40
        %p352 = scmp.lt.s32.totalorder %s22, 1
        %s353 = scalar_select %p352, %s22, 1
        %s354 = smul.addr %s353, 4
        %s355 = smul.addr %s354, 4
        %s356 = scalar_lea.vmem %s1, %s355
        %p357 = pneg %p69
        %p358 = pneg %p66
        %p359 = pneg %p90
        %p360 = pneg %p87
        %p361 = pneg %p111
        %p362 = pneg %p108
        %p363 = pneg %p132
        %p364 = pneg %p129
        %p365 = pneg %p153
        %p366 = pneg %p150
        %p367 = pneg %p174
        %p368 = pneg %p171
        %p369 = pneg %p195
        %p370 = pneg %p192
        %p371 = pneg %p216
        %p372 = pneg %p213
        %p373 = pneg %p237
        %p374 = pneg %p234
        %p375 = pneg %p263
        %p376 = pneg %p260
        %p377 = scmp.lt.s32.totalorder %s22, 1
        %s378 = scalar_select %p377, %s22, 1
        %s379 = smul.addr %s378, 8
        %s380 = smul.addr %s379, 8
        %s381 = scalar_lea.vmem %s10, %s380
        %p382 = scmp.lt.s32.totalorder %s22, 1
        %s383 = scalar_select %p382, %s22, 1
        %s384 = smul.addr %s383, 8
        %s385 = smul.addr %s384, 4
        %s386 = scalar_lea.vmem %s0, %s385
        %p387 = scmp.lt.s32.totalorder %s22, 1
        %s388 = scalar_select %p387, %s22, 1
        %s389 = smul.addr %s388, 4
        %s390 = smul.addr %s389, 4
        %s391 = scalar_lea.vmem %s1, %s390
        %p392 = scmp.lt.s32.totalorder %s22, 1
        %s393 = scalar_select %p392, %s22, 1
        %s394 = smul.addr %s393, 8
        %s395 = smul.addr %s394, 8
        %s396 = scalar_lea.vmem %s10, %s395
        %v398 = vld [vmem:[%s2] sm:$0xf]
        %v399 = vld [vmem:[%s2 + $0x4] sm:$0xf]
        %v400 = vld [vmem:[%s2 + $0x8] sm:$0xf]
        %v401 = vld [vmem:[%s2 + $0xc] sm:$0xf]
        %v402 = vld [vmem:[%s2 + $0x10] sm:$0xf]
        %v403 = vld [vmem:[%s2 + $0x14] sm:$0xf]
        %v404 = vld [vmem:[%s2 + $0x18] sm:$0xf]
        %v405 = vld [vmem:[%s2 + $0x1c] sm:$0xf]
        %v406 = vld [vmem:[%s391] sm:$0xff]
        %v407 = vld [vmem:[%s391 + $0x8] sm:$0xff]
        %v416 = vunpack.c.l.b16 %v398
        %v417 = vunpack.c.l.b16 %v399
        %v418 = vunpack.c.l.b16 %v400
        %v419 = vunpack.c.l.b16 %v401
        %v420 = vunpack.c.l.b16 %v402
        %v421 = vunpack.c.l.b16 %v403
        %v422 = vunpack.c.l.b16 %v404
        %v423 = vunpack.c.l.b16 %v405
        %v424 = vpack.c.b16 %v417, %v416
        %v425 = vpack.c.b16 %v419, %v418
        %v426 = vpack.c.b16 %v421, %v420
        %v427 = vpack.c.b16 %v423, %v422
        %v430 = vunpack.c.l.b16 %v406
        %v431 = vunpack.c.h.b16 %v406
        %v432 = vunpack.c.l.b16 %v407
        %v433 = vunpack.c.h.b16 %v407
        %v434 = vpack.c.b16 %v432, %v430
        %v435 = vpack.c.b16 %v433, %v431
        %vm438 = vcmask 130048
        %v440 = vsel %vm438, %v424, 0
        %v443 = vsel %vm438, %v425, 0
        %v446 = vsel %vm438, %v426, 0
        %v449 = vsel %vm438, %v427, 0
        %451 = vmatpush.bf16.msra.mxu0 0
        %452 = vmatpush.bf16.msra.mxu0 0
        %453 = vmatpush.bf16.msra.mxu0 0
        %454 = vmatpush.bf16.msra.mxu0 0
        %455 = vmatpush.bf16.msra.mxu0 0
        %456 = vmatpush.bf16.msra.mxu0 0
        %457 = vmatpush.bf16.msra.mxu0 0
        %458 = vmatpush.bf16.msra.mxu0 %v434
        %459 = vmatmul.bf16.gmra.mxu0 %v440
        %v460 = vpop.f32.mrf.mxu0
        %v461 = vadd.f32 0.0, %v460
        %v462 = vpop.f32.mrf.mxu0
        %v463 = vadd.f32 0.0, %v462
        %464 = vmatmul.bf16.gmra.mxu0 %v443
        %v465 = vpop.f32.mrf.mxu0
        %v466 = vadd.f32 0.0, %v465
        %v467 = vpop.f32.mrf.mxu0
        %v468 = vadd.f32 0.0, %v467
        %469 = vmatmul.bf16.gmra.mxu0 %v446
        %v470 = vpop.f32.mrf.mxu0
        %v471 = vadd.f32 0.0, %v470
        %v472 = vpop.f32.mrf.mxu0
        %v473 = vadd.f32 0.0, %v472
        %474 = vmatmul.bf16.gmra.mxu0 %v449
        %v475 = vpop.f32.mrf.mxu0
        %v476 = vadd.f32 0.0, %v475
        %v477 = vpop.f32.mrf.mxu0
        %v478 = vadd.f32 0.0, %v477
        %479 = vdwg.mxu0
        %480 = vmatpush.bf16.msra.mxu0 0
        %481 = vmatpush.bf16.msra.mxu0 0
        %482 = vmatpush.bf16.msra.mxu0 0
        %483 = vmatpush.bf16.msra.mxu0 0
        %484 = vmatpush.bf16.msra.mxu0 0
        %485 = vmatpush.bf16.msra.mxu0 0
        %486 = vmatpush.bf16.msra.mxu0 0
        %487 = vmatpush.bf16.msra.mxu0 %v435
        %488 = vmatmul.bf16.gmra.mxu0 %v440
        %v489 = vpop.f32.mrf.mxu0
        %v490 = vadd.f32 0.0, %v489
        %v491 = vpop.f32.mrf.mxu0
        %v492 = vadd.f32 0.0, %v491
        %493 = vmatmul.bf16.gmra.mxu0 %v443
        %v494 = vpop.f32.mrf.mxu0
        %v495 = vadd.f32 0.0, %v494
        %v496 = vpop.f32.mrf.mxu0
        %v497 = vadd.f32 0.0, %v496
        %498 = vmatmul.bf16.gmra.mxu0 %v446
        %v499 = vpop.f32.mrf.mxu0
        %v500 = vadd.f32 0.0, %v499
        %v501 = vpop.f32.mrf.mxu0
        %v502 = vadd.f32 0.0, %v501
        %503 = vmatmul.bf16.gmra.mxu0 %v449
        %v504 = vpop.f32.mrf.mxu0
        %v505 = vadd.f32 0.0, %v504
        %v506 = vpop.f32.mrf.mxu0
        %v507 = vadd.f32 0.0, %v506
        %508 = vdwg.mxu0
        %509 = vst [vmem:[#allocation2] sm:$0xff] 0.0
        %510 = vst [vmem:[#allocation2 + $0x8] sm:$0xff] 0.0
        %511 = vst [vmem:[#allocation2 + $0x10] sm:$0x3] 0.0
        %512 = vst [vmem:[#allocation2 + $0x18] sm:$0x3] 0.0
        %513 = vst [vmem:[#allocation2 + $0x20] sm:$0xff] 0.0
        %514 = vst [vmem:[#allocation2 + $0x28] sm:$0xff] 0.0
        %515 = vst [vmem:[#allocation2 + $0x30] sm:$0x3] 0.0
        %516 = vst [vmem:[#allocation2 + $0x38] sm:$0x3] 0.0
        %517 = vst [vmem:[#allocation2 + $0x40] sm:$0xff] 0.0
        %518 = vst [vmem:[#allocation2 + $0x48] sm:$0xff] 0.0
        %519 = vst [vmem:[#allocation2 + $0x50] sm:$0x3] 0.0
        %520 = vst [vmem:[#allocation2 + $0x58] sm:$0x3] 0.0
        %521 = vst [vmem:[#allocation2 + $0x60] sm:$0xff] 0.0
        %522 = vst [vmem:[#allocation2 + $0x68] sm:$0xff] 0.0
        %523 = vst [vmem:[#allocation2 + $0x70] sm:$0x3] 0.0
        %524 = vst [vmem:[#allocation2 + $0x78] sm:$0x3] 0.0
        %525 = vst [vmem:[#allocation2 + $0x80] sm:$0xff] 0.0
        %526 = vst [vmem:[#allocation2 + $0x88] sm:$0xff] 0.0
        %527 = vst [vmem:[#allocation2 + $0x90] sm:$0x3] 0.0
        %528 = vst [vmem:[#allocation2 + $0x98] sm:$0x3] 0.0
        %529 = vst [vmem:[#allocation2 + $0xa0] sm:$0xff] 0.0
        %530 = vst [vmem:[#allocation2 + $0xa8] sm:$0xff] 0.0
        %531 = vst [vmem:[#allocation2 + $0xb0] sm:$0x3] 0.0
        %532 = vst [vmem:[#allocation2 + $0xb8] sm:$0x3] 0.0
        %533 = vst [vmem:[#allocation2 + $0xc0] sm:$0xff] 0.0
        %534 = vst [vmem:[#allocation2 + $0xc8] sm:$0xff] 0.0
        %535 = vst [vmem:[#allocation2 + $0xd0] sm:$0x3] 0.0
        %536 = vst [vmem:[#allocation2 + $0xd8] sm:$0x3] 0.0
        %537 = vst [vmem:[#allocation2 + $0xe0] sm:$0xff] 0.0
        %538 = vst [vmem:[#allocation2 + $0xe8] sm:$0xff] 0.0
        %539 = vst [vmem:[#allocation2 + $0xf0] sm:$0x3] 0.0
        %540 = vst [vmem:[#allocation2 + $0xf8] sm:$0x3] 0.0
        %541 = vst [vmem:[#allocation2 + $0x100] sm:$0xff] 0.0
        %542 = vst [vmem:[#allocation2 + $0x108] sm:$0xff] 0.0
        %543 = vst [vmem:[#allocation2 + $0x110] sm:$0x3] 0.0
        %544 = vst [vmem:[#allocation2 + $0x118] sm:$0x3] 0.0
        %545 = vst [vmem:[#allocation2 + $0x120] sm:$0xff] 0.0
        %546 = vst [vmem:[#allocation2 + $0x128] sm:$0xff] 0.0
        %547 = vst [vmem:[#allocation2 + $0x130] sm:$0x3] 0.0
        %548 = vst [vmem:[#allocation2 + $0x138] sm:$0x3] 0.0
        %v565 = vrot.slane %v461, 7
        %v566 = vrot.slane %v490, 7
        %v567 = vrot.slane %v463, 7
        %v568 = vrot.slane %v492, 7
        %v569 = vrot.slane %v466, 7
        %v570 = vrot.slane %v495, 7
        %v571 = vrot.slane %v468, 7
        %v572 = vrot.slane %v497, 7
        %v573 = vrot.slane %v471, 7
        %v574 = vrot.slane %v500, 7
        %v575 = vrot.slane %v473, 7
        %v576 = vrot.slane %v502, 7
        %v577 = vrot.slane %v476, 7
        %v578 = vrot.slane %v505, 7
        %v579 = vrot.slane %v478, 7
        %v580 = vrot.slane %v507, 7
        %s597 = scalar_lea.vmem [#allocation2], 32
        %598 = vst [vmem:[%s597] sm:$0xfe] %v565
        %599 = vst [vmem:[%s597 + $0x8] sm:$0xfe] %v566
        %600 = vst [vmem:[%s597 + $0x10] sm:$0x1] %v565
        %601 = vst [vmem:[%s597 + $0x18] sm:$0x1] %v566
        %602 = vst [vmem:[%s597 + $0x20] sm:$0xfe] %v567
        %603 = vst [vmem:[%s597 + $0x28] sm:$0xfe] %v568
        %604 = vst [vmem:[%s597 + $0x30] sm:$0x1] %v567
        %605 = vst [vmem:[%s597 + $0x38] sm:$0x1] %v568
        %606 = vst [vmem:[%s597 + $0x40] sm:$0xfe] %v569
        %607 = vst [vmem:[%s597 + $0x48] sm:$0xfe] %v570
        %608 = vst [vmem:[%s597 + $0x50] sm:$0x1] %v569
        %609 = vst [vmem:[%s597 + $0x58] sm:$0x1] %v570
        %610 = vst [vmem:[%s597 + $0x60] sm:$0xfe] %v571
        %611 = vst [vmem:[%s597 + $0x68] sm:$0xfe] %v572
        %612 = vst [vmem:[%s597 + $0x70] sm:$0x1] %v571
        %613 = vst [vmem:[%s597 + $0x78] sm:$0x1] %v572
        %614 = vst [vmem:[%s597 + $0x80] sm:$0xfe] %v573
        %615 = vst [vmem:[%s597 + $0x88] sm:$0xfe] %v574
        %616 = vst [vmem:[%s597 + $0x90] sm:$0x1] %v573
        %617 = vst [vmem:[%s597 + $0x98] sm:$0x1] %v574
        %618 = vst [vmem:[%s597 + $0xa0] sm:$0xfe] %v575
        %619 = vst [vmem:[%s597 + $0xa8] sm:$0xfe] %v576
        %620 = vst [vmem:[%s597 + $0xb0] sm:$0x1] %v575
        %621 = vst [vmem:[%s597 + $0xb8] sm:$0x1] %v576
        %622 = vst [vmem:[%s597 + $0xc0] sm:$0xfe] %v577
        %623 = vst [vmem:[%s597 + $0xc8] sm:$0xfe] %v578
        %624 = vst [vmem:[%s597 + $0xd0] sm:$0x1] %v577
        %625 = vst [vmem:[%s597 + $0xd8] sm:$0x1] %v578
        %626 = vst [vmem:[%s597 + $0xe0] sm:$0xfe] %v579
        %627 = vst [vmem:[%s597 + $0xe8] sm:$0xfe] %v580
        %628 = vst [vmem:[%s597 + $0xf0] sm:$0x1] %v579
        %629 = vst [vmem:[%s597 + $0xf8] sm:$0x1] %v580
        %v630 = vld [vmem:[%s386] sm:$0xf]
        %v631 = vld [vmem:[%s386 + $0x4] sm:$0xf]
        %v632 = vld [vmem:[%s386 + $0x8] sm:$0xf]
        %v633 = vld [vmem:[%s386 + $0xc] sm:$0xf]
        %v634 = vld [vmem:[%s386 + $0x10] sm:$0xf]
        %v635 = vld [vmem:[%s386 + $0x14] sm:$0xf]
        %v636 = vld [vmem:[%s386 + $0x18] sm:$0xf]
        %v637 = vld [vmem:[%s386 + $0x1c] sm:$0xf]
        %v638 = vld [vmem:[%s3] sm:$0xf]
        %v639 = vld [vmem:[%s4] sm:$0x1]
        %v641 = vperm.slane %v639, 0
        %v651 = vunpack.c.l.b16 %v630
        %v652 = vunpack.c.l.b16 %v631
        %v653 = vunpack.c.l.b16 %v632
        %v654 = vunpack.c.l.b16 %v633
        %v655 = vunpack.c.l.b16 %v634
        %v656 = vunpack.c.l.b16 %v635
        %v657 = vunpack.c.l.b16 %v636
        %v658 = vunpack.c.l.b16 %v637
        %v659 = vpack.c.b16 %v652, %v651
        %v660 = vpack.c.b16 %v654, %v653
        %v661 = vpack.c.b16 %v656, %v655
        %v662 = vpack.c.b16 %v658, %v657
        %vm663 = vcmask 64512
        %v665 = vsel %vm663, %v659, 0
        %v668 = vsel %vm663, %v660, 0
        %v671 = vsel %vm663, %v661, 0
        %v674 = vsel %vm663, %v662, 0
        %vm676 = vcmask 1043456
        %v678 = vsel %vm676, %v638, 0
        %680 = vmatpush.bf16.msra.mxu0 0
        %681 = vmatpush.bf16.msra.mxu0 0
        %682 = vmatpush.bf16.msra.mxu0 0
        %683 = vmatpush.bf16.msra.mxu0 0
        %684 = vmatpush.bf16.msra.mxu0 0
        %685 = vmatpush.bf16.msra.mxu0 0
        %686 = vmatpush.bf16.msra.mxu0 0
        %687 = vmatpush.bf16.msra.mxu0 %v678
        %688 = vmatmul.bf16.gmra.mxu0 %v665
        %v689 = vpop.f32.mrf.mxu0
        %v690 = vadd.f32 %v641, %v689
        %v691 = vpop.f32.mrf.mxu0
        %v692 = vadd.f32 %v641, %v691
        %693 = vmatmul.bf16.gmra.mxu0 %v668
        %v694 = vpop.f32.mrf.mxu0
        %v695 = vadd.f32 %v641, %v694
        %v696 = vpop.f32.mrf.mxu0
        %v697 = vadd.f32 %v641, %v696
        %698 = vmatmul.bf16.gmra.mxu0 %v671
        %v699 = vpop.f32.mrf.mxu0
        %v700 = vadd.f32 %v641, %v699
        %v701 = vpop.f32.mrf.mxu0
        %v702 = vadd.f32 %v641, %v701
        %703 = vmatmul.bf16.gmra.mxu0 %v674
        %v704 = vpop.f32.mrf.mxu0
        %v705 = vadd.f32 %v641, %v704
        %v706 = vpop.f32.mrf.mxu0
        %v707 = vadd.f32 %v641, %v706
        %708 = vdwg.mxu0
        %v709 = vmax.f32 %v690, 0.0
        %v710 = vmax.f32 %v692, 0.0
        %v711 = vmax.f32 %v695, 0.0
        %v712 = vmax.f32 %v697, 0.0
        %v713 = vmax.f32 %v700, 0.0
        %v714 = vmax.f32 %v702, 0.0
        %v715 = vmax.f32 %v705, 0.0
        %v716 = vmax.f32 %v707, 0.0
        %vm717 = vcmask 392192
        %718 = vst.msk [vmem:[#allocation3] sm:$0xff] %vm717, 0.0
        %vm719 = vcmask 386048
        %720 = vst.msk [vmem:[#allocation3 + $0x8] sm:$0x3] %vm719, 0.0
        %721 = vst.msk [vmem:[#allocation3 + $0x10] sm:$0xff] %vm717, 0.0
        %722 = vst.msk [vmem:[#allocation3 + $0x18] sm:$0x3] %vm719, 0.0
        %723 = vst.msk [vmem:[#allocation3 + $0x20] sm:$0xff] %vm717, 0.0
        %724 = vst.msk [vmem:[#allocation3 + $0x28] sm:$0x3] %vm719, 0.0
        %725 = vst.msk [vmem:[#allocation3 + $0x30] sm:$0xff] %vm717, 0.0
        %726 = vst.msk [vmem:[#allocation3 + $0x38] sm:$0x3] %vm719, 0.0
        %727 = vst.msk [vmem:[#allocation3 + $0x40] sm:$0xff] %vm717, 0.0
        %728 = vst.msk [vmem:[#allocation3 + $0x48] sm:$0x3] %vm719, 0.0
        %729 = vst.msk [vmem:[#allocation3 + $0x50] sm:$0xff] %vm717, 0.0
        %730 = vst.msk [vmem:[#allocation3 + $0x58] sm:$0x3] %vm719, 0.0
        %731 = vst.msk [vmem:[#allocation3 + $0x60] sm:$0xff] %vm717, 0.0
        %732 = vst.msk [vmem:[#allocation3 + $0x68] sm:$0x3] %vm719, 0.0
        %733 = vst.msk [vmem:[#allocation3 + $0x70] sm:$0xff] %vm717, 0.0
        %734 = vst.msk [vmem:[#allocation3 + $0x78] sm:$0x3] %vm719, 0.0
        %735 = vst.msk [vmem:[#allocation3 + $0x80] sm:$0xff] %vm717, 0.0
        %736 = vst.msk [vmem:[#allocation3 + $0x88] sm:$0x3] %vm719, 0.0
        %737 = vst.msk [vmem:[#allocation3 + $0x90] sm:$0xff] %vm717, 0.0
        %738 = vst.msk [vmem:[#allocation3 + $0x98] sm:$0x3] %vm719, 0.0
        %s739 = scalar_lea.vmem [#allocation3], 16
        %740 = vst.msk [vmem:[%s739 + $0x1] sm:$0xff] %vm717, %v709
        %741 = vst.msk [vmem:[%s739 + $0x11] sm:$0xff] %vm717, %v710
        %742 = vst.msk [vmem:[%s739 + $0x21] sm:$0xff] %vm717, %v711
        %743 = vst.msk [vmem:[%s739 + $0x31] sm:$0xff] %vm717, %v712
        %744 = vst.msk [vmem:[%s739 + $0x41] sm:$0xff] %vm717, %v713
        %745 = vst.msk [vmem:[%s739 + $0x51] sm:$0xff] %vm717, %v714
        %746 = vst.msk [vmem:[%s739 + $0x61] sm:$0xff] %vm717, %v715
        %747 = vst.msk [vmem:[%s739 + $0x71] sm:$0xff] %vm717, %v716
        %v748 = vld [vmem:[#allocation2] sm:$0xff]
        %v749 = vld [vmem:[#allocation2 + $0x8] sm:$0xff]
        %v750 = vld [vmem:[#allocation2 + $0x20] sm:$0xff]
        %v751 = vld [vmem:[#allocation2 + $0x28] sm:$0xff]
        %v752 = vld [vmem:[#allocation2 + $0x40] sm:$0xff]
        %v753 = vld [vmem:[#allocation2 + $0x48] sm:$0xff]
        %v754 = vld [vmem:[#allocation2 + $0x60] sm:$0xff]
        %v755 = vld [vmem:[#allocation2 + $0x68] sm:$0xff]
        %v756 = vld [vmem:[#allocation2 + $0x80] sm:$0xff]
        %v757 = vld [vmem:[#allocation2 + $0x88] sm:$0xff]
        %v758 = vld [vmem:[#allocation2 + $0xa0] sm:$0xff]
        %v759 = vld [vmem:[#allocation2 + $0xa8] sm:$0xff]
        %v760 = vld [vmem:[#allocation2 + $0xc0] sm:$0xff]
        %v761 = vld [vmem:[#allocation2 + $0xc8] sm:$0xff]
        %v762 = vld [vmem:[#allocation2 + $0xe0] sm:$0xff]
        %v763 = vld [vmem:[#allocation2 + $0xe8] sm:$0xff]
        %v764 = vpack.c.bf16 %v750, %v748
        %v765 = vpack.c.bf16 %v751, %v749
        %v766 = vpack.c.bf16 %v754, %v752
        %v767 = vpack.c.bf16 %v755, %v753
        %v768 = vpack.c.bf16 %v758, %v756
        %v769 = vpack.c.bf16 %v759, %v757
        %v770 = vpack.c.bf16 %v762, %v760
        %v771 = vpack.c.bf16 %v763, %v761
        %v772 = vld [vmem:[%s5] sm:$0xff]
        %v773 = vld [vmem:[%s5 + $0x8] sm:$0xff]
        %v774 = vld [vmem:[%s5 + $0x10] sm:$0xff]
        %v775 = vld [vmem:[%s5 + $0x18] sm:$0xff]
        %v776 = vld [vmem:[%s5 + $0x20] sm:$0xff]
        %v777 = vld [vmem:[%s5 + $0x28] sm:$0xff]
        %v778 = vld [vmem:[%s5 + $0x30] sm:$0xff]
        %v779 = vld [vmem:[%s5 + $0x38] sm:$0xff]
        %v780 = vld [vmem:[%s5 + $0x40] sm:$0xff]
        %v781 = vld [vmem:[%s5 + $0x48] sm:$0xff]
        %v782 = vld [vmem:[%s5 + $0x50] sm:$0xff]
        %v783 = vld [vmem:[%s5 + $0x58] sm:$0xff]
        %v784 = vld [vmem:[%s5 + $0x60] sm:$0xff]
        %v785 = vld [vmem:[%s5 + $0x68] sm:$0xff]
        %v786 = vld [vmem:[%s5 + $0x70] sm:$0xff]
        %v787 = vld [vmem:[%s5 + $0x78] sm:$0xff]
        %v788 = vld [vmem:[%s5 + $0x80] sm:$0xff]
        %v789 = vld [vmem:[%s5 + $0x88] sm:$0xff]
        %v790 = vld [vmem:[%s5 + $0x90] sm:$0xff]
        %v791 = vld [vmem:[%s5 + $0x98] sm:$0xff]
        %v792 = vld [vmem:[%s5 + $0xa0] sm:$0xff]
        %v793 = vld [vmem:[%s5 + $0xa8] sm:$0xff]
        %v794 = vld [vmem:[%s5 + $0xb0] sm:$0xff]
        %v795 = vld [vmem:[%s5 + $0xb8] sm:$0xff]
        %v796 = vld [vmem:[%s5 + $0xc0] sm:$0xff]
        %v797 = vld [vmem:[%s5 + $0xc8] sm:$0xff]
        %v798 = vld [vmem:[%s5 + $0xd0] sm:$0xff]
        %v799 = vld [vmem:[%s5 + $0xd8] sm:$0xff]
        %v800 = vld [vmem:[%s5 + $0xe0] sm:$0xff]
        %v801 = vld [vmem:[%s5 + $0xe8] sm:$0xff]
        %v802 = vld [vmem:[%s5 + $0xf0] sm:$0xff]
        %v803 = vld [vmem:[%s5 + $0xf8] sm:$0xff]
        %v804 = vld [vmem:[#allocation3] sm:$0xff]
        %v805 = vld [vmem:[#allocation3 + $0x10] sm:$0xff]
        %v806 = vld [vmem:[#allocation3 + $0x20] sm:$0xff]
        %v807 = vld [vmem:[#allocation3 + $0x30] sm:$0xff]
        %v808 = vld [vmem:[#allocation3 + $0x40] sm:$0xff]
        %v809 = vld [vmem:[#allocation3 + $0x50] sm:$0xff]
        %v810 = vld [vmem:[#allocation3 + $0x60] sm:$0xff]
        %v811 = vld [vmem:[#allocation3 + $0x70] sm:$0xff]
        %v812 = vpack.c.bf16 %v805, %v804
        %v813 = vpack.c.bf16 %v807, %v806
        %v814 = vpack.c.bf16 %v809, %v808
        %v815 = vpack.c.bf16 %v811, %v810
        %v816 = vld [vmem:[#allocation5] sm:$0xff]
        %v817 = vld [vmem:[#allocation5 + $0x8] sm:$0xff]
        %v818 = vld [vmem:[#allocation5 + $0x10] sm:$0xff]
        %v819 = vld [vmem:[#allocation5 + $0x18] sm:$0xff]
        %v820 = vld [vmem:[#allocation5 + $0x20] sm:$0xff]
        %v821 = vld [vmem:[#allocation5 + $0x28] sm:$0xff]
        %v828 = vunpack.c.l.b16 %v816
        %v829 = vunpack.c.h.b16 %v816
        %v830 = vunpack.c.l.b16 %v817
        %v831 = vunpack.c.h.b16 %v817
        %v832 = vunpack.c.l.b16 %v818
        %v833 = vunpack.c.h.b16 %v818
        %v834 = vunpack.c.l.b16 %v819
        %v835 = vunpack.c.h.b16 %v819
        %v836 = vunpack.c.l.b16 %v820
        %v837 = vunpack.c.h.b16 %v820
        %v838 = vunpack.c.l.b16 %v821
        %v839 = vunpack.c.h.b16 %v821
        %v840 = vpack.c.b16 %v830, %v828
        %v841 = vpack.c.b16 %v831, %v829
        %v842 = vpack.c.b16 %v834, %v832
        %v843 = vpack.c.b16 %v835, %v833
        %v844 = vpack.c.b16 %v838, %v836
        %v845 = vpack.c.b16 %v839, %v837
        %v853 = vsel %vm717, %v812, 0
        %v856 = vsel %vm717, %v813, 0
        %v859 = vsel %vm717, %v814, 0
        %v862 = vsel %vm717, %v815, 0
        %864 = vmatpush.bf16.msra.mxu0 0
        %865 = vmatpush.bf16.msra.mxu0 0
        %866 = vmatpush.bf16.msra.mxu0 0
        %867 = vmatpush.bf16.msra.mxu0 0
        %868 = vmatpush.bf16.msra.mxu0 0
        %869 = vmatpush.bf16.msra.mxu0 %v844
        %870 = vmatpush.bf16.msra.mxu0 %v842
        %871 = vmatpush.bf16.msra.mxu0 %v840
        %872 = vmatmul.bf16.gmra.mxu0 %v853
        %v873 = vpop.f32.mrf.mxu0
        %v874 = vadd.f32 0.0, %v873
        %v875 = vpop.f32.mrf.mxu0
        %v876 = vadd.f32 0.0, %v875
        %877 = vmatmul.bf16.gmra.mxu0 %v856
        %v878 = vpop.f32.mrf.mxu0
        %v879 = vadd.f32 0.0, %v878
        %v880 = vpop.f32.mrf.mxu0
        %v881 = vadd.f32 0.0, %v880
        %882 = vmatmul.bf16.gmra.mxu0 %v859
        %v883 = vpop.f32.mrf.mxu0
        %v884 = vadd.f32 0.0, %v883
        %v885 = vpop.f32.mrf.mxu0
        %v886 = vadd.f32 0.0, %v885
        %887 = vmatmul.bf16.gmra.mxu0 %v862
        %v888 = vpop.f32.mrf.mxu0
        %v889 = vadd.f32 0.0, %v888
        %v890 = vpop.f32.mrf.mxu0
        %v891 = vadd.f32 0.0, %v890
        %892 = vdwg.mxu0
        %893 = vmatpush.bf16.msra.mxu0 0
        %894 = vmatpush.bf16.msra.mxu0 0
        %895 = vmatpush.bf16.msra.mxu0 0
        %896 = vmatpush.bf16.msra.mxu0 0
        %897 = vmatpush.bf16.msra.mxu0 0
        %898 = vmatpush.bf16.msra.mxu0 %v845
        %899 = vmatpush.bf16.msra.mxu0 %v843
        %900 = vmatpush.bf16.msra.mxu0 %v841
        %901 = vmatmul.bf16.gmra.mxu0 %v853
        %v902 = vpop.f32.mrf.mxu0
        %v903 = vadd.f32 0.0, %v902
        %v904 = vpop.f32.mrf.mxu0
        %v905 = vadd.f32 0.0, %v904
        %906 = vmatmul.bf16.gmra.mxu0 %v856
        %v907 = vpop.f32.mrf.mxu0
        %v908 = vadd.f32 0.0, %v907
        %v909 = vpop.f32.mrf.mxu0
        %v910 = vadd.f32 0.0, %v909
        %911 = vmatmul.bf16.gmra.mxu0 %v859
        %v912 = vpop.f32.mrf.mxu0
        %v913 = vadd.f32 0.0, %v912
        %v914 = vpop.f32.mrf.mxu0
        %v915 = vadd.f32 0.0, %v914
        %916 = vmatmul.bf16.gmra.mxu0 %v862
        %v917 = vpop.f32.mrf.mxu0
        %v918 = vadd.f32 0.0, %v917
        %v919 = vpop.f32.mrf.mxu0
        %v920 = vadd.f32 0.0, %v919
        %921 = vdwg.mxu0
        %v954 = vunpack.c.l.b16 %v772
        %v955 = vunpack.c.h.b16 %v772
        %v956 = vunpack.c.l.b16 %v773
        %v957 = vunpack.c.h.b16 %v773
        %v958 = vunpack.c.l.b16 %v774
        %v959 = vunpack.c.h.b16 %v774
        %v960 = vunpack.c.l.b16 %v775
        %v961 = vunpack.c.h.b16 %v775
        %v962 = vunpack.c.l.b16 %v776
        %v963 = vunpack.c.h.b16 %v776
        %v964 = vunpack.c.l.b16 %v777
        %v965 = vunpack.c.h.b16 %v777
        %v966 = vunpack.c.l.b16 %v778
        %v967 = vunpack.c.h.b16 %v778
        %v968 = vunpack.c.l.b16 %v779
        %v969 = vunpack.c.h.b16 %v779
        %v970 = vunpack.c.l.b16 %v780
        %v971 = vunpack.c.h.b16 %v780
        %v972 = vunpack.c.l.b16 %v781
        %v973 = vunpack.c.h.b16 %v781
        %v974 = vunpack.c.l.b16 %v782
        %v975 = vunpack.c.h.b16 %v782
        %v976 = vunpack.c.l.b16 %v783
        %v977 = vunpack.c.h.b16 %v783
        %v978 = vunpack.c.l.b16 %v784
        %v979 = vunpack.c.h.b16 %v784
        %v980 = vunpack.c.l.b16 %v785
        %v981 = vunpack.c.h.b16 %v785
        %v982 = vunpack.c.l.b16 %v786
        %v983 = vunpack.c.h.b16 %v786
        %v984 = vunpack.c.l.b16 %v787
        %v985 = vunpack.c.h.b16 %v787
        %v986 = vunpack.c.l.b16 %v788
        %v987 = vunpack.c.h.b16 %v788
        %v988 = vunpack.c.l.b16 %v789
        %v989 = vunpack.c.h.b16 %v789
        %v990 = vunpack.c.l.b16 %v790
        %v991 = vunpack.c.h.b16 %v790
        %v992 = vunpack.c.l.b16 %v791
        %v993 = vunpack.c.h.b16 %v791
        %v994 = vunpack.c.l.b16 %v792
        %v995 = vunpack.c.h.b16 %v792
        %v996 = vunpack.c.l.b16 %v793
        %v997 = vunpack.c.h.b16 %v793
        %v998 = vunpack.c.l.b16 %v794
        %v999 = vunpack.c.h.b16 %v794
        %v1000 = vunpack.c.l.b16 %v795
        %v1001 = vunpack.c.h.b16 %v795
        %v1002 = vunpack.c.l.b16 %v796
        %v1003 = vunpack.c.h.b16 %v796
        %v1004 = vunpack.c.l.b16 %v797
        %v1005 = vunpack.c.h.b16 %v797
        %v1006 = vunpack.c.l.b16 %v798
        %v1007 = vunpack.c.h.b16 %v798
        %v1008 = vunpack.c.l.b16 %v799
        %v1009 = vunpack.c.h.b16 %v799
        %v1010 = vunpack.c.l.b16 %v800
        %v1011 = vunpack.c.h.b16 %v800
        %v1012 = vunpack.c.l.b16 %v801
        %v1013 = vunpack.c.h.b16 %v801
        %v1014 = vunpack.c.l.b16 %v802
        %v1015 = vunpack.c.h.b16 %v802
        %v1016 = vunpack.c.l.b16 %v803
        %v1017 = vunpack.c.h.b16 %v803
        %v1018 = vpack.c.b16 %v956, %v954
        %v1019 = vpack.c.b16 %v957, %v955
        %v1020 = vpack.c.b16 %v960, %v958
        %v1021 = vpack.c.b16 %v961, %v959
        %v1022 = vpack.c.b16 %v964, %v962
        %v1023 = vpack.c.b16 %v965, %v963
        %v1024 = vpack.c.b16 %v968, %v966
        %v1025 = vpack.c.b16 %v969, %v967
        %v1026 = vpack.c.b16 %v972, %v970
        %v1027 = vpack.c.b16 %v973, %v971
        %v1028 = vpack.c.b16 %v976, %v974
        %v1029 = vpack.c.b16 %v977, %v975
        %v1030 = vpack.c.b16 %v980, %v978
        %v1031 = vpack.c.b16 %v981, %v979
        %v1032 = vpack.c.b16 %v984, %v982
        %v1033 = vpack.c.b16 %v985, %v983
        %v1034 = vpack.c.b16 %v988, %v986
        %v1035 = vpack.c.b16 %v989, %v987
        %v1036 = vpack.c.b16 %v992, %v990
        %v1037 = vpack.c.b16 %v993, %v991
        %v1038 = vpack.c.b16 %v996, %v994
        %v1039 = vpack.c.b16 %v997, %v995
        %v1040 = vpack.c.b16 %v1000, %v998
        %v1041 = vpack.c.b16 %v1001, %v999
        %v1042 = vpack.c.b16 %v1004, %v1002
        %v1043 = vpack.c.b16 %v1005, %v1003
        %v1044 = vpack.c.b16 %v1008, %v1006
        %v1045 = vpack.c.b16 %v1009, %v1007
        %v1046 = vpack.c.b16 %v1012, %v1010
        %v1047 = vpack.c.b16 %v1013, %v1011
        %v1048 = vpack.c.b16 %v1016, %v1014
        %v1049 = vpack.c.b16 %v1017, %v1015
        %1082 = vmatpush.bf16.msra.mxu0 %v1032
        %1083 = vmatpush.bf16.msra.mxu0 %v1030
        %1084 = vmatpush.bf16.msra.mxu0 %v1028
        %1085 = vmatpush.bf16.msra.mxu0 %v1026
        %1086 = vmatpush.bf16.msra.mxu0 %v1024
        %1087 = vmatpush.bf16.msra.mxu0 %v1022
        %1088 = vmatpush.bf16.msra.mxu0 %v1020
        %1089 = vmatpush.bf16.msra.mxu0 %v1018
        %1090 = vmatmul.bf16.gmra.mxu0 %v764
        %v1091 = vpop.f32.mrf.mxu0
        %v1092 = vadd.f32 %v874, %v1091
        %v1093 = vpop.f32.mrf.mxu0
        %v1094 = vadd.f32 %v876, %v1093
        %1095 = vmatmul.bf16.gmra.mxu0 %v766
        %v1096 = vpop.f32.mrf.mxu0
        %v1097 = vadd.f32 %v879, %v1096
        %v1098 = vpop.f32.mrf.mxu0
        %v1099 = vadd.f32 %v881, %v1098
        %1100 = vmatmul.bf16.gmra.mxu0 %v768
        %v1101 = vpop.f32.mrf.mxu0
        %v1102 = vadd.f32 %v884, %v1101
        %v1103 = vpop.f32.mrf.mxu0
        %v1104 = vadd.f32 %v886, %v1103
        %1105 = vmatmul.bf16.gmra.mxu0 %v770
        %v1106 = vpop.f32.mrf.mxu0
        %v1107 = vadd.f32 %v889, %v1106
        %v1108 = vpop.f32.mrf.mxu0
        %v1109 = vadd.f32 %v891, %v1108
        %1110 = vdwg.mxu0
        %1111 = vmatpush.bf16.msra.mxu0 %v1048
        %1112 = vmatpush.bf16.msra.mxu0 %v1046
        %1113 = vmatpush.bf16.msra.mxu0 %v1044
        %1114 = vmatpush.bf16.msra.mxu0 %v1042
        %1115 = vmatpush.bf16.msra.mxu0 %v1040
        %1116 = vmatpush.bf16.msra.mxu0 %v1038
        %1117 = vmatpush.bf16.msra.mxu0 %v1036
        %1118 = vmatpush.bf16.msra.mxu0 %v1034
        %1119 = vmatmul.bf16.gmra.mxu0 %v765
        %v1120 = vpop.f32.mrf.mxu0
        %v1121 = vadd.f32 %v1092, %v1120
        %v1122 = vpop.f32.mrf.mxu0
        %v1123 = vadd.f32 %v1094, %v1122
        %1124 = vmatmul.bf16.gmra.mxu0 %v767
        %v1125 = vpop.f32.mrf.mxu0
        %v1126 = vadd.f32 %v1097, %v1125
        %v1127 = vpop.f32.mrf.mxu0
        %v1128 = vadd.f32 %v1099, %v1127
        %1129 = vmatmul.bf16.gmra.mxu0 %v769
        %v1130 = vpop.f32.mrf.mxu0
        %v1131 = vadd.f32 %v1102, %v1130
        %v1132 = vpop.f32.mrf.mxu0
        %v1133 = vadd.f32 %v1104, %v1132
        %1134 = vmatmul.bf16.gmra.mxu0 %v771
        %v1135 = vpop.f32.mrf.mxu0
        %v1136 = vadd.f32 %v1107, %v1135
        %v1137 = vpop.f32.mrf.mxu0
        %v1138 = vadd.f32 %v1109, %v1137
        %1139 = vdwg.mxu0
        %1140 = vmatpush.bf16.msra.mxu0 %v1033
        %1141 = vmatpush.bf16.msra.mxu0 %v1031
        %1142 = vmatpush.bf16.msra.mxu0 %v1029
        %1143 = vmatpush.bf16.msra.mxu0 %v1027
        %1144 = vmatpush.bf16.msra.mxu0 %v1025
        %1145 = vmatpush.bf16.msra.mxu0 %v1023
        %1146 = vmatpush.bf16.msra.mxu0 %v1021
        %1147 = vmatpush.bf16.msra.mxu0 %v1019
        %1148 = vmatmul.bf16.gmra.mxu0 %v764
        %v1149 = vpop.f32.mrf.mxu0
        %v1150 = vadd.f32 %v903, %v1149
        %v1151 = vpop.f32.mrf.mxu0
        %v1152 = vadd.f32 %v905, %v1151
        %1153 = vmatmul.bf16.gmra.mxu0 %v766
        %v1154 = vpop.f32.mrf.mxu0
        %v1155 = vadd.f32 %v908, %v1154
        %v1156 = vpop.f32.mrf.mxu0
        %v1157 = vadd.f32 %v910, %v1156
        %1158 = vmatmul.bf16.gmra.mxu0 %v768
        %v1159 = vpop.f32.mrf.mxu0
        %v1160 = vadd.f32 %v913, %v1159
        %v1161 = vpop.f32.mrf.mxu0
        %v1162 = vadd.f32 %v915, %v1161
        %1163 = vmatmul.bf16.gmra.mxu0 %v770
        %v1164 = vpop.f32.mrf.mxu0
        %v1165 = vadd.f32 %v918, %v1164
        %v1166 = vpop.f32.mrf.mxu0
        %v1167 = vadd.f32 %v920, %v1166
        %1168 = vdwg.mxu0
        %1169 = vmatpush.bf16.msra.mxu0 %v1049
        %1170 = vmatpush.bf16.msra.mxu0 %v1047
        %1171 = vmatpush.bf16.msra.mxu0 %v1045
        %1172 = vmatpush.bf16.msra.mxu0 %v1043
        %1173 = vmatpush.bf16.msra.mxu0 %v1041
        %1174 = vmatpush.bf16.msra.mxu0 %v1039
        %1175 = vmatpush.bf16.msra.mxu0 %v1037
        %1176 = vmatpush.bf16.msra.mxu0 %v1035
        %1177 = vmatmul.bf16.gmra.mxu0 %v765
        %v1178 = vpop.f32.mrf.mxu0
        %v1179 = vadd.f32 %v1150, %v1178
        %v1180 = vpop.f32.mrf.mxu0
        %v1181 = vadd.f32 %v1152, %v1180
        %1182 = vmatmul.bf16.gmra.mxu0 %v767
        %v1183 = vpop.f32.mrf.mxu0
        %v1184 = vadd.f32 %v1155, %v1183
        %v1185 = vpop.f32.mrf.mxu0
        %v1186 = vadd.f32 %v1157, %v1185
        %1187 = vmatmul.bf16.gmra.mxu0 %v769
        %v1188 = vpop.f32.mrf.mxu0
        %v1189 = vadd.f32 %v1160, %v1188
        %v1190 = vpop.f32.mrf.mxu0
        %v1191 = vadd.f32 %v1162, %v1190
        %1192 = vmatmul.bf16.gmra.mxu0 %v771
        %v1193 = vpop.f32.mrf.mxu0
        %v1194 = vadd.f32 %v1165, %v1193
        %v1195 = vpop.f32.mrf.mxu0
        %v1196 = vadd.f32 %v1167, %v1195
        %1197 = vdwg.mxu0
        %v1198 = vld [vmem:[#allocation2] sm:$0xfe]
        %v1199 = vld [vmem:[#allocation2 + $0x8] sm:$0xfe]
        %v1200 = vld [vmem:[#allocation2 + $0x10] sm:$0x1]
        %v1201 = vld [vmem:[#allocation2 + $0x18] sm:$0x1]
        %v1202 = vld [vmem:[#allocation2 + $0x20] sm:$0xfe]
        %v1203 = vld [vmem:[#allocation2 + $0x28] sm:$0xfe]
        %v1204 = vld [vmem:[#allocation2 + $0x30] sm:$0x1]
        %v1205 = vld [vmem:[#allocation2 + $0x38] sm:$0x1]
        %v1206 = vld [vmem:[#allocation2 + $0x40] sm:$0xfe]
        %v1207 = vld [vmem:[#allocation2 + $0x48] sm:$0xfe]
        %v1208 = vld [vmem:[#allocation2 + $0x50] sm:$0x1]
        %v1209 = vld [vmem:[#allocation2 + $0x58] sm:$0x1]
        %v1210 = vld [vmem:[#allocation2 + $0x60] sm:$0xfe]
        %v1211 = vld [vmem:[#allocation2 + $0x68] sm:$0xfe]
        %v1212 = vld [vmem:[#allocation2 + $0x70] sm:$0x1]
        %v1213 = vld [vmem:[#allocation2 + $0x78] sm:$0x1]
        %v1214 = vld [vmem:[#allocation2 + $0x80] sm:$0xfe]
        %v1215 = vld [vmem:[#allocation2 + $0x88] sm:$0xfe]
        %v1216 = vld [vmem:[#allocation2 + $0x90] sm:$0x1]
        %v1217 = vld [vmem:[#allocation2 + $0x98] sm:$0x1]
        %v1218 = vld [vmem:[#allocation2 + $0xa0] sm:$0xfe]
        %v1219 = vld [vmem:[#allocation2 + $0xa8] sm:$0xfe]
        %v1220 = vld [vmem:[#allocation2 + $0xb0] sm:$0x1]
        %v1221 = vld [vmem:[#allocation2 + $0xb8] sm:$0x1]
        %v1222 = vld [vmem:[#allocation2 + $0xc0] sm:$0xfe]
        %v1223 = vld [vmem:[#allocation2 + $0xc8] sm:$0xfe]
        %v1224 = vld [vmem:[#allocation2 + $0xd0] sm:$0x1]
        %v1225 = vld [vmem:[#allocation2 + $0xd8] sm:$0x1]
        %v1226 = vld [vmem:[#allocation2 + $0xe0] sm:$0xfe]
        %v1227 = vld [vmem:[#allocation2 + $0xe8] sm:$0xfe]
        %v1228 = vld [vmem:[#allocation2 + $0xf0] sm:$0x1]
        %v1229 = vld [vmem:[#allocation2 + $0xf8] sm:$0x1]
        %vm1262 = vcmask 1046528
        %v1263 = vrot.slane %v1198, 1
        %v1264 = vrot.slane %v1200, 1
        %v1265 = vsel %vm1262, %v1263, %v1264
        %v1266 = vrot.slane %v1199, 1
        %v1267 = vrot.slane %v1201, 1
        %v1268 = vsel %vm1262, %v1266, %v1267
        %v1269 = vrot.slane %v1202, 1
        %v1270 = vrot.slane %v1204, 1
        %v1271 = vsel %vm1262, %v1269, %v1270
        %v1272 = vrot.slane %v1203, 1
        %v1273 = vrot.slane %v1205, 1
        %v1274 = vsel %vm1262, %v1272, %v1273
        %v1275 = vrot.slane %v1206, 1
        %v1276 = vrot.slane %v1208, 1
        %v1277 = vsel %vm1262, %v1275, %v1276
        %v1278 = vrot.slane %v1207, 1
        %v1279 = vrot.slane %v1209, 1
        %v1280 = vsel %vm1262, %v1278, %v1279
        %v1281 = vrot.slane %v1210, 1
        %v1282 = vrot.slane %v1212, 1
        %v1283 = vsel %vm1262, %v1281, %v1282
        %v1284 = vrot.slane %v1211, 1
        %v1285 = vrot.slane %v1213, 1
        %v1286 = vsel %vm1262, %v1284, %v1285
        %v1287 = vrot.slane %v1214, 1
        %v1288 = vrot.slane %v1216, 1
        %v1289 = vsel %vm1262, %v1287, %v1288
        %v1290 = vrot.slane %v1215, 1
        %v1291 = vrot.slane %v1217, 1
        %v1292 = vsel %vm1262, %v1290, %v1291
        %v1293 = vrot.slane %v1218, 1
        %v1294 = vrot.slane %v1220, 1
        %v1295 = vsel %vm1262, %v1293, %v1294
        %v1296 = vrot.slane %v1219, 1
        %v1297 = vrot.slane %v1221, 1
        %v1298 = vsel %vm1262, %v1296, %v1297
        %v1299 = vrot.slane %v1222, 1
        %v1300 = vrot.slane %v1224, 1
        %v1301 = vsel %vm1262, %v1299, %v1300
        %v1302 = vrot.slane %v1223, 1
        %v1303 = vrot.slane %v1225, 1
        %v1304 = vsel %vm1262, %v1302, %v1303
        %v1305 = vrot.slane %v1226, 1
        %v1306 = vrot.slane %v1228, 1
        %v1307 = vsel %vm1262, %v1305, %v1306
        %v1308 = vrot.slane %v1227, 1
        %v1309 = vrot.slane %v1229, 1
        %v1310 = vsel %vm1262, %v1308, %v1309
        %v1327 = vpack.c.bf16 %v1271, %v1265
        %v1328 = vpack.c.bf16 %v1274, %v1268
        %v1329 = vpack.c.bf16 %v1283, %v1277
        %v1330 = vpack.c.bf16 %v1286, %v1280
        %v1331 = vpack.c.bf16 %v1295, %v1289
        %v1332 = vpack.c.bf16 %v1298, %v1292
        %v1333 = vpack.c.bf16 %v1307, %v1301
        %v1334 = vpack.c.bf16 %v1310, %v1304
        %s1335 = scalar_lea.vmem %s5, 256
        %v1336 = vld [vmem:[%s1335] sm:$0xff]
        %v1337 = vld [vmem:[%s1335 + $0x8] sm:$0xff]
        %v1338 = vld [vmem:[%s1335 + $0x10] sm:$0xff]
        %v1339 = vld [vmem:[%s1335 + $0x18] sm:$0xff]
        %v1340 = vld [vmem:[%s1335 + $0x20] sm:$0xff]
        %v1341 = vld [vmem:[%s1335 + $0x28] sm:$0xff]
        %v1342 = vld [vmem:[%s1335 + $0x30] sm:$0xff]
        %v1343 = vld [vmem:[%s1335 + $0x38] sm:$0xff]
        %v1344 = vld [vmem:[%s1335 + $0x40] sm:$0xff]
        %v1345 = vld [vmem:[%s1335 + $0x48] sm:$0xff]
        %v1346 = vld [vmem:[%s1335 + $0x50] sm:$0xff]
        %v1347 = vld [vmem:[%s1335 + $0x58] sm:$0xff]
        %v1348 = vld [vmem:[%s1335 + $0x60] sm:$0xff]
        %v1349 = vld [vmem:[%s1335 + $0x68] sm:$0xff]
        %v1350 = vld [vmem:[%s1335 + $0x70] sm:$0xff]
        %v1351 = vld [vmem:[%s1335 + $0x78] sm:$0xff]
        %v1352 = vld [vmem:[%s1335 + $0x80] sm:$0xff]
        %v1353 = vld [vmem:[%s1335 + $0x88] sm:$0xff]
        %v1354 = vld [vmem:[%s1335 + $0x90] sm:$0xff]
        %v1355 = vld [vmem:[%s1335 + $0x98] sm:$0xff]
        %v1356 = vld [vmem:[%s1335 + $0xa0] sm:$0xff]
        %v1357 = vld [vmem:[%s1335 + $0xa8] sm:$0xff]
        %v1358 = vld [vmem:[%s1335 + $0xb0] sm:$0xff]
        %v1359 = vld [vmem:[%s1335 + $0xb8] sm:$0xff]
        %v1360 = vld [vmem:[%s1335 + $0xc0] sm:$0xff]
        %v1361 = vld [vmem:[%s1335 + $0xc8] sm:$0xff]
        %v1362 = vld [vmem:[%s1335 + $0xd0] sm:$0xff]
        %v1363 = vld [vmem:[%s1335 + $0xd8] sm:$0xff]
        %v1364 = vld [vmem:[%s1335 + $0xe0] sm:$0xff]
        %v1365 = vld [vmem:[%s1335 + $0xe8] sm:$0xff]
        %v1366 = vld [vmem:[%s1335 + $0xf0] sm:$0xff]
        %v1367 = vld [vmem:[%s1335 + $0xf8] sm:$0xff]
        %v1400 = vunpack.c.l.b16 %v1336
        %v1401 = vunpack.c.h.b16 %v1336
        %v1402 = vunpack.c.l.b16 %v1337
        %v1403 = vunpack.c.h.b16 %v1337
        %v1404 = vunpack.c.l.b16 %v1338
        %v1405 = vunpack.c.h.b16 %v1338
        %v1406 = vunpack.c.l.b16 %v1339
        %v1407 = vunpack.c.h.b16 %v1339
        %v1408 = vunpack.c.l.b16 %v1340
        %v1409 = vunpack.c.h.b16 %v1340
        %v1410 = vunpack.c.l.b16 %v1341
        %v1411 = vunpack.c.h.b16 %v1341
        %v1412 = vunpack.c.l.b16 %v1342
        %v1413 = vunpack.c.h.b16 %v1342
        %v1414 = vunpack.c.l.b16 %v1343
        %v1415 = vunpack.c.h.b16 %v1343
        %v1416 = vunpack.c.l.b16 %v1344
        %v1417 = vunpack.c.h.b16 %v1344
        %v1418 = vunpack.c.l.b16 %v1345
        %v1419 = vunpack.c.h.b16 %v1345
        %v1420 = vunpack.c.l.b16 %v1346
        %v1421 = vunpack.c.h.b16 %v1346
        %v1422 = vunpack.c.l.b16 %v1347
        %v1423 = vunpack.c.h.b16 %v1347
        %v1424 = vunpack.c.l.b16 %v1348
        %v1425 = vunpack.c.h.b16 %v1348
        %v1426 = vunpack.c.l.b16 %v1349
        %v1427 = vunpack.c.h.b16 %v1349
        %v1428 = vunpack.c.l.b16 %v1350
        %v1429 = vunpack.c.h.b16 %v1350
        %v1430 = vunpack.c.l.b16 %v1351
        %v1431 = vunpack.c.h.b16 %v1351
        %v1432 = vunpack.c.l.b16 %v1352
        %v1433 = vunpack.c.h.b16 %v1352
        %v1434 = vunpack.c.l.b16 %v1353
        %v1435 = vunpack.c.h.b16 %v1353
        %v1436 = vunpack.c.l.b16 %v1354
        %v1437 = vunpack.c.h.b16 %v1354
        %v1438 = vunpack.c.l.b16 %v1355
        %v1439 = vunpack.c.h.b16 %v1355
        %v1440 = vunpack.c.l.b16 %v1356
        %v1441 = vunpack.c.h.b16 %v1356
        %v1442 = vunpack.c.l.b16 %v1357
        %v1443 = vunpack.c.h.b16 %v1357
        %v1444 = vunpack.c.l.b16 %v1358
        %v1445 = vunpack.c.h.b16 %v1358
        %v1446 = vunpack.c.l.b16 %v1359
        %v1447 = vunpack.c.h.b16 %v1359
        %v1448 = vunpack.c.l.b16 %v1360
        %v1449 = vunpack.c.h.b16 %v1360
        %v1450 = vunpack.c.l.b16 %v1361
        %v1451 = vunpack.c.h.b16 %v1361
        %v1452 = vunpack.c.l.b16 %v1362
        %v1453 = vunpack.c.h.b16 %v1362
        %v1454 = vunpack.c.l.b16 %v1363
        %v1455 = vunpack.c.h.b16 %v1363
        %v1456 = vunpack.c.l.b16 %v1364
        %v1457 = vunpack.c.h.b16 %v1364
        %v1458 = vunpack.c.l.b16 %v1365
        %v1459 = vunpack.c.h.b16 %v1365
        %v1460 = vunpack.c.l.b16 %v1366
        %v1461 = vunpack.c.h.b16 %v1366
        %v1462 = vunpack.c.l.b16 %v1367
        %v1463 = vunpack.c.h.b16 %v1367
        %v1464 = vpack.c.b16 %v1402, %v1400
        %v1465 = vpack.c.b16 %v1403, %v1401
        %v1466 = vpack.c.b16 %v1406, %v1404
        %v1467 = vpack.c.b16 %v1407, %v1405
        %v1468 = vpack.c.b16 %v1410, %v1408
        %v1469 = vpack.c.b16 %v1411, %v1409
        %v1470 = vpack.c.b16 %v1414, %v1412
        %v1471 = vpack.c.b16 %v1415, %v1413
        %v1472 = vpack.c.b16 %v1418, %v1416
        %v1473 = vpack.c.b16 %v1419, %v1417
        %v1474 = vpack.c.b16 %v1422, %v1420
        %v1475 = vpack.c.b16 %v1423, %v1421
        %v1476 = vpack.c.b16 %v1426, %v1424
        %v1477 = vpack.c.b16 %v1427, %v1425
        %v1478 = vpack.c.b16 %v1430, %v1428
        %v1479 = vpack.c.b16 %v1431, %v1429
        %v1480 = vpack.c.b16 %v1434, %v1432
        %v1481 = vpack.c.b16 %v1435, %v1433
        %v1482 = vpack.c.b16 %v1438, %v1436
        %v1483 = vpack.c.b16 %v1439, %v1437
        %v1484 = vpack.c.b16 %v1442, %v1440
        %v1485 = vpack.c.b16 %v1443, %v1441
        %v1486 = vpack.c.b16 %v1446, %v1444
        %v1487 = vpack.c.b16 %v1447, %v1445
        %v1488 = vpack.c.b16 %v1450, %v1448
        %v1489 = vpack.c.b16 %v1451, %v1449
        %v1490 = vpack.c.b16 %v1454, %v1452
        %v1491 = vpack.c.b16 %v1455, %v1453
        %v1492 = vpack.c.b16 %v1458, %v1456
        %v1493 = vpack.c.b16 %v1459, %v1457
        %v1494 = vpack.c.b16 %v1462, %v1460
        %v1495 = vpack.c.b16 %v1463, %v1461
        %1528 = vmatpush.bf16.msra.mxu0 %v1478
        %1529 = vmatpush.bf16.msra.mxu0 %v1476
        %1530 = vmatpush.bf16.msra.mxu0 %v1474
        %1531 = vmatpush.bf16.msra.mxu0 %v1472
        %1532 = vmatpush.bf16.msra.mxu0 %v1470
        %1533 = vmatpush.bf16.msra.mxu0 %v1468
        %1534 = vmatpush.bf16.msra.mxu0 %v1466
        %1535 = vmatpush.bf16.msra.mxu0 %v1464
        %1536 = vmatmul.bf16.gmra.mxu0 %v1327
        %v1537 = vpop.f32.mrf.mxu0
        %v1538 = vadd.f32 0.0, %v1537
        %v1539 = vpop.f32.mrf.mxu0
        %v1540 = vadd.f32 0.0, %v1539
        %1541 = vmatmul.bf16.gmra.mxu0 %v1329
        %v1542 = vpop.f32.mrf.mxu0
        %v1543 = vadd.f32 0.0, %v1542
        %v1544 = vpop.f32.mrf.mxu0
        %v1545 = vadd.f32 0.0, %v1544
        %1546 = vmatmul.bf16.gmra.mxu0 %v1331
        %v1547 = vpop.f32.mrf.mxu0
        %v1548 = vadd.f32 0.0, %v1547
        %v1549 = vpop.f32.mrf.mxu0
        %v1550 = vadd.f32 0.0, %v1549
        %1551 = vmatmul.bf16.gmra.mxu0 %v1333
        %v1552 = vpop.f32.mrf.mxu0
        %v1553 = vadd.f32 0.0, %v1552
        %v1554 = vpop.f32.mrf.mxu0
        %v1555 = vadd.f32 0.0, %v1554
        %1556 = vdwg.mxu0
        %1557 = vmatpush.bf16.msra.mxu0 %v1494
        %1558 = vmatpush.bf16.msra.mxu0 %v1492
        %1559 = vmatpush.bf16.msra.mxu0 %v1490
        %1560 = vmatpush.bf16.msra.mxu0 %v1488
        %1561 = vmatpush.bf16.msra.mxu0 %v1486
        %1562 = vmatpush.bf16.msra.mxu0 %v1484
        %1563 = vmatpush.bf16.msra.mxu0 %v1482
        %1564 = vmatpush.bf16.msra.mxu0 %v1480
        %1565 = vmatmul.bf16.gmra.mxu0 %v1328
        %v1566 = vpop.f32.mrf.mxu0
        %v1567 = vadd.f32 %v1538, %v1566
        %v1568 = vpop.f32.mrf.mxu0
        %v1569 = vadd.f32 %v1540, %v1568
        %1570 = vmatmul.bf16.gmra.mxu0 %v1330
        %v1571 = vpop.f32.mrf.mxu0
        %v1572 = vadd.f32 %v1543, %v1571
        %v1573 = vpop.f32.mrf.mxu0
        %v1574 = vadd.f32 %v1545, %v1573
        %1575 = vmatmul.bf16.gmra.mxu0 %v1332
        %v1576 = vpop.f32.mrf.mxu0
        %v1577 = vadd.f32 %v1548, %v1576
        %v1578 = vpop.f32.mrf.mxu0
        %v1579 = vadd.f32 %v1550, %v1578
        %1580 = vmatmul.bf16.gmra.mxu0 %v1334
        %v1581 = vpop.f32.mrf.mxu0
        %v1582 = vadd.f32 %v1553, %v1581
        %v1583 = vpop.f32.mrf.mxu0
        %v1584 = vadd.f32 %v1555, %v1583
        %1585 = vdwg.mxu0
        %1586 = vmatpush.bf16.msra.mxu0 %v1479
        %1587 = vmatpush.bf16.msra.mxu0 %v1477
        %1588 = vmatpush.bf16.msra.mxu0 %v1475
        %1589 = vmatpush.bf16.msra.mxu0 %v1473
        %1590 = vmatpush.bf16.msra.mxu0 %v1471
        %1591 = vmatpush.bf16.msra.mxu0 %v1469
        %1592 = vmatpush.bf16.msra.mxu0 %v1467
        %1593 = vmatpush.bf16.msra.mxu0 %v1465
        %1594 = vmatmul.bf16.gmra.mxu0 %v1327
        %v1595 = vpop.f32.mrf.mxu0
        %v1596 = vadd.f32 0.0, %v1595
        %v1597 = vpop.f32.mrf.mxu0
        %v1598 = vadd.f32 0.0, %v1597
        %1599 = vmatmul.bf16.gmra.mxu0 %v1329
        %v1600 = vpop.f32.mrf.mxu0
        %v1601 = vadd.f32 0.0, %v1600
        %v1602 = vpop.f32.mrf.mxu0
        %v1603 = vadd.f32 0.0, %v1602
        %1604 = vmatmul.bf16.gmra.mxu0 %v1331
        %v1605 = vpop.f32.mrf.mxu0
        %v1606 = vadd.f32 0.0, %v1605
        %v1607 = vpop.f32.mrf.mxu0
        %v1608 = vadd.f32 0.0, %v1607
        %1609 = vmatmul.bf16.gmra.mxu0 %v1333
        %v1610 = vpop.f32.mrf.mxu0
        %v1611 = vadd.f32 0.0, %v1610
        %v1612 = vpop.f32.mrf.mxu0
        %v1613 = vadd.f32 0.0, %v1612
        %1614 = vdwg.mxu0
        %1615 = vmatpush.bf16.msra.mxu0 %v1495
        %1616 = vmatpush.bf16.msra.mxu0 %v1493
        %1617 = vmatpush.bf16.msra.mxu0 %v1491
        %1618 = vmatpush.bf16.msra.mxu0 %v1489
        %1619 = vmatpush.bf16.msra.mxu0 %v1487
        %1620 = vmatpush.bf16.msra.mxu0 %v1485
        %1621 = vmatpush.bf16.msra.mxu0 %v1483
        %1622 = vmatpush.bf16.msra.mxu0 %v1481
        %1623 = vmatmul.bf16.gmra.mxu0 %v1328
        %v1624 = vpop.f32.mrf.mxu0
        %v1625 = vadd.f32 %v1596, %v1624
        %v1626 = vpop.f32.mrf.mxu0
        %v1627 = vadd.f32 %v1598, %v1626
        %1628 = vmatmul.bf16.gmra.mxu0 %v1330
        %v1629 = vpop.f32.mrf.mxu0
        %v1630 = vadd.f32 %v1601, %v1629
        %v1631 = vpop.f32.mrf.mxu0
        %v1632 = vadd.f32 %v1603, %v1631
        %1633 = vmatmul.bf16.gmra.mxu0 %v1332
        %v1634 = vpop.f32.mrf.mxu0
        %v1635 = vadd.f32 %v1606, %v1634
        %v1636 = vpop.f32.mrf.mxu0
        %v1637 = vadd.f32 %v1608, %v1636
        %1638 = vmatmul.bf16.gmra.mxu0 %v1334
        %v1639 = vpop.f32.mrf.mxu0
        %v1640 = vadd.f32 %v1611, %v1639
        %v1641 = vpop.f32.mrf.mxu0
        %v1642 = vadd.f32 %v1613, %v1641
        %1643 = vdwg.mxu0
        %v1644 = vadd.f32 %v1121, %v1567
        %v1645 = vadd.f32 %v1179, %v1625
        %v1646 = vadd.f32 %v1123, %v1569
        %v1647 = vadd.f32 %v1181, %v1627
        %v1648 = vadd.f32 %v1126, %v1572
        %v1649 = vadd.f32 %v1184, %v1630
        %v1650 = vadd.f32 %v1128, %v1574
        %v1651 = vadd.f32 %v1186, %v1632
        %v1652 = vadd.f32 %v1131, %v1577
        %v1653 = vadd.f32 %v1189, %v1635
        %v1654 = vadd.f32 %v1133, %v1579
        %v1655 = vadd.f32 %v1191, %v1637
        %v1656 = vadd.f32 %v1136, %v1582
        %v1657 = vadd.f32 %v1194, %v1640
        %v1658 = vadd.f32 %v1138, %v1584
        %v1659 = vadd.f32 %v1196, %v1642
        %v1660 = vld [vmem:[#allocation3 + $0x1] sm:$0xff]
        %v1661 = vld [vmem:[#allocation3 + $0x11] sm:$0xff]
        %v1662 = vld [vmem:[#allocation3 + $0x21] sm:$0xff]
        %v1663 = vld [vmem:[#allocation3 + $0x31] sm:$0xff]
        %v1664 = vld [vmem:[#allocation3 + $0x41] sm:$0xff]
        %v1665 = vld [vmem:[#allocation3 + $0x51] sm:$0xff]
        %v1666 = vld [vmem:[#allocation3 + $0x61] sm:$0xff]
        %v1667 = vld [vmem:[#allocation3 + $0x71] sm:$0xff]
        %v1668 = vpack.c.bf16 %v1661, %v1660
        %v1669 = vpack.c.bf16 %v1663, %v1662
        %v1670 = vpack.c.bf16 %v1665, %v1664
        %v1671 = vpack.c.bf16 %v1667, %v1666
        %s1672 = scalar_lea.vmem [#allocation5], 48
        %v1673 = vld [vmem:[%s1672] sm:$0xff]
        %v1674 = vld [vmem:[%s1672 + $0x8] sm:$0xff]
        %v1675 = vld [vmem:[%s1672 + $0x10] sm:$0xff]
        %v1676 = vld [vmem:[%s1672 + $0x18] sm:$0xff]
        %v1677 = vld [vmem:[%s1672 + $0x20] sm:$0xff]
        %v1678 = vld [vmem:[%s1672 + $0x28] sm:$0xff]
        %v1685 = vunpack.c.l.b16 %v1673
        %v1686 = vunpack.c.h.b16 %v1673
        %v1687 = vunpack.c.l.b16 %v1674
        %v1688 = vunpack.c.h.b16 %v1674
        %v1689 = vunpack.c.l.b16 %v1675
        %v1690 = vunpack.c.h.b16 %v1675
        %v1691 = vunpack.c.l.b16 %v1676
        %v1692 = vunpack.c.h.b16 %v1676
        %v1693 = vunpack.c.l.b16 %v1677
        %v1694 = vunpack.c.h.b16 %v1677
        %v1695 = vunpack.c.l.b16 %v1678
        %v1696 = vunpack.c.h.b16 %v1678
        %v1697 = vpack.c.b16 %v1687, %v1685
        %v1698 = vpack.c.b16 %v1688, %v1686
        %v1699 = vpack.c.b16 %v1691, %v1689
        %v1700 = vpack.c.b16 %v1692, %v1690
        %v1701 = vpack.c.b16 %v1695, %v1693
        %v1702 = vpack.c.b16 %v1696, %v1694
        %v1710 = vsel %vm717, %v1668, 0
        %v1713 = vsel %vm717, %v1669, 0
        %v1716 = vsel %vm717, %v1670, 0
        %v1719 = vsel %vm717, %v1671, 0
        %1721 = vmatpush.bf16.msra.mxu0 0
        %1722 = vmatpush.bf16.msra.mxu0 0
        %1723 = vmatpush.bf16.msra.mxu0 0
        %1724 = vmatpush.bf16.msra.mxu0 0
        %1725 = vmatpush.bf16.msra.mxu0 0
        %1726 = vmatpush.bf16.msra.mxu0 %v1701
        %1727 = vmatpush.bf16.msra.mxu0 %v1699
        %1728 = vmatpush.bf16.msra.mxu0 %v1697
        %1729 = vmatmul.bf16.gmra.mxu0 %v1710
        %v1730 = vpop.f32.mrf.mxu0
        %v1731 = vadd.f32 0.0, %v1730
        %v1732 = vpop.f32.mrf.mxu0
        %v1733 = vadd.f32 0.0, %v1732
        %1734 = vmatmul.bf16.gmra.mxu0 %v1713
        %v1735 = vpop.f32.mrf.mxu0
        %v1736 = vadd.f32 0.0, %v1735
        %v1737 = vpop.f32.mrf.mxu0
        %v1738 = vadd.f32 0.0, %v1737
        %1739 = vmatmul.bf16.gmra.mxu0 %v1716
        %v1740 = vpop.f32.mrf.mxu0
        %v1741 = vadd.f32 0.0, %v1740
        %v1742 = vpop.f32.mrf.mxu0
        %v1743 = vadd.f32 0.0, %v1742
        %1744 = vmatmul.bf16.gmra.mxu0 %v1719
        %v1745 = vpop.f32.mrf.mxu0
        %v1746 = vadd.f32 0.0, %v1745
        %v1747 = vpop.f32.mrf.mxu0
        %v1748 = vadd.f32 0.0, %v1747
        %1749 = vdwg.mxu0
        %1750 = vmatpush.bf16.msra.mxu0 0
        %1751 = vmatpush.bf16.msra.mxu0 0
        %1752 = vmatpush.bf16.msra.mxu0 0
        %1753 = vmatpush.bf16.msra.mxu0 0
        %1754 = vmatpush.bf16.msra.mxu0 0
        %1755 = vmatpush.bf16.msra.mxu0 %v1702
        %1756 = vmatpush.bf16.msra.mxu0 %v1700
        %1757 = vmatpush.bf16.msra.mxu0 %v1698
        %1758 = vmatmul.bf16.gmra.mxu0 %v1710
        %v1759 = vpop.f32.mrf.mxu0
        %v1760 = vadd.f32 0.0, %v1759
        %v1761 = vpop.f32.mrf.mxu0
        %v1762 = vadd.f32 0.0, %v1761
        %1763 = vmatmul.bf16.gmra.mxu0 %v1713
        %v1764 = vpop.f32.mrf.mxu0
        %v1765 = vadd.f32 0.0, %v1764
        %v1766 = vpop.f32.mrf.mxu0
        %v1767 = vadd.f32 0.0, %v1766
        %1768 = vmatmul.bf16.gmra.mxu0 %v1716
        %v1769 = vpop.f32.mrf.mxu0
        %v1770 = vadd.f32 0.0, %v1769
        %v1771 = vpop.f32.mrf.mxu0
        %v1772 = vadd.f32 0.0, %v1771
        %1773 = vmatmul.bf16.gmra.mxu0 %v1719
        %v1774 = vpop.f32.mrf.mxu0
        %v1775 = vadd.f32 0.0, %v1774
        %v1776 = vpop.f32.mrf.mxu0
        %v1777 = vadd.f32 0.0, %v1776
        %1778 = vdwg.mxu0
        %v1779 = vadd.f32 %v1644, %v1731
        %v1780 = vadd.f32 %v1645, %v1760
        %v1781 = vadd.f32 %v1646, %v1733
        %v1782 = vadd.f32 %v1647, %v1762
        %v1783 = vadd.f32 %v1648, %v1736
        %v1784 = vadd.f32 %v1649, %v1765
        %v1785 = vadd.f32 %v1650, %v1738
        %v1786 = vadd.f32 %v1651, %v1767
        %v1787 = vadd.f32 %v1652, %v1741
        %v1788 = vadd.f32 %v1653, %v1770
        %v1789 = vadd.f32 %v1654, %v1743
        %v1790 = vadd.f32 %v1655, %v1772
        %v1791 = vadd.f32 %v1656, %v1746
        %v1792 = vadd.f32 %v1657, %v1775
        %v1793 = vadd.f32 %v1658, %v1748
        %v1794 = vadd.f32 %v1659, %v1777
        %v1795 = vld [vmem:[#allocation2] sm:$0xfc]
        %v1796 = vld [vmem:[#allocation2 + $0x8] sm:$0xfc]
        %v1797 = vld [vmem:[#allocation2 + $0x10] sm:$0x3]
        %v1798 = vld [vmem:[#allocation2 + $0x18] sm:$0x3]
        %v1799 = vld [vmem:[#allocation2 + $0x20] sm:$0xfc]
        %v1800 = vld [vmem:[#allocation2 + $0x28] sm:$0xfc]
        %v1801 = vld [vmem:[#allocation2 + $0x30] sm:$0x3]
        %v1802 = vld [vmem:[#allocation2 + $0x38] sm:$0x3]
        %v1803 = vld [vmem:[#allocation2 + $0x40] sm:$0xfc]
        %v1804 = vld [vmem:[#allocation2 + $0x48] sm:$0xfc]
        %v1805 = vld [vmem:[#allocation2 + $0x50] sm:$0x3]
        %v1806 = vld [vmem:[#allocation2 + $0x58] sm:$0x3]
        %v1807 = vld [vmem:[#allocation2 + $0x60] sm:$0xfc]
        %v1808 = vld [vmem:[#allocation2 + $0x68] sm:$0xfc]
        %v1809 = vld [vmem:[#allocation2 + $0x70] sm:$0x3]
        %v1810 = vld [vmem:[#allocation2 + $0x78] sm:$0x3]
        %v1811 = vld [vmem:[#allocation2 + $0x80] sm:$0xfc]
        %v1812 = vld [vmem:[#allocation2 + $0x88] sm:$0xfc]
        %v1813 = vld [vmem:[#allocation2 + $0x90] sm:$0x3]
        %v1814 = vld [vmem:[#allocation2 + $0x98] sm:$0x3]
        %v1815 = vld [vmem:[#allocation2 + $0xa0] sm:$0xfc]
        %v1816 = vld [vmem:[#allocation2 + $0xa8] sm:$0xfc]
        %v1817 = vld [vmem:[#allocation2 + $0xb0] sm:$0x3]
        %v1818 = vld [vmem:[#allocation2 + $0xb8] sm:$0x3]
        %v1819 = vld [vmem:[#allocation2 + $0xc0] sm:$0xfc]
        %v1820 = vld [vmem:[#allocation2 + $0xc8] sm:$0xfc]
        %v1821 = vld [vmem:[#allocation2 + $0xd0] sm:$0x3]
        %v1822 = vld [vmem:[#allocation2 + $0xd8] sm:$0x3]
        %v1823 = vld [vmem:[#allocation2 + $0xe0] sm:$0xfc]
        %v1824 = vld [vmem:[#allocation2 + $0xe8] sm:$0xfc]
        %v1825 = vld [vmem:[#allocation2 + $0xf0] sm:$0x3]
        %v1826 = vld [vmem:[#allocation2 + $0xf8] sm:$0x3]
        %vm1859 = vcmask 1045504
        %v1860 = vrot.slane %v1795, 2
        %v1861 = vrot.slane %v1797, 2
        %v1862 = vsel %vm1859, %v1860, %v1861
        %v1863 = vrot.slane %v1796, 2
        %v1864 = vrot.slane %v1798, 2
        %v1865 = vsel %vm1859, %v1863, %v1864
        %v1866 = vrot.slane %v1799, 2
        %v1867 = vrot.slane %v1801, 2
        %v1868 = vsel %vm1859, %v1866, %v1867
        %v1869 = vrot.slane %v1800, 2
        %v1870 = vrot.slane %v1802, 2
        %v1871 = vsel %vm1859, %v1869, %v1870
        %v1872 = vrot.slane %v1803, 2
        %v1873 = vrot.slane %v1805, 2
        %v1874 = vsel %vm1859, %v1872, %v1873
        %v1875 = vrot.slane %v1804, 2
        %v1876 = vrot.slane %v1806, 2
        %v1877 = vsel %vm1859, %v1875, %v1876
        %v1878 = vrot.slane %v1807, 2
        %v1879 = vrot.slane %v1809, 2
        %v1880 = vsel %vm1859, %v1878, %v1879
        %v1881 = vrot.slane %v1808, 2
        %v1882 = vrot.slane %v1810, 2
        %v1883 = vsel %vm1859, %v1881, %v1882
        %v1884 = vrot.slane %v1811, 2
        %v1885 = vrot.slane %v1813, 2
        %v1886 = vsel %vm1859, %v1884, %v1885
        %v1887 = vrot.slane %v1812, 2
        %v1888 = vrot.slane %v1814, 2
        %v1889 = vsel %vm1859, %v1887, %v1888
        %v1890 = vrot.slane %v1815, 2
        %v1891 = vrot.slane %v1817, 2
        %v1892 = vsel %vm1859, %v1890, %v1891
        %v1893 = vrot.slane %v1816, 2
        %v1894 = vrot.slane %v1818, 2
        %v1895 = vsel %vm1859, %v1893, %v1894
        %v1896 = vrot.slane %v1819, 2
        %v1897 = vrot.slane %v1821, 2
        %v1898 = vsel %vm1859, %v1896, %v1897
        %v1899 = vrot.slane %v1820, 2
        %v1900 = vrot.slane %v1822, 2
        %v1901 = vsel %vm1859, %v1899, %v1900
        %v1902 = vrot.slane %v1823, 2
        %v1903 = vrot.slane %v1825, 2
        %v1904 = vsel %vm1859, %v1902, %v1903
        %v1905 = vrot.slane %v1824, 2
        %v1906 = vrot.slane %v1826, 2
        %v1907 = vsel %vm1859, %v1905, %v1906
        %v1924 = vpack.c.bf16 %v1868, %v1862
        %v1925 = vpack.c.bf16 %v1871, %v1865
        %v1926 = vpack.c.bf16 %v1880, %v1874
        %v1927 = vpack.c.bf16 %v1883, %v1877
        %v1928 = vpack.c.bf16 %v1892, %v1886
        %v1929 = vpack.c.bf16 %v1895, %v1889
        %v1930 = vpack.c.bf16 %v1904, %v1898
        %v1931 = vpack.c.bf16 %v1907, %v1901
        %s1932 = scalar_lea.vmem %s5, 512
        %v1933 = vld [vmem:[%s1932] sm:$0xff]
        %v1934 = vld [vmem:[%s1932 + $0x8] sm:$0xff]
        %v1935 = vld [vmem:[%s1932 + $0x10] sm:$0xff]
        %v1936 = vld [vmem:[%s1932 + $0x18] sm:$0xff]
        %v1937 = vld [vmem:[%s1932 + $0x20] sm:$0xff]
        %v1938 = vld [vmem:[%s1932 + $0x28] sm:$0xff]
        %v1939 = vld [vmem:[%s1932 + $0x30] sm:$0xff]
        %v1940 = vld [vmem:[%s1932 + $0x38] sm:$0xff]
        %v1941 = vld [vmem:[%s1932 + $0x40] sm:$0xff]
        %v1942 = vld [vmem:[%s1932 + $0x48] sm:$0xff]
        %v1943 = vld [vmem:[%s1932 + $0x50] sm:$0xff]
        %v1944 = vld [vmem:[%s1932 + $0x58] sm:$0xff]
        %v1945 = vld [vmem:[%s1932 + $0x60] sm:$0xff]
        %v1946 = vld [vmem:[%s1932 + $0x68] sm:$0xff]
        %v1947 = vld [vmem:[%s1932 + $0x70] sm:$0xff]
        %v1948 = vld [vmem:[%s1932 + $0x78] sm:$0xff]
        %v1949 = vld [vmem:[%s1932 + $0x80] sm:$0xff]
        %v1950 = vld [vmem:[%s1932 + $0x88] sm:$0xff]
        %v1951 = vld [vmem:[%s1932 + $0x90] sm:$0xff]
        %v1952 = vld [vmem:[%s1932 + $0x98] sm:$0xff]
        %v1953 = vld [vmem:[%s1932 + $0xa0] sm:$0xff]
        %v1954 = vld [vmem:[%s1932 + $0xa8] sm:$0xff]
        %v1955 = vld [vmem:[%s1932 + $0xb0] sm:$0xff]
        %v1956 = vld [vmem:[%s1932 + $0xb8] sm:$0xff]
        %v1957 = vld [vmem:[%s1932 + $0xc0] sm:$0xff]
        %v1958 = vld [vmem:[%s1932 + $0xc8] sm:$0xff]
        %v1959 = vld [vmem:[%s1932 + $0xd0] sm:$0xff]
        %v1960 = vld [vmem:[%s1932 + $0xd8] sm:$0xff]
        %v1961 = vld [vmem:[%s1932 + $0xe0] sm:$0xff]
        %v1962 = vld [vmem:[%s1932 + $0xe8] sm:$0xff]
        %v1963 = vld [vmem:[%s1932 + $0xf0] sm:$0xff]
        %v1964 = vld [vmem:[%s1932 + $0xf8] sm:$0xff]
        %v1997 = vunpack.c.l.b16 %v1933
        %v1998 = vunpack.c.h.b16 %v1933
        %v1999 = vunpack.c.l.b16 %v1934
        %v2000 = vunpack.c.h.b16 %v1934
        %v2001 = vunpack.c.l.b16 %v1935
        %v2002 = vunpack.c.h.b16 %v1935
        %v2003 = vunpack.c.l.b16 %v1936
        %v2004 = vunpack.c.h.b16 %v1936
        %v2005 = vunpack.c.l.b16 %v1937
        %v2006 = vunpack.c.h.b16 %v1937
        %v2007 = vunpack.c.l.b16 %v1938
        %v2008 = vunpack.c.h.b16 %v1938
        %v2009 = vunpack.c.l.b16 %v1939
        %v2010 = vunpack.c.h.b16 %v1939
        %v2011 = vunpack.c.l.b16 %v1940
        %v2012 = vunpack.c.h.b16 %v1940
        %v2013 = vunpack.c.l.b16 %v1941
        %v2014 = vunpack.c.h.b16 %v1941
        %v2015 = vunpack.c.l.b16 %v1942
        %v2016 = vunpack.c.h.b16 %v1942
        %v2017 = vunpack.c.l.b16 %v1943
        %v2018 = vunpack.c.h.b16 %v1943
        %v2019 = vunpack.c.l.b16 %v1944
        %v2020 = vunpack.c.h.b16 %v1944
        %v2021 = vunpack.c.l.b16 %v1945
        %v2022 = vunpack.c.h.b16 %v1945
        %v2023 = vunpack.c.l.b16 %v1946
        %v2024 = vunpack.c.h.b16 %v1946
        %v2025 = vunpack.c.l.b16 %v1947
        %v2026 = vunpack.c.h.b16 %v1947
        %v2027 = vunpack.c.l.b16 %v1948
        %v2028 = vunpack.c.h.b16 %v1948
        %v2029 = vunpack.c.l.b16 %v1949
        %v2030 = vunpack.c.h.b16 %v1949
        %v2031 = vunpack.c.l.b16 %v1950
        %v2032 = vunpack.c.h.b16 %v1950
        %v2033 = vunpack.c.l.b16 %v1951
        %v2034 = vunpack.c.h.b16 %v1951
        %v2035 = vunpack.c.l.b16 %v1952
        %v2036 = vunpack.c.h.b16 %v1952
        %v2037 = vunpack.c.l.b16 %v1953
        %v2038 = vunpack.c.h.b16 %v1953
        %v2039 = vunpack.c.l.b16 %v1954
        %v2040 = vunpack.c.h.b16 %v1954
        %v2041 = vunpack.c.l.b16 %v1955
        %v2042 = vunpack.c.h.b16 %v1955
        %v2043 = vunpack.c.l.b16 %v1956
        %v2044 = vunpack.c.h.b16 %v1956
        %v2045 = vunpack.c.l.b16 %v1957
        %v2046 = vunpack.c.h.b16 %v1957
        %v2047 = vunpack.c.l.b16 %v1958
        %v2048 = vunpack.c.h.b16 %v1958
        %v2049 = vunpack.c.l.b16 %v1959
        %v2050 = vunpack.c.h.b16 %v1959
        %v2051 = vunpack.c.l.b16 %v1960
        %v2052 = vunpack.c.h.b16 %v1960
        %v2053 = vunpack.c.l.b16 %v1961
        %v2054 = vunpack.c.h.b16 %v1961
        %v2055 = vunpack.c.l.b16 %v1962
        %v2056 = vunpack.c.h.b16 %v1962
        %v2057 = vunpack.c.l.b16 %v1963
        %v2058 = vunpack.c.h.b16 %v1963
        %v2059 = vunpack.c.l.b16 %v1964
        %v2060 = vunpack.c.h.b16 %v1964
        %v2061 = vpack.c.b16 %v1999, %v1997
        %v2062 = vpack.c.b16 %v2000, %v1998
        %v2063 = vpack.c.b16 %v2003, %v2001
        %v2064 = vpack.c.b16 %v2004, %v2002
        %v2065 = vpack.c.b16 %v2007, %v2005
        %v2066 = vpack.c.b16 %v2008, %v2006
        %v2067 = vpack.c.b16 %v2011, %v2009
        %v2068 = vpack.c.b16 %v2012, %v2010
        %v2069 = vpack.c.b16 %v2015, %v2013
        %v2070 = vpack.c.b16 %v2016, %v2014
        %v2071 = vpack.c.b16 %v2019, %v2017
        %v2072 = vpack.c.b16 %v2020, %v2018
        %v2073 = vpack.c.b16 %v2023, %v2021
        %v2074 = vpack.c.b16 %v2024, %v2022
        %v2075 = vpack.c.b16 %v2027, %v2025
        %v2076 = vpack.c.b16 %v2028, %v2026
        %v2077 = vpack.c.b16 %v2031, %v2029
        %v2078 = vpack.c.b16 %v2032, %v2030
        %v2079 = vpack.c.b16 %v2035, %v2033
        %v2080 = vpack.c.b16 %v2036, %v2034
        %v2081 = vpack.c.b16 %v2039, %v2037
        %v2082 = vpack.c.b16 %v2040, %v2038
        %v2083 = vpack.c.b16 %v2043, %v2041
        %v2084 = vpack.c.b16 %v2044, %v2042
        %v2085 = vpack.c.b16 %v2047, %v2045
        %v2086 = vpack.c.b16 %v2048, %v2046
        %v2087 = vpack.c.b16 %v2051, %v2049
        %v2088 = vpack.c.b16 %v2052, %v2050
        %v2089 = vpack.c.b16 %v2055, %v2053
        %v2090 = vpack.c.b16 %v2056, %v2054
        %v2091 = vpack.c.b16 %v2059, %v2057
        %v2092 = vpack.c.b16 %v2060, %v2058
        %2125 = vmatpush.bf16.msra.mxu0 %v2075
        %2126 = vmatpush.bf16.msra.mxu0 %v2073
        %2127 = vmatpush.bf16.msra.mxu0 %v2071
        %2128 = vmatpush.bf16.msra.mxu0 %v2069
        %2129 = vmatpush.bf16.msra.mxu0 %v2067
        %2130 = vmatpush.bf16.msra.mxu0 %v2065
        %2131 = vmatpush.bf16.msra.mxu0 %v2063
        %2132 = vmatpush.bf16.msra.mxu0 %v2061
        %2133 = vmatmul.bf16.gmra.mxu0 %v1924
        %v2134 = vpop.f32.mrf.mxu0
        %v2135 = vadd.f32 0.0, %v2134
        %v2136 = vpop.f32.mrf.mxu0
        %v2137 = vadd.f32 0.0, %v2136
        %2138 = vmatmul.bf16.gmra.mxu0 %v1926
        %v2139 = vpop.f32.mrf.mxu0
        %v2140 = vadd.f32 0.0, %v2139
        %v2141 = vpop.f32.mrf.mxu0
        %v2142 = vadd.f32 0.0, %v2141
        %2143 = vmatmul.bf16.gmra.mxu0 %v1928
        %v2144 = vpop.f32.mrf.mxu0
        %v2145 = vadd.f32 0.0, %v2144
        %v2146 = vpop.f32.mrf.mxu0
        %v2147 = vadd.f32 0.0, %v2146
        %2148 = vmatmul.bf16.gmra.mxu0 %v1930
        %v2149 = vpop.f32.mrf.mxu0
        %v2150 = vadd.f32 0.0, %v2149
        %v2151 = vpop.f32.mrf.mxu0
        %v2152 = vadd.f32 0.0, %v2151
        %2153 = vdwg.mxu0
        %2154 = vmatpush.bf16.msra.mxu0 %v2091
        %2155 = vmatpush.bf16.msra.mxu0 %v2089
        %2156 = vmatpush.bf16.msra.mxu0 %v2087
        %2157 = vmatpush.bf16.msra.mxu0 %v2085
        %2158 = vmatpush.bf16.msra.mxu0 %v2083
        %2159 = vmatpush.bf16.msra.mxu0 %v2081
        %2160 = vmatpush.bf16.msra.mxu0 %v2079
        %2161 = vmatpush.bf16.msra.mxu0 %v2077
        %2162 = vmatmul.bf16.gmra.mxu0 %v1925
        %v2163 = vpop.f32.mrf.mxu0
        %v2164 = vadd.f32 %v2135, %v2163
        %v2165 = vpop.f32.mrf.mxu0
        %v2166 = vadd.f32 %v2137, %v2165
        %2167 = vmatmul.bf16.gmra.mxu0 %v1927
        %v2168 = vpop.f32.mrf.mxu0
        %v2169 = vadd.f32 %v2140, %v2168
        %v2170 = vpop.f32.mrf.mxu0
        %v2171 = vadd.f32 %v2142, %v2170
        %2172 = vmatmul.bf16.gmra.mxu0 %v1929
        %v2173 = vpop.f32.mrf.mxu0
        %v2174 = vadd.f32 %v2145, %v2173
        %v2175 = vpop.f32.mrf.mxu0
        %v2176 = vadd.f32 %v2147, %v2175
        %2177 = vmatmul.bf16.gmra.mxu0 %v1931
        %v2178 = vpop.f32.mrf.mxu0
        %v2179 = vadd.f32 %v2150, %v2178
        %v2180 = vpop.f32.mrf.mxu0
        %v2181 = vadd.f32 %v2152, %v2180
        %2182 = vdwg.mxu0
        %2183 = vmatpush.bf16.msra.mxu0 %v2076
        %2184 = vmatpush.bf16.msra.mxu0 %v2074
        %2185 = vmatpush.bf16.msra.mxu0 %v2072
        %2186 = vmatpush.bf16.msra.mxu0 %v2070
        %2187 = vmatpush.bf16.msra.mxu0 %v2068
        %2188 = vmatpush.bf16.msra.mxu0 %v2066
        %2189 = vmatpush.bf16.msra.mxu0 %v2064
        %2190 = vmatpush.bf16.msra.mxu0 %v2062
        %2191 = vmatmul.bf16.gmra.mxu0 %v1924
        %v2192 = vpop.f32.mrf.mxu0
        %v2193 = vadd.f32 0.0, %v2192
        %v2194 = vpop.f32.mrf.mxu0
        %v2195 = vadd.f32 0.0, %v2194
        %2196 = vmatmul.bf16.gmra.mxu0 %v1926
        %v2197 = vpop.f32.mrf.mxu0
        %v2198 = vadd.f32 0.0, %v2197
        %v2199 = vpop.f32.mrf.mxu0
        %v2200 = vadd.f32 0.0, %v2199
        %2201 = vmatmul.bf16.gmra.mxu0 %v1928
        %v2202 = vpop.f32.mrf.mxu0
        %v2203 = vadd.f32 0.0, %v2202
        %v2204 = vpop.f32.mrf.mxu0
        %v2205 = vadd.f32 0.0, %v2204
        %2206 = vmatmul.bf16.gmra.mxu0 %v1930
        %v2207 = vpop.f32.mrf.mxu0
        %v2208 = vadd.f32 0.0, %v2207
        %v2209 = vpop.f32.mrf.mxu0
        %v2210 = vadd.f32 0.0, %v2209
        %2211 = vdwg.mxu0
        %2212 = vmatpush.bf16.msra.mxu0 %v2092
        %2213 = vmatpush.bf16.msra.mxu0 %v2090
        %2214 = vmatpush.bf16.msra.mxu0 %v2088
        %2215 = vmatpush.bf16.msra.mxu0 %v2086
        %2216 = vmatpush.bf16.msra.mxu0 %v2084
        %2217 = vmatpush.bf16.msra.mxu0 %v2082
        %2218 = vmatpush.bf16.msra.mxu0 %v2080
        %2219 = vmatpush.bf16.msra.mxu0 %v2078
        %2220 = vmatmul.bf16.gmra.mxu0 %v1925
        %v2221 = vpop.f32.mrf.mxu0
        %v2222 = vadd.f32 %v2193, %v2221
        %v2223 = vpop.f32.mrf.mxu0
        %v2224 = vadd.f32 %v2195, %v2223
        %2225 = vmatmul.bf16.gmra.mxu0 %v1927
        %v2226 = vpop.f32.mrf.mxu0
        %v2227 = vadd.f32 %v2198, %v2226
        %v2228 = vpop.f32.mrf.mxu0
        %v2229 = vadd.f32 %v2200, %v2228
        %2230 = vmatmul.bf16.gmra.mxu0 %v1929
        %v2231 = vpop.f32.mrf.mxu0
        %v2232 = vadd.f32 %v2203, %v2231
        %v2233 = vpop.f32.mrf.mxu0
        %v2234 = vadd.f32 %v2205, %v2233
        %2235 = vmatmul.bf16.gmra.mxu0 %v1931
        %v2236 = vpop.f32.mrf.mxu0
        %v2237 = vadd.f32 %v2208, %v2236
        %v2238 = vpop.f32.mrf.mxu0
        %v2239 = vadd.f32 %v2210, %v2238
        %2240 = vdwg.mxu0
        %v2241 = vadd.f32 %v1779, %v2164
        %v2242 = vadd.f32 %v1780, %v2222
        %v2243 = vadd.f32 %v1781, %v2166
        %v2244 = vadd.f32 %v1782, %v2224
        %v2245 = vadd.f32 %v1783, %v2169
        %v2246 = vadd.f32 %v1784, %v2227
        %v2247 = vadd.f32 %v1785, %v2171
        %v2248 = vadd.f32 %v1786, %v2229
        %v2249 = vadd.f32 %v1787, %v2174
        %v2250 = vadd.f32 %v1788, %v2232
        %v2251 = vadd.f32 %v1789, %v2176
        %v2252 = vadd.f32 %v1790, %v2234
        %v2253 = vadd.f32 %v1791, %v2179
        %v2254 = vadd.f32 %v1792, %v2237
        %v2255 = vadd.f32 %v1793, %v2181
        %v2256 = vadd.f32 %v1794, %v2239
        %v2257 = vld [vmem:[#allocation3 + $0x2] sm:$0xff]
        %v2258 = vld [vmem:[#allocation3 + $0x12] sm:$0xff]
        %v2259 = vld [vmem:[#allocation3 + $0x22] sm:$0xff]
        %v2260 = vld [vmem:[#allocation3 + $0x32] sm:$0xff]
        %v2261 = vld [vmem:[#allocation3 + $0x42] sm:$0xff]
        %v2262 = vld [vmem:[#allocation3 + $0x52] sm:$0xff]
        %v2263 = vld [vmem:[#allocation3 + $0x62] sm:$0xff]
        %v2264 = vld [vmem:[#allocation3 + $0x72] sm:$0xff]
        %v2265 = vpack.c.bf16 %v2258, %v2257
        %v2266 = vpack.c.bf16 %v2260, %v2259
        %v2267 = vpack.c.bf16 %v2262, %v2261
        %v2268 = vpack.c.bf16 %v2264, %v2263
        %s2269 = scalar_lea.vmem [#allocation5], 96
        %v2270 = vld [vmem:[%s2269] sm:$0xff]
        %v2271 = vld [vmem:[%s2269 + $0x8] sm:$0xff]
        %v2272 = vld [vmem:[%s2269 + $0x10] sm:$0xff]
        %v2273 = vld [vmem:[%s2269 + $0x18] sm:$0xff]
        %v2274 = vld [vmem:[%s2269 + $0x20] sm:$0xff]
        %v2275 = vld [vmem:[%s2269 + $0x28] sm:$0xff]
        %v2282 = vunpack.c.l.b16 %v2270
        %v2283 = vunpack.c.h.b16 %v2270
        %v2284 = vunpack.c.l.b16 %v2271
        %v2285 = vunpack.c.h.b16 %v2271
        %v2286 = vunpack.c.l.b16 %v2272
        %v2287 = vunpack.c.h.b16 %v2272
        %v2288 = vunpack.c.l.b16 %v2273
        %v2289 = vunpack.c.h.b16 %v2273
        %v2290 = vunpack.c.l.b16 %v2274
        %v2291 = vunpack.c.h.b16 %v2274
        %v2292 = vunpack.c.l.b16 %v2275
        %v2293 = vunpack.c.h.b16 %v2275
        %v2294 = vpack.c.b16 %v2284, %v2282
        %v2295 = vpack.c.b16 %v2285, %v2283
        %v2296 = vpack.c.b16 %v2288, %v2286
        %v2297 = vpack.c.b16 %v2289, %v2287
        %v2298 = vpack.c.b16 %v2292, %v2290
        %v2299 = vpack.c.b16 %v2293, %v2291
        %v2307 = vsel %vm717, %v2265, 0
        %v2310 = vsel %vm717, %v2266, 0
        %v2313 = vsel %vm717, %v2267, 0
        %v2316 = vsel %vm717, %v2268, 0
        %2318 = vmatpush.bf16.msra.mxu0 0
        %2319 = vmatpush.bf16.msra.mxu0 0
        %2320 = vmatpush.bf16.msra.mxu0 0
        %2321 = vmatpush.bf16.msra.mxu0 0
        %2322 = vmatpush.bf16.msra.mxu0 0
        %2323 = vmatpush.bf16.msra.mxu0 %v2298
        %2324 = vmatpush.bf16.msra.mxu0 %v2296
        %2325 = vmatpush.bf16.msra.mxu0 %v2294
        %2326 = vmatmul.bf16.gmra.mxu0 %v2307
        %v2327 = vpop.f32.mrf.mxu0
        %v2328 = vadd.f32 0.0, %v2327
        %v2329 = vpop.f32.mrf.mxu0
        %v2330 = vadd.f32 0.0, %v2329
        %2331 = vmatmul.bf16.gmra.mxu0 %v2310
        %v2332 = vpop.f32.mrf.mxu0
        %v2333 = vadd.f32 0.0, %v2332
        %v2334 = vpop.f32.mrf.mxu0
        %v2335 = vadd.f32 0.0, %v2334
        %2336 = vmatmul.bf16.gmra.mxu0 %v2313
        %v2337 = vpop.f32.mrf.mxu0
        %v2338 = vadd.f32 0.0, %v2337
        %v2339 = vpop.f32.mrf.mxu0
        %v2340 = vadd.f32 0.0, %v2339
        %2341 = vmatmul.bf16.gmra.mxu0 %v2316
        %v2342 = vpop.f32.mrf.mxu0
        %v2343 = vadd.f32 0.0, %v2342
        %v2344 = vpop.f32.mrf.mxu0
        %v2345 = vadd.f32 0.0, %v2344
        %2346 = vdwg.mxu0
        %2347 = vmatpush.bf16.msra.mxu0 0
        %2348 = vmatpush.bf16.msra.mxu0 0
        %2349 = vmatpush.bf16.msra.mxu0 0
        %2350 = vmatpush.bf16.msra.mxu0 0
        %2351 = vmatpush.bf16.msra.mxu0 0
        %2352 = vmatpush.bf16.msra.mxu0 %v2299
        %2353 = vmatpush.bf16.msra.mxu0 %v2297
        %2354 = vmatpush.bf16.msra.mxu0 %v2295
        %2355 = vmatmul.bf16.gmra.mxu0 %v2307
        %v2356 = vpop.f32.mrf.mxu0
        %v2357 = vadd.f32 0.0, %v2356
        %v2358 = vpop.f32.mrf.mxu0
        %v2359 = vadd.f32 0.0, %v2358
        %2360 = vmatmul.bf16.gmra.mxu0 %v2310
        %v2361 = vpop.f32.mrf.mxu0
        %v2362 = vadd.f32 0.0, %v2361
        %v2363 = vpop.f32.mrf.mxu0
        %v2364 = vadd.f32 0.0, %v2363
        %2365 = vmatmul.bf16.gmra.mxu0 %v2313
        %v2366 = vpop.f32.mrf.mxu0
        %v2367 = vadd.f32 0.0, %v2366
        %v2368 = vpop.f32.mrf.mxu0
        %v2369 = vadd.f32 0.0, %v2368
        %2370 = vmatmul.bf16.gmra.mxu0 %v2316
        %v2371 = vpop.f32.mrf.mxu0
        %v2372 = vadd.f32 0.0, %v2371
        %v2373 = vpop.f32.mrf.mxu0
        %v2374 = vadd.f32 0.0, %v2373
        %2375 = vdwg.mxu0
        %v2376 = vadd.f32 %v2241, %v2328
        %v2377 = vadd.f32 %v2242, %v2357
        %v2378 = vadd.f32 %v2243, %v2330
        %v2379 = vadd.f32 %v2244, %v2359
        %v2380 = vadd.f32 %v2245, %v2333
        %v2381 = vadd.f32 %v2246, %v2362
        %v2382 = vadd.f32 %v2247, %v2335
        %v2383 = vadd.f32 %v2248, %v2364
        %v2384 = vadd.f32 %v2249, %v2338
        %v2385 = vadd.f32 %v2250, %v2367
        %v2386 = vadd.f32 %v2251, %v2340
        %v2387 = vadd.f32 %v2252, %v2369
        %v2388 = vadd.f32 %v2253, %v2343
        %v2389 = vadd.f32 %v2254, %v2372
        %v2390 = vadd.f32 %v2255, %v2345
        %v2391 = vadd.f32 %v2256, %v2374
        %v2392 = vld [vmem:[%s597] sm:$0xff]
        %v2393 = vld [vmem:[%s597 + $0x8] sm:$0xff]
        %v2394 = vld [vmem:[%s597 + $0x20] sm:$0xff]
        %v2395 = vld [vmem:[%s597 + $0x28] sm:$0xff]
        %v2396 = vld [vmem:[%s597 + $0x40] sm:$0xff]
        %v2397 = vld [vmem:[%s597 + $0x48] sm:$0xff]
        %v2398 = vld [vmem:[%s597 + $0x60] sm:$0xff]
        %v2399 = vld [vmem:[%s597 + $0x68] sm:$0xff]
        %v2400 = vld [vmem:[%s597 + $0x80] sm:$0xff]
        %v2401 = vld [vmem:[%s597 + $0x88] sm:$0xff]
        %v2402 = vld [vmem:[%s597 + $0xa0] sm:$0xff]
        %v2403 = vld [vmem:[%s597 + $0xa8] sm:$0xff]
        %v2404 = vld [vmem:[%s597 + $0xc0] sm:$0xff]
        %v2405 = vld [vmem:[%s597 + $0xc8] sm:$0xff]
        %v2406 = vld [vmem:[%s597 + $0xe0] sm:$0xff]
        %v2407 = vld [vmem:[%s597 + $0xe8] sm:$0xff]
        %v2408 = vpack.c.bf16 %v2394, %v2392
        %v2409 = vpack.c.bf16 %v2395, %v2393
        %v2410 = vpack.c.bf16 %v2398, %v2396
        %v2411 = vpack.c.bf16 %v2399, %v2397
        %v2412 = vpack.c.bf16 %v2402, %v2400
        %v2413 = vpack.c.bf16 %v2403, %v2401
        %v2414 = vpack.c.bf16 %v2406, %v2404
        %v2415 = vpack.c.bf16 %v2407, %v2405
        %s2416 = scalar_lea.vmem %s5, 768
        %v2417 = vld [vmem:[%s2416] sm:$0xff]
        %v2418 = vld [vmem:[%s2416 + $0x8] sm:$0xff]
        %v2419 = vld [vmem:[%s2416 + $0x10] sm:$0xff]
        %v2420 = vld [vmem:[%s2416 + $0x18] sm:$0xff]
        %v2421 = vld [vmem:[%s2416 + $0x20] sm:$0xff]
        %v2422 = vld [vmem:[%s2416 + $0x28] sm:$0xff]
        %v2423 = vld [vmem:[%s2416 + $0x30] sm:$0xff]
        %v2424 = vld [vmem:[%s2416 + $0x38] sm:$0xff]
        %v2425 = vld [vmem:[%s2416 + $0x40] sm:$0xff]
        %v2426 = vld [vmem:[%s2416 + $0x48] sm:$0xff]
        %v2427 = vld [vmem:[%s2416 + $0x50] sm:$0xff]
        %v2428 = vld [vmem:[%s2416 + $0x58] sm:$0xff]
        %v2429 = vld [vmem:[%s2416 + $0x60] sm:$0xff]
        %v2430 = vld [vmem:[%s2416 + $0x68] sm:$0xff]
        %v2431 = vld [vmem:[%s2416 + $0x70] sm:$0xff]
        %v2432 = vld [vmem:[%s2416 + $0x78] sm:$0xff]
        %v2433 = vld [vmem:[%s2416 + $0x80] sm:$0xff]
        %v2434 = vld [vmem:[%s2416 + $0x88] sm:$0xff]
        %v2435 = vld [vmem:[%s2416 + $0x90] sm:$0xff]
        %v2436 = vld [vmem:[%s2416 + $0x98] sm:$0xff]
        %v2437 = vld [vmem:[%s2416 + $0xa0] sm:$0xff]
        %v2438 = vld [vmem:[%s2416 + $0xa8] sm:$0xff]
        %v2439 = vld [vmem:[%s2416 + $0xb0] sm:$0xff]
        %v2440 = vld [vmem:[%s2416 + $0xb8] sm:$0xff]
        %v2441 = vld [vmem:[%s2416 + $0xc0] sm:$0xff]
        %v2442 = vld [vmem:[%s2416 + $0xc8] sm:$0xff]
        %v2443 = vld [vmem:[%s2416 + $0xd0] sm:$0xff]
        %v2444 = vld [vmem:[%s2416 + $0xd8] sm:$0xff]
        %v2445 = vld [vmem:[%s2416 + $0xe0] sm:$0xff]
        %v2446 = vld [vmem:[%s2416 + $0xe8] sm:$0xff]
        %v2447 = vld [vmem:[%s2416 + $0xf0] sm:$0xff]
        %v2448 = vld [vmem:[%s2416 + $0xf8] sm:$0xff]
        %v2481 = vunpack.c.l.b16 %v2417
        %v2482 = vunpack.c.h.b16 %v2417
        %v2483 = vunpack.c.l.b16 %v2418
        %v2484 = vunpack.c.h.b16 %v2418
        %v2485 = vunpack.c.l.b16 %v2419
        %v2486 = vunpack.c.h.b16 %v2419
        %v2487 = vunpack.c.l.b16 %v2420
        %v2488 = vunpack.c.h.b16 %v2420
        %v2489 = vunpack.c.l.b16 %v2421
        %v2490 = vunpack.c.h.b16 %v2421
        %v2491 = vunpack.c.l.b16 %v2422
        %v2492 = vunpack.c.h.b16 %v2422
        %v2493 = vunpack.c.l.b16 %v2423
        %v2494 = vunpack.c.h.b16 %v2423
        %v2495 = vunpack.c.l.b16 %v2424
        %v2496 = vunpack.c.h.b16 %v2424
        %v2497 = vunpack.c.l.b16 %v2425
        %v2498 = vunpack.c.h.b16 %v2425
        %v2499 = vunpack.c.l.b16 %v2426
        %v2500 = vunpack.c.h.b16 %v2426
        %v2501 = vunpack.c.l.b16 %v2427
        %v2502 = vunpack.c.h.b16 %v2427
        %v2503 = vunpack.c.l.b16 %v2428
        %v2504 = vunpack.c.h.b16 %v2428
        %v2505 = vunpack.c.l.b16 %v2429
        %v2506 = vunpack.c.h.b16 %v2429
        %v2507 = vunpack.c.l.b16 %v2430
        %v2508 = vunpack.c.h.b16 %v2430
        %v2509 = vunpack.c.l.b16 %v2431
        %v2510 = vunpack.c.h.b16 %v2431
        %v2511 = vunpack.c.l.b16 %v2432
        %v2512 = vunpack.c.h.b16 %v2432
        %v2513 = vunpack.c.l.b16 %v2433
        %v2514 = vunpack.c.h.b16 %v2433
        %v2515 = vunpack.c.l.b16 %v2434
        %v2516 = vunpack.c.h.b16 %v2434
        %v2517 = vunpack.c.l.b16 %v2435
        %v2518 = vunpack.c.h.b16 %v2435
        %v2519 = vunpack.c.l.b16 %v2436
        %v2520 = vunpack.c.h.b16 %v2436
        %v2521 = vunpack.c.l.b16 %v2437
        %v2522 = vunpack.c.h.b16 %v2437
        %v2523 = vunpack.c.l.b16 %v2438
        %v2524 = vunpack.c.h.b16 %v2438
        %v2525 = vunpack.c.l.b16 %v2439
        %v2526 = vunpack.c.h.b16 %v2439
        %v2527 = vunpack.c.l.b16 %v2440
        %v2528 = vunpack.c.h.b16 %v2440
        %v2529 = vunpack.c.l.b16 %v2441
        %v2530 = vunpack.c.h.b16 %v2441
        %v2531 = vunpack.c.l.b16 %v2442
        %v2532 = vunpack.c.h.b16 %v2442
        %v2533 = vunpack.c.l.b16 %v2443
        %v2534 = vunpack.c.h.b16 %v2443
        %v2535 = vunpack.c.l.b16 %v2444
        %v2536 = vunpack.c.h.b16 %v2444
        %v2537 = vunpack.c.l.b16 %v2445
        %v2538 = vunpack.c.h.b16 %v2445
        %v2539 = vunpack.c.l.b16 %v2446
        %v2540 = vunpack.c.h.b16 %v2446
        %v2541 = vunpack.c.l.b16 %v2447
        %v2542 = vunpack.c.h.b16 %v2447
        %v2543 = vunpack.c.l.b16 %v2448
        %v2544 = vunpack.c.h.b16 %v2448
        %v2545 = vpack.c.b16 %v2483, %v2481
        %v2546 = vpack.c.b16 %v2484, %v2482
        %v2547 = vpack.c.b16 %v2487, %v2485
        %v2548 = vpack.c.b16 %v2488, %v2486
        %v2549 = vpack.c.b16 %v2491, %v2489
        %v2550 = vpack.c.b16 %v2492, %v2490
        %v2551 = vpack.c.b16 %v2495, %v2493
        %v2552 = vpack.c.b16 %v2496, %v2494
        %v2553 = vpack.c.b16 %v2499, %v2497
        %v2554 = vpack.c.b16 %v2500, %v2498
        %v2555 = vpack.c.b16 %v2503, %v2501
        %v2556 = vpack.c.b16 %v2504, %v2502
        %v2557 = vpack.c.b16 %v2507, %v2505
        %v2558 = vpack.c.b16 %v2508, %v2506
        %v2559 = vpack.c.b16 %v2511, %v2509
        %v2560 = vpack.c.b16 %v2512, %v2510
        %v2561 = vpack.c.b16 %v2515, %v2513
        %v2562 = vpack.c.b16 %v2516, %v2514
        %v2563 = vpack.c.b16 %v2519, %v2517
        %v2564 = vpack.c.b16 %v2520, %v2518
        %v2565 = vpack.c.b16 %v2523, %v2521
        %v2566 = vpack.c.b16 %v2524, %v2522
        %v2567 = vpack.c.b16 %v2527, %v2525
        %v2568 = vpack.c.b16 %v2528, %v2526
        %v2569 = vpack.c.b16 %v2531, %v2529
        %v2570 = vpack.c.b16 %v2532, %v2530
        %v2571 = vpack.c.b16 %v2535, %v2533
        %v2572 = vpack.c.b16 %v2536, %v2534
        %v2573 = vpack.c.b16 %v2539, %v2537
        %v2574 = vpack.c.b16 %v2540, %v2538
        %v2575 = vpack.c.b16 %v2543, %v2541
        %v2576 = vpack.c.b16 %v2544, %v2542
        %2609 = vmatpush.bf16.msra.mxu0 %v2559
        %2610 = vmatpush.bf16.msra.mxu0 %v2557
        %2611 = vmatpush.bf16.msra.mxu0 %v2555
        %2612 = vmatpush.bf16.msra.mxu0 %v2553
        %2613 = vmatpush.bf16.msra.mxu0 %v2551
        %2614 = vmatpush.bf16.msra.mxu0 %v2549
        %2615 = vmatpush.bf16.msra.mxu0 %v2547
        %2616 = vmatpush.bf16.msra.mxu0 %v2545
        %2617 = vmatmul.bf16.gmra.mxu0 %v2408
        %v2618 = vpop.f32.mrf.mxu0
        %v2619 = vadd.f32 0.0, %v2618
        %v2620 = vpop.f32.mrf.mxu0
        %v2621 = vadd.f32 0.0, %v2620
        %2622 = vmatmul.bf16.gmra.mxu0 %v2410
        %v2623 = vpop.f32.mrf.mxu0
        %v2624 = vadd.f32 0.0, %v2623
        %v2625 = vpop.f32.mrf.mxu0
        %v2626 = vadd.f32 0.0, %v2625
        %2627 = vmatmul.bf16.gmra.mxu0 %v2412
        %v2628 = vpop.f32.mrf.mxu0
        %v2629 = vadd.f32 0.0, %v2628
        %v2630 = vpop.f32.mrf.mxu0
        %v2631 = vadd.f32 0.0, %v2630
        %2632 = vmatmul.bf16.gmra.mxu0 %v2414
        %v2633 = vpop.f32.mrf.mxu0
        %v2634 = vadd.f32 0.0, %v2633
        %v2635 = vpop.f32.mrf.mxu0
        %v2636 = vadd.f32 0.0, %v2635
        %2637 = vdwg.mxu0
        %2638 = vmatpush.bf16.msra.mxu0 %v2575
        %2639 = vmatpush.bf16.msra.mxu0 %v2573
        %2640 = vmatpush.bf16.msra.mxu0 %v2571
        %2641 = vmatpush.bf16.msra.mxu0 %v2569
        %2642 = vmatpush.bf16.msra.mxu0 %v2567
        %2643 = vmatpush.bf16.msra.mxu0 %v2565
        %2644 = vmatpush.bf16.msra.mxu0 %v2563
        %2645 = vmatpush.bf16.msra.mxu0 %v2561
        %2646 = vmatmul.bf16.gmra.mxu0 %v2409
        %v2647 = vpop.f32.mrf.mxu0
        %v2648 = vadd.f32 %v2619, %v2647
        %v2649 = vpop.f32.mrf.mxu0
        %v2650 = vadd.f32 %v2621, %v2649
        %2651 = vmatmul.bf16.gmra.mxu0 %v2411
        %v2652 = vpop.f32.mrf.mxu0
        %v2653 = vadd.f32 %v2624, %v2652
        %v2654 = vpop.f32.mrf.mxu0
        %v2655 = vadd.f32 %v2626, %v2654
        %2656 = vmatmul.bf16.gmra.mxu0 %v2413
        %v2657 = vpop.f32.mrf.mxu0
        %v2658 = vadd.f32 %v2629, %v2657
        %v2659 = vpop.f32.mrf.mxu0
        %v2660 = vadd.f32 %v2631, %v2659
        %2661 = vmatmul.bf16.gmra.mxu0 %v2415
        %v2662 = vpop.f32.mrf.mxu0
        %v2663 = vadd.f32 %v2634, %v2662
        %v2664 = vpop.f32.mrf.mxu0
        %v2665 = vadd.f32 %v2636, %v2664
        %2666 = vdwg.mxu0
        %2667 = vmatpush.bf16.msra.mxu0 %v2560
        %2668 = vmatpush.bf16.msra.mxu0 %v2558
        %2669 = vmatpush.bf16.msra.mxu0 %v2556
        %2670 = vmatpush.bf16.msra.mxu0 %v2554
        %2671 = vmatpush.bf16.msra.mxu0 %v2552
        %2672 = vmatpush.bf16.msra.mxu0 %v2550
        %2673 = vmatpush.bf16.msra.mxu0 %v2548
        %2674 = vmatpush.bf16.msra.mxu0 %v2546
        %2675 = vmatmul.bf16.gmra.mxu0 %v2408
        %v2676 = vpop.f32.mrf.mxu0
        %v2677 = vadd.f32 0.0, %v2676
        %v2678 = vpop.f32.mrf.mxu0
        %v2679 = vadd.f32 0.0, %v2678
        %2680 = vmatmul.bf16.gmra.mxu0 %v2410
        %v2681 = vpop.f32.mrf.mxu0
        %v2682 = vadd.f32 0.0, %v2681
        %v2683 = vpop.f32.mrf.mxu0
        %v2684 = vadd.f32 0.0, %v2683
        %2685 = vmatmul.bf16.gmra.mxu0 %v2412
        %v2686 = vpop.f32.mrf.mxu0
        %v2687 = vadd.f32 0.0, %v2686
        %v2688 = vpop.f32.mrf.mxu0
        %v2689 = vadd.f32 0.0, %v2688
        %2690 = vmatmul.bf16.gmra.mxu0 %v2414
        %v2691 = vpop.f32.mrf.mxu0
        %v2692 = vadd.f32 0.0, %v2691
        %v2693 = vpop.f32.mrf.mxu0
        %v2694 = vadd.f32 0.0, %v2693
        %2695 = vdwg.mxu0
        %2696 = vmatpush.bf16.msra.mxu0 %v2576
        %2697 = vmatpush.bf16.msra.mxu0 %v2574
        %2698 = vmatpush.bf16.msra.mxu0 %v2572
        %2699 = vmatpush.bf16.msra.mxu0 %v2570
        %2700 = vmatpush.bf16.msra.mxu0 %v2568
        %2701 = vmatpush.bf16.msra.mxu0 %v2566
        %2702 = vmatpush.bf16.msra.mxu0 %v2564
        %2703 = vmatpush.bf16.msra.mxu0 %v2562
        %2704 = vmatmul.bf16.gmra.mxu0 %v2409
        %v2705 = vpop.f32.mrf.mxu0
        %v2706 = vadd.f32 %v2677, %v2705
        %v2707 = vpop.f32.mrf.mxu0
        %v2708 = vadd.f32 %v2679, %v2707
        %2709 = vmatmul.bf16.gmra.mxu0 %v2411
        %v2710 = vpop.f32.mrf.mxu0
        %v2711 = vadd.f32 %v2682, %v2710
        %v2712 = vpop.f32.mrf.mxu0
        %v2713 = vadd.f32 %v2684, %v2712
        %2714 = vmatmul.bf16.gmra.mxu0 %v2413
        %v2715 = vpop.f32.mrf.mxu0
        %v2716 = vadd.f32 %v2687, %v2715
        %v2717 = vpop.f32.mrf.mxu0
        %v2718 = vadd.f32 %v2689, %v2717
        %2719 = vmatmul.bf16.gmra.mxu0 %v2415
        %v2720 = vpop.f32.mrf.mxu0
        %v2721 = vadd.f32 %v2692, %v2720
        %v2722 = vpop.f32.mrf.mxu0
        %v2723 = vadd.f32 %v2694, %v2722
        %2724 = vdwg.mxu0
        %v2725 = vadd.f32 %v2376, %v2648
        %v2726 = vadd.f32 %v2377, %v2706
        %v2727 = vadd.f32 %v2378, %v2650
        %v2728 = vadd.f32 %v2379, %v2708
        %v2729 = vadd.f32 %v2380, %v2653
        %v2730 = vadd.f32 %v2381, %v2711
        %v2731 = vadd.f32 %v2382, %v2655
        %v2732 = vadd.f32 %v2383, %v2713
        %v2733 = vadd.f32 %v2384, %v2658
        %v2734 = vadd.f32 %v2385, %v2716
        %v2735 = vadd.f32 %v2386, %v2660
        %v2736 = vadd.f32 %v2387, %v2718
        %v2737 = vadd.f32 %v2388, %v2663
        %v2738 = vadd.f32 %v2389, %v2721
        %v2739 = vadd.f32 %v2390, %v2665
        %v2740 = vadd.f32 %v2391, %v2723
        %v2741 = vld [vmem:[%s739] sm:$0xff]
        %v2742 = vld [vmem:[%s739 + $0x10] sm:$0xff]
        %v2743 = vld [vmem:[%s739 + $0x20] sm:$0xff]
        %v2744 = vld [vmem:[%s739 + $0x30] sm:$0xff]
        %v2745 = vld [vmem:[%s739 + $0x40] sm:$0xff]
        %v2746 = vld [vmem:[%s739 + $0x50] sm:$0xff]
        %v2747 = vld [vmem:[%s739 + $0x60] sm:$0xff]
        %v2748 = vld [vmem:[%s739 + $0x70] sm:$0xff]
        %v2749 = vpack.c.bf16 %v2742, %v2741
        %v2750 = vpack.c.bf16 %v2744, %v2743
        %v2751 = vpack.c.bf16 %v2746, %v2745
        %v2752 = vpack.c.bf16 %v2748, %v2747
        %s2753 = scalar_lea.vmem [#allocation5], 144
        %v2754 = vld [vmem:[%s2753] sm:$0xff]
        %v2755 = vld [vmem:[%s2753 + $0x8] sm:$0xff]
        %v2756 = vld [vmem:[%s2753 + $0x10] sm:$0xff]
        %v2757 = vld [vmem:[%s2753 + $0x18] sm:$0xff]
        %v2758 = vld [vmem:[%s2753 + $0x20] sm:$0xff]
        %v2759 = vld [vmem:[%s2753 + $0x28] sm:$0xff]
        %v2766 = vunpack.c.l.b16 %v2754
        %v2767 = vunpack.c.h.b16 %v2754
        %v2768 = vunpack.c.l.b16 %v2755
        %v2769 = vunpack.c.h.b16 %v2755
        %v2770 = vunpack.c.l.b16 %v2756
        %v2771 = vunpack.c.h.b16 %v2756
        %v2772 = vunpack.c.l.b16 %v2757
        %v2773 = vunpack.c.h.b16 %v2757
        %v2774 = vunpack.c.l.b16 %v2758
        %v2775 = vunpack.c.h.b16 %v2758
        %v2776 = vunpack.c.l.b16 %v2759
        %v2777 = vunpack.c.h.b16 %v2759
        %v2778 = vpack.c.b16 %v2768, %v2766
        %v2779 = vpack.c.b16 %v2769, %v2767
        %v2780 = vpack.c.b16 %v2772, %v2770
        %v2781 = vpack.c.b16 %v2773, %v2771
        %v2782 = vpack.c.b16 %v2776, %v2774
        %v2783 = vpack.c.b16 %v2777, %v2775
        %v2791 = vsel %vm717, %v2749, 0
        %v2794 = vsel %vm717, %v2750, 0
        %v2797 = vsel %vm717, %v2751, 0
        %v2800 = vsel %vm717, %v2752, 0
        %2802 = vmatpush.bf16.msra.mxu0 0
        %2803 = vmatpush.bf16.msra.mxu0 0
        %2804 = vmatpush.bf16.msra.mxu0 0
        %2805 = vmatpush.bf16.msra.mxu0 0
        %2806 = vmatpush.bf16.msra.mxu0 0
        %2807 = vmatpush.bf16.msra.mxu0 %v2782
        %2808 = vmatpush.bf16.msra.mxu0 %v2780
        %2809 = vmatpush.bf16.msra.mxu0 %v2778
        %2810 = vmatmul.bf16.gmra.mxu0 %v2791
        %v2811 = vpop.f32.mrf.mxu0
        %v2812 = vadd.f32 0.0, %v2811
        %v2813 = vpop.f32.mrf.mxu0
        %v2814 = vadd.f32 0.0, %v2813
        %2815 = vmatmul.bf16.gmra.mxu0 %v2794
        %v2816 = vpop.f32.mrf.mxu0
        %v2817 = vadd.f32 0.0, %v2816
        %v2818 = vpop.f32.mrf.mxu0
        %v2819 = vadd.f32 0.0, %v2818
        %2820 = vmatmul.bf16.gmra.mxu0 %v2797
        %v2821 = vpop.f32.mrf.mxu0
        %v2822 = vadd.f32 0.0, %v2821
        %v2823 = vpop.f32.mrf.mxu0
        %v2824 = vadd.f32 0.0, %v2823
        %2825 = vmatmul.bf16.gmra.mxu0 %v2800
        %v2826 = vpop.f32.mrf.mxu0
        %v2827 = vadd.f32 0.0, %v2826
        %v2828 = vpop.f32.mrf.mxu0
        %v2829 = vadd.f32 0.0, %v2828
        %2830 = vdwg.mxu0
        %2831 = vmatpush.bf16.msra.mxu0 0
        %2832 = vmatpush.bf16.msra.mxu0 0
        %2833 = vmatpush.bf16.msra.mxu0 0
        %2834 = vmatpush.bf16.msra.mxu0 0
        %2835 = vmatpush.bf16.msra.mxu0 0
        %2836 = vmatpush.bf16.msra.mxu0 %v2783
        %2837 = vmatpush.bf16.msra.mxu0 %v2781
        %2838 = vmatpush.bf16.msra.mxu0 %v2779
        %2839 = vmatmul.bf16.gmra.mxu0 %v2791
        %v2840 = vpop.f32.mrf.mxu0
        %v2841 = vadd.f32 0.0, %v2840
        %v2842 = vpop.f32.mrf.mxu0
        %v2843 = vadd.f32 0.0, %v2842
        %2844 = vmatmul.bf16.gmra.mxu0 %v2794
        %v2845 = vpop.f32.mrf.mxu0
        %v2846 = vadd.f32 0.0, %v2845
        %v2847 = vpop.f32.mrf.mxu0
        %v2848 = vadd.f32 0.0, %v2847
        %2849 = vmatmul.bf16.gmra.mxu0 %v2797
        %v2850 = vpop.f32.mrf.mxu0
        %v2851 = vadd.f32 0.0, %v2850
        %v2852 = vpop.f32.mrf.mxu0
        %v2853 = vadd.f32 0.0, %v2852
        %2854 = vmatmul.bf16.gmra.mxu0 %v2800
        %v2855 = vpop.f32.mrf.mxu0
        %v2856 = vadd.f32 0.0, %v2855
        %v2857 = vpop.f32.mrf.mxu0
        %v2858 = vadd.f32 0.0, %v2857
        %2859 = vdwg.mxu0
        %v2860 = vadd.f32 %v2725, %v2812
        %v2861 = vadd.f32 %v2726, %v2841
        %v2862 = vadd.f32 %v2727, %v2814
        %v2863 = vadd.f32 %v2728, %v2843
        %v2864 = vadd.f32 %v2729, %v2817
        %v2865 = vadd.f32 %v2730, %v2846
        %v2866 = vadd.f32 %v2731, %v2819
        %v2867 = vadd.f32 %v2732, %v2848
        %v2868 = vadd.f32 %v2733, %v2822
        %v2869 = vadd.f32 %v2734, %v2851
        %v2870 = vadd.f32 %v2735, %v2824
        %v2871 = vadd.f32 %v2736, %v2853
        %v2872 = vadd.f32 %v2737, %v2827
        %v2873 = vadd.f32 %v2738, %v2856
        %v2874 = vadd.f32 %v2739, %v2829
        %v2875 = vadd.f32 %v2740, %v2858
        %v2876 = vld [vmem:[%s597] sm:$0xfe]
        %v2877 = vld [vmem:[%s597 + $0x8] sm:$0xfe]
        %v2878 = vld [vmem:[%s597 + $0x10] sm:$0x1]
        %v2879 = vld [vmem:[%s597 + $0x18] sm:$0x1]
        %v2880 = vld [vmem:[%s597 + $0x20] sm:$0xfe]
        %v2881 = vld [vmem:[%s597 + $0x28] sm:$0xfe]
        %v2882 = vld [vmem:[%s597 + $0x30] sm:$0x1]
        %v2883 = vld [vmem:[%s597 + $0x38] sm:$0x1]
        %v2884 = vld [vmem:[%s597 + $0x40] sm:$0xfe]
        %v2885 = vld [vmem:[%s597 + $0x48] sm:$0xfe]
        %v2886 = vld [vmem:[%s597 + $0x50] sm:$0x1]
        %v2887 = vld [vmem:[%s597 + $0x58] sm:$0x1]
        %v2888 = vld [vmem:[%s597 + $0x60] sm:$0xfe]
        %v2889 = vld [vmem:[%s597 + $0x68] sm:$0xfe]
        %v2890 = vld [vmem:[%s597 + $0x70] sm:$0x1]
        %v2891 = vld [vmem:[%s597 + $0x78] sm:$0x1]
        %v2892 = vld [vmem:[%s597 + $0x80] sm:$0xfe]
        %v2893 = vld [vmem:[%s597 + $0x88] sm:$0xfe]
        %v2894 = vld [vmem:[%s597 + $0x90] sm:$0x1]
        %v2895 = vld [vmem:[%s597 + $0x98] sm:$0x1]
        %v2896 = vld [vmem:[%s597 + $0xa0] sm:$0xfe]
        %v2897 = vld [vmem:[%s597 + $0xa8] sm:$0xfe]
        %v2898 = vld [vmem:[%s597 + $0xb0] sm:$0x1]
        %v2899 = vld [vmem:[%s597 + $0xb8] sm:$0x1]
        %v2900 = vld [vmem:[%s597 + $0xc0] sm:$0xfe]
        %v2901 = vld [vmem:[%s597 + $0xc8] sm:$0xfe]
        %v2902 = vld [vmem:[%s597 + $0xd0] sm:$0x1]
        %v2903 = vld [vmem:[%s597 + $0xd8] sm:$0x1]
        %v2904 = vld [vmem:[%s597 + $0xe0] sm:$0xfe]
        %v2905 = vld [vmem:[%s597 + $0xe8] sm:$0xfe]
        %v2906 = vld [vmem:[%s597 + $0xf0] sm:$0x1]
        %v2907 = vld [vmem:[%s597 + $0xf8] sm:$0x1]
        %v2940 = vrot.slane %v2876, 1
        %v2941 = vrot.slane %v2878, 1
        %v2942 = vsel %vm1262, %v2940, %v2941
        %v2943 = vrot.slane %v2877, 1
        %v2944 = vrot.slane %v2879, 1
        %v2945 = vsel %vm1262, %v2943, %v2944
        %v2946 = vrot.slane %v2880, 1
        %v2947 = vrot.slane %v2882, 1
        %v2948 = vsel %vm1262, %v2946, %v2947
        %v2949 = vrot.slane %v2881, 1
        %v2950 = vrot.slane %v2883, 1
        %v2951 = vsel %vm1262, %v2949, %v2950
        %v2952 = vrot.slane %v2884, 1
        %v2953 = vrot.slane %v2886, 1
        %v2954 = vsel %vm1262, %v2952, %v2953
        %v2955 = vrot.slane %v2885, 1
        %v2956 = vrot.slane %v2887, 1
        %v2957 = vsel %vm1262, %v2955, %v2956
        %v2958 = vrot.slane %v2888, 1
        %v2959 = vrot.slane %v2890, 1
        %v2960 = vsel %vm1262, %v2958, %v2959
        %v2961 = vrot.slane %v2889, 1
        %v2962 = vrot.slane %v2891, 1
        %v2963 = vsel %vm1262, %v2961, %v2962
        %v2964 = vrot.slane %v2892, 1
        %v2965 = vrot.slane %v2894, 1
        %v2966 = vsel %vm1262, %v2964, %v2965
        %v2967 = vrot.slane %v2893, 1
        %v2968 = vrot.slane %v2895, 1
        %v2969 = vsel %vm1262, %v2967, %v2968
        %v2970 = vrot.slane %v2896, 1
        %v2971 = vrot.slane %v2898, 1
        %v2972 = vsel %vm1262, %v2970, %v2971
        %v2973 = vrot.slane %v2897, 1
        %v2974 = vrot.slane %v2899, 1
        %v2975 = vsel %vm1262, %v2973, %v2974
        %v2976 = vrot.slane %v2900, 1
        %v2977 = vrot.slane %v2902, 1
        %v2978 = vsel %vm1262, %v2976, %v2977
        %v2979 = vrot.slane %v2901, 1
        %v2980 = vrot.slane %v2903, 1
        %v2981 = vsel %vm1262, %v2979, %v2980
        %v2982 = vrot.slane %v2904, 1
        %v2983 = vrot.slane %v2906, 1
        %v2984 = vsel %vm1262, %v2982, %v2983
        %v2985 = vrot.slane %v2905, 1
        %v2986 = vrot.slane %v2907, 1
        %v2987 = vsel %vm1262, %v2985, %v2986
        %v3004 = vpack.c.bf16 %v2948, %v2942
        %v3005 = vpack.c.bf16 %v2951, %v2945
        %v3006 = vpack.c.bf16 %v2960, %v2954
        %v3007 = vpack.c.bf16 %v2963, %v2957
        %v3008 = vpack.c.bf16 %v2972, %v2966
        %v3009 = vpack.c.bf16 %v2975, %v2969
        %v3010 = vpack.c.bf16 %v2984, %v2978
        %v3011 = vpack.c.bf16 %v2987, %v2981
        %s3012 = scalar_lea.vmem %s5, 1024
        %v3013 = vld [vmem:[%s3012] sm:$0xff]
        %v3014 = vld [vmem:[%s3012 + $0x8] sm:$0xff]
        %v3015 = vld [vmem:[%s3012 + $0x10] sm:$0xff]
        %v3016 = vld [vmem:[%s3012 + $0x18] sm:$0xff]
        %v3017 = vld [vmem:[%s3012 + $0x20] sm:$0xff]
        %v3018 = vld [vmem:[%s3012 + $0x28] sm:$0xff]
        %v3019 = vld [vmem:[%s3012 + $0x30] sm:$0xff]
        %v3020 = vld [vmem:[%s3012 + $0x38] sm:$0xff]
        %v3021 = vld [vmem:[%s3012 + $0x40] sm:$0xff]
        %v3022 = vld [vmem:[%s3012 + $0x48] sm:$0xff]
        %v3023 = vld [vmem:[%s3012 + $0x50] sm:$0xff]
        %v3024 = vld [vmem:[%s3012 + $0x58] sm:$0xff]
        %v3025 = vld [vmem:[%s3012 + $0x60] sm:$0xff]
        %v3026 = vld [vmem:[%s3012 + $0x68] sm:$0xff]
        %v3027 = vld [vmem:[%s3012 + $0x70] sm:$0xff]
        %v3028 = vld [vmem:[%s3012 + $0x78] sm:$0xff]
        %v3029 = vld [vmem:[%s3012 + $0x80] sm:$0xff]
        %v3030 = vld [vmem:[%s3012 + $0x88] sm:$0xff]
        %v3031 = vld [vmem:[%s3012 + $0x90] sm:$0xff]
        %v3032 = vld [vmem:[%s3012 + $0x98] sm:$0xff]
        %v3033 = vld [vmem:[%s3012 + $0xa0] sm:$0xff]
        %v3034 = vld [vmem:[%s3012 + $0xa8] sm:$0xff]
        %v3035 = vld [vmem:[%s3012 + $0xb0] sm:$0xff]
        %v3036 = vld [vmem:[%s3012 + $0xb8] sm:$0xff]
        %v3037 = vld [vmem:[%s3012 + $0xc0] sm:$0xff]
        %v3038 = vld [vmem:[%s3012 + $0xc8] sm:$0xff]
        %v3039 = vld [vmem:[%s3012 + $0xd0] sm:$0xff]
        %v3040 = vld [vmem:[%s3012 + $0xd8] sm:$0xff]
        %v3041 = vld [vmem:[%s3012 + $0xe0] sm:$0xff]
        %v3042 = vld [vmem:[%s3012 + $0xe8] sm:$0xff]
        %v3043 = vld [vmem:[%s3012 + $0xf0] sm:$0xff]
        %v3044 = vld [vmem:[%s3012 + $0xf8] sm:$0xff]
        %v3077 = vunpack.c.l.b16 %v3013
        %v3078 = vunpack.c.h.b16 %v3013
        %v3079 = vunpack.c.l.b16 %v3014
        %v3080 = vunpack.c.h.b16 %v3014
        %v3081 = vunpack.c.l.b16 %v3015
        %v3082 = vunpack.c.h.b16 %v3015
        %v3083 = vunpack.c.l.b16 %v3016
        %v3084 = vunpack.c.h.b16 %v3016
        %v3085 = vunpack.c.l.b16 %v3017
        %v3086 = vunpack.c.h.b16 %v3017
        %v3087 = vunpack.c.l.b16 %v3018
        %v3088 = vunpack.c.h.b16 %v3018
        %v3089 = vunpack.c.l.b16 %v3019
        %v3090 = vunpack.c.h.b16 %v3019
        %v3091 = vunpack.c.l.b16 %v3020
        %v3092 = vunpack.c.h.b16 %v3020
        %v3093 = vunpack.c.l.b16 %v3021
        %v3094 = vunpack.c.h.b16 %v3021
        %v3095 = vunpack.c.l.b16 %v3022
        %v3096 = vunpack.c.h.b16 %v3022
        %v3097 = vunpack.c.l.b16 %v3023
        %v3098 = vunpack.c.h.b16 %v3023
        %v3099 = vunpack.c.l.b16 %v3024
        %v3100 = vunpack.c.h.b16 %v3024
        %v3101 = vunpack.c.l.b16 %v3025
        %v3102 = vunpack.c.h.b16 %v3025
        %v3103 = vunpack.c.l.b16 %v3026
        %v3104 = vunpack.c.h.b16 %v3026
        %v3105 = vunpack.c.l.b16 %v3027
        %v3106 = vunpack.c.h.b16 %v3027
        %v3107 = vunpack.c.l.b16 %v3028
        %v3108 = vunpack.c.h.b16 %v3028
        %v3109 = vunpack.c.l.b16 %v3029
        %v3110 = vunpack.c.h.b16 %v3029
        %v3111 = vunpack.c.l.b16 %v3030
        %v3112 = vunpack.c.h.b16 %v3030
        %v3113 = vunpack.c.l.b16 %v3031
        %v3114 = vunpack.c.h.b16 %v3031
        %v3115 = vunpack.c.l.b16 %v3032
        %v3116 = vunpack.c.h.b16 %v3032
        %v3117 = vunpack.c.l.b16 %v3033
        %v3118 = vunpack.c.h.b16 %v3033
        %v3119 = vunpack.c.l.b16 %v3034
        %v3120 = vunpack.c.h.b16 %v3034
        %v3121 = vunpack.c.l.b16 %v3035
        %v3122 = vunpack.c.h.b16 %v3035
        %v3123 = vunpack.c.l.b16 %v3036
        %v3124 = vunpack.c.h.b16 %v3036
        %v3125 = vunpack.c.l.b16 %v3037
        %v3126 = vunpack.c.h.b16 %v3037
        %v3127 = vunpack.c.l.b16 %v3038
        %v3128 = vunpack.c.h.b16 %v3038
        %v3129 = vunpack.c.l.b16 %v3039
        %v3130 = vunpack.c.h.b16 %v3039
        %v3131 = vunpack.c.l.b16 %v3040
        %v3132 = vunpack.c.h.b16 %v3040
        %v3133 = vunpack.c.l.b16 %v3041
        %v3134 = vunpack.c.h.b16 %v3041
        %v3135 = vunpack.c.l.b16 %v3042
        %v3136 = vunpack.c.h.b16 %v3042
        %v3137 = vunpack.c.l.b16 %v3043
        %v3138 = vunpack.c.h.b16 %v3043
        %v3139 = vunpack.c.l.b16 %v3044
        %v3140 = vunpack.c.h.b16 %v3044
        %v3141 = vpack.c.b16 %v3079, %v3077
        %v3142 = vpack.c.b16 %v3080, %v3078
        %v3143 = vpack.c.b16 %v3083, %v3081
        %v3144 = vpack.c.b16 %v3084, %v3082
        %v3145 = vpack.c.b16 %v3087, %v3085
        %v3146 = vpack.c.b16 %v3088, %v3086
        %v3147 = vpack.c.b16 %v3091, %v3089
        %v3148 = vpack.c.b16 %v3092, %v3090
        %v3149 = vpack.c.b16 %v3095, %v3093
        %v3150 = vpack.c.b16 %v3096, %v3094
        %v3151 = vpack.c.b16 %v3099, %v3097
        %v3152 = vpack.c.b16 %v3100, %v3098
        %v3153 = vpack.c.b16 %v3103, %v3101
        %v3154 = vpack.c.b16 %v3104, %v3102
        %v3155 = vpack.c.b16 %v3107, %v3105
        %v3156 = vpack.c.b16 %v3108, %v3106
        %v3157 = vpack.c.b16 %v3111, %v3109
        %v3158 = vpack.c.b16 %v3112, %v3110
        %v3159 = vpack.c.b16 %v3115, %v3113
        %v3160 = vpack.c.b16 %v3116, %v3114
        %v3161 = vpack.c.b16 %v3119, %v3117
        %v3162 = vpack.c.b16 %v3120, %v3118
        %v3163 = vpack.c.b16 %v3123, %v3121
        %v3164 = vpack.c.b16 %v3124, %v3122
        %v3165 = vpack.c.b16 %v3127, %v3125
        %v3166 = vpack.c.b16 %v3128, %v3126
        %v3167 = vpack.c.b16 %v3131, %v3129
        %v3168 = vpack.c.b16 %v3132, %v3130
        %v3169 = vpack.c.b16 %v3135, %v3133
        %v3170 = vpack.c.b16 %v3136, %v3134
        %v3171 = vpack.c.b16 %v3139, %v3137
        %v3172 = vpack.c.b16 %v3140, %v3138
        %3205 = vmatpush.bf16.msra.mxu0 %v3155
        %3206 = vmatpush.bf16.msra.mxu0 %v3153
        %3207 = vmatpush.bf16.msra.mxu0 %v3151
        %3208 = vmatpush.bf16.msra.mxu0 %v3149
        %3209 = vmatpush.bf16.msra.mxu0 %v3147
        %3210 = vmatpush.bf16.msra.mxu0 %v3145
        %3211 = vmatpush.bf16.msra.mxu0 %v3143
        %3212 = vmatpush.bf16.msra.mxu0 %v3141
        %3213 = vmatmul.bf16.gmra.mxu0 %v3004
        %v3214 = vpop.f32.mrf.mxu0
        %v3215 = vadd.f32 0.0, %v3214
        %v3216 = vpop.f32.mrf.mxu0
        %v3217 = vadd.f32 0.0, %v3216
        %3218 = vmatmul.bf16.gmra.mxu0 %v3006
        %v3219 = vpop.f32.mrf.mxu0
        %v3220 = vadd.f32 0.0, %v3219
        %v3221 = vpop.f32.mrf.mxu0
        %v3222 = vadd.f32 0.0, %v3221
        %3223 = vmatmul.bf16.gmra.mxu0 %v3008
        %v3224 = vpop.f32.mrf.mxu0
        %v3225 = vadd.f32 0.0, %v3224
        %v3226 = vpop.f32.mrf.mxu0
        %v3227 = vadd.f32 0.0, %v3226
        %3228 = vmatmul.bf16.gmra.mxu0 %v3010
        %v3229 = vpop.f32.mrf.mxu0
        %v3230 = vadd.f32 0.0, %v3229
        %v3231 = vpop.f32.mrf.mxu0
        %v3232 = vadd.f32 0.0, %v3231
        %3233 = vdwg.mxu0
        %3234 = vmatpush.bf16.msra.mxu0 %v3171
        %3235 = vmatpush.bf16.msra.mxu0 %v3169
        %3236 = vmatpush.bf16.msra.mxu0 %v3167
        %3237 = vmatpush.bf16.msra.mxu0 %v3165
        %3238 = vmatpush.bf16.msra.mxu0 %v3163
        %3239 = vmatpush.bf16.msra.mxu0 %v3161
        %3240 = vmatpush.bf16.msra.mxu0 %v3159
        %3241 = vmatpush.bf16.msra.mxu0 %v3157
        %3242 = vmatmul.bf16.gmra.mxu0 %v3005
        %v3243 = vpop.f32.mrf.mxu0
        %v3244 = vadd.f32 %v3215, %v3243
        %v3245 = vpop.f32.mrf.mxu0
        %v3246 = vadd.f32 %v3217, %v3245
        %3247 = vmatmul.bf16.gmra.mxu0 %v3007
        %v3248 = vpop.f32.mrf.mxu0
        %v3249 = vadd.f32 %v3220, %v3248
        %v3250 = vpop.f32.mrf.mxu0
        %v3251 = vadd.f32 %v3222, %v3250
        %3252 = vmatmul.bf16.gmra.mxu0 %v3009
        %v3253 = vpop.f32.mrf.mxu0
        %v3254 = vadd.f32 %v3225, %v3253
        %v3255 = vpop.f32.mrf.mxu0
        %v3256 = vadd.f32 %v3227, %v3255
        %3257 = vmatmul.bf16.gmra.mxu0 %v3011
        %v3258 = vpop.f32.mrf.mxu0
        %v3259 = vadd.f32 %v3230, %v3258
        %v3260 = vpop.f32.mrf.mxu0
        %v3261 = vadd.f32 %v3232, %v3260
        %3262 = vdwg.mxu0
        %3263 = vmatpush.bf16.msra.mxu0 %v3156
        %3264 = vmatpush.bf16.msra.mxu0 %v3154
        %3265 = vmatpush.bf16.msra.mxu0 %v3152
        %3266 = vmatpush.bf16.msra.mxu0 %v3150
        %3267 = vmatpush.bf16.msra.mxu0 %v3148
        %3268 = vmatpush.bf16.msra.mxu0 %v3146
        %3269 = vmatpush.bf16.msra.mxu0 %v3144
        %3270 = vmatpush.bf16.msra.mxu0 %v3142
        %3271 = vmatmul.bf16.gmra.mxu0 %v3004
        %v3272 = vpop.f32.mrf.mxu0
        %v3273 = vadd.f32 0.0, %v3272
        %v3274 = vpop.f32.mrf.mxu0
        %v3275 = vadd.f32 0.0, %v3274
        %3276 = vmatmul.bf16.gmra.mxu0 %v3006
        %v3277 = vpop.f32.mrf.mxu0
        %v3278 = vadd.f32 0.0, %v3277
        %v3279 = vpop.f32.mrf.mxu0
        %v3280 = vadd.f32 0.0, %v3279
        %3281 = vmatmul.bf16.gmra.mxu0 %v3008
        %v3282 = vpop.f32.mrf.mxu0
        %v3283 = vadd.f32 0.0, %v3282
        %v3284 = vpop.f32.mrf.mxu0
        %v3285 = vadd.f32 0.0, %v3284
        %3286 = vmatmul.bf16.gmra.mxu0 %v3010
        %v3287 = vpop.f32.mrf.mxu0
        %v3288 = vadd.f32 0.0, %v3287
        %v3289 = vpop.f32.mrf.mxu0
        %v3290 = vadd.f32 0.0, %v3289
        %3291 = vdwg.mxu0
        %3292 = vmatpush.bf16.msra.mxu0 %v3172
        %3293 = vmatpush.bf16.msra.mxu0 %v3170
        %3294 = vmatpush.bf16.msra.mxu0 %v3168
        %3295 = vmatpush.bf16.msra.mxu0 %v3166
        %3296 = vmatpush.bf16.msra.mxu0 %v3164
        %3297 = vmatpush.bf16.msra.mxu0 %v3162
        %3298 = vmatpush.bf16.msra.mxu0 %v3160
        %3299 = vmatpush.bf16.msra.mxu0 %v3158
        %3300 = vmatmul.bf16.gmra.mxu0 %v3005
        %v3301 = vpop.f32.mrf.mxu0
        %v3302 = vadd.f32 %v3273, %v3301
        %v3303 = vpop.f32.mrf.mxu0
        %v3304 = vadd.f32 %v3275, %v3303
        %3305 = vmatmul.bf16.gmra.mxu0 %v3007
        %v3306 = vpop.f32.mrf.mxu0
        %v3307 = vadd.f32 %v3278, %v3306
        %v3308 = vpop.f32.mrf.mxu0
        %v3309 = vadd.f32 %v3280, %v3308
        %3310 = vmatmul.bf16.gmra.mxu0 %v3009
        %v3311 = vpop.f32.mrf.mxu0
        %v3312 = vadd.f32 %v3283, %v3311
        %v3313 = vpop.f32.mrf.mxu0
        %v3314 = vadd.f32 %v3285, %v3313
        %3315 = vmatmul.bf16.gmra.mxu0 %v3011
        %v3316 = vpop.f32.mrf.mxu0
        %v3317 = vadd.f32 %v3288, %v3316
        %v3318 = vpop.f32.mrf.mxu0
        %v3319 = vadd.f32 %v3290, %v3318
        %3320 = vdwg.mxu0
        %v3321 = vadd.f32 %v2860, %v3244
        %v3322 = vadd.f32 %v2861, %v3302
        %v3323 = vadd.f32 %v2862, %v3246
        %v3324 = vadd.f32 %v2863, %v3304
        %v3325 = vadd.f32 %v2864, %v3249
        %v3326 = vadd.f32 %v2865, %v3307
        %v3327 = vadd.f32 %v2866, %v3251
        %v3328 = vadd.f32 %v2867, %v3309
        %v3329 = vadd.f32 %v2868, %v3254
        %v3330 = vadd.f32 %v2869, %v3312
        %v3331 = vadd.f32 %v2870, %v3256
        %v3332 = vadd.f32 %v2871, %v3314
        %v3333 = vadd.f32 %v2872, %v3259
        %v3334 = vadd.f32 %v2873, %v3317
        %v3335 = vadd.f32 %v2874, %v3261
        %v3336 = vadd.f32 %v2875, %v3319
        %v3337 = vld [vmem:[%s739 + $0x1] sm:$0xff]
        %v3338 = vld [vmem:[%s739 + $0x11] sm:$0xff]
        %v3339 = vld [vmem:[%s739 + $0x21] sm:$0xff]
        %v3340 = vld [vmem:[%s739 + $0x31] sm:$0xff]
        %v3341 = vld [vmem:[%s739 + $0x41] sm:$0xff]
        %v3342 = vld [vmem:[%s739 + $0x51] sm:$0xff]
        %v3343 = vld [vmem:[%s739 + $0x61] sm:$0xff]
        %v3344 = vld [vmem:[%s739 + $0x71] sm:$0xff]
        %v3345 = vpack.c.bf16 %v3338, %v3337
        %v3346 = vpack.c.bf16 %v3340, %v3339
        %v3347 = vpack.c.bf16 %v3342, %v3341
        %v3348 = vpack.c.bf16 %v3344, %v3343
        %s3349 = scalar_lea.vmem [#allocation5], 192
        %v3350 = vld [vmem:[%s3349] sm:$0xff]
        %v3351 = vld [vmem:[%s3349 + $0x8] sm:$0xff]
        %v3352 = vld [vmem:[%s3349 + $0x10] sm:$0xff]
        %v3353 = vld [vmem:[%s3349 + $0x18] sm:$0xff]
        %v3354 = vld [vmem:[%s3349 + $0x20] sm:$0xff]
        %v3355 = vld [vmem:[%s3349 + $0x28] sm:$0xff]
        %v3362 = vunpack.c.l.b16 %v3350
        %v3363 = vunpack.c.h.b16 %v3350
        %v3364 = vunpack.c.l.b16 %v3351
        %v3365 = vunpack.c.h.b16 %v3351
        %v3366 = vunpack.c.l.b16 %v3352
        %v3367 = vunpack.c.h.b16 %v3352
        %v3368 = vunpack.c.l.b16 %v3353
        %v3369 = vunpack.c.h.b16 %v3353
        %v3370 = vunpack.c.l.b16 %v3354
        %v3371 = vunpack.c.h.b16 %v3354
        %v3372 = vunpack.c.l.b16 %v3355
        %v3373 = vunpack.c.h.b16 %v3355
        %v3374 = vpack.c.b16 %v3364, %v3362
        %v3375 = vpack.c.b16 %v3365, %v3363
        %v3376 = vpack.c.b16 %v3368, %v3366
        %v3377 = vpack.c.b16 %v3369, %v3367
        %v3378 = vpack.c.b16 %v3372, %v3370
        %v3379 = vpack.c.b16 %v3373, %v3371
        %v3387 = vsel %vm717, %v3345, 0
        %v3390 = vsel %vm717, %v3346, 0
        %v3393 = vsel %vm717, %v3347, 0
        %v3396 = vsel %vm717, %v3348, 0
        %3398 = vmatpush.bf16.msra.mxu0 0
        %3399 = vmatpush.bf16.msra.mxu0 0
        %3400 = vmatpush.bf16.msra.mxu0 0
        %3401 = vmatpush.bf16.msra.mxu0 0
        %3402 = vmatpush.bf16.msra.mxu0 0
        %3403 = vmatpush.bf16.msra.mxu0 %v3378
        %3404 = vmatpush.bf16.msra.mxu0 %v3376
        %3405 = vmatpush.bf16.msra.mxu0 %v3374
        %3406 = vmatmul.bf16.gmra.mxu0 %v3387
        %v3407 = vpop.f32.mrf.mxu0
        %v3408 = vadd.f32 0.0, %v3407
        %v3409 = vpop.f32.mrf.mxu0
        %v3410 = vadd.f32 0.0, %v3409
        %3411 = vmatmul.bf16.gmra.mxu0 %v3390
        %v3412 = vpop.f32.mrf.mxu0
        %v3413 = vadd.f32 0.0, %v3412
        %v3414 = vpop.f32.mrf.mxu0
        %v3415 = vadd.f32 0.0, %v3414
        %3416 = vmatmul.bf16.gmra.mxu0 %v3393
        %v3417 = vpop.f32.mrf.mxu0
        %v3418 = vadd.f32 0.0, %v3417
        %v3419 = vpop.f32.mrf.mxu0
        %v3420 = vadd.f32 0.0, %v3419
        %3421 = vmatmul.bf16.gmra.mxu0 %v3396
        %v3422 = vpop.f32.mrf.mxu0
        %v3423 = vadd.f32 0.0, %v3422
        %v3424 = vpop.f32.mrf.mxu0
        %v3425 = vadd.f32 0.0, %v3424
        %3426 = vdwg.mxu0
        %3427 = vmatpush.bf16.msra.mxu0 0
        %3428 = vmatpush.bf16.msra.mxu0 0
        %3429 = vmatpush.bf16.msra.mxu0 0
        %3430 = vmatpush.bf16.msra.mxu0 0
        %3431 = vmatpush.bf16.msra.mxu0 0
        %3432 = vmatpush.bf16.msra.mxu0 %v3379
        %3433 = vmatpush.bf16.msra.mxu0 %v3377
        %3434 = vmatpush.bf16.msra.mxu0 %v3375
        %3435 = vmatmul.bf16.gmra.mxu0 %v3387
        %v3436 = vpop.f32.mrf.mxu0
        %v3437 = vadd.f32 0.0, %v3436
        %v3438 = vpop.f32.mrf.mxu0
        %v3439 = vadd.f32 0.0, %v3438
        %3440 = vmatmul.bf16.gmra.mxu0 %v3390
        %v3441 = vpop.f32.mrf.mxu0
        %v3442 = vadd.f32 0.0, %v3441
        %v3443 = vpop.f32.mrf.mxu0
        %v3444 = vadd.f32 0.0, %v3443
        %3445 = vmatmul.bf16.gmra.mxu0 %v3393
        %v3446 = vpop.f32.mrf.mxu0
        %v3447 = vadd.f32 0.0, %v3446
        %v3448 = vpop.f32.mrf.mxu0
        %v3449 = vadd.f32 0.0, %v3448
        %3450 = vmatmul.bf16.gmra.mxu0 %v3396
        %v3451 = vpop.f32.mrf.mxu0
        %v3452 = vadd.f32 0.0, %v3451
        %v3453 = vpop.f32.mrf.mxu0
        %v3454 = vadd.f32 0.0, %v3453
        %3455 = vdwg.mxu0
        %v3456 = vadd.f32 %v3321, %v3408
        %v3457 = vadd.f32 %v3322, %v3437
        %v3458 = vadd.f32 %v3323, %v3410
        %v3459 = vadd.f32 %v3324, %v3439
        %v3460 = vadd.f32 %v3325, %v3413
        %v3461 = vadd.f32 %v3326, %v3442
        %v3462 = vadd.f32 %v3327, %v3415
        %v3463 = vadd.f32 %v3328, %v3444
        %v3464 = vadd.f32 %v3329, %v3418
        %v3465 = vadd.f32 %v3330, %v3447
        %v3466 = vadd.f32 %v3331, %v3420
        %v3467 = vadd.f32 %v3332, %v3449
        %v3468 = vadd.f32 %v3333, %v3423
        %v3469 = vadd.f32 %v3334, %v3452
        %v3470 = vadd.f32 %v3335, %v3425
        %v3471 = vadd.f32 %v3336, %v3454
        %v3472 = vld [vmem:[%s597] sm:$0xfc]
        %v3473 = vld [vmem:[%s597 + $0x8] sm:$0xfc]
        %v3474 = vld [vmem:[%s597 + $0x10] sm:$0x3]
        %v3475 = vld [vmem:[%s597 + $0x18] sm:$0x3]
        %v3476 = vld [vmem:[%s597 + $0x20] sm:$0xfc]
        %v3477 = vld [vmem:[%s597 + $0x28] sm:$0xfc]
        %v3478 = vld [vmem:[%s597 + $0x30] sm:$0x3]
        %v3479 = vld [vmem:[%s597 + $0x38] sm:$0x3]
        %v3480 = vld [vmem:[%s597 + $0x40] sm:$0xfc]
        %v3481 = vld [vmem:[%s597 + $0x48] sm:$0xfc]
        %v3482 = vld [vmem:[%s597 + $0x50] sm:$0x3]
        %v3483 = vld [vmem:[%s597 + $0x58] sm:$0x3]
        %v3484 = vld [vmem:[%s597 + $0x60] sm:$0xfc]
        %v3485 = vld [vmem:[%s597 + $0x68] sm:$0xfc]
        %v3486 = vld [vmem:[%s597 + $0x70] sm:$0x3]
        %v3487 = vld [vmem:[%s597 + $0x78] sm:$0x3]
        %v3488 = vld [vmem:[%s597 + $0x80] sm:$0xfc]
        %v3489 = vld [vmem:[%s597 + $0x88] sm:$0xfc]
        %v3490 = vld [vmem:[%s597 + $0x90] sm:$0x3]
        %v3491 = vld [vmem:[%s597 + $0x98] sm:$0x3]
        %v3492 = vld [vmem:[%s597 + $0xa0] sm:$0xfc]
        %v3493 = vld [vmem:[%s597 + $0xa8] sm:$0xfc]
        %v3494 = vld [vmem:[%s597 + $0xb0] sm:$0x3]
        %v3495 = vld [vmem:[%s597 + $0xb8] sm:$0x3]
        %v3496 = vld [vmem:[%s597 + $0xc0] sm:$0xfc]
        %v3497 = vld [vmem:[%s597 + $0xc8] sm:$0xfc]
        %v3498 = vld [vmem:[%s597 + $0xd0] sm:$0x3]
        %v3499 = vld [vmem:[%s597 + $0xd8] sm:$0x3]
        %v3500 = vld [vmem:[%s597 + $0xe0] sm:$0xfc]
        %v3501 = vld [vmem:[%s597 + $0xe8] sm:$0xfc]
        %v3502 = vld [vmem:[%s597 + $0xf0] sm:$0x3]
        %v3503 = vld [vmem:[%s597 + $0xf8] sm:$0x3]
        %v3536 = vrot.slane %v3472, 2
        %v3537 = vrot.slane %v3474, 2
        %v3538 = vsel %vm1859, %v3536, %v3537
        %v3539 = vrot.slane %v3473, 2
        %v3540 = vrot.slane %v3475, 2
        %v3541 = vsel %vm1859, %v3539, %v3540
        %v3542 = vrot.slane %v3476, 2
        %v3543 = vrot.slane %v3478, 2
        %v3544 = vsel %vm1859, %v3542, %v3543
        %v3545 = vrot.slane %v3477, 2
        %v3546 = vrot.slane %v3479, 2
        %v3547 = vsel %vm1859, %v3545, %v3546
        %v3548 = vrot.slane %v3480, 2
        %v3549 = vrot.slane %v3482, 2
        %v3550 = vsel %vm1859, %v3548, %v3549
        %v3551 = vrot.slane %v3481, 2
        %v3552 = vrot.slane %v3483, 2
        %v3553 = vsel %vm1859, %v3551, %v3552
        %v3554 = vrot.slane %v3484, 2
        %v3555 = vrot.slane %v3486, 2
        %v3556 = vsel %vm1859, %v3554, %v3555
        %v3557 = vrot.slane %v3485, 2
        %v3558 = vrot.slane %v3487, 2
        %v3559 = vsel %vm1859, %v3557, %v3558
        %v3560 = vrot.slane %v3488, 2
        %v3561 = vrot.slane %v3490, 2
        %v3562 = vsel %vm1859, %v3560, %v3561
        %v3563 = vrot.slane %v3489, 2
        %v3564 = vrot.slane %v3491, 2
        %v3565 = vsel %vm1859, %v3563, %v3564
        %v3566 = vrot.slane %v3492, 2
        %v3567 = vrot.slane %v3494, 2
        %v3568 = vsel %vm1859, %v3566, %v3567
        %v3569 = vrot.slane %v3493, 2
        %v3570 = vrot.slane %v3495, 2
        %v3571 = vsel %vm1859, %v3569, %v3570
        %v3572 = vrot.slane %v3496, 2
        %v3573 = vrot.slane %v3498, 2
        %v3574 = vsel %vm1859, %v3572, %v3573
        %v3575 = vrot.slane %v3497, 2
        %v3576 = vrot.slane %v3499, 2
        %v3577 = vsel %vm1859, %v3575, %v3576
        %v3578 = vrot.slane %v3500, 2
        %v3579 = vrot.slane %v3502, 2
        %v3580 = vsel %vm1859, %v3578, %v3579
        %v3581 = vrot.slane %v3501, 2
        %v3582 = vrot.slane %v3503, 2
        %v3583 = vsel %vm1859, %v3581, %v3582
        %v3600 = vpack.c.bf16 %v3544, %v3538
        %v3601 = vpack.c.bf16 %v3547, %v3541
        %v3602 = vpack.c.bf16 %v3556, %v3550
        %v3603 = vpack.c.bf16 %v3559, %v3553
        %v3604 = vpack.c.bf16 %v3568, %v3562
        %v3605 = vpack.c.bf16 %v3571, %v3565
        %v3606 = vpack.c.bf16 %v3580, %v3574
        %v3607 = vpack.c.bf16 %v3583, %v3577
        %s3608 = scalar_lea.vmem %s5, 1280
        %v3609 = vld [vmem:[%s3608] sm:$0xff]
        %v3610 = vld [vmem:[%s3608 + $0x8] sm:$0xff]
        %v3611 = vld [vmem:[%s3608 + $0x10] sm:$0xff]
        %v3612 = vld [vmem:[%s3608 + $0x18] sm:$0xff]
        %v3613 = vld [vmem:[%s3608 + $0x20] sm:$0xff]
        %v3614 = vld [vmem:[%s3608 + $0x28] sm:$0xff]
        %v3615 = vld [vmem:[%s3608 + $0x30] sm:$0xff]
        %v3616 = vld [vmem:[%s3608 + $0x38] sm:$0xff]
        %v3617 = vld [vmem:[%s3608 + $0x40] sm:$0xff]
        %v3618 = vld [vmem:[%s3608 + $0x48] sm:$0xff]
        %v3619 = vld [vmem:[%s3608 + $0x50] sm:$0xff]
        %v3620 = vld [vmem:[%s3608 + $0x58] sm:$0xff]
        %v3621 = vld [vmem:[%s3608 + $0x60] sm:$0xff]
        %v3622 = vld [vmem:[%s3608 + $0x68] sm:$0xff]
        %v3623 = vld [vmem:[%s3608 + $0x70] sm:$0xff]
        %v3624 = vld [vmem:[%s3608 + $0x78] sm:$0xff]
        %v3625 = vld [vmem:[%s3608 + $0x80] sm:$0xff]
        %v3626 = vld [vmem:[%s3608 + $0x88] sm:$0xff]
        %v3627 = vld [vmem:[%s3608 + $0x90] sm:$0xff]
        %v3628 = vld [vmem:[%s3608 + $0x98] sm:$0xff]
        %v3629 = vld [vmem:[%s3608 + $0xa0] sm:$0xff]
        %v3630 = vld [vmem:[%s3608 + $0xa8] sm:$0xff]
        %v3631 = vld [vmem:[%s3608 + $0xb0] sm:$0xff]
        %v3632 = vld [vmem:[%s3608 + $0xb8] sm:$0xff]
        %v3633 = vld [vmem:[%s3608 + $0xc0] sm:$0xff]
        %v3634 = vld [vmem:[%s3608 + $0xc8] sm:$0xff]
        %v3635 = vld [vmem:[%s3608 + $0xd0] sm:$0xff]
        %v3636 = vld [vmem:[%s3608 + $0xd8] sm:$0xff]
        %v3637 = vld [vmem:[%s3608 + $0xe0] sm:$0xff]
        %v3638 = vld [vmem:[%s3608 + $0xe8] sm:$0xff]
        %v3639 = vld [vmem:[%s3608 + $0xf0] sm:$0xff]
        %v3640 = vld [vmem:[%s3608 + $0xf8] sm:$0xff]
        %v3673 = vunpack.c.l.b16 %v3609
        %v3674 = vunpack.c.h.b16 %v3609
        %v3675 = vunpack.c.l.b16 %v3610
        %v3676 = vunpack.c.h.b16 %v3610
        %v3677 = vunpack.c.l.b16 %v3611
        %v3678 = vunpack.c.h.b16 %v3611
        %v3679 = vunpack.c.l.b16 %v3612
        %v3680 = vunpack.c.h.b16 %v3612
        %v3681 = vunpack.c.l.b16 %v3613
        %v3682 = vunpack.c.h.b16 %v3613
        %v3683 = vunpack.c.l.b16 %v3614
        %v3684 = vunpack.c.h.b16 %v3614
        %v3685 = vunpack.c.l.b16 %v3615
        %v3686 = vunpack.c.h.b16 %v3615
        %v3687 = vunpack.c.l.b16 %v3616
        %v3688 = vunpack.c.h.b16 %v3616
        %v3689 = vunpack.c.l.b16 %v3617
        %v3690 = vunpack.c.h.b16 %v3617
        %v3691 = vunpack.c.l.b16 %v3618
        %v3692 = vunpack.c.h.b16 %v3618
        %v3693 = vunpack.c.l.b16 %v3619
        %v3694 = vunpack.c.h.b16 %v3619
        %v3695 = vunpack.c.l.b16 %v3620
        %v3696 = vunpack.c.h.b16 %v3620
        %v3697 = vunpack.c.l.b16 %v3621
        %v3698 = vunpack.c.h.b16 %v3621
        %v3699 = vunpack.c.l.b16 %v3622
        %v3700 = vunpack.c.h.b16 %v3622
        %v3701 = vunpack.c.l.b16 %v3623
        %v3702 = vunpack.c.h.b16 %v3623
        %v3703 = vunpack.c.l.b16 %v3624
        %v3704 = vunpack.c.h.b16 %v3624
        %v3705 = vunpack.c.l.b16 %v3625
        %v3706 = vunpack.c.h.b16 %v3625
        %v3707 = vunpack.c.l.b16 %v3626
        %v3708 = vunpack.c.h.b16 %v3626
        %v3709 = vunpack.c.l.b16 %v3627
        %v3710 = vunpack.c.h.b16 %v3627
        %v3711 = vunpack.c.l.b16 %v3628
        %v3712 = vunpack.c.h.b16 %v3628
        %v3713 = vunpack.c.l.b16 %v3629
        %v3714 = vunpack.c.h.b16 %v3629
        %v3715 = vunpack.c.l.b16 %v3630
        %v3716 = vunpack.c.h.b16 %v3630
        %v3717 = vunpack.c.l.b16 %v3631
        %v3718 = vunpack.c.h.b16 %v3631
        %v3719 = vunpack.c.l.b16 %v3632
        %v3720 = vunpack.c.h.b16 %v3632
        %v3721 = vunpack.c.l.b16 %v3633
        %v3722 = vunpack.c.h.b16 %v3633
        %v3723 = vunpack.c.l.b16 %v3634
        %v3724 = vunpack.c.h.b16 %v3634
        %v3725 = vunpack.c.l.b16 %v3635
        %v3726 = vunpack.c.h.b16 %v3635
        %v3727 = vunpack.c.l.b16 %v3636
        %v3728 = vunpack.c.h.b16 %v3636
        %v3729 = vunpack.c.l.b16 %v3637
        %v3730 = vunpack.c.h.b16 %v3637
        %v3731 = vunpack.c.l.b16 %v3638
        %v3732 = vunpack.c.h.b16 %v3638
        %v3733 = vunpack.c.l.b16 %v3639
        %v3734 = vunpack.c.h.b16 %v3639
        %v3735 = vunpack.c.l.b16 %v3640
        %v3736 = vunpack.c.h.b16 %v3640
        %v3737 = vpack.c.b16 %v3675, %v3673
        %v3738 = vpack.c.b16 %v3676, %v3674
        %v3739 = vpack.c.b16 %v3679, %v3677
        %v3740 = vpack.c.b16 %v3680, %v3678
        %v3741 = vpack.c.b16 %v3683, %v3681
        %v3742 = vpack.c.b16 %v3684, %v3682
        %v3743 = vpack.c.b16 %v3687, %v3685
        %v3744 = vpack.c.b16 %v3688, %v3686
        %v3745 = vpack.c.b16 %v3691, %v3689
        %v3746 = vpack.c.b16 %v3692, %v3690
        %v3747 = vpack.c.b16 %v3695, %v3693
        %v3748 = vpack.c.b16 %v3696, %v3694
        %v3749 = vpack.c.b16 %v3699, %v3697
        %v3750 = vpack.c.b16 %v3700, %v3698
        %v3751 = vpack.c.b16 %v3703, %v3701
        %v3752 = vpack.c.b16 %v3704, %v3702
        %v3753 = vpack.c.b16 %v3707, %v3705
        %v3754 = vpack.c.b16 %v3708, %v3706
        %v3755 = vpack.c.b16 %v3711, %v3709
        %v3756 = vpack.c.b16 %v3712, %v3710
        %v3757 = vpack.c.b16 %v3715, %v3713
        %v3758 = vpack.c.b16 %v3716, %v3714
        %v3759 = vpack.c.b16 %v3719, %v3717
        %v3760 = vpack.c.b16 %v3720, %v3718
        %v3761 = vpack.c.b16 %v3723, %v3721
        %v3762 = vpack.c.b16 %v3724, %v3722
        %v3763 = vpack.c.b16 %v3727, %v3725
        %v3764 = vpack.c.b16 %v3728, %v3726
        %v3765 = vpack.c.b16 %v3731, %v3729
        %v3766 = vpack.c.b16 %v3732, %v3730
        %v3767 = vpack.c.b16 %v3735, %v3733
        %v3768 = vpack.c.b16 %v3736, %v3734
        %3801 = vmatpush.bf16.msra.mxu0 %v3751
        %3802 = vmatpush.bf16.msra.mxu0 %v3749
        %3803 = vmatpush.bf16.msra.mxu0 %v3747
        %3804 = vmatpush.bf16.msra.mxu0 %v3745
        %3805 = vmatpush.bf16.msra.mxu0 %v3743
        %3806 = vmatpush.bf16.msra.mxu0 %v3741
        %3807 = vmatpush.bf16.msra.mxu0 %v3739
        %3808 = vmatpush.bf16.msra.mxu0 %v3737
        %3809 = vmatmul.bf16.gmra.mxu0 %v3600
        %v3810 = vpop.f32.mrf.mxu0
        %v3811 = vadd.f32 0.0, %v3810
        %v3812 = vpop.f32.mrf.mxu0
        %v3813 = vadd.f32 0.0, %v3812
        %3814 = vmatmul.bf16.gmra.mxu0 %v3602
        %v3815 = vpop.f32.mrf.mxu0
        %v3816 = vadd.f32 0.0, %v3815
        %v3817 = vpop.f32.mrf.mxu0
        %v3818 = vadd.f32 0.0, %v3817
        %3819 = vmatmul.bf16.gmra.mxu0 %v3604
        %v3820 = vpop.f32.mrf.mxu0
        %v3821 = vadd.f32 0.0, %v3820
        %v3822 = vpop.f32.mrf.mxu0
        %v3823 = vadd.f32 0.0, %v3822
        %3824 = vmatmul.bf16.gmra.mxu0 %v3606
        %v3825 = vpop.f32.mrf.mxu0
        %v3826 = vadd.f32 0.0, %v3825
        %v3827 = vpop.f32.mrf.mxu0
        %v3828 = vadd.f32 0.0, %v3827
        %3829 = vdwg.mxu0
        %3830 = vmatpush.bf16.msra.mxu0 %v3767
        %3831 = vmatpush.bf16.msra.mxu0 %v3765
        %3832 = vmatpush.bf16.msra.mxu0 %v3763
        %3833 = vmatpush.bf16.msra.mxu0 %v3761
        %3834 = vmatpush.bf16.msra.mxu0 %v3759
        %3835 = vmatpush.bf16.msra.mxu0 %v3757
        %3836 = vmatpush.bf16.msra.mxu0 %v3755
        %3837 = vmatpush.bf16.msra.mxu0 %v3753
        %3838 = vmatmul.bf16.gmra.mxu0 %v3601
        %v3839 = vpop.f32.mrf.mxu0
        %v3840 = vadd.f32 %v3811, %v3839
        %v3841 = vpop.f32.mrf.mxu0
        %v3842 = vadd.f32 %v3813, %v3841
        %3843 = vmatmul.bf16.gmra.mxu0 %v3603
        %v3844 = vpop.f32.mrf.mxu0
        %v3845 = vadd.f32 %v3816, %v3844
        %v3846 = vpop.f32.mrf.mxu0
        %v3847 = vadd.f32 %v3818, %v3846
        %3848 = vmatmul.bf16.gmra.mxu0 %v3605
        %v3849 = vpop.f32.mrf.mxu0
        %v3850 = vadd.f32 %v3821, %v3849
        %v3851 = vpop.f32.mrf.mxu0
        %v3852 = vadd.f32 %v3823, %v3851
        %3853 = vmatmul.bf16.gmra.mxu0 %v3607
        %v3854 = vpop.f32.mrf.mxu0
        %v3855 = vadd.f32 %v3826, %v3854
        %v3856 = vpop.f32.mrf.mxu0
        %v3857 = vadd.f32 %v3828, %v3856
        %3858 = vdwg.mxu0
        %3859 = vmatpush.bf16.msra.mxu0 %v3752
        %3860 = vmatpush.bf16.msra.mxu0 %v3750
        %3861 = vmatpush.bf16.msra.mxu0 %v3748
        %3862 = vmatpush.bf16.msra.mxu0 %v3746
        %3863 = vmatpush.bf16.msra.mxu0 %v3744
        %3864 = vmatpush.bf16.msra.mxu0 %v3742
        %3865 = vmatpush.bf16.msra.mxu0 %v3740
        %3866 = vmatpush.bf16.msra.mxu0 %v3738
        %3867 = vmatmul.bf16.gmra.mxu0 %v3600
        %v3868 = vpop.f32.mrf.mxu0
        %v3869 = vadd.f32 0.0, %v3868
        %v3870 = vpop.f32.mrf.mxu0
        %v3871 = vadd.f32 0.0, %v3870
        %3872 = vmatmul.bf16.gmra.mxu0 %v3602
        %v3873 = vpop.f32.mrf.mxu0
        %v3874 = vadd.f32 0.0, %v3873
        %v3875 = vpop.f32.mrf.mxu0
        %v3876 = vadd.f32 0.0, %v3875
        %3877 = vmatmul.bf16.gmra.mxu0 %v3604
        %v3878 = vpop.f32.mrf.mxu0
        %v3879 = vadd.f32 0.0, %v3878
        %v3880 = vpop.f32.mrf.mxu0
        %v3881 = vadd.f32 0.0, %v3880
        %3882 = vmatmul.bf16.gmra.mxu0 %v3606
        %v3883 = vpop.f32.mrf.mxu0
        %v3884 = vadd.f32 0.0, %v3883
        %v3885 = vpop.f32.mrf.mxu0
        %v3886 = vadd.f32 0.0, %v3885
        %3887 = vdwg.mxu0
        %3888 = vmatpush.bf16.msra.mxu0 %v3768
        %3889 = vmatpush.bf16.msra.mxu0 %v3766
        %3890 = vmatpush.bf16.msra.mxu0 %v3764
        %3891 = vmatpush.bf16.msra.mxu0 %v3762
        %3892 = vmatpush.bf16.msra.mxu0 %v3760
        %3893 = vmatpush.bf16.msra.mxu0 %v3758
        %3894 = vmatpush.bf16.msra.mxu0 %v3756
        %3895 = vmatpush.bf16.msra.mxu0 %v3754
        %3896 = vmatmul.bf16.gmra.mxu0 %v3601
        %v3897 = vpop.f32.mrf.mxu0
        %v3898 = vadd.f32 %v3869, %v3897
        %v3899 = vpop.f32.mrf.mxu0
        %v3900 = vadd.f32 %v3871, %v3899
        %3901 = vmatmul.bf16.gmra.mxu0 %v3603
        %v3902 = vpop.f32.mrf.mxu0
        %v3903 = vadd.f32 %v3874, %v3902
        %v3904 = vpop.f32.mrf.mxu0
        %v3905 = vadd.f32 %v3876, %v3904
        %3906 = vmatmul.bf16.gmra.mxu0 %v3605
        %v3907 = vpop.f32.mrf.mxu0
        %v3908 = vadd.f32 %v3879, %v3907
        %v3909 = vpop.f32.mrf.mxu0
        %v3910 = vadd.f32 %v3881, %v3909
        %3911 = vmatmul.bf16.gmra.mxu0 %v3607
        %v3912 = vpop.f32.mrf.mxu0
        %v3913 = vadd.f32 %v3884, %v3912
        %v3914 = vpop.f32.mrf.mxu0
        %v3915 = vadd.f32 %v3886, %v3914
        %3916 = vdwg.mxu0
        %v3917 = vadd.f32 %v3456, %v3840
        %v3918 = vadd.f32 %v3457, %v3898
        %v3919 = vadd.f32 %v3458, %v3842
        %v3920 = vadd.f32 %v3459, %v3900
        %v3921 = vadd.f32 %v3460, %v3845
        %v3922 = vadd.f32 %v3461, %v3903
        %v3923 = vadd.f32 %v3462, %v3847
        %v3924 = vadd.f32 %v3463, %v3905
        %v3925 = vadd.f32 %v3464, %v3850
        %v3926 = vadd.f32 %v3465, %v3908
        %v3927 = vadd.f32 %v3466, %v3852
        %v3928 = vadd.f32 %v3467, %v3910
        %v3929 = vadd.f32 %v3468, %v3855
        %v3930 = vadd.f32 %v3469, %v3913
        %v3931 = vadd.f32 %v3470, %v3857
        %v3932 = vadd.f32 %v3471, %v3915
        %v3933 = vld [vmem:[%s739 + $0x2] sm:$0xff]
        %v3934 = vld [vmem:[%s739 + $0x12] sm:$0xff]
        %v3935 = vld [vmem:[%s739 + $0x22] sm:$0xff]
        %v3936 = vld [vmem:[%s739 + $0x32] sm:$0xff]
        %v3937 = vld [vmem:[%s739 + $0x42] sm:$0xff]
        %v3938 = vld [vmem:[%s739 + $0x52] sm:$0xff]
        %v3939 = vld [vmem:[%s739 + $0x62] sm:$0xff]
        %v3940 = vld [vmem:[%s739 + $0x72] sm:$0xff]
        %v3941 = vpack.c.bf16 %v3934, %v3933
        %v3942 = vpack.c.bf16 %v3936, %v3935
        %v3943 = vpack.c.bf16 %v3938, %v3937
        %v3944 = vpack.c.bf16 %v3940, %v3939
        %s3945 = scalar_lea.vmem [#allocation5], 240
        %v3946 = vld [vmem:[%s3945] sm:$0xff]
        %v3947 = vld [vmem:[%s3945 + $0x8] sm:$0xff]
        %v3948 = vld [vmem:[%s3945 + $0x10] sm:$0xff]
        %v3949 = vld [vmem:[%s3945 + $0x18] sm:$0xff]
        %v3950 = vld [vmem:[%s3945 + $0x20] sm:$0xff]
        %v3951 = vld [vmem:[%s3945 + $0x28] sm:$0xff]
        %v3958 = vunpack.c.l.b16 %v3946
        %v3959 = vunpack.c.h.b16 %v3946
        %v3960 = vunpack.c.l.b16 %v3947
        %v3961 = vunpack.c.h.b16 %v3947
        %v3962 = vunpack.c.l.b16 %v3948
        %v3963 = vunpack.c.h.b16 %v3948
        %v3964 = vunpack.c.l.b16 %v3949
        %v3965 = vunpack.c.h.b16 %v3949
        %v3966 = vunpack.c.l.b16 %v3950
        %v3967 = vunpack.c.h.b16 %v3950
        %v3968 = vunpack.c.l.b16 %v3951
        %v3969 = vunpack.c.h.b16 %v3951
        %v3970 = vpack.c.b16 %v3960, %v3958
        %v3971 = vpack.c.b16 %v3961, %v3959
        %v3972 = vpack.c.b16 %v3964, %v3962
        %v3973 = vpack.c.b16 %v3965, %v3963
        %v3974 = vpack.c.b16 %v3968, %v3966
        %v3975 = vpack.c.b16 %v3969, %v3967
        %v3983 = vsel %vm717, %v3941, 0
        %v3986 = vsel %vm717, %v3942, 0
        %v3989 = vsel %vm717, %v3943, 0
        %v3992 = vsel %vm717, %v3944, 0
        %3994 = vmatpush.bf16.msra.mxu0 0
        %3995 = vmatpush.bf16.msra.mxu0 0
        %3996 = vmatpush.bf16.msra.mxu0 0
        %3997 = vmatpush.bf16.msra.mxu0 0
        %3998 = vmatpush.bf16.msra.mxu0 0
        %3999 = vmatpush.bf16.msra.mxu0 %v3974
        %4000 = vmatpush.bf16.msra.mxu0 %v3972
        %4001 = vmatpush.bf16.msra.mxu0 %v3970
        %4002 = vmatmul.bf16.gmra.mxu0 %v3983
        %v4003 = vpop.f32.mrf.mxu0
        %v4004 = vadd.f32 0.0, %v4003
        %v4005 = vpop.f32.mrf.mxu0
        %v4006 = vadd.f32 0.0, %v4005
        %4007 = vmatmul.bf16.gmra.mxu0 %v3986
        %v4008 = vpop.f32.mrf.mxu0
        %v4009 = vadd.f32 0.0, %v4008
        %v4010 = vpop.f32.mrf.mxu0
        %v4011 = vadd.f32 0.0, %v4010
        %4012 = vmatmul.bf16.gmra.mxu0 %v3989
        %v4013 = vpop.f32.mrf.mxu0
        %v4014 = vadd.f32 0.0, %v4013
        %v4015 = vpop.f32.mrf.mxu0
        %v4016 = vadd.f32 0.0, %v4015
        %4017 = vmatmul.bf16.gmra.mxu0 %v3992
        %v4018 = vpop.f32.mrf.mxu0
        %v4019 = vadd.f32 0.0, %v4018
        %v4020 = vpop.f32.mrf.mxu0
        %v4021 = vadd.f32 0.0, %v4020
        %4022 = vdwg.mxu0
        %4023 = vmatpush.bf16.msra.mxu0 0
        %4024 = vmatpush.bf16.msra.mxu0 0
        %4025 = vmatpush.bf16.msra.mxu0 0
        %4026 = vmatpush.bf16.msra.mxu0 0
        %4027 = vmatpush.bf16.msra.mxu0 0
        %4028 = vmatpush.bf16.msra.mxu0 %v3975
        %4029 = vmatpush.bf16.msra.mxu0 %v3973
        %4030 = vmatpush.bf16.msra.mxu0 %v3971
        %4031 = vmatmul.bf16.gmra.mxu0 %v3983
        %v4032 = vpop.f32.mrf.mxu0
        %v4033 = vadd.f32 0.0, %v4032
        %v4034 = vpop.f32.mrf.mxu0
        %v4035 = vadd.f32 0.0, %v4034
        %4036 = vmatmul.bf16.gmra.mxu0 %v3986
        %v4037 = vpop.f32.mrf.mxu0
        %v4038 = vadd.f32 0.0, %v4037
        %v4039 = vpop.f32.mrf.mxu0
        %v4040 = vadd.f32 0.0, %v4039
        %4041 = vmatmul.bf16.gmra.mxu0 %v3989
        %v4042 = vpop.f32.mrf.mxu0
        %v4043 = vadd.f32 0.0, %v4042
        %v4044 = vpop.f32.mrf.mxu0
        %v4045 = vadd.f32 0.0, %v4044
        %4046 = vmatmul.bf16.gmra.mxu0 %v3992
        %v4047 = vpop.f32.mrf.mxu0
        %v4048 = vadd.f32 0.0, %v4047
        %v4049 = vpop.f32.mrf.mxu0
        %v4050 = vadd.f32 0.0, %v4049
        %4051 = vdwg.mxu0
        %v4052 = vadd.f32 %v3917, %v4004
        %v4053 = vadd.f32 %v3918, %v4033
        %v4054 = vadd.f32 %v3919, %v4006
        %v4055 = vadd.f32 %v3920, %v4035
        %v4056 = vadd.f32 %v3921, %v4009
        %v4057 = vadd.f32 %v3922, %v4038
        %v4058 = vadd.f32 %v3923, %v4011
        %v4059 = vadd.f32 %v3924, %v4040
        %v4060 = vadd.f32 %v3925, %v4014
        %v4061 = vadd.f32 %v3926, %v4043
        %v4062 = vadd.f32 %v3927, %v4016
        %v4063 = vadd.f32 %v3928, %v4045
        %v4064 = vadd.f32 %v3929, %v4019
        %v4065 = vadd.f32 %v3930, %v4048
        %v4066 = vadd.f32 %v3931, %v4021
        %v4067 = vadd.f32 %v3932, %v4050
        %s4068 = scalar_lea.vmem [#allocation2], 64
        %v4069 = vld [vmem:[%s4068] sm:$0xff]
        %v4070 = vld [vmem:[%s4068 + $0x8] sm:$0xff]
        %v4071 = vld [vmem:[%s4068 + $0x20] sm:$0xff]
        %v4072 = vld [vmem:[%s4068 + $0x28] sm:$0xff]
        %v4073 = vld [vmem:[%s4068 + $0x40] sm:$0xff]
        %v4074 = vld [vmem:[%s4068 + $0x48] sm:$0xff]
        %v4075 = vld [vmem:[%s4068 + $0x60] sm:$0xff]
        %v4076 = vld [vmem:[%s4068 + $0x68] sm:$0xff]
        %v4077 = vld [vmem:[%s4068 + $0x80] sm:$0xff]
        %v4078 = vld [vmem:[%s4068 + $0x88] sm:$0xff]
        %v4079 = vld [vmem:[%s4068 + $0xa0] sm:$0xff]
        %v4080 = vld [vmem:[%s4068 + $0xa8] sm:$0xff]
        %v4081 = vld [vmem:[%s4068 + $0xc0] sm:$0xff]
        %v4082 = vld [vmem:[%s4068 + $0xc8] sm:$0xff]
        %v4083 = vld [vmem:[%s4068 + $0xe0] sm:$0xff]
        %v4084 = vld [vmem:[%s4068 + $0xe8] sm:$0xff]
        %v4085 = vpack.c.bf16 %v4071, %v4069
        %v4086 = vpack.c.bf16 %v4072, %v4070
        %v4087 = vpack.c.bf16 %v4075, %v4073
        %v4088 = vpack.c.bf16 %v4076, %v4074
        %v4089 = vpack.c.bf16 %v4079, %v4077
        %v4090 = vpack.c.bf16 %v4080, %v4078
        %v4091 = vpack.c.bf16 %v4083, %v4081
        %v4092 = vpack.c.bf16 %v4084, %v4082
        %s4093 = scalar_lea.vmem %s5, 1536
        %v4094 = vld [vmem:[%s4093] sm:$0xff]
        %v4095 = vld [vmem:[%s4093 + $0x8] sm:$0xff]
        %v4096 = vld [vmem:[%s4093 + $0x10] sm:$0xff]
        %v4097 = vld [vmem:[%s4093 + $0x18] sm:$0xff]
        %v4098 = vld [vmem:[%s4093 + $0x20] sm:$0xff]
        %v4099 = vld [vmem:[%s4093 + $0x28] sm:$0xff]
        %v4100 = vld [vmem:[%s4093 + $0x30] sm:$0xff]
        %v4101 = vld [vmem:[%s4093 + $0x38] sm:$0xff]
        %v4102 = vld [vmem:[%s4093 + $0x40] sm:$0xff]
        %v4103 = vld [vmem:[%s4093 + $0x48] sm:$0xff]
        %v4104 = vld [vmem:[%s4093 + $0x50] sm:$0xff]
        %v4105 = vld [vmem:[%s4093 + $0x58] sm:$0xff]
        %v4106 = vld [vmem:[%s4093 + $0x60] sm:$0xff]
        %v4107 = vld [vmem:[%s4093 + $0x68] sm:$0xff]
        %v4108 = vld [vmem:[%s4093 + $0x70] sm:$0xff]
        %v4109 = vld [vmem:[%s4093 + $0x78] sm:$0xff]
        %v4110 = vld [vmem:[%s4093 + $0x80] sm:$0xff]
        %v4111 = vld [vmem:[%s4093 + $0x88] sm:$0xff]
        %v4112 = vld [vmem:[%s4093 + $0x90] sm:$0xff]
        %v4113 = vld [vmem:[%s4093 + $0x98] sm:$0xff]
        %v4114 = vld [vmem:[%s4093 + $0xa0] sm:$0xff]
        %v4115 = vld [vmem:[%s4093 + $0xa8] sm:$0xff]
        %v4116 = vld [vmem:[%s4093 + $0xb0] sm:$0xff]
        %v4117 = vld [vmem:[%s4093 + $0xb8] sm:$0xff]
        %v4118 = vld [vmem:[%s4093 + $0xc0] sm:$0xff]
        %v4119 = vld [vmem:[%s4093 + $0xc8] sm:$0xff]
        %v4120 = vld [vmem:[%s4093 + $0xd0] sm:$0xff]
        %v4121 = vld [vmem:[%s4093 + $0xd8] sm:$0xff]
        %v4122 = vld [vmem:[%s4093 + $0xe0] sm:$0xff]
        %v4123 = vld [vmem:[%s4093 + $0xe8] sm:$0xff]
        %v4124 = vld [vmem:[%s4093 + $0xf0] sm:$0xff]
        %v4125 = vld [vmem:[%s4093 + $0xf8] sm:$0xff]
        %v4158 = vunpack.c.l.b16 %v4094
        %v4159 = vunpack.c.h.b16 %v4094
        %v4160 = vunpack.c.l.b16 %v4095
        %v4161 = vunpack.c.h.b16 %v4095
        %v4162 = vunpack.c.l.b16 %v4096
        %v4163 = vunpack.c.h.b16 %v4096
        %v4164 = vunpack.c.l.b16 %v4097
        %v4165 = vunpack.c.h.b16 %v4097
        %v4166 = vunpack.c.l.b16 %v4098
        %v4167 = vunpack.c.h.b16 %v4098
        %v4168 = vunpack.c.l.b16 %v4099
        %v4169 = vunpack.c.h.b16 %v4099
        %v4170 = vunpack.c.l.b16 %v4100
        %v4171 = vunpack.c.h.b16 %v4100
        %v4172 = vunpack.c.l.b16 %v4101
        %v4173 = vunpack.c.h.b16 %v4101
        %v4174 = vunpack.c.l.b16 %v4102
        %v4175 = vunpack.c.h.b16 %v4102
        %v4176 = vunpack.c.l.b16 %v4103
        %v4177 = vunpack.c.h.b16 %v4103
        %v4178 = vunpack.c.l.b16 %v4104
        %v4179 = vunpack.c.h.b16 %v4104
        %v4180 = vunpack.c.l.b16 %v4105
        %v4181 = vunpack.c.h.b16 %v4105
        %v4182 = vunpack.c.l.b16 %v4106
        %v4183 = vunpack.c.h.b16 %v4106
        %v4184 = vunpack.c.l.b16 %v4107
        %v4185 = vunpack.c.h.b16 %v4107
        %v4186 = vunpack.c.l.b16 %v4108
        %v4187 = vunpack.c.h.b16 %v4108
        %v4188 = vunpack.c.l.b16 %v4109
        %v4189 = vunpack.c.h.b16 %v4109
        %v4190 = vunpack.c.l.b16 %v4110
        %v4191 = vunpack.c.h.b16 %v4110
        %v4192 = vunpack.c.l.b16 %v4111
        %v4193 = vunpack.c.h.b16 %v4111
        %v4194 = vunpack.c.l.b16 %v4112
        %v4195 = vunpack.c.h.b16 %v4112
        %v4196 = vunpack.c.l.b16 %v4113
        %v4197 = vunpack.c.h.b16 %v4113
        %v4198 = vunpack.c.l.b16 %v4114
        %v4199 = vunpack.c.h.b16 %v4114
        %v4200 = vunpack.c.l.b16 %v4115
        %v4201 = vunpack.c.h.b16 %v4115
        %v4202 = vunpack.c.l.b16 %v4116
        %v4203 = vunpack.c.h.b16 %v4116
        %v4204 = vunpack.c.l.b16 %v4117
        %v4205 = vunpack.c.h.b16 %v4117
        %v4206 = vunpack.c.l.b16 %v4118
        %v4207 = vunpack.c.h.b16 %v4118
        %v4208 = vunpack.c.l.b16 %v4119
        %v4209 = vunpack.c.h.b16 %v4119
        %v4210 = vunpack.c.l.b16 %v4120
        %v4211 = vunpack.c.h.b16 %v4120
        %v4212 = vunpack.c.l.b16 %v4121
        %v4213 = vunpack.c.h.b16 %v4121
        %v4214 = vunpack.c.l.b16 %v4122
        %v4215 = vunpack.c.h.b16 %v4122
        %v4216 = vunpack.c.l.b16 %v4123
        %v4217 = vunpack.c.h.b16 %v4123
        %v4218 = vunpack.c.l.b16 %v4124
        %v4219 = vunpack.c.h.b16 %v4124
        %v4220 = vunpack.c.l.b16 %v4125
        %v4221 = vunpack.c.h.b16 %v4125
        %v4222 = vpack.c.b16 %v4160, %v4158
        %v4223 = vpack.c.b16 %v4161, %v4159
        %v4224 = vpack.c.b16 %v4164, %v4162
        %v4225 = vpack.c.b16 %v4165, %v4163
        %v4226 = vpack.c.b16 %v4168, %v4166
        %v4227 = vpack.c.b16 %v4169, %v4167
        %v4228 = vpack.c.b16 %v4172, %v4170
        %v4229 = vpack.c.b16 %v4173, %v4171
        %v4230 = vpack.c.b16 %v4176, %v4174
        %v4231 = vpack.c.b16 %v4177, %v4175
        %v4232 = vpack.c.b16 %v4180, %v4178
        %v4233 = vpack.c.b16 %v4181, %v4179
        %v4234 = vpack.c.b16 %v4184, %v4182
        %v4235 = vpack.c.b16 %v4185, %v4183
        %v4236 = vpack.c.b16 %v4188, %v4186
        %v4237 = vpack.c.b16 %v4189, %v4187
        %v4238 = vpack.c.b16 %v4192, %v4190
        %v4239 = vpack.c.b16 %v4193, %v4191
        %v4240 = vpack.c.b16 %v4196, %v4194
        %v4241 = vpack.c.b16 %v4197, %v4195
        %v4242 = vpack.c.b16 %v4200, %v4198
        %v4243 = vpack.c.b16 %v4201, %v4199
        %v4244 = vpack.c.b16 %v4204, %v4202
        %v4245 = vpack.c.b16 %v4205, %v4203
        %v4246 = vpack.c.b16 %v4208, %v4206
        %v4247 = vpack.c.b16 %v4209, %v4207
        %v4248 = vpack.c.b16 %v4212, %v4210
        %v4249 = vpack.c.b16 %v4213, %v4211
        %v4250 = vpack.c.b16 %v4216, %v4214
        %v4251 = vpack.c.b16 %v4217, %v4215
        %v4252 = vpack.c.b16 %v4220, %v4218
        %v4253 = vpack.c.b16 %v4221, %v4219
        %4286 = vmatpush.bf16.msra.mxu0 %v4236
        %4287 = vmatpush.bf16.msra.mxu0 %v4234
        %4288 = vmatpush.bf16.msra.mxu0 %v4232
        %4289 = vmatpush.bf16.msra.mxu0 %v4230
        %4290 = vmatpush.bf16.msra.mxu0 %v4228
        %4291 = vmatpush.bf16.msra.mxu0 %v4226
        %4292 = vmatpush.bf16.msra.mxu0 %v4224
        %4293 = vmatpush.bf16.msra.mxu0 %v4222
        %4294 = vmatmul.bf16.gmra.mxu0 %v4085
        %v4295 = vpop.f32.mrf.mxu0
        %v4296 = vadd.f32 0.0, %v4295
        %v4297 = vpop.f32.mrf.mxu0
        %v4298 = vadd.f32 0.0, %v4297
        %4299 = vmatmul.bf16.gmra.mxu0 %v4087
        %v4300 = vpop.f32.mrf.mxu0
        %v4301 = vadd.f32 0.0, %v4300
        %v4302 = vpop.f32.mrf.mxu0
        %v4303 = vadd.f32 0.0, %v4302
        %4304 = vmatmul.bf16.gmra.mxu0 %v4089
        %v4305 = vpop.f32.mrf.mxu0
        %v4306 = vadd.f32 0.0, %v4305
        %v4307 = vpop.f32.mrf.mxu0
        %v4308 = vadd.f32 0.0, %v4307
        %4309 = vmatmul.bf16.gmra.mxu0 %v4091
        %v4310 = vpop.f32.mrf.mxu0
        %v4311 = vadd.f32 0.0, %v4310
        %v4312 = vpop.f32.mrf.mxu0
        %v4313 = vadd.f32 0.0, %v4312
        %4314 = vdwg.mxu0
        %4315 = vmatpush.bf16.msra.mxu0 %v4252
        %4316 = vmatpush.bf16.msra.mxu0 %v4250
        %4317 = vmatpush.bf16.msra.mxu0 %v4248
        %4318 = vmatpush.bf16.msra.mxu0 %v4246
        %4319 = vmatpush.bf16.msra.mxu0 %v4244
        %4320 = vmatpush.bf16.msra.mxu0 %v4242
        %4321 = vmatpush.bf16.msra.mxu0 %v4240
        %4322 = vmatpush.bf16.msra.mxu0 %v4238
        %4323 = vmatmul.bf16.gmra.mxu0 %v4086
        %v4324 = vpop.f32.mrf.mxu0
        %v4325 = vadd.f32 %v4296, %v4324
        %v4326 = vpop.f32.mrf.mxu0
        %v4327 = vadd.f32 %v4298, %v4326
        %4328 = vmatmul.bf16.gmra.mxu0 %v4088
        %v4329 = vpop.f32.mrf.mxu0
        %v4330 = vadd.f32 %v4301, %v4329
        %v4331 = vpop.f32.mrf.mxu0
        %v4332 = vadd.f32 %v4303, %v4331
        %4333 = vmatmul.bf16.gmra.mxu0 %v4090
        %v4334 = vpop.f32.mrf.mxu0
        %v4335 = vadd.f32 %v4306, %v4334
        %v4336 = vpop.f32.mrf.mxu0
        %v4337 = vadd.f32 %v4308, %v4336
        %4338 = vmatmul.bf16.gmra.mxu0 %v4092
        %v4339 = vpop.f32.mrf.mxu0
        %v4340 = vadd.f32 %v4311, %v4339
        %v4341 = vpop.f32.mrf.mxu0
        %v4342 = vadd.f32 %v4313, %v4341
        %4343 = vdwg.mxu0
        %4344 = vmatpush.bf16.msra.mxu0 %v4237
        %4345 = vmatpush.bf16.msra.mxu0 %v4235
        %4346 = vmatpush.bf16.msra.mxu0 %v4233
        %4347 = vmatpush.bf16.msra.mxu0 %v4231
        %4348 = vmatpush.bf16.msra.mxu0 %v4229
        %4349 = vmatpush.bf16.msra.mxu0 %v4227
        %4350 = vmatpush.bf16.msra.mxu0 %v4225
        %4351 = vmatpush.bf16.msra.mxu0 %v4223
        %4352 = vmatmul.bf16.gmra.mxu0 %v4085
        %v4353 = vpop.f32.mrf.mxu0
        %v4354 = vadd.f32 0.0, %v4353
        %v4355 = vpop.f32.mrf.mxu0
        %v4356 = vadd.f32 0.0, %v4355
        %4357 = vmatmul.bf16.gmra.mxu0 %v4087
        %v4358 = vpop.f32.mrf.mxu0
        %v4359 = vadd.f32 0.0, %v4358
        %v4360 = vpop.f32.mrf.mxu0
        %v4361 = vadd.f32 0.0, %v4360
        %4362 = vmatmul.bf16.gmra.mxu0 %v4089
        %v4363 = vpop.f32.mrf.mxu0
        %v4364 = vadd.f32 0.0, %v4363
        %v4365 = vpop.f32.mrf.mxu0
        %v4366 = vadd.f32 0.0, %v4365
        %4367 = vmatmul.bf16.gmra.mxu0 %v4091
        %v4368 = vpop.f32.mrf.mxu0
        %v4369 = vadd.f32 0.0, %v4368
        %v4370 = vpop.f32.mrf.mxu0
        %v4371 = vadd.f32 0.0, %v4370
        %4372 = vdwg.mxu0
        %4373 = vmatpush.bf16.msra.mxu0 %v4253
        %4374 = vmatpush.bf16.msra.mxu0 %v4251
        %4375 = vmatpush.bf16.msra.mxu0 %v4249
        %4376 = vmatpush.bf16.msra.mxu0 %v4247
        %4377 = vmatpush.bf16.msra.mxu0 %v4245
        %4378 = vmatpush.bf16.msra.mxu0 %v4243
        %4379 = vmatpush.bf16.msra.mxu0 %v4241
        %4380 = vmatpush.bf16.msra.mxu0 %v4239
        %4381 = vmatmul.bf16.gmra.mxu0 %v4086
        %v4382 = vpop.f32.mrf.mxu0
        %v4383 = vadd.f32 %v4354, %v4382
        %v4384 = vpop.f32.mrf.mxu0
        %v4385 = vadd.f32 %v4356, %v4384
        %4386 = vmatmul.bf16.gmra.mxu0 %v4088
        %v4387 = vpop.f32.mrf.mxu0
        %v4388 = vadd.f32 %v4359, %v4387
        %v4389 = vpop.f32.mrf.mxu0
        %v4390 = vadd.f32 %v4361, %v4389
        %4391 = vmatmul.bf16.gmra.mxu0 %v4090
        %v4392 = vpop.f32.mrf.mxu0
        %v4393 = vadd.f32 %v4364, %v4392
        %v4394 = vpop.f32.mrf.mxu0
        %v4395 = vadd.f32 %v4366, %v4394
        %4396 = vmatmul.bf16.gmra.mxu0 %v4092
        %v4397 = vpop.f32.mrf.mxu0
        %v4398 = vadd.f32 %v4369, %v4397
        %v4399 = vpop.f32.mrf.mxu0
        %v4400 = vadd.f32 %v4371, %v4399
        %4401 = vdwg.mxu0
        %v4402 = vadd.f32 %v4052, %v4325
        %v4403 = vadd.f32 %v4053, %v4383
        %v4404 = vadd.f32 %v4054, %v4327
        %v4405 = vadd.f32 %v4055, %v4385
        %v4406 = vadd.f32 %v4056, %v4330
        %v4407 = vadd.f32 %v4057, %v4388
        %v4408 = vadd.f32 %v4058, %v4332
        %v4409 = vadd.f32 %v4059, %v4390
        %v4410 = vadd.f32 %v4060, %v4335
        %v4411 = vadd.f32 %v4061, %v4393
        %v4412 = vadd.f32 %v4062, %v4337
        %v4413 = vadd.f32 %v4063, %v4395
        %v4414 = vadd.f32 %v4064, %v4340
        %v4415 = vadd.f32 %v4065, %v4398
        %v4416 = vadd.f32 %v4066, %v4342
        %v4417 = vadd.f32 %v4067, %v4400
        %s4418 = scalar_lea.vmem [#allocation3], 32
        %v4419 = vld [vmem:[%s4418] sm:$0xff]
        %v4420 = vld [vmem:[%s4418 + $0x10] sm:$0xff]
        %v4421 = vld [vmem:[%s4418 + $0x20] sm:$0xff]
        %v4422 = vld [vmem:[%s4418 + $0x30] sm:$0xff]
        %v4423 = vld [vmem:[%s4418 + $0x40] sm:$0xff]
        %v4424 = vld [vmem:[%s4418 + $0x50] sm:$0xff]
        %v4425 = vld [vmem:[%s4418 + $0x60] sm:$0xff]
        %v4426 = vld [vmem:[%s4418 + $0x70] sm:$0xff]
        %v4427 = vpack.c.bf16 %v4420, %v4419
        %v4428 = vpack.c.bf16 %v4422, %v4421
        %v4429 = vpack.c.bf16 %v4424, %v4423
        %v4430 = vpack.c.bf16 %v4426, %v4425
        %s4431 = scalar_lea.vmem [#allocation5], 288
        %v4432 = vld [vmem:[%s4431] sm:$0xff]
        %v4433 = vld [vmem:[%s4431 + $0x8] sm:$0xff]
        %v4434 = vld [vmem:[%s4431 + $0x10] sm:$0xff]
        %v4435 = vld [vmem:[%s4431 + $0x18] sm:$0xff]
        %v4436 = vld [vmem:[%s4431 + $0x20] sm:$0xff]
        %v4437 = vld [vmem:[%s4431 + $0x28] sm:$0xff]
        %v4444 = vunpack.c.l.b16 %v4432
        %v4445 = vunpack.c.h.b16 %v4432
        %v4446 = vunpack.c.l.b16 %v4433
        %v4447 = vunpack.c.h.b16 %v4433
        %v4448 = vunpack.c.l.b16 %v4434
        %v4449 = vunpack.c.h.b16 %v4434
        %v4450 = vunpack.c.l.b16 %v4435
        %v4451 = vunpack.c.h.b16 %v4435
        %v4452 = vunpack.c.l.b16 %v4436
        %v4453 = vunpack.c.h.b16 %v4436
        %v4454 = vunpack.c.l.b16 %v4437
        %v4455 = vunpack.c.h.b16 %v4437
        %v4456 = vpack.c.b16 %v4446, %v4444
        %v4457 = vpack.c.b16 %v4447, %v4445
        %v4458 = vpack.c.b16 %v4450, %v4448
        %v4459 = vpack.c.b16 %v4451, %v4449
        %v4460 = vpack.c.b16 %v4454, %v4452
        %v4461 = vpack.c.b16 %v4455, %v4453
        %v4469 = vsel %vm717, %v4427, 0
        %v4472 = vsel %vm717, %v4428, 0
        %v4475 = vsel %vm717, %v4429, 0
        %v4478 = vsel %vm717, %v4430, 0
        %4480 = vmatpush.bf16.msra.mxu0 0
        %4481 = vmatpush.bf16.msra.mxu0 0
        %4482 = vmatpush.bf16.msra.mxu0 0
        %4483 = vmatpush.bf16.msra.mxu0 0
        %4484 = vmatpush.bf16.msra.mxu0 0
        %4485 = vmatpush.bf16.msra.mxu0 %v4460
        %4486 = vmatpush.bf16.msra.mxu0 %v4458
        %4487 = vmatpush.bf16.msra.mxu0 %v4456
        %4488 = vmatmul.bf16.gmra.mxu0 %v4469
        %v4489 = vpop.f32.mrf.mxu0
        %v4490 = vadd.f32 0.0, %v4489
        %v4491 = vpop.f32.mrf.mxu0
        %v4492 = vadd.f32 0.0, %v4491
        %4493 = vmatmul.bf16.gmra.mxu0 %v4472
        %v4494 = vpop.f32.mrf.mxu0
        %v4495 = vadd.f32 0.0, %v4494
        %v4496 = vpop.f32.mrf.mxu0
        %v4497 = vadd.f32 0.0, %v4496
        %4498 = vmatmul.bf16.gmra.mxu0 %v4475
        %v4499 = vpop.f32.mrf.mxu0
        %v4500 = vadd.f32 0.0, %v4499
        %v4501 = vpop.f32.mrf.mxu0
        %v4502 = vadd.f32 0.0, %v4501
        %4503 = vmatmul.bf16.gmra.mxu0 %v4478
        %v4504 = vpop.f32.mrf.mxu0
        %v4505 = vadd.f32 0.0, %v4504
        %v4506 = vpop.f32.mrf.mxu0
        %v4507 = vadd.f32 0.0, %v4506
        %4508 = vdwg.mxu0
        %4509 = vmatpush.bf16.msra.mxu0 0
        %4510 = vmatpush.bf16.msra.mxu0 0
        %4511 = vmatpush.bf16.msra.mxu0 0
        %4512 = vmatpush.bf16.msra.mxu0 0
        %4513 = vmatpush.bf16.msra.mxu0 0
        %4514 = vmatpush.bf16.msra.mxu0 %v4461
        %4515 = vmatpush.bf16.msra.mxu0 %v4459
        %4516 = vmatpush.bf16.msra.mxu0 %v4457
        %4517 = vmatmul.bf16.gmra.mxu0 %v4469
        %v4518 = vpop.f32.mrf.mxu0
        %v4519 = vadd.f32 0.0, %v4518
        %v4520 = vpop.f32.mrf.mxu0
        %v4521 = vadd.f32 0.0, %v4520
        %4522 = vmatmul.bf16.gmra.mxu0 %v4472
        %v4523 = vpop.f32.mrf.mxu0
        %v4524 = vadd.f32 0.0, %v4523
        %v4525 = vpop.f32.mrf.mxu0
        %v4526 = vadd.f32 0.0, %v4525
        %4527 = vmatmul.bf16.gmra.mxu0 %v4475
        %v4528 = vpop.f32.mrf.mxu0
        %v4529 = vadd.f32 0.0, %v4528
        %v4530 = vpop.f32.mrf.mxu0
        %v4531 = vadd.f32 0.0, %v4530
        %4532 = vmatmul.bf16.gmra.mxu0 %v4478
        %v4533 = vpop.f32.mrf.mxu0
        %v4534 = vadd.f32 0.0, %v4533
        %v4535 = vpop.f32.mrf.mxu0
        %v4536 = vadd.f32 0.0, %v4535
        %4537 = vdwg.mxu0
        %v4538 = vadd.f32 %v4402, %v4490
        %v4539 = vadd.f32 %v4403, %v4519
        %v4540 = vadd.f32 %v4404, %v4492
        %v4541 = vadd.f32 %v4405, %v4521
        %v4542 = vadd.f32 %v4406, %v4495
        %v4543 = vadd.f32 %v4407, %v4524
        %v4544 = vadd.f32 %v4408, %v4497
        %v4545 = vadd.f32 %v4409, %v4526
        %v4546 = vadd.f32 %v4410, %v4500
        %v4547 = vadd.f32 %v4411, %v4529
        %v4548 = vadd.f32 %v4412, %v4502
        %v4549 = vadd.f32 %v4413, %v4531
        %v4550 = vadd.f32 %v4414, %v4505
        %v4551 = vadd.f32 %v4415, %v4534
        %v4552 = vadd.f32 %v4416, %v4507
        %v4553 = vadd.f32 %v4417, %v4536
        %v4554 = vld [vmem:[%s4068] sm:$0xfe]
        %v4555 = vld [vmem:[%s4068 + $0x8] sm:$0xfe]
        %v4556 = vld [vmem:[%s4068 + $0x10] sm:$0x1]
        %v4557 = vld [vmem:[%s4068 + $0x18] sm:$0x1]
        %v4558 = vld [vmem:[%s4068 + $0x20] sm:$0xfe]
        %v4559 = vld [vmem:[%s4068 + $0x28] sm:$0xfe]
        %v4560 = vld [vmem:[%s4068 + $0x30] sm:$0x1]
        %v4561 = vld [vmem:[%s4068 + $0x38] sm:$0x1]
        %v4562 = vld [vmem:[%s4068 + $0x40] sm:$0xfe]
        %v4563 = vld [vmem:[%s4068 + $0x48] sm:$0xfe]
        %v4564 = vld [vmem:[%s4068 + $0x50] sm:$0x1]
        %v4565 = vld [vmem:[%s4068 + $0x58] sm:$0x1]
        %v4566 = vld [vmem:[%s4068 + $0x60] sm:$0xfe]
        %v4567 = vld [vmem:[%s4068 + $0x68] sm:$0xfe]
        %v4568 = vld [vmem:[%s4068 + $0x70] sm:$0x1]
        %v4569 = vld [vmem:[%s4068 + $0x78] sm:$0x1]
        %v4570 = vld [vmem:[%s4068 + $0x80] sm:$0xfe]
        %v4571 = vld [vmem:[%s4068 + $0x88] sm:$0xfe]
        %v4572 = vld [vmem:[%s4068 + $0x90] sm:$0x1]
        %v4573 = vld [vmem:[%s4068 + $0x98] sm:$0x1]
        %v4574 = vld [vmem:[%s4068 + $0xa0] sm:$0xfe]
        %v4575 = vld [vmem:[%s4068 + $0xa8] sm:$0xfe]
        %v4576 = vld [vmem:[%s4068 + $0xb0] sm:$0x1]
        %v4577 = vld [vmem:[%s4068 + $0xb8] sm:$0x1]
        %v4578 = vld [vmem:[%s4068 + $0xc0] sm:$0xfe]
        %v4579 = vld [vmem:[%s4068 + $0xc8] sm:$0xfe]
        %v4580 = vld [vmem:[%s4068 + $0xd0] sm:$0x1]
        %v4581 = vld [vmem:[%s4068 + $0xd8] sm:$0x1]
        %v4582 = vld [vmem:[%s4068 + $0xe0] sm:$0xfe]
        %v4583 = vld [vmem:[%s4068 + $0xe8] sm:$0xfe]
        %v4584 = vld [vmem:[%s4068 + $0xf0] sm:$0x1]
        %v4585 = vld [vmem:[%s4068 + $0xf8] sm:$0x1]
        %v4618 = vrot.slane %v4554, 1
        %v4619 = vrot.slane %v4556, 1
        %v4620 = vsel %vm1262, %v4618, %v4619
        %v4621 = vrot.slane %v4555, 1
        %v4622 = vrot.slane %v4557, 1
        %v4623 = vsel %vm1262, %v4621, %v4622
        %v4624 = vrot.slane %v4558, 1
        %v4625 = vrot.slane %v4560, 1
        %v4626 = vsel %vm1262, %v4624, %v4625
        %v4627 = vrot.slane %v4559, 1
        %v4628 = vrot.slane %v4561, 1
        %v4629 = vsel %vm1262, %v4627, %v4628
        %v4630 = vrot.slane %v4562, 1
        %v4631 = vrot.slane %v4564, 1
        %v4632 = vsel %vm1262, %v4630, %v4631
        %v4633 = vrot.slane %v4563, 1
        %v4634 = vrot.slane %v4565, 1
        %v4635 = vsel %vm1262, %v4633, %v4634
        %v4636 = vrot.slane %v4566, 1
        %v4637 = vrot.slane %v4568, 1
        %v4638 = vsel %vm1262, %v4636, %v4637
        %v4639 = vrot.slane %v4567, 1
        %v4640 = vrot.slane %v4569, 1
        %v4641 = vsel %vm1262, %v4639, %v4640
        %v4642 = vrot.slane %v4570, 1
        %v4643 = vrot.slane %v4572, 1
        %v4644 = vsel %vm1262, %v4642, %v4643
        %v4645 = vrot.slane %v4571, 1
        %v4646 = vrot.slane %v4573, 1
        %v4647 = vsel %vm1262, %v4645, %v4646
        %v4648 = vrot.slane %v4574, 1
        %v4649 = vrot.slane %v4576, 1
        %v4650 = vsel %vm1262, %v4648, %v4649
        %v4651 = vrot.slane %v4575, 1
        %v4652 = vrot.slane %v4577, 1
        %v4653 = vsel %vm1262, %v4651, %v4652
        %v4654 = vrot.slane %v4578, 1
        %v4655 = vrot.slane %v4580, 1
        %v4656 = vsel %vm1262, %v4654, %v4655
        %v4657 = vrot.slane %v4579, 1
        %v4658 = vrot.slane %v4581, 1
        %v4659 = vsel %vm1262, %v4657, %v4658
        %v4660 = vrot.slane %v4582, 1
        %v4661 = vrot.slane %v4584, 1
        %v4662 = vsel %vm1262, %v4660, %v4661
        %v4663 = vrot.slane %v4583, 1
        %v4664 = vrot.slane %v4585, 1
        %v4665 = vsel %vm1262, %v4663, %v4664
        %v4682 = vpack.c.bf16 %v4626, %v4620
        %v4683 = vpack.c.bf16 %v4629, %v4623
        %v4684 = vpack.c.bf16 %v4638, %v4632
        %v4685 = vpack.c.bf16 %v4641, %v4635
        %v4686 = vpack.c.bf16 %v4650, %v4644
        %v4687 = vpack.c.bf16 %v4653, %v4647
        %v4688 = vpack.c.bf16 %v4662, %v4656
        %v4689 = vpack.c.bf16 %v4665, %v4659
        %s4690 = scalar_lea.vmem %s5, 1792
        %v4691 = vld [vmem:[%s4690] sm:$0xff]
        %v4692 = vld [vmem:[%s4690 + $0x8] sm:$0xff]
        %v4693 = vld [vmem:[%s4690 + $0x10] sm:$0xff]
        %v4694 = vld [vmem:[%s4690 + $0x18] sm:$0xff]
        %v4695 = vld [vmem:[%s4690 + $0x20] sm:$0xff]
        %v4696 = vld [vmem:[%s4690 + $0x28] sm:$0xff]
        %v4697 = vld [vmem:[%s4690 + $0x30] sm:$0xff]
        %v4698 = vld [vmem:[%s4690 + $0x38] sm:$0xff]
        %v4699 = vld [vmem:[%s4690 + $0x40] sm:$0xff]
        %v4700 = vld [vmem:[%s4690 + $0x48] sm:$0xff]
        %v4701 = vld [vmem:[%s4690 + $0x50] sm:$0xff]
        %v4702 = vld [vmem:[%s4690 + $0x58] sm:$0xff]
        %v4703 = vld [vmem:[%s4690 + $0x60] sm:$0xff]
        %v4704 = vld [vmem:[%s4690 + $0x68] sm:$0xff]
        %v4705 = vld [vmem:[%s4690 + $0x70] sm:$0xff]
        %v4706 = vld [vmem:[%s4690 + $0x78] sm:$0xff]
        %v4707 = vld [vmem:[%s4690 + $0x80] sm:$0xff]
        %v4708 = vld [vmem:[%s4690 + $0x88] sm:$0xff]
        %v4709 = vld [vmem:[%s4690 + $0x90] sm:$0xff]
        %v4710 = vld [vmem:[%s4690 + $0x98] sm:$0xff]
        %v4711 = vld [vmem:[%s4690 + $0xa0] sm:$0xff]
        %v4712 = vld [vmem:[%s4690 + $0xa8] sm:$0xff]
        %v4713 = vld [vmem:[%s4690 + $0xb0] sm:$0xff]
        %v4714 = vld [vmem:[%s4690 + $0xb8] sm:$0xff]
        %v4715 = vld [vmem:[%s4690 + $0xc0] sm:$0xff]
        %v4716 = vld [vmem:[%s4690 + $0xc8] sm:$0xff]
        %v4717 = vld [vmem:[%s4690 + $0xd0] sm:$0xff]
        %v4718 = vld [vmem:[%s4690 + $0xd8] sm:$0xff]
        %v4719 = vld [vmem:[%s4690 + $0xe0] sm:$0xff]
        %v4720 = vld [vmem:[%s4690 + $0xe8] sm:$0xff]
        %v4721 = vld [vmem:[%s4690 + $0xf0] sm:$0xff]
        %v4722 = vld [vmem:[%s4690 + $0xf8] sm:$0xff]
        %v4755 = vunpack.c.l.b16 %v4691
        %v4756 = vunpack.c.h.b16 %v4691
        %v4757 = vunpack.c.l.b16 %v4692
        %v4758 = vunpack.c.h.b16 %v4692
        %v4759 = vunpack.c.l.b16 %v4693
        %v4760 = vunpack.c.h.b16 %v4693
        %v4761 = vunpack.c.l.b16 %v4694
        %v4762 = vunpack.c.h.b16 %v4694
        %v4763 = vunpack.c.l.b16 %v4695
        %v4764 = vunpack.c.h.b16 %v4695
        %v4765 = vunpack.c.l.b16 %v4696
        %v4766 = vunpack.c.h.b16 %v4696
        %v4767 = vunpack.c.l.b16 %v4697
        %v4768 = vunpack.c.h.b16 %v4697
        %v4769 = vunpack.c.l.b16 %v4698
        %v4770 = vunpack.c.h.b16 %v4698
        %v4771 = vunpack.c.l.b16 %v4699
        %v4772 = vunpack.c.h.b16 %v4699
        %v4773 = vunpack.c.l.b16 %v4700
        %v4774 = vunpack.c.h.b16 %v4700
        %v4775 = vunpack.c.l.b16 %v4701
        %v4776 = vunpack.c.h.b16 %v4701
        %v4777 = vunpack.c.l.b16 %v4702
        %v4778 = vunpack.c.h.b16 %v4702
        %v4779 = vunpack.c.l.b16 %v4703
        %v4780 = vunpack.c.h.b16 %v4703
        %v4781 = vunpack.c.l.b16 %v4704
        %v4782 = vunpack.c.h.b16 %v4704
        %v4783 = vunpack.c.l.b16 %v4705
        %v4784 = vunpack.c.h.b16 %v4705
        %v4785 = vunpack.c.l.b16 %v4706
        %v4786 = vunpack.c.h.b16 %v4706
        %v4787 = vunpack.c.l.b16 %v4707
        %v4788 = vunpack.c.h.b16 %v4707
        %v4789 = vunpack.c.l.b16 %v4708
        %v4790 = vunpack.c.h.b16 %v4708
        %v4791 = vunpack.c.l.b16 %v4709
        %v4792 = vunpack.c.h.b16 %v4709
        %v4793 = vunpack.c.l.b16 %v4710
        %v4794 = vunpack.c.h.b16 %v4710
        %v4795 = vunpack.c.l.b16 %v4711
        %v4796 = vunpack.c.h.b16 %v4711
        %v4797 = vunpack.c.l.b16 %v4712
        %v4798 = vunpack.c.h.b16 %v4712
        %v4799 = vunpack.c.l.b16 %v4713
        %v4800 = vunpack.c.h.b16 %v4713
        %v4801 = vunpack.c.l.b16 %v4714
        %v4802 = vunpack.c.h.b16 %v4714
        %v4803 = vunpack.c.l.b16 %v4715
        %v4804 = vunpack.c.h.b16 %v4715
        %v4805 = vunpack.c.l.b16 %v4716
        %v4806 = vunpack.c.h.b16 %v4716
        %v4807 = vunpack.c.l.b16 %v4717
        %v4808 = vunpack.c.h.b16 %v4717
        %v4809 = vunpack.c.l.b16 %v4718
        %v4810 = vunpack.c.h.b16 %v4718
        %v4811 = vunpack.c.l.b16 %v4719
        %v4812 = vunpack.c.h.b16 %v4719
        %v4813 = vunpack.c.l.b16 %v4720
        %v4814 = vunpack.c.h.b16 %v4720
        %v4815 = vunpack.c.l.b16 %v4721
        %v4816 = vunpack.c.h.b16 %v4721
        %v4817 = vunpack.c.l.b16 %v4722
        %v4818 = vunpack.c.h.b16 %v4722
        %v4819 = vpack.c.b16 %v4757, %v4755
        %v4820 = vpack.c.b16 %v4758, %v4756
        %v4821 = vpack.c.b16 %v4761, %v4759
        %v4822 = vpack.c.b16 %v4762, %v4760
        %v4823 = vpack.c.b16 %v4765, %v4763
        %v4824 = vpack.c.b16 %v4766, %v4764
        %v4825 = vpack.c.b16 %v4769, %v4767
        %v4826 = vpack.c.b16 %v4770, %v4768
        %v4827 = vpack.c.b16 %v4773, %v4771
        %v4828 = vpack.c.b16 %v4774, %v4772
        %v4829 = vpack.c.b16 %v4777, %v4775
        %v4830 = vpack.c.b16 %v4778, %v4776
        %v4831 = vpack.c.b16 %v4781, %v4779
        %v4832 = vpack.c.b16 %v4782, %v4780
        %v4833 = vpack.c.b16 %v4785, %v4783
        %v4834 = vpack.c.b16 %v4786, %v4784
        %v4835 = vpack.c.b16 %v4789, %v4787
        %v4836 = vpack.c.b16 %v4790, %v4788
        %v4837 = vpack.c.b16 %v4793, %v4791
        %v4838 = vpack.c.b16 %v4794, %v4792
        %v4839 = vpack.c.b16 %v4797, %v4795
        %v4840 = vpack.c.b16 %v4798, %v4796
        %v4841 = vpack.c.b16 %v4801, %v4799
        %v4842 = vpack.c.b16 %v4802, %v4800
        %v4843 = vpack.c.b16 %v4805, %v4803
        %v4844 = vpack.c.b16 %v4806, %v4804
        %v4845 = vpack.c.b16 %v4809, %v4807
        %v4846 = vpack.c.b16 %v4810, %v4808
        %v4847 = vpack.c.b16 %v4813, %v4811
        %v4848 = vpack.c.b16 %v4814, %v4812
        %v4849 = vpack.c.b16 %v4817, %v4815
        %v4850 = vpack.c.b16 %v4818, %v4816
        %4883 = vmatpush.bf16.msra.mxu0 %v4833
        %4884 = vmatpush.bf16.msra.mxu0 %v4831
        %4885 = vmatpush.bf16.msra.mxu0 %v4829
        %4886 = vmatpush.bf16.msra.mxu0 %v4827
        %4887 = vmatpush.bf16.msra.mxu0 %v4825
        %4888 = vmatpush.bf16.msra.mxu0 %v4823
        %4889 = vmatpush.bf16.msra.mxu0 %v4821
        %4890 = vmatpush.bf16.msra.mxu0 %v4819
        %4891 = vmatmul.bf16.gmra.mxu0 %v4682
        %v4892 = vpop.f32.mrf.mxu0
        %v4893 = vadd.f32 0.0, %v4892
        %v4894 = vpop.f32.mrf.mxu0
        %v4895 = vadd.f32 0.0, %v4894
        %4896 = vmatmul.bf16.gmra.mxu0 %v4684
        %v4897 = vpop.f32.mrf.mxu0
        %v4898 = vadd.f32 0.0, %v4897
        %v4899 = vpop.f32.mrf.mxu0
        %v4900 = vadd.f32 0.0, %v4899
        %4901 = vmatmul.bf16.gmra.mxu0 %v4686
        %v4902 = vpop.f32.mrf.mxu0
        %v4903 = vadd.f32 0.0, %v4902
        %v4904 = vpop.f32.mrf.mxu0
        %v4905 = vadd.f32 0.0, %v4904
        %4906 = vmatmul.bf16.gmra.mxu0 %v4688
        %v4907 = vpop.f32.mrf.mxu0
        %v4908 = vadd.f32 0.0, %v4907
        %v4909 = vpop.f32.mrf.mxu0
        %v4910 = vadd.f32 0.0, %v4909
        %4911 = vdwg.mxu0
        %4912 = vmatpush.bf16.msra.mxu0 %v4849
        %4913 = vmatpush.bf16.msra.mxu0 %v4847
        %4914 = vmatpush.bf16.msra.mxu0 %v4845
        %4915 = vmatpush.bf16.msra.mxu0 %v4843
        %4916 = vmatpush.bf16.msra.mxu0 %v4841
        %4917 = vmatpush.bf16.msra.mxu0 %v4839
        %4918 = vmatpush.bf16.msra.mxu0 %v4837
        %4919 = vmatpush.bf16.msra.mxu0 %v4835
        %4920 = vmatmul.bf16.gmra.mxu0 %v4683
        %v4921 = vpop.f32.mrf.mxu0
        %v4922 = vadd.f32 %v4893, %v4921
        %v4923 = vpop.f32.mrf.mxu0
        %v4924 = vadd.f32 %v4895, %v4923
        %4925 = vmatmul.bf16.gmra.mxu0 %v4685
        %v4926 = vpop.f32.mrf.mxu0
        %v4927 = vadd.f32 %v4898, %v4926
        %v4928 = vpop.f32.mrf.mxu0
        %v4929 = vadd.f32 %v4900, %v4928
        %4930 = vmatmul.bf16.gmra.mxu0 %v4687
        %v4931 = vpop.f32.mrf.mxu0
        %v4932 = vadd.f32 %v4903, %v4931
        %v4933 = vpop.f32.mrf.mxu0
        %v4934 = vadd.f32 %v4905, %v4933
        %4935 = vmatmul.bf16.gmra.mxu0 %v4689
        %v4936 = vpop.f32.mrf.mxu0
        %v4937 = vadd.f32 %v4908, %v4936
        %v4938 = vpop.f32.mrf.mxu0
        %v4939 = vadd.f32 %v4910, %v4938
        %4940 = vdwg.mxu0
        %4941 = vmatpush.bf16.msra.mxu0 %v4834
        %4942 = vmatpush.bf16.msra.mxu0 %v4832
        %4943 = vmatpush.bf16.msra.mxu0 %v4830
        %4944 = vmatpush.bf16.msra.mxu0 %v4828
        %4945 = vmatpush.bf16.msra.mxu0 %v4826
        %4946 = vmatpush.bf16.msra.mxu0 %v4824
        %4947 = vmatpush.bf16.msra.mxu0 %v4822
        %4948 = vmatpush.bf16.msra.mxu0 %v4820
        %4949 = vmatmul.bf16.gmra.mxu0 %v4682
        %v4950 = vpop.f32.mrf.mxu0
        %v4951 = vadd.f32 0.0, %v4950
        %v4952 = vpop.f32.mrf.mxu0
        %v4953 = vadd.f32 0.0, %v4952
        %4954 = vmatmul.bf16.gmra.mxu0 %v4684
        %v4955 = vpop.f32.mrf.mxu0
        %v4956 = vadd.f32 0.0, %v4955
        %v4957 = vpop.f32.mrf.mxu0
        %v4958 = vadd.f32 0.0, %v4957
        %4959 = vmatmul.bf16.gmra.mxu0 %v4686
        %v4960 = vpop.f32.mrf.mxu0
        %v4961 = vadd.f32 0.0, %v4960
        %v4962 = vpop.f32.mrf.mxu0
        %v4963 = vadd.f32 0.0, %v4962
        %4964 = vmatmul.bf16.gmra.mxu0 %v4688
        %v4965 = vpop.f32.mrf.mxu0
        %v4966 = vadd.f32 0.0, %v4965
        %v4967 = vpop.f32.mrf.mxu0
        %v4968 = vadd.f32 0.0, %v4967
        %4969 = vdwg.mxu0
        %4970 = vmatpush.bf16.msra.mxu0 %v4850
        %4971 = vmatpush.bf16.msra.mxu0 %v4848
        %4972 = vmatpush.bf16.msra.mxu0 %v4846
        %4973 = vmatpush.bf16.msra.mxu0 %v4844
        %4974 = vmatpush.bf16.msra.mxu0 %v4842
        %4975 = vmatpush.bf16.msra.mxu0 %v4840
        %4976 = vmatpush.bf16.msra.mxu0 %v4838
        %4977 = vmatpush.bf16.msra.mxu0 %v4836
        %4978 = vmatmul.bf16.gmra.mxu0 %v4683
        %v4979 = vpop.f32.mrf.mxu0
        %v4980 = vadd.f32 %v4951, %v4979
        %v4981 = vpop.f32.mrf.mxu0
        %v4982 = vadd.f32 %v4953, %v4981
        %4983 = vmatmul.bf16.gmra.mxu0 %v4685
        %v4984 = vpop.f32.mrf.mxu0
        %v4985 = vadd.f32 %v4956, %v4984
        %v4986 = vpop.f32.mrf.mxu0
        %v4987 = vadd.f32 %v4958, %v4986
        %4988 = vmatmul.bf16.gmra.mxu0 %v4687
        %v4989 = vpop.f32.mrf.mxu0
        %v4990 = vadd.f32 %v4961, %v4989
        %v4991 = vpop.f32.mrf.mxu0
        %v4992 = vadd.f32 %v4963, %v4991
        %4993 = vmatmul.bf16.gmra.mxu0 %v4689
        %v4994 = vpop.f32.mrf.mxu0
        %v4995 = vadd.f32 %v4966, %v4994
        %v4996 = vpop.f32.mrf.mxu0
        %v4997 = vadd.f32 %v4968, %v4996
        %4998 = vdwg.mxu0
        %v4999 = vadd.f32 %v4538, %v4922
        %v5000 = vadd.f32 %v4539, %v4980
        %v5001 = vadd.f32 %v4540, %v4924
        %v5002 = vadd.f32 %v4541, %v4982
        %v5003 = vadd.f32 %v4542, %v4927
        %v5004 = vadd.f32 %v4543, %v4985
        %v5005 = vadd.f32 %v4544, %v4929
        %v5006 = vadd.f32 %v4545, %v4987
        %v5007 = vadd.f32 %v4546, %v4932
        %v5008 = vadd.f32 %v4547, %v4990
        %v5009 = vadd.f32 %v4548, %v4934
        %v5010 = vadd.f32 %v4549, %v4992
        %v5011 = vadd.f32 %v4550, %v4937
        %v5012 = vadd.f32 %v4551, %v4995
        %v5013 = vadd.f32 %v4552, %v4939
        %v5014 = vadd.f32 %v4553, %v4997
        %v5015 = vld [vmem:[%s4418 + $0x1] sm:$0xff]
        %v5016 = vld [vmem:[%s4418 + $0x11] sm:$0xff]
        %v5017 = vld [vmem:[%s4418 + $0x21] sm:$0xff]
        %v5018 = vld [vmem:[%s4418 + $0x31] sm:$0xff]
        %v5019 = vld [vmem:[%s4418 + $0x41] sm:$0xff]
        %v5020 = vld [vmem:[%s4418 + $0x51] sm:$0xff]
        %v5021 = vld [vmem:[%s4418 + $0x61] sm:$0xff]
        %v5022 = vld [vmem:[%s4418 + $0x71] sm:$0xff]
        %v5023 = vpack.c.bf16 %v5016, %v5015
        %v5024 = vpack.c.bf16 %v5018, %v5017
        %v5025 = vpack.c.bf16 %v5020, %v5019
        %v5026 = vpack.c.bf16 %v5022, %v5021
        %s5027 = scalar_lea.vmem [#allocation5], 336
        %v5028 = vld [vmem:[%s5027] sm:$0xff]
        %v5029 = vld [vmem:[%s5027 + $0x8] sm:$0xff]
        %v5030 = vld [vmem:[%s5027 + $0x10] sm:$0xff]
        %v5031 = vld [vmem:[%s5027 + $0x18] sm:$0xff]
        %v5032 = vld [vmem:[%s5027 + $0x20] sm:$0xff]
        %v5033 = vld [vmem:[%s5027 + $0x28] sm:$0xff]
        %v5040 = vunpack.c.l.b16 %v5028
        %v5041 = vunpack.c.h.b16 %v5028
        %v5042 = vunpack.c.l.b16 %v5029
        %v5043 = vunpack.c.h.b16 %v5029
        %v5044 = vunpack.c.l.b16 %v5030
        %v5045 = vunpack.c.h.b16 %v5030
        %v5046 = vunpack.c.l.b16 %v5031
        %v5047 = vunpack.c.h.b16 %v5031
        %v5048 = vunpack.c.l.b16 %v5032
        %v5049 = vunpack.c.h.b16 %v5032
        %v5050 = vunpack.c.l.b16 %v5033
        %v5051 = vunpack.c.h.b16 %v5033
        %v5052 = vpack.c.b16 %v5042, %v5040
        %v5053 = vpack.c.b16 %v5043, %v5041
        %v5054 = vpack.c.b16 %v5046, %v5044
        %v5055 = vpack.c.b16 %v5047, %v5045
        %v5056 = vpack.c.b16 %v5050, %v5048
        %v5057 = vpack.c.b16 %v5051, %v5049
        %v5065 = vsel %vm717, %v5023, 0
        %v5068 = vsel %vm717, %v5024, 0
        %v5071 = vsel %vm717, %v5025, 0
        %v5074 = vsel %vm717, %v5026, 0
        %5076 = vmatpush.bf16.msra.mxu0 0
        %5077 = vmatpush.bf16.msra.mxu0 0
        %5078 = vmatpush.bf16.msra.mxu0 0
        %5079 = vmatpush.bf16.msra.mxu0 0
        %5080 = vmatpush.bf16.msra.mxu0 0
        %5081 = vmatpush.bf16.msra.mxu0 %v5056
        %5082 = vmatpush.bf16.msra.mxu0 %v5054
        %5083 = vmatpush.bf16.msra.mxu0 %v5052
        %5084 = vmatmul.bf16.gmra.mxu0 %v5065
        %v5085 = vpop.f32.mrf.mxu0
        %v5086 = vadd.f32 0.0, %v5085
        %v5087 = vpop.f32.mrf.mxu0
        %v5088 = vadd.f32 0.0, %v5087
        %5089 = vmatmul.bf16.gmra.mxu0 %v5068
        %v5090 = vpop.f32.mrf.mxu0
        %v5091 = vadd.f32 0.0, %v5090
        %v5092 = vpop.f32.mrf.mxu0
        %v5093 = vadd.f32 0.0, %v5092
        %5094 = vmatmul.bf16.gmra.mxu0 %v5071
        %v5095 = vpop.f32.mrf.mxu0
        %v5096 = vadd.f32 0.0, %v5095
        %v5097 = vpop.f32.mrf.mxu0
        %v5098 = vadd.f32 0.0, %v5097
        %5099 = vmatmul.bf16.gmra.mxu0 %v5074
        %v5100 = vpop.f32.mrf.mxu0
        %v5101 = vadd.f32 0.0, %v5100
        %v5102 = vpop.f32.mrf.mxu0
        %v5103 = vadd.f32 0.0, %v5102
        %5104 = vdwg.mxu0
        %5105 = vmatpush.bf16.msra.mxu0 0
        %5106 = vmatpush.bf16.msra.mxu0 0
        %5107 = vmatpush.bf16.msra.mxu0 0
        %5108 = vmatpush.bf16.msra.mxu0 0
        %5109 = vmatpush.bf16.msra.mxu0 0
        %5110 = vmatpush.bf16.msra.mxu0 %v5057
        %5111 = vmatpush.bf16.msra.mxu0 %v5055
        %5112 = vmatpush.bf16.msra.mxu0 %v5053
        %5113 = vmatmul.bf16.gmra.mxu0 %v5065
        %v5114 = vpop.f32.mrf.mxu0
        %v5115 = vadd.f32 0.0, %v5114
        %v5116 = vpop.f32.mrf.mxu0
        %v5117 = vadd.f32 0.0, %v5116
        %5118 = vmatmul.bf16.gmra.mxu0 %v5068
        %v5119 = vpop.f32.mrf.mxu0
        %v5120 = vadd.f32 0.0, %v5119
        %v5121 = vpop.f32.mrf.mxu0
        %v5122 = vadd.f32 0.0, %v5121
        %5123 = vmatmul.bf16.gmra.mxu0 %v5071
        %v5124 = vpop.f32.mrf.mxu0
        %v5125 = vadd.f32 0.0, %v5124
        %v5126 = vpop.f32.mrf.mxu0
        %v5127 = vadd.f32 0.0, %v5126
        %5128 = vmatmul.bf16.gmra.mxu0 %v5074
        %v5129 = vpop.f32.mrf.mxu0
        %v5130 = vadd.f32 0.0, %v5129
        %v5131 = vpop.f32.mrf.mxu0
        %v5132 = vadd.f32 0.0, %v5131
        %5133 = vdwg.mxu0
        %v5134 = vadd.f32 %v4999, %v5086
        %v5135 = vadd.f32 %v5000, %v5115
        %v5136 = vadd.f32 %v5001, %v5088
        %v5137 = vadd.f32 %v5002, %v5117
        %v5138 = vadd.f32 %v5003, %v5091
        %v5139 = vadd.f32 %v5004, %v5120
        %v5140 = vadd.f32 %v5005, %v5093
        %v5141 = vadd.f32 %v5006, %v5122
        %v5142 = vadd.f32 %v5007, %v5096
        %v5143 = vadd.f32 %v5008, %v5125
        %v5144 = vadd.f32 %v5009, %v5098
        %v5145 = vadd.f32 %v5010, %v5127
        %v5146 = vadd.f32 %v5011, %v5101
        %v5147 = vadd.f32 %v5012, %v5130
        %v5148 = vadd.f32 %v5013, %v5103
        %v5149 = vadd.f32 %v5014, %v5132
        %v5150 = vld [vmem:[%s4068] sm:$0xfc]
        %v5151 = vld [vmem:[%s4068 + $0x8] sm:$0xfc]
        %v5152 = vld [vmem:[%s4068 + $0x10] sm:$0x3]
        %v5153 = vld [vmem:[%s4068 + $0x18] sm:$0x3]
        %v5154 = vld [vmem:[%s4068 + $0x20] sm:$0xfc]
        %v5155 = vld [vmem:[%s4068 + $0x28] sm:$0xfc]
        %v5156 = vld [vmem:[%s4068 + $0x30] sm:$0x3]
        %v5157 = vld [vmem:[%s4068 + $0x38] sm:$0x3]
        %v5158 = vld [vmem:[%s4068 + $0x40] sm:$0xfc]
        %v5159 = vld [vmem:[%s4068 + $0x48] sm:$0xfc]
        %v5160 = vld [vmem:[%s4068 + $0x50] sm:$0x3]
        %v5161 = vld [vmem:[%s4068 + $0x58] sm:$0x3]
        %v5162 = vld [vmem:[%s4068 + $0x60] sm:$0xfc]
        %v5163 = vld [vmem:[%s4068 + $0x68] sm:$0xfc]
        %v5164 = vld [vmem:[%s4068 + $0x70] sm:$0x3]
        %v5165 = vld [vmem:[%s4068 + $0x78] sm:$0x3]
        %v5166 = vld [vmem:[%s4068 + $0x80] sm:$0xfc]
        %v5167 = vld [vmem:[%s4068 + $0x88] sm:$0xfc]
        %v5168 = vld [vmem:[%s4068 + $0x90] sm:$0x3]
        %v5169 = vld [vmem:[%s4068 + $0x98] sm:$0x3]
        %v5170 = vld [vmem:[%s4068 + $0xa0] sm:$0xfc]
        %v5171 = vld [vmem:[%s4068 + $0xa8] sm:$0xfc]
        %v5172 = vld [vmem:[%s4068 + $0xb0] sm:$0x3]
        %v5173 = vld [vmem:[%s4068 + $0xb8] sm:$0x3]
        %v5174 = vld [vmem:[%s4068 + $0xc0] sm:$0xfc]
        %v5175 = vld [vmem:[%s4068 + $0xc8] sm:$0xfc]
        %v5176 = vld [vmem:[%s4068 + $0xd0] sm:$0x3]
        %v5177 = vld [vmem:[%s4068 + $0xd8] sm:$0x3]
        %v5178 = vld [vmem:[%s4068 + $0xe0] sm:$0xfc]
        %v5179 = vld [vmem:[%s4068 + $0xe8] sm:$0xfc]
        %v5180 = vld [vmem:[%s4068 + $0xf0] sm:$0x3]
        %v5181 = vld [vmem:[%s4068 + $0xf8] sm:$0x3]
        %v5214 = vrot.slane %v5150, 2
        %v5215 = vrot.slane %v5152, 2
        %v5216 = vsel %vm1859, %v5214, %v5215
        %v5217 = vrot.slane %v5151, 2
        %v5218 = vrot.slane %v5153, 2
        %v5219 = vsel %vm1859, %v5217, %v5218
        %v5220 = vrot.slane %v5154, 2
        %v5221 = vrot.slane %v5156, 2
        %v5222 = vsel %vm1859, %v5220, %v5221
        %v5223 = vrot.slane %v5155, 2
        %v5224 = vrot.slane %v5157, 2
        %v5225 = vsel %vm1859, %v5223, %v5224
        %v5226 = vrot.slane %v5158, 2
        %v5227 = vrot.slane %v5160, 2
        %v5228 = vsel %vm1859, %v5226, %v5227
        %v5229 = vrot.slane %v5159, 2
        %v5230 = vrot.slane %v5161, 2
        %v5231 = vsel %vm1859, %v5229, %v5230
        %v5232 = vrot.slane %v5162, 2
        %v5233 = vrot.slane %v5164, 2
        %v5234 = vsel %vm1859, %v5232, %v5233
        %v5235 = vrot.slane %v5163, 2
        %v5236 = vrot.slane %v5165, 2
        %v5237 = vsel %vm1859, %v5235, %v5236
        %v5238 = vrot.slane %v5166, 2
        %v5239 = vrot.slane %v5168, 2
        %v5240 = vsel %vm1859, %v5238, %v5239
        %v5241 = vrot.slane %v5167, 2
        %v5242 = vrot.slane %v5169, 2
        %v5243 = vsel %vm1859, %v5241, %v5242
        %v5244 = vrot.slane %v5170, 2
        %v5245 = vrot.slane %v5172, 2
        %v5246 = vsel %vm1859, %v5244, %v5245
        %v5247 = vrot.slane %v5171, 2
        %v5248 = vrot.slane %v5173, 2
        %v5249 = vsel %vm1859, %v5247, %v5248
        %v5250 = vrot.slane %v5174, 2
        %v5251 = vrot.slane %v5176, 2
        %v5252 = vsel %vm1859, %v5250, %v5251
        %v5253 = vrot.slane %v5175, 2
        %v5254 = vrot.slane %v5177, 2
        %v5255 = vsel %vm1859, %v5253, %v5254
        %v5256 = vrot.slane %v5178, 2
        %v5257 = vrot.slane %v5180, 2
        %v5258 = vsel %vm1859, %v5256, %v5257
        %v5259 = vrot.slane %v5179, 2
        %v5260 = vrot.slane %v5181, 2
        %v5261 = vsel %vm1859, %v5259, %v5260
        %v5278 = vpack.c.bf16 %v5222, %v5216
        %v5279 = vpack.c.bf16 %v5225, %v5219
        %v5280 = vpack.c.bf16 %v5234, %v5228
        %v5281 = vpack.c.bf16 %v5237, %v5231
        %v5282 = vpack.c.bf16 %v5246, %v5240
        %v5283 = vpack.c.bf16 %v5249, %v5243
        %v5284 = vpack.c.bf16 %v5258, %v5252
        %v5285 = vpack.c.bf16 %v5261, %v5255
        %s5286 = scalar_lea.vmem %s5, 2048
        %v5287 = vld [vmem:[%s5286] sm:$0xff]
        %v5288 = vld [vmem:[%s5286 + $0x8] sm:$0xff]
        %v5289 = vld [vmem:[%s5286 + $0x10] sm:$0xff]
        %v5290 = vld [vmem:[%s5286 + $0x18] sm:$0xff]
        %v5291 = vld [vmem:[%s5286 + $0x20] sm:$0xff]
        %v5292 = vld [vmem:[%s5286 + $0x28] sm:$0xff]
        %v5293 = vld [vmem:[%s5286 + $0x30] sm:$0xff]
        %v5294 = vld [vmem:[%s5286 + $0x38] sm:$0xff]
        %v5295 = vld [vmem:[%s5286 + $0x40] sm:$0xff]
        %v5296 = vld [vmem:[%s5286 + $0x48] sm:$0xff]
        %v5297 = vld [vmem:[%s5286 + $0x50] sm:$0xff]
        %v5298 = vld [vmem:[%s5286 + $0x58] sm:$0xff]
        %v5299 = vld [vmem:[%s5286 + $0x60] sm:$0xff]
        %v5300 = vld [vmem:[%s5286 + $0x68] sm:$0xff]
        %v5301 = vld [vmem:[%s5286 + $0x70] sm:$0xff]
        %v5302 = vld [vmem:[%s5286 + $0x78] sm:$0xff]
        %v5303 = vld [vmem:[%s5286 + $0x80] sm:$0xff]
        %v5304 = vld [vmem:[%s5286 + $0x88] sm:$0xff]
        %v5305 = vld [vmem:[%s5286 + $0x90] sm:$0xff]
        %v5306 = vld [vmem:[%s5286 + $0x98] sm:$0xff]
        %v5307 = vld [vmem:[%s5286 + $0xa0] sm:$0xff]
        %v5308 = vld [vmem:[%s5286 + $0xa8] sm:$0xff]
        %v5309 = vld [vmem:[%s5286 + $0xb0] sm:$0xff]
        %v5310 = vld [vmem:[%s5286 + $0xb8] sm:$0xff]
        %v5311 = vld [vmem:[%s5286 + $0xc0] sm:$0xff]
        %v5312 = vld [vmem:[%s5286 + $0xc8] sm:$0xff]
        %v5313 = vld [vmem:[%s5286 + $0xd0] sm:$0xff]
        %v5314 = vld [vmem:[%s5286 + $0xd8] sm:$0xff]
        %v5315 = vld [vmem:[%s5286 + $0xe0] sm:$0xff]
        %v5316 = vld [vmem:[%s5286 + $0xe8] sm:$0xff]
        %v5317 = vld [vmem:[%s5286 + $0xf0] sm:$0xff]
        %v5318 = vld [vmem:[%s5286 + $0xf8] sm:$0xff]
        %v5351 = vunpack.c.l.b16 %v5287
        %v5352 = vunpack.c.h.b16 %v5287
        %v5353 = vunpack.c.l.b16 %v5288
        %v5354 = vunpack.c.h.b16 %v5288
        %v5355 = vunpack.c.l.b16 %v5289
        %v5356 = vunpack.c.h.b16 %v5289
        %v5357 = vunpack.c.l.b16 %v5290
        %v5358 = vunpack.c.h.b16 %v5290
        %v5359 = vunpack.c.l.b16 %v5291
        %v5360 = vunpack.c.h.b16 %v5291
        %v5361 = vunpack.c.l.b16 %v5292
        %v5362 = vunpack.c.h.b16 %v5292
        %v5363 = vunpack.c.l.b16 %v5293
        %v5364 = vunpack.c.h.b16 %v5293
        %v5365 = vunpack.c.l.b16 %v5294
        %v5366 = vunpack.c.h.b16 %v5294
        %v5367 = vunpack.c.l.b16 %v5295
        %v5368 = vunpack.c.h.b16 %v5295
        %v5369 = vunpack.c.l.b16 %v5296
        %v5370 = vunpack.c.h.b16 %v5296
        %v5371 = vunpack.c.l.b16 %v5297
        %v5372 = vunpack.c.h.b16 %v5297
        %v5373 = vunpack.c.l.b16 %v5298
        %v5374 = vunpack.c.h.b16 %v5298
        %v5375 = vunpack.c.l.b16 %v5299
        %v5376 = vunpack.c.h.b16 %v5299
        %v5377 = vunpack.c.l.b16 %v5300
        %v5378 = vunpack.c.h.b16 %v5300
        %v5379 = vunpack.c.l.b16 %v5301
        %v5380 = vunpack.c.h.b16 %v5301
        %v5381 = vunpack.c.l.b16 %v5302
        %v5382 = vunpack.c.h.b16 %v5302
        %v5383 = vunpack.c.l.b16 %v5303
        %v5384 = vunpack.c.h.b16 %v5303
        %v5385 = vunpack.c.l.b16 %v5304
        %v5386 = vunpack.c.h.b16 %v5304
        %v5387 = vunpack.c.l.b16 %v5305
        %v5388 = vunpack.c.h.b16 %v5305
        %v5389 = vunpack.c.l.b16 %v5306
        %v5390 = vunpack.c.h.b16 %v5306
        %v5391 = vunpack.c.l.b16 %v5307
        %v5392 = vunpack.c.h.b16 %v5307
        %v5393 = vunpack.c.l.b16 %v5308
        %v5394 = vunpack.c.h.b16 %v5308
        %v5395 = vunpack.c.l.b16 %v5309
        %v5396 = vunpack.c.h.b16 %v5309
        %v5397 = vunpack.c.l.b16 %v5310
        %v5398 = vunpack.c.h.b16 %v5310
        %v5399 = vunpack.c.l.b16 %v5311
        %v5400 = vunpack.c.h.b16 %v5311
        %v5401 = vunpack.c.l.b16 %v5312
        %v5402 = vunpack.c.h.b16 %v5312
        %v5403 = vunpack.c.l.b16 %v5313
        %v5404 = vunpack.c.h.b16 %v5313
        %v5405 = vunpack.c.l.b16 %v5314
        %v5406 = vunpack.c.h.b16 %v5314
        %v5407 = vunpack.c.l.b16 %v5315
        %v5408 = vunpack.c.h.b16 %v5315
        %v5409 = vunpack.c.l.b16 %v5316
        %v5410 = vunpack.c.h.b16 %v5316
        %v5411 = vunpack.c.l.b16 %v5317
        %v5412 = vunpack.c.h.b16 %v5317
        %v5413 = vunpack.c.l.b16 %v5318
        %v5414 = vunpack.c.h.b16 %v5318
        %v5415 = vpack.c.b16 %v5353, %v5351
        %v5416 = vpack.c.b16 %v5354, %v5352
        %v5417 = vpack.c.b16 %v5357, %v5355
        %v5418 = vpack.c.b16 %v5358, %v5356
        %v5419 = vpack.c.b16 %v5361, %v5359
        %v5420 = vpack.c.b16 %v5362, %v5360
        %v5421 = vpack.c.b16 %v5365, %v5363
        %v5422 = vpack.c.b16 %v5366, %v5364
        %v5423 = vpack.c.b16 %v5369, %v5367
        %v5424 = vpack.c.b16 %v5370, %v5368
        %v5425 = vpack.c.b16 %v5373, %v5371
        %v5426 = vpack.c.b16 %v5374, %v5372
        %v5427 = vpack.c.b16 %v5377, %v5375
        %v5428 = vpack.c.b16 %v5378, %v5376
        %v5429 = vpack.c.b16 %v5381, %v5379
        %v5430 = vpack.c.b16 %v5382, %v5380
        %v5431 = vpack.c.b16 %v5385, %v5383
        %v5432 = vpack.c.b16 %v5386, %v5384
        %v5433 = vpack.c.b16 %v5389, %v5387
        %v5434 = vpack.c.b16 %v5390, %v5388
        %v5435 = vpack.c.b16 %v5393, %v5391
        %v5436 = vpack.c.b16 %v5394, %v5392
        %v5437 = vpack.c.b16 %v5397, %v5395
        %v5438 = vpack.c.b16 %v5398, %v5396
        %v5439 = vpack.c.b16 %v5401, %v5399
        %v5440 = vpack.c.b16 %v5402, %v5400
        %v5441 = vpack.c.b16 %v5405, %v5403
        %v5442 = vpack.c.b16 %v5406, %v5404
        %v5443 = vpack.c.b16 %v5409, %v5407
        %v5444 = vpack.c.b16 %v5410, %v5408
        %v5445 = vpack.c.b16 %v5413, %v5411
        %v5446 = vpack.c.b16 %v5414, %v5412
        %5479 = vmatpush.bf16.msra.mxu0 %v5429
        %5480 = vmatpush.bf16.msra.mxu0 %v5427
        %5481 = vmatpush.bf16.msra.mxu0 %v5425
        %5482 = vmatpush.bf16.msra.mxu0 %v5423
        %5483 = vmatpush.bf16.msra.mxu0 %v5421
        %5484 = vmatpush.bf16.msra.mxu0 %v5419
        %5485 = vmatpush.bf16.msra.mxu0 %v5417
        %5486 = vmatpush.bf16.msra.mxu0 %v5415
        %5487 = vmatmul.bf16.gmra.mxu0 %v5278
        %v5488 = vpop.f32.mrf.mxu0
        %v5489 = vadd.f32 0.0, %v5488
        %v5490 = vpop.f32.mrf.mxu0
        %v5491 = vadd.f32 0.0, %v5490
        %5492 = vmatmul.bf16.gmra.mxu0 %v5280
        %v5493 = vpop.f32.mrf.mxu0
        %v5494 = vadd.f32 0.0, %v5493
        %v5495 = vpop.f32.mrf.mxu0
        %v5496 = vadd.f32 0.0, %v5495
        %5497 = vmatmul.bf16.gmra.mxu0 %v5282
        %v5498 = vpop.f32.mrf.mxu0
        %v5499 = vadd.f32 0.0, %v5498
        %v5500 = vpop.f32.mrf.mxu0
        %v5501 = vadd.f32 0.0, %v5500
        %5502 = vmatmul.bf16.gmra.mxu0 %v5284
        %v5503 = vpop.f32.mrf.mxu0
        %v5504 = vadd.f32 0.0, %v5503
        %v5505 = vpop.f32.mrf.mxu0
        %v5506 = vadd.f32 0.0, %v5505
        %5507 = vdwg.mxu0
        %5508 = vmatpush.bf16.msra.mxu0 %v5445
        %5509 = vmatpush.bf16.msra.mxu0 %v5443
        %5510 = vmatpush.bf16.msra.mxu0 %v5441
        %5511 = vmatpush.bf16.msra.mxu0 %v5439
        %5512 = vmatpush.bf16.msra.mxu0 %v5437
        %5513 = vmatpush.bf16.msra.mxu0 %v5435
        %5514 = vmatpush.bf16.msra.mxu0 %v5433
        %5515 = vmatpush.bf16.msra.mxu0 %v5431
        %5516 = vmatmul.bf16.gmra.mxu0 %v5279
        %v5517 = vpop.f32.mrf.mxu0
        %v5518 = vadd.f32 %v5489, %v5517
        %v5519 = vpop.f32.mrf.mxu0
        %v5520 = vadd.f32 %v5491, %v5519
        %5521 = vmatmul.bf16.gmra.mxu0 %v5281
        %v5522 = vpop.f32.mrf.mxu0
        %v5523 = vadd.f32 %v5494, %v5522
        %v5524 = vpop.f32.mrf.mxu0
        %v5525 = vadd.f32 %v5496, %v5524
        %5526 = vmatmul.bf16.gmra.mxu0 %v5283
        %v5527 = vpop.f32.mrf.mxu0
        %v5528 = vadd.f32 %v5499, %v5527
        %v5529 = vpop.f32.mrf.mxu0
        %v5530 = vadd.f32 %v5501, %v5529
        %5531 = vmatmul.bf16.gmra.mxu0 %v5285
        %v5532 = vpop.f32.mrf.mxu0
        %v5533 = vadd.f32 %v5504, %v5532
        %v5534 = vpop.f32.mrf.mxu0
        %v5535 = vadd.f32 %v5506, %v5534
        %5536 = vdwg.mxu0
        %5537 = vmatpush.bf16.msra.mxu0 %v5430
        %5538 = vmatpush.bf16.msra.mxu0 %v5428
        %5539 = vmatpush.bf16.msra.mxu0 %v5426
        %5540 = vmatpush.bf16.msra.mxu0 %v5424
        %5541 = vmatpush.bf16.msra.mxu0 %v5422
        %5542 = vmatpush.bf16.msra.mxu0 %v5420
        %5543 = vmatpush.bf16.msra.mxu0 %v5418
        %5544 = vmatpush.bf16.msra.mxu0 %v5416
        %5545 = vmatmul.bf16.gmra.mxu0 %v5278
        %v5546 = vpop.f32.mrf.mxu0
        %v5547 = vadd.f32 0.0, %v5546
        %v5548 = vpop.f32.mrf.mxu0
        %v5549 = vadd.f32 0.0, %v5548
        %5550 = vmatmul.bf16.gmra.mxu0 %v5280
        %v5551 = vpop.f32.mrf.mxu0
        %v5552 = vadd.f32 0.0, %v5551
        %v5553 = vpop.f32.mrf.mxu0
        %v5554 = vadd.f32 0.0, %v5553
        %5555 = vmatmul.bf16.gmra.mxu0 %v5282
        %v5556 = vpop.f32.mrf.mxu0
        %v5557 = vadd.f32 0.0, %v5556
        %v5558 = vpop.f32.mrf.mxu0
        %v5559 = vadd.f32 0.0, %v5558
        %5560 = vmatmul.bf16.gmra.mxu0 %v5284
        %v5561 = vpop.f32.mrf.mxu0
        %v5562 = vadd.f32 0.0, %v5561
        %v5563 = vpop.f32.mrf.mxu0
        %v5564 = vadd.f32 0.0, %v5563
        %5565 = vdwg.mxu0
        %5566 = vmatpush.bf16.msra.mxu0 %v5446
        %5567 = vmatpush.bf16.msra.mxu0 %v5444
        %5568 = vmatpush.bf16.msra.mxu0 %v5442
        %5569 = vmatpush.bf16.msra.mxu0 %v5440
        %5570 = vmatpush.bf16.msra.mxu0 %v5438
        %5571 = vmatpush.bf16.msra.mxu0 %v5436
        %5572 = vmatpush.bf16.msra.mxu0 %v5434
        %5573 = vmatpush.bf16.msra.mxu0 %v5432
        %5574 = vmatmul.bf16.gmra.mxu0 %v5279
        %v5575 = vpop.f32.mrf.mxu0
        %v5576 = vadd.f32 %v5547, %v5575
        %v5577 = vpop.f32.mrf.mxu0
        %v5578 = vadd.f32 %v5549, %v5577
        %5579 = vmatmul.bf16.gmra.mxu0 %v5281
        %v5580 = vpop.f32.mrf.mxu0
        %v5581 = vadd.f32 %v5552, %v5580
        %v5582 = vpop.f32.mrf.mxu0
        %v5583 = vadd.f32 %v5554, %v5582
        %5584 = vmatmul.bf16.gmra.mxu0 %v5283
        %v5585 = vpop.f32.mrf.mxu0
        %v5586 = vadd.f32 %v5557, %v5585
        %v5587 = vpop.f32.mrf.mxu0
        %v5588 = vadd.f32 %v5559, %v5587
        %5589 = vmatmul.bf16.gmra.mxu0 %v5285
        %v5590 = vpop.f32.mrf.mxu0
        %v5591 = vadd.f32 %v5562, %v5590
        %v5592 = vpop.f32.mrf.mxu0
        %v5593 = vadd.f32 %v5564, %v5592
        %5594 = vdwg.mxu0
        %v5595 = vadd.f32 %v5134, %v5518
        %v5596 = vadd.f32 %v5135, %v5576
        %v5597 = vadd.f32 %v5136, %v5520
        %v5598 = vadd.f32 %v5137, %v5578
        %v5599 = vadd.f32 %v5138, %v5523
        %v5600 = vadd.f32 %v5139, %v5581
        %v5601 = vadd.f32 %v5140, %v5525
        %v5602 = vadd.f32 %v5141, %v5583
        %v5603 = vadd.f32 %v5142, %v5528
        %v5604 = vadd.f32 %v5143, %v5586
        %v5605 = vadd.f32 %v5144, %v5530
        %v5606 = vadd.f32 %v5145, %v5588
        %v5607 = vadd.f32 %v5146, %v5533
        %v5608 = vadd.f32 %v5147, %v5591
        %v5609 = vadd.f32 %v5148, %v5535
        %v5610 = vadd.f32 %v5149, %v5593
        %v5611 = vld [vmem:[%s4418 + $0x2] sm:$0xff]
        %v5612 = vld [vmem:[%s4418 + $0x12] sm:$0xff]
        %v5613 = vld [vmem:[%s4418 + $0x22] sm:$0xff]
        %v5614 = vld [vmem:[%s4418 + $0x32] sm:$0xff]
        %v5615 = vld [vmem:[%s4418 + $0x42] sm:$0xff]
        %v5616 = vld [vmem:[%s4418 + $0x52] sm:$0xff]
        %v5617 = vld [vmem:[%s4418 + $0x62] sm:$0xff]
        %v5618 = vld [vmem:[%s4418 + $0x72] sm:$0xff]
        %v5619 = vpack.c.bf16 %v5612, %v5611
        %v5620 = vpack.c.bf16 %v5614, %v5613
        %v5621 = vpack.c.bf16 %v5616, %v5615
        %v5622 = vpack.c.bf16 %v5618, %v5617
        %s5623 = scalar_lea.vmem [#allocation5], 384
        %v5624 = vld [vmem:[%s5623] sm:$0xff]
        %v5625 = vld [vmem:[%s5623 + $0x8] sm:$0xff]
        %v5626 = vld [vmem:[%s5623 + $0x10] sm:$0xff]
        %v5627 = vld [vmem:[%s5623 + $0x18] sm:$0xff]
        %v5628 = vld [vmem:[%s5623 + $0x20] sm:$0xff]
        %v5629 = vld [vmem:[%s5623 + $0x28] sm:$0xff]
        %v5636 = vunpack.c.l.b16 %v5624
        %v5637 = vunpack.c.h.b16 %v5624
        %v5638 = vunpack.c.l.b16 %v5625
        %v5639 = vunpack.c.h.b16 %v5625
        %v5640 = vunpack.c.l.b16 %v5626
        %v5641 = vunpack.c.h.b16 %v5626
        %v5642 = vunpack.c.l.b16 %v5627
        %v5643 = vunpack.c.h.b16 %v5627
        %v5644 = vunpack.c.l.b16 %v5628
        %v5645 = vunpack.c.h.b16 %v5628
        %v5646 = vunpack.c.l.b16 %v5629
        %v5647 = vunpack.c.h.b16 %v5629
        %v5648 = vpack.c.b16 %v5638, %v5636
        %v5649 = vpack.c.b16 %v5639, %v5637
        %v5650 = vpack.c.b16 %v5642, %v5640
        %v5651 = vpack.c.b16 %v5643, %v5641
        %v5652 = vpack.c.b16 %v5646, %v5644
        %v5653 = vpack.c.b16 %v5647, %v5645
        %v5661 = vsel %vm717, %v5619, 0
        %v5664 = vsel %vm717, %v5620, 0
        %v5667 = vsel %vm717, %v5621, 0
        %v5670 = vsel %vm717, %v5622, 0
        %5672 = vmatpush.bf16.msra.mxu0 0
        %5673 = vmatpush.bf16.msra.mxu0 0
        %5674 = vmatpush.bf16.msra.mxu0 0
        %5675 = vmatpush.bf16.msra.mxu0 0
        %5676 = vmatpush.bf16.msra.mxu0 0
        %5677 = vmatpush.bf16.msra.mxu0 %v5652
        %5678 = vmatpush.bf16.msra.mxu0 %v5650
        %5679 = vmatpush.bf16.msra.mxu0 %v5648
        %5680 = vmatmul.bf16.gmra.mxu0 %v5661
        %v5681 = vpop.f32.mrf.mxu0
        %v5682 = vadd.f32 0.0, %v5681
        %v5683 = vpop.f32.mrf.mxu0
        %v5684 = vadd.f32 0.0, %v5683
        %5685 = vmatmul.bf16.gmra.mxu0 %v5664
        %v5686 = vpop.f32.mrf.mxu0
        %v5687 = vadd.f32 0.0, %v5686
        %v5688 = vpop.f32.mrf.mxu0
        %v5689 = vadd.f32 0.0, %v5688
        %5690 = vmatmul.bf16.gmra.mxu0 %v5667
        %v5691 = vpop.f32.mrf.mxu0
        %v5692 = vadd.f32 0.0, %v5691
        %v5693 = vpop.f32.mrf.mxu0
        %v5694 = vadd.f32 0.0, %v5693
        %5695 = vmatmul.bf16.gmra.mxu0 %v5670
        %v5696 = vpop.f32.mrf.mxu0
        %v5697 = vadd.f32 0.0, %v5696
        %v5698 = vpop.f32.mrf.mxu0
        %v5699 = vadd.f32 0.0, %v5698
        %5700 = vdwg.mxu0
        %5701 = vmatpush.bf16.msra.mxu0 0
        %5702 = vmatpush.bf16.msra.mxu0 0
        %5703 = vmatpush.bf16.msra.mxu0 0
        %5704 = vmatpush.bf16.msra.mxu0 0
        %5705 = vmatpush.bf16.msra.mxu0 0
        %5706 = vmatpush.bf16.msra.mxu0 %v5653
        %5707 = vmatpush.bf16.msra.mxu0 %v5651
        %5708 = vmatpush.bf16.msra.mxu0 %v5649
        %5709 = vmatmul.bf16.gmra.mxu0 %v5661
        %v5710 = vpop.f32.mrf.mxu0
        %v5711 = vadd.f32 0.0, %v5710
        %v5712 = vpop.f32.mrf.mxu0
        %v5713 = vadd.f32 0.0, %v5712
        %5714 = vmatmul.bf16.gmra.mxu0 %v5664
        %v5715 = vpop.f32.mrf.mxu0
        %v5716 = vadd.f32 0.0, %v5715
        %v5717 = vpop.f32.mrf.mxu0
        %v5718 = vadd.f32 0.0, %v5717
        %5719 = vmatmul.bf16.gmra.mxu0 %v5667
        %v5720 = vpop.f32.mrf.mxu0
        %v5721 = vadd.f32 0.0, %v5720
        %v5722 = vpop.f32.mrf.mxu0
        %v5723 = vadd.f32 0.0, %v5722
        %5724 = vmatmul.bf16.gmra.mxu0 %v5670
        %v5725 = vpop.f32.mrf.mxu0
        %v5726 = vadd.f32 0.0, %v5725
        %v5727 = vpop.f32.mrf.mxu0
        %v5728 = vadd.f32 0.0, %v5727
        %5729 = vdwg.mxu0
        %v5730 = vadd.f32 %v5595, %v5682
        %v5731 = vadd.f32 %v5596, %v5711
        %v5732 = vadd.f32 %v5597, %v5684
        %v5733 = vadd.f32 %v5598, %v5713
        %v5734 = vadd.f32 %v5599, %v5687
        %v5735 = vadd.f32 %v5600, %v5716
        %v5736 = vadd.f32 %v5601, %v5689
        %v5737 = vadd.f32 %v5602, %v5718
        %v5738 = vadd.f32 %v5603, %v5692
        %v5739 = vadd.f32 %v5604, %v5721
        %v5740 = vadd.f32 %v5605, %v5694
        %v5741 = vadd.f32 %v5606, %v5723
        %v5742 = vadd.f32 %v5607, %v5697
        %v5743 = vadd.f32 %v5608, %v5726
        %v5744 = vadd.f32 %v5609, %v5699
        %v5745 = vadd.f32 %v5610, %v5728
        %v5746 = vld [vmem:[%s7] sm:$0x3]
        %v5748 = vperm.slane %v5746, 0
        %v5749 = vperm.slane %v5746, 1
        %v5752 = vadd.f32 %v5730, %v5748
        %v5753 = vadd.f32 %v5731, %v5749
        %v5754 = vadd.f32 %v5732, %v5748
        %v5755 = vadd.f32 %v5733, %v5749
        %v5756 = vadd.f32 %v5734, %v5748
        %v5757 = vadd.f32 %v5735, %v5749
        %v5758 = vadd.f32 %v5736, %v5748
        %v5759 = vadd.f32 %v5737, %v5749
        %v5760 = vadd.f32 %v5738, %v5748
        %v5761 = vadd.f32 %v5739, %v5749
        %v5762 = vadd.f32 %v5740, %v5748
        %v5763 = vadd.f32 %v5741, %v5749
        %v5764 = vadd.f32 %v5742, %v5748
        %v5765 = vadd.f32 %v5743, %v5749
        %v5766 = vadd.f32 %v5744, %v5748
        %v5767 = vadd.f32 %v5745, %v5749
        %v5768 = vmax.f32 %v5752, 0.0
        %v5769 = vmax.f32 %v5753, 0.0
        %v5770 = vmax.f32 %v5754, 0.0
        %v5771 = vmax.f32 %v5755, 0.0
        %v5772 = vmax.f32 %v5756, 0.0
        %v5773 = vmax.f32 %v5757, 0.0
        %v5774 = vmax.f32 %v5758, 0.0
        %v5775 = vmax.f32 %v5759, 0.0
        %v5776 = vmax.f32 %v5760, 0.0
        %v5777 = vmax.f32 %v5761, 0.0
        %v5778 = vmax.f32 %v5762, 0.0
        %v5779 = vmax.f32 %v5763, 0.0
        %v5780 = vmax.f32 %v5764, 0.0
        %v5781 = vmax.f32 %v5765, 0.0
        %v5782 = vmax.f32 %v5766, 0.0
        %v5783 = vmax.f32 %v5767, 0.0
        %5784 = vst [vmem:[#allocation4] sm:$0xff] 0.0
        %5785 = vst [vmem:[#allocation4 + $0x8] sm:$0xff] 0.0
        %5786 = vst [vmem:[#allocation4 + $0x10] sm:$0x3] 0.0
        %5787 = vst [vmem:[#allocation4 + $0x18] sm:$0x3] 0.0
        %5788 = vst [vmem:[#allocation4 + $0x20] sm:$0xff] 0.0
        %5789 = vst [vmem:[#allocation4 + $0x28] sm:$0xff] 0.0
        %5790 = vst [vmem:[#allocation4 + $0x30] sm:$0x3] 0.0
        %5791 = vst [vmem:[#allocation4 + $0x38] sm:$0x3] 0.0
        %5792 = vst [vmem:[#allocation4 + $0x40] sm:$0xff] 0.0
        %5793 = vst [vmem:[#allocation4 + $0x48] sm:$0xff] 0.0
        %5794 = vst [vmem:[#allocation4 + $0x50] sm:$0x3] 0.0
        %5795 = vst [vmem:[#allocation4 + $0x58] sm:$0x3] 0.0
        %5796 = vst [vmem:[#allocation4 + $0x60] sm:$0xff] 0.0
        %5797 = vst [vmem:[#allocation4 + $0x68] sm:$0xff] 0.0
        %5798 = vst [vmem:[#allocation4 + $0x70] sm:$0x3] 0.0
        %5799 = vst [vmem:[#allocation4 + $0x78] sm:$0x3] 0.0
        %5800 = vst [vmem:[#allocation4 + $0x80] sm:$0xff] 0.0
        %5801 = vst [vmem:[#allocation4 + $0x88] sm:$0xff] 0.0
        %5802 = vst [vmem:[#allocation4 + $0x90] sm:$0x3] 0.0
        %5803 = vst [vmem:[#allocation4 + $0x98] sm:$0x3] 0.0
        %5804 = vst [vmem:[#allocation4 + $0xa0] sm:$0xff] 0.0
        %5805 = vst [vmem:[#allocation4 + $0xa8] sm:$0xff] 0.0
        %5806 = vst [vmem:[#allocation4 + $0xb0] sm:$0x3] 0.0
        %5807 = vst [vmem:[#allocation4 + $0xb8] sm:$0x3] 0.0
        %5808 = vst [vmem:[#allocation4 + $0xc0] sm:$0xff] 0.0
        %5809 = vst [vmem:[#allocation4 + $0xc8] sm:$0xff] 0.0
        %5810 = vst [vmem:[#allocation4 + $0xd0] sm:$0x3] 0.0
        %5811 = vst [vmem:[#allocation4 + $0xd8] sm:$0x3] 0.0
        %5812 = vst [vmem:[#allocation4 + $0xe0] sm:$0xff] 0.0
        %5813 = vst [vmem:[#allocation4 + $0xe8] sm:$0xff] 0.0
        %5814 = vst [vmem:[#allocation4 + $0xf0] sm:$0x3] 0.0
        %5815 = vst [vmem:[#allocation4 + $0xf8] sm:$0x3] 0.0
        %5816 = vst [vmem:[#allocation4 + $0x100] sm:$0xff] 0.0
        %5817 = vst [vmem:[#allocation4 + $0x108] sm:$0xff] 0.0
        %5818 = vst [vmem:[#allocation4 + $0x110] sm:$0x3] 0.0
        %5819 = vst [vmem:[#allocation4 + $0x118] sm:$0x3] 0.0
        %5820 = vst [vmem:[#allocation4 + $0x120] sm:$0xff] 0.0
        %5821 = vst [vmem:[#allocation4 + $0x128] sm:$0xff] 0.0
        %5822 = vst [vmem:[#allocation4 + $0x130] sm:$0x3] 0.0
        %5823 = vst [vmem:[#allocation4 + $0x138] sm:$0x3] 0.0
        %v5840 = vrot.slane %v5768, 7
        %v5841 = vrot.slane %v5769, 7
        %v5842 = vrot.slane %v5770, 7
        %v5843 = vrot.slane %v5771, 7
        %v5844 = vrot.slane %v5772, 7
        %v5845 = vrot.slane %v5773, 7
        %v5846 = vrot.slane %v5774, 7
        %v5847 = vrot.slane %v5775, 7
        %v5848 = vrot.slane %v5776, 7
        %v5849 = vrot.slane %v5777, 7
        %v5850 = vrot.slane %v5778, 7
        %v5851 = vrot.slane %v5779, 7
        %v5852 = vrot.slane %v5780, 7
        %v5853 = vrot.slane %v5781, 7
        %v5854 = vrot.slane %v5782, 7
        %v5855 = vrot.slane %v5783, 7
        %s5872 = scalar_lea.vmem [#allocation4], 32
        %5873 = vst [vmem:[%s5872] sm:$0xfe] %v5840
        %5874 = vst [vmem:[%s5872 + $0x8] sm:$0xfe] %v5841
        %5875 = vst [vmem:[%s5872 + $0x10] sm:$0x1] %v5840
        %5876 = vst [vmem:[%s5872 + $0x18] sm:$0x1] %v5841
        %5877 = vst [vmem:[%s5872 + $0x20] sm:$0xfe] %v5842
        %5878 = vst [vmem:[%s5872 + $0x28] sm:$0xfe] %v5843
        %5879 = vst [vmem:[%s5872 + $0x30] sm:$0x1] %v5842
        %5880 = vst [vmem:[%s5872 + $0x38] sm:$0x1] %v5843
        %5881 = vst [vmem:[%s5872 + $0x40] sm:$0xfe] %v5844
        %5882 = vst [vmem:[%s5872 + $0x48] sm:$0xfe] %v5845
        %5883 = vst [vmem:[%s5872 + $0x50] sm:$0x1] %v5844
        %5884 = vst [vmem:[%s5872 + $0x58] sm:$0x1] %v5845
        %5885 = vst [vmem:[%s5872 + $0x60] sm:$0xfe] %v5846
        %5886 = vst [vmem:[%s5872 + $0x68] sm:$0xfe] %v5847
        %5887 = vst [vmem:[%s5872 + $0x70] sm:$0x1] %v5846
        %5888 = vst [vmem:[%s5872 + $0x78] sm:$0x1] %v5847
        %5889 = vst [vmem:[%s5872 + $0x80] sm:$0xfe] %v5848
        %5890 = vst [vmem:[%s5872 + $0x88] sm:$0xfe] %v5849
        %5891 = vst [vmem:[%s5872 + $0x90] sm:$0x1] %v5848
        %5892 = vst [vmem:[%s5872 + $0x98] sm:$0x1] %v5849
        %5893 = vst [vmem:[%s5872 + $0xa0] sm:$0xfe] %v5850
        %5894 = vst [vmem:[%s5872 + $0xa8] sm:$0xfe] %v5851
        %5895 = vst [vmem:[%s5872 + $0xb0] sm:$0x1] %v5850
        %5896 = vst [vmem:[%s5872 + $0xb8] sm:$0x1] %v5851
        %5897 = vst [vmem:[%s5872 + $0xc0] sm:$0xfe] %v5852
        %5898 = vst [vmem:[%s5872 + $0xc8] sm:$0xfe] %v5853
        %5899 = vst [vmem:[%s5872 + $0xd0] sm:$0x1] %v5852
        %5900 = vst [vmem:[%s5872 + $0xd8] sm:$0x1] %v5853
        %5901 = vst [vmem:[%s5872 + $0xe0] sm:$0xfe] %v5854
        %5902 = vst [vmem:[%s5872 + $0xe8] sm:$0xfe] %v5855
        %5903 = vst [vmem:[%s5872 + $0xf0] sm:$0x1] %v5854
        %5904 = vst [vmem:[%s5872 + $0xf8] sm:$0x1] %v5855
        %v5905 = vld [vmem:[#allocation4] sm:$0xff]
        %v5906 = vld [vmem:[#allocation4 + $0x8] sm:$0xff]
        %v5907 = vld [vmem:[#allocation4 + $0x20] sm:$0xff]
        %v5908 = vld [vmem:[#allocation4 + $0x28] sm:$0xff]
        %v5909 = vld [vmem:[#allocation4 + $0x40] sm:$0xff]
        %v5910 = vld [vmem:[#allocation4 + $0x48] sm:$0xff]
        %v5911 = vld [vmem:[#allocation4 + $0x60] sm:$0xff]
        %v5912 = vld [vmem:[#allocation4 + $0x68] sm:$0xff]
        %v5913 = vld [vmem:[#allocation4 + $0x80] sm:$0xff]
        %v5914 = vld [vmem:[#allocation4 + $0x88] sm:$0xff]
        %v5915 = vld [vmem:[#allocation4 + $0xa0] sm:$0xff]
        %v5916 = vld [vmem:[#allocation4 + $0xa8] sm:$0xff]
        %v5917 = vld [vmem:[#allocation4 + $0xc0] sm:$0xff]
        %v5918 = vld [vmem:[#allocation4 + $0xc8] sm:$0xff]
        %v5919 = vld [vmem:[#allocation4 + $0xe0] sm:$0xff]
        %v5920 = vld [vmem:[#allocation4 + $0xe8] sm:$0xff]
        %v5921 = vpack.c.bf16 %v5907, %v5905
        %v5922 = vpack.c.bf16 %v5908, %v5906
        %v5923 = vpack.c.bf16 %v5911, %v5909
        %v5924 = vpack.c.bf16 %v5912, %v5910
        %v5925 = vpack.c.bf16 %v5915, %v5913
        %v5926 = vpack.c.bf16 %v5916, %v5914
        %v5927 = vpack.c.bf16 %v5919, %v5917
        %v5928 = vpack.c.bf16 %v5920, %v5918
        %v5929 = vld [vmem:[%s8] sm:$0xf]
        %v5930 = vld [vmem:[%s8 + $0x4] sm:$0xf]
        %v5931 = vld [vmem:[%s8 + $0x8] sm:$0xf]
        %v5932 = vld [vmem:[%s8 + $0xc] sm:$0xf]
        %v5933 = vld [vmem:[%s8 + $0x10] sm:$0xf]
        %v5934 = vld [vmem:[%s8 + $0x14] sm:$0xf]
        %v5935 = vld [vmem:[%s8 + $0x18] sm:$0xf]
        %v5936 = vld [vmem:[%s8 + $0x1c] sm:$0xf]
        %v5937 = vld [vmem:[%s8 + $0x20] sm:$0xf]
        %v5938 = vld [vmem:[%s8 + $0x24] sm:$0xf]
        %v5939 = vld [vmem:[%s8 + $0x28] sm:$0xf]
        %v5940 = vld [vmem:[%s8 + $0x2c] sm:$0xf]
        %v5941 = vld [vmem:[%s8 + $0x30] sm:$0xf]
        %v5942 = vld [vmem:[%s8 + $0x34] sm:$0xf]
        %v5943 = vld [vmem:[%s8 + $0x38] sm:$0xf]
        %v5944 = vld [vmem:[%s8 + $0x3c] sm:$0xf]
        %v5945 = vld [vmem:[%s8 + $0x40] sm:$0xf]
        %v5946 = vld [vmem:[%s8 + $0x44] sm:$0xf]
        %v5947 = vld [vmem:[%s8 + $0x48] sm:$0xf]
        %v5948 = vld [vmem:[%s8 + $0x4c] sm:$0xf]
        %v5949 = vld [vmem:[%s8 + $0x50] sm:$0xf]
        %v5950 = vld [vmem:[%s8 + $0x54] sm:$0xf]
        %v5951 = vld [vmem:[%s8 + $0x58] sm:$0xf]
        %v5952 = vld [vmem:[%s8 + $0x5c] sm:$0xf]
        %v5953 = vld [vmem:[%s8 + $0x60] sm:$0xf]
        %v5954 = vld [vmem:[%s8 + $0x64] sm:$0xf]
        %v5955 = vld [vmem:[%s8 + $0x68] sm:$0xf]
        %v5956 = vld [vmem:[%s8 + $0x6c] sm:$0xf]
        %v5957 = vld [vmem:[%s8 + $0x70] sm:$0xf]
        %v5958 = vld [vmem:[%s8 + $0x74] sm:$0xf]
        %v5959 = vld [vmem:[%s8 + $0x78] sm:$0xf]
        %v5960 = vld [vmem:[%s8 + $0x7c] sm:$0xf]
        %v5961 = vld [vmem:[#allocation4] sm:$0xfe]
        %v5962 = vld [vmem:[#allocation4 + $0x8] sm:$0xfe]
        %v5963 = vld [vmem:[#allocation4 + $0x10] sm:$0x1]
        %v5964 = vld [vmem:[#allocation4 + $0x18] sm:$0x1]
        %v5965 = vld [vmem:[#allocation4 + $0x20] sm:$0xfe]
        %v5966 = vld [vmem:[#allocation4 + $0x28] sm:$0xfe]
        %v5967 = vld [vmem:[#allocation4 + $0x30] sm:$0x1]
        %v5968 = vld [vmem:[#allocation4 + $0x38] sm:$0x1]
        %v5969 = vld [vmem:[#allocation4 + $0x40] sm:$0xfe]
        %v5970 = vld [vmem:[#allocation4 + $0x48] sm:$0xfe]
        %v5971 = vld [vmem:[#allocation4 + $0x50] sm:$0x1]
        %v5972 = vld [vmem:[#allocation4 + $0x58] sm:$0x1]
        %v5973 = vld [vmem:[#allocation4 + $0x60] sm:$0xfe]
        %v5974 = vld [vmem:[#allocation4 + $0x68] sm:$0xfe]
        %v5975 = vld [vmem:[#allocation4 + $0x70] sm:$0x1]
        %v5976 = vld [vmem:[#allocation4 + $0x78] sm:$0x1]
        %v5977 = vld [vmem:[#allocation4 + $0x80] sm:$0xfe]
        %v5978 = vld [vmem:[#allocation4 + $0x88] sm:$0xfe]
        %v5979 = vld [vmem:[#allocation4 + $0x90] sm:$0x1]
        %v5980 = vld [vmem:[#allocation4 + $0x98] sm:$0x1]
        %v5981 = vld [vmem:[#allocation4 + $0xa0] sm:$0xfe]
        %v5982 = vld [vmem:[#allocation4 + $0xa8] sm:$0xfe]
        %v5983 = vld [vmem:[#allocation4 + $0xb0] sm:$0x1]
        %v5984 = vld [vmem:[#allocation4 + $0xb8] sm:$0x1]
        %v5985 = vld [vmem:[#allocation4 + $0xc0] sm:$0xfe]
        %v5986 = vld [vmem:[#allocation4 + $0xc8] sm:$0xfe]
        %v5987 = vld [vmem:[#allocation4 + $0xd0] sm:$0x1]
        %v5988 = vld [vmem:[#allocation4 + $0xd8] sm:$0x1]
        %v5989 = vld [vmem:[#allocation4 + $0xe0] sm:$0xfe]
        %v5990 = vld [vmem:[#allocation4 + $0xe8] sm:$0xfe]
        %v5991 = vld [vmem:[#allocation4 + $0xf0] sm:$0x1]
        %v5992 = vld [vmem:[#allocation4 + $0xf8] sm:$0x1]
        %v6025 = vrot.slane %v5961, 1
        %v6026 = vrot.slane %v5963, 1
        %v6027 = vsel %vm1262, %v6025, %v6026
        %v6028 = vrot.slane %v5962, 1
        %v6029 = vrot.slane %v5964, 1
        %v6030 = vsel %vm1262, %v6028, %v6029
        %v6031 = vrot.slane %v5965, 1
        %v6032 = vrot.slane %v5967, 1
        %v6033 = vsel %vm1262, %v6031, %v6032
        %v6034 = vrot.slane %v5966, 1
        %v6035 = vrot.slane %v5968, 1
        %v6036 = vsel %vm1262, %v6034, %v6035
        %v6037 = vrot.slane %v5969, 1
        %v6038 = vrot.slane %v5971, 1
        %v6039 = vsel %vm1262, %v6037, %v6038
        %v6040 = vrot.slane %v5970, 1
        %v6041 = vrot.slane %v5972, 1
        %v6042 = vsel %vm1262, %v6040, %v6041
        %v6043 = vrot.slane %v5973, 1
        %v6044 = vrot.slane %v5975, 1
        %v6045 = vsel %vm1262, %v6043, %v6044
        %v6046 = vrot.slane %v5974, 1
        %v6047 = vrot.slane %v5976, 1
        %v6048 = vsel %vm1262, %v6046, %v6047
        %v6049 = vrot.slane %v5977, 1
        %v6050 = vrot.slane %v5979, 1
        %v6051 = vsel %vm1262, %v6049, %v6050
        %v6052 = vrot.slane %v5978, 1
        %v6053 = vrot.slane %v5980, 1
        %v6054 = vsel %vm1262, %v6052, %v6053
        %v6055 = vrot.slane %v5981, 1
        %v6056 = vrot.slane %v5983, 1
        %v6057 = vsel %vm1262, %v6055, %v6056
        %v6058 = vrot.slane %v5982, 1
        %v6059 = vrot.slane %v5984, 1
        %v6060 = vsel %vm1262, %v6058, %v6059
        %v6061 = vrot.slane %v5985, 1
        %v6062 = vrot.slane %v5987, 1
        %v6063 = vsel %vm1262, %v6061, %v6062
        %v6064 = vrot.slane %v5986, 1
        %v6065 = vrot.slane %v5988, 1
        %v6066 = vsel %vm1262, %v6064, %v6065
        %v6067 = vrot.slane %v5989, 1
        %v6068 = vrot.slane %v5991, 1
        %v6069 = vsel %vm1262, %v6067, %v6068
        %v6070 = vrot.slane %v5990, 1
        %v6071 = vrot.slane %v5992, 1
        %v6072 = vsel %vm1262, %v6070, %v6071
        %v6089 = vpack.c.bf16 %v6033, %v6027
        %v6090 = vpack.c.bf16 %v6036, %v6030
        %v6091 = vpack.c.bf16 %v6045, %v6039
        %v6092 = vpack.c.bf16 %v6048, %v6042
        %v6093 = vpack.c.bf16 %v6057, %v6051
        %v6094 = vpack.c.bf16 %v6060, %v6054
        %v6095 = vpack.c.bf16 %v6069, %v6063
        %v6096 = vpack.c.bf16 %v6072, %v6066
        %s6097 = scalar_lea.vmem %s8, 128
        %v6098 = vld [vmem:[%s6097] sm:$0xf]
        %v6099 = vld [vmem:[%s6097 + $0x4] sm:$0xf]
        %v6100 = vld [vmem:[%s6097 + $0x8] sm:$0xf]
        %v6101 = vld [vmem:[%s6097 + $0xc] sm:$0xf]
        %v6102 = vld [vmem:[%s6097 + $0x10] sm:$0xf]
        %v6103 = vld [vmem:[%s6097 + $0x14] sm:$0xf]
        %v6104 = vld [vmem:[%s6097 + $0x18] sm:$0xf]
        %v6105 = vld [vmem:[%s6097 + $0x1c] sm:$0xf]
        %v6106 = vld [vmem:[%s6097 + $0x20] sm:$0xf]
        %v6107 = vld [vmem:[%s6097 + $0x24] sm:$0xf]
        %v6108 = vld [vmem:[%s6097 + $0x28] sm:$0xf]
        %v6109 = vld [vmem:[%s6097 + $0x2c] sm:$0xf]
        %v6110 = vld [vmem:[%s6097 + $0x30] sm:$0xf]
        %v6111 = vld [vmem:[%s6097 + $0x34] sm:$0xf]
        %v6112 = vld [vmem:[%s6097 + $0x38] sm:$0xf]
        %v6113 = vld [vmem:[%s6097 + $0x3c] sm:$0xf]
        %v6114 = vld [vmem:[%s6097 + $0x40] sm:$0xf]
        %v6115 = vld [vmem:[%s6097 + $0x44] sm:$0xf]
        %v6116 = vld [vmem:[%s6097 + $0x48] sm:$0xf]
        %v6117 = vld [vmem:[%s6097 + $0x4c] sm:$0xf]
        %v6118 = vld [vmem:[%s6097 + $0x50] sm:$0xf]
        %v6119 = vld [vmem:[%s6097 + $0x54] sm:$0xf]
        %v6120 = vld [vmem:[%s6097 + $0x58] sm:$0xf]
        %v6121 = vld [vmem:[%s6097 + $0x5c] sm:$0xf]
        %v6122 = vld [vmem:[%s6097 + $0x60] sm:$0xf]
        %v6123 = vld [vmem:[%s6097 + $0x64] sm:$0xf]
        %v6124 = vld [vmem:[%s6097 + $0x68] sm:$0xf]
        %v6125 = vld [vmem:[%s6097 + $0x6c] sm:$0xf]
        %v6126 = vld [vmem:[%s6097 + $0x70] sm:$0xf]
        %v6127 = vld [vmem:[%s6097 + $0x74] sm:$0xf]
        %v6128 = vld [vmem:[%s6097 + $0x78] sm:$0xf]
        %v6129 = vld [vmem:[%s6097 + $0x7c] sm:$0xf]
        %v6162 = vunpack.c.l.b16 %v6098
        %v6163 = vunpack.c.l.b16 %v6099
        %v6164 = vunpack.c.l.b16 %v6100
        %v6165 = vunpack.c.l.b16 %v6101
        %v6166 = vunpack.c.l.b16 %v6102
        %v6167 = vunpack.c.l.b16 %v6103
        %v6168 = vunpack.c.l.b16 %v6104
        %v6169 = vunpack.c.l.b16 %v6105
        %v6170 = vunpack.c.l.b16 %v6106
        %v6171 = vunpack.c.l.b16 %v6107
        %v6172 = vunpack.c.l.b16 %v6108
        %v6173 = vunpack.c.l.b16 %v6109
        %v6174 = vunpack.c.l.b16 %v6110
        %v6175 = vunpack.c.l.b16 %v6111
        %v6176 = vunpack.c.l.b16 %v6112
        %v6177 = vunpack.c.l.b16 %v6113
        %v6178 = vunpack.c.l.b16 %v6114
        %v6179 = vunpack.c.l.b16 %v6115
        %v6180 = vunpack.c.l.b16 %v6116
        %v6181 = vunpack.c.l.b16 %v6117
        %v6182 = vunpack.c.l.b16 %v6118
        %v6183 = vunpack.c.l.b16 %v6119
        %v6184 = vunpack.c.l.b16 %v6120
        %v6185 = vunpack.c.l.b16 %v6121
        %v6186 = vunpack.c.l.b16 %v6122
        %v6187 = vunpack.c.l.b16 %v6123
        %v6188 = vunpack.c.l.b16 %v6124
        %v6189 = vunpack.c.l.b16 %v6125
        %v6190 = vunpack.c.l.b16 %v6126
        %v6191 = vunpack.c.l.b16 %v6127
        %v6192 = vunpack.c.l.b16 %v6128
        %v6193 = vunpack.c.l.b16 %v6129
        %v6194 = vpack.c.b16 %v6163, %v6162
        %v6195 = vpack.c.b16 %v6165, %v6164
        %v6196 = vpack.c.b16 %v6167, %v6166
        %v6197 = vpack.c.b16 %v6169, %v6168
        %v6198 = vpack.c.b16 %v6171, %v6170
        %v6199 = vpack.c.b16 %v6173, %v6172
        %v6200 = vpack.c.b16 %v6175, %v6174
        %v6201 = vpack.c.b16 %v6177, %v6176
        %v6202 = vpack.c.b16 %v6179, %v6178
        %v6203 = vpack.c.b16 %v6181, %v6180
        %v6204 = vpack.c.b16 %v6183, %v6182
        %v6205 = vpack.c.b16 %v6185, %v6184
        %v6206 = vpack.c.b16 %v6187, %v6186
        %v6207 = vpack.c.b16 %v6189, %v6188
        %v6208 = vpack.c.b16 %v6191, %v6190
        %v6209 = vpack.c.b16 %v6193, %v6192
        %6226 = vmatpush.bf16.msra.mxu0 %v6201
        %6227 = vmatpush.bf16.msra.mxu0 %v6200
        %6228 = vmatpush.bf16.msra.mxu0 %v6199
        %6229 = vmatpush.bf16.msra.mxu0 %v6198
        %6230 = vmatpush.bf16.msra.mxu0 %v6197
        %6231 = vmatpush.bf16.msra.mxu0 %v6196
        %6232 = vmatpush.bf16.msra.mxu0 %v6195
        %6233 = vmatpush.bf16.msra.mxu0 %v6194
        %6234 = vmatmul.bf16.gmra.mxu0 %v6089
        %v6235 = vpop.f32.mrf.mxu0
        %v6236 = vadd.f32 0.0, %v6235
        %v6237 = vpop.f32.mrf.mxu0
        %v6238 = vadd.f32 0.0, %v6237
        %6239 = vmatmul.bf16.gmra.mxu0 %v6091
        %v6240 = vpop.f32.mrf.mxu0
        %v6241 = vadd.f32 0.0, %v6240
        %v6242 = vpop.f32.mrf.mxu0
        %v6243 = vadd.f32 0.0, %v6242
        %6244 = vmatmul.bf16.gmra.mxu0 %v6093
        %v6245 = vpop.f32.mrf.mxu0
        %v6246 = vadd.f32 0.0, %v6245
        %v6247 = vpop.f32.mrf.mxu0
        %v6248 = vadd.f32 0.0, %v6247
        %6249 = vmatmul.bf16.gmra.mxu0 %v6095
        %v6250 = vpop.f32.mrf.mxu0
        %v6251 = vadd.f32 0.0, %v6250
        %v6252 = vpop.f32.mrf.mxu0
        %v6253 = vadd.f32 0.0, %v6252
        %6254 = vdwg.mxu0
        %6255 = vmatpush.bf16.msra.mxu0 %v6209
        %6256 = vmatpush.bf16.msra.mxu0 %v6208
        %6257 = vmatpush.bf16.msra.mxu0 %v6207
        %6258 = vmatpush.bf16.msra.mxu0 %v6206
        %6259 = vmatpush.bf16.msra.mxu0 %v6205
        %6260 = vmatpush.bf16.msra.mxu0 %v6204
        %6261 = vmatpush.bf16.msra.mxu0 %v6203
        %6262 = vmatpush.bf16.msra.mxu0 %v6202
        %6263 = vmatmul.bf16.gmra.mxu0 %v6090
        %v6264 = vpop.f32.mrf.mxu0
        %v6265 = vadd.f32 %v6236, %v6264
        %v6266 = vpop.f32.mrf.mxu0
        %v6267 = vadd.f32 %v6238, %v6266
        %6268 = vmatmul.bf16.gmra.mxu0 %v6092
        %v6269 = vpop.f32.mrf.mxu0
        %v6270 = vadd.f32 %v6241, %v6269
        %v6271 = vpop.f32.mrf.mxu0
        %v6272 = vadd.f32 %v6243, %v6271
        %6273 = vmatmul.bf16.gmra.mxu0 %v6094
        %v6274 = vpop.f32.mrf.mxu0
        %v6275 = vadd.f32 %v6246, %v6274
        %v6276 = vpop.f32.mrf.mxu0
        %v6277 = vadd.f32 %v6248, %v6276
        %6278 = vmatmul.bf16.gmra.mxu0 %v6096
        %v6279 = vpop.f32.mrf.mxu0
        %v6280 = vadd.f32 %v6251, %v6279
        %v6281 = vpop.f32.mrf.mxu0
        %v6282 = vadd.f32 %v6253, %v6281
        %6283 = vdwg.mxu0
        %v6316 = vunpack.c.l.b16 %v5929
        %v6317 = vunpack.c.l.b16 %v5930
        %v6318 = vunpack.c.l.b16 %v5931
        %v6319 = vunpack.c.l.b16 %v5932
        %v6320 = vunpack.c.l.b16 %v5933
        %v6321 = vunpack.c.l.b16 %v5934
        %v6322 = vunpack.c.l.b16 %v5935
        %v6323 = vunpack.c.l.b16 %v5936
        %v6324 = vunpack.c.l.b16 %v5937
        %v6325 = vunpack.c.l.b16 %v5938
        %v6326 = vunpack.c.l.b16 %v5939
        %v6327 = vunpack.c.l.b16 %v5940
        %v6328 = vunpack.c.l.b16 %v5941
        %v6329 = vunpack.c.l.b16 %v5942
        %v6330 = vunpack.c.l.b16 %v5943
        %v6331 = vunpack.c.l.b16 %v5944
        %v6332 = vunpack.c.l.b16 %v5945
        %v6333 = vunpack.c.l.b16 %v5946
        %v6334 = vunpack.c.l.b16 %v5947
        %v6335 = vunpack.c.l.b16 %v5948
        %v6336 = vunpack.c.l.b16 %v5949
        %v6337 = vunpack.c.l.b16 %v5950
        %v6338 = vunpack.c.l.b16 %v5951
        %v6339 = vunpack.c.l.b16 %v5952
        %v6340 = vunpack.c.l.b16 %v5953
        %v6341 = vunpack.c.l.b16 %v5954
        %v6342 = vunpack.c.l.b16 %v5955
        %v6343 = vunpack.c.l.b16 %v5956
        %v6344 = vunpack.c.l.b16 %v5957
        %v6345 = vunpack.c.l.b16 %v5958
        %v6346 = vunpack.c.l.b16 %v5959
        %v6347 = vunpack.c.l.b16 %v5960
        %v6348 = vpack.c.b16 %v6317, %v6316
        %v6349 = vpack.c.b16 %v6319, %v6318
        %v6350 = vpack.c.b16 %v6321, %v6320
        %v6351 = vpack.c.b16 %v6323, %v6322
        %v6352 = vpack.c.b16 %v6325, %v6324
        %v6353 = vpack.c.b16 %v6327, %v6326
        %v6354 = vpack.c.b16 %v6329, %v6328
        %v6355 = vpack.c.b16 %v6331, %v6330
        %v6356 = vpack.c.b16 %v6333, %v6332
        %v6357 = vpack.c.b16 %v6335, %v6334
        %v6358 = vpack.c.b16 %v6337, %v6336
        %v6359 = vpack.c.b16 %v6339, %v6338
        %v6360 = vpack.c.b16 %v6341, %v6340
        %v6361 = vpack.c.b16 %v6343, %v6342
        %v6362 = vpack.c.b16 %v6345, %v6344
        %v6363 = vpack.c.b16 %v6347, %v6346
        %6380 = vmatpush.bf16.msra.mxu0 %v6355
        %6381 = vmatpush.bf16.msra.mxu0 %v6354
        %6382 = vmatpush.bf16.msra.mxu0 %v6353
        %6383 = vmatpush.bf16.msra.mxu0 %v6352
        %6384 = vmatpush.bf16.msra.mxu0 %v6351
        %6385 = vmatpush.bf16.msra.mxu0 %v6350
        %6386 = vmatpush.bf16.msra.mxu0 %v6349
        %6387 = vmatpush.bf16.msra.mxu0 %v6348
        %6388 = vmatmul.bf16.gmra.mxu0 %v5921
        %v6389 = vpop.f32.mrf.mxu0
        %v6390 = vadd.f32 %v6265, %v6389
        %v6391 = vpop.f32.mrf.mxu0
        %v6392 = vadd.f32 %v6267, %v6391
        %6393 = vmatmul.bf16.gmra.mxu0 %v5923
        %v6394 = vpop.f32.mrf.mxu0
        %v6395 = vadd.f32 %v6270, %v6394
        %v6396 = vpop.f32.mrf.mxu0
        %v6397 = vadd.f32 %v6272, %v6396
        %6398 = vmatmul.bf16.gmra.mxu0 %v5925
        %v6399 = vpop.f32.mrf.mxu0
        %v6400 = vadd.f32 %v6275, %v6399
        %v6401 = vpop.f32.mrf.mxu0
        %v6402 = vadd.f32 %v6277, %v6401
        %6403 = vmatmul.bf16.gmra.mxu0 %v5927
        %v6404 = vpop.f32.mrf.mxu0
        %v6405 = vadd.f32 %v6280, %v6404
        %v6406 = vpop.f32.mrf.mxu0
        %v6407 = vadd.f32 %v6282, %v6406
        %6408 = vdwg.mxu0
        %6409 = vmatpush.bf16.msra.mxu0 %v6363
        %6410 = vmatpush.bf16.msra.mxu0 %v6362
        %6411 = vmatpush.bf16.msra.mxu0 %v6361
        %6412 = vmatpush.bf16.msra.mxu0 %v6360
        %6413 = vmatpush.bf16.msra.mxu0 %v6359
        %6414 = vmatpush.bf16.msra.mxu0 %v6358
        %6415 = vmatpush.bf16.msra.mxu0 %v6357
        %6416 = vmatpush.bf16.msra.mxu0 %v6356
        %6417 = vmatmul.bf16.gmra.mxu0 %v5922
        %v6418 = vpop.f32.mrf.mxu0
        %v6419 = vadd.f32 %v6390, %v6418
        %v6420 = vpop.f32.mrf.mxu0
        %v6421 = vadd.f32 %v6392, %v6420
        %6422 = vmatmul.bf16.gmra.mxu0 %v5924
        %v6423 = vpop.f32.mrf.mxu0
        %v6424 = vadd.f32 %v6395, %v6423
        %v6425 = vpop.f32.mrf.mxu0
        %v6426 = vadd.f32 %v6397, %v6425
        %6427 = vmatmul.bf16.gmra.mxu0 %v5926
        %v6428 = vpop.f32.mrf.mxu0
        %v6429 = vadd.f32 %v6400, %v6428
        %v6430 = vpop.f32.mrf.mxu0
        %v6431 = vadd.f32 %v6402, %v6430
        %6432 = vmatmul.bf16.gmra.mxu0 %v5928
        %v6433 = vpop.f32.mrf.mxu0
        %v6434 = vadd.f32 %v6405, %v6433
        %v6435 = vpop.f32.mrf.mxu0
        %v6436 = vadd.f32 %v6407, %v6435
        %6437 = vdwg.mxu0
        %v6438 = vld [vmem:[#allocation4] sm:$0xfc]
        %v6439 = vld [vmem:[#allocation4 + $0x8] sm:$0xfc]
        %v6440 = vld [vmem:[#allocation4 + $0x10] sm:$0x3]
        %v6441 = vld [vmem:[#allocation4 + $0x18] sm:$0x3]
        %v6442 = vld [vmem:[#allocation4 + $0x20] sm:$0xfc]
        %v6443 = vld [vmem:[#allocation4 + $0x28] sm:$0xfc]
        %v6444 = vld [vmem:[#allocation4 + $0x30] sm:$0x3]
        %v6445 = vld [vmem:[#allocation4 + $0x38] sm:$0x3]
        %v6446 = vld [vmem:[#allocation4 + $0x40] sm:$0xfc]
        %v6447 = vld [vmem:[#allocation4 + $0x48] sm:$0xfc]
        %v6448 = vld [vmem:[#allocation4 + $0x50] sm:$0x3]
        %v6449 = vld [vmem:[#allocation4 + $0x58] sm:$0x3]
        %v6450 = vld [vmem:[#allocation4 + $0x60] sm:$0xfc]
        %v6451 = vld [vmem:[#allocation4 + $0x68] sm:$0xfc]
        %v6452 = vld [vmem:[#allocation4 + $0x70] sm:$0x3]
        %v6453 = vld [vmem:[#allocation4 + $0x78] sm:$0x3]
        %v6454 = vld [vmem:[#allocation4 + $0x80] sm:$0xfc]
        %v6455 = vld [vmem:[#allocation4 + $0x88] sm:$0xfc]
        %v6456 = vld [vmem:[#allocation4 + $0x90] sm:$0x3]
        %v6457 = vld [vmem:[#allocation4 + $0x98] sm:$0x3]
        %v6458 = vld [vmem:[#allocation4 + $0xa0] sm:$0xfc]
        %v6459 = vld [vmem:[#allocation4 + $0xa8] sm:$0xfc]
        %v6460 = vld [vmem:[#allocation4 + $0xb0] sm:$0x3]
        %v6461 = vld [vmem:[#allocation4 + $0xb8] sm:$0x3]
        %v6462 = vld [vmem:[#allocation4 + $0xc0] sm:$0xfc]
        %v6463 = vld [vmem:[#allocation4 + $0xc8] sm:$0xfc]
        %v6464 = vld [vmem:[#allocation4 + $0xd0] sm:$0x3]
        %v6465 = vld [vmem:[#allocation4 + $0xd8] sm:$0x3]
        %v6466 = vld [vmem:[#allocation4 + $0xe0] sm:$0xfc]
        %v6467 = vld [vmem:[#allocation4 + $0xe8] sm:$0xfc]
        %v6468 = vld [vmem:[#allocation4 + $0xf0] sm:$0x3]
        %v6469 = vld [vmem:[#allocation4 + $0xf8] sm:$0x3]
        %v6502 = vrot.slane %v6438, 2
        %v6503 = vrot.slane %v6440, 2
        %v6504 = vsel %vm1859, %v6502, %v6503
        %v6505 = vrot.slane %v6439, 2
        %v6506 = vrot.slane %v6441, 2
        %v6507 = vsel %vm1859, %v6505, %v6506
        %v6508 = vrot.slane %v6442, 2
        %v6509 = vrot.slane %v6444, 2
        %v6510 = vsel %vm1859, %v6508, %v6509
        %v6511 = vrot.slane %v6443, 2
        %v6512 = vrot.slane %v6445, 2
        %v6513 = vsel %vm1859, %v6511, %v6512
        %v6514 = vrot.slane %v6446, 2
        %v6515 = vrot.slane %v6448, 2
        %v6516 = vsel %vm1859, %v6514, %v6515
        %v6517 = vrot.slane %v6447, 2
        %v6518 = vrot.slane %v6449, 2
        %v6519 = vsel %vm1859, %v6517, %v6518
        %v6520 = vrot.slane %v6450, 2
        %v6521 = vrot.slane %v6452, 2
        %v6522 = vsel %vm1859, %v6520, %v6521
        %v6523 = vrot.slane %v6451, 2
        %v6524 = vrot.slane %v6453, 2
        %v6525 = vsel %vm1859, %v6523, %v6524
        %v6526 = vrot.slane %v6454, 2
        %v6527 = vrot.slane %v6456, 2
        %v6528 = vsel %vm1859, %v6526, %v6527
        %v6529 = vrot.slane %v6455, 2
        %v6530 = vrot.slane %v6457, 2
        %v6531 = vsel %vm1859, %v6529, %v6530
        %v6532 = vrot.slane %v6458, 2
        %v6533 = vrot.slane %v6460, 2
        %v6534 = vsel %vm1859, %v6532, %v6533
        %v6535 = vrot.slane %v6459, 2
        %v6536 = vrot.slane %v6461, 2
        %v6537 = vsel %vm1859, %v6535, %v6536
        %v6538 = vrot.slane %v6462, 2
        %v6539 = vrot.slane %v6464, 2
        %v6540 = vsel %vm1859, %v6538, %v6539
        %v6541 = vrot.slane %v6463, 2
        %v6542 = vrot.slane %v6465, 2
        %v6543 = vsel %vm1859, %v6541, %v6542
        %v6544 = vrot.slane %v6466, 2
        %v6545 = vrot.slane %v6468, 2
        %v6546 = vsel %vm1859, %v6544, %v6545
        %v6547 = vrot.slane %v6467, 2
        %v6548 = vrot.slane %v6469, 2
        %v6549 = vsel %vm1859, %v6547, %v6548
        %v6566 = vpack.c.bf16 %v6510, %v6504
        %v6567 = vpack.c.bf16 %v6513, %v6507
        %v6568 = vpack.c.bf16 %v6522, %v6516
        %v6569 = vpack.c.bf16 %v6525, %v6519
        %v6570 = vpack.c.bf16 %v6534, %v6528
        %v6571 = vpack.c.bf16 %v6537, %v6531
        %v6572 = vpack.c.bf16 %v6546, %v6540
        %v6573 = vpack.c.bf16 %v6549, %v6543
        %s6574 = scalar_lea.vmem %s8, 256
        %v6575 = vld [vmem:[%s6574] sm:$0xf]
        %v6576 = vld [vmem:[%s6574 + $0x4] sm:$0xf]
        %v6577 = vld [vmem:[%s6574 + $0x8] sm:$0xf]
        %v6578 = vld [vmem:[%s6574 + $0xc] sm:$0xf]
        %v6579 = vld [vmem:[%s6574 + $0x10] sm:$0xf]
        %v6580 = vld [vmem:[%s6574 + $0x14] sm:$0xf]
        %v6581 = vld [vmem:[%s6574 + $0x18] sm:$0xf]
        %v6582 = vld [vmem:[%s6574 + $0x1c] sm:$0xf]
        %v6583 = vld [vmem:[%s6574 + $0x20] sm:$0xf]
        %v6584 = vld [vmem:[%s6574 + $0x24] sm:$0xf]
        %v6585 = vld [vmem:[%s6574 + $0x28] sm:$0xf]
        %v6586 = vld [vmem:[%s6574 + $0x2c] sm:$0xf]
        %v6587 = vld [vmem:[%s6574 + $0x30] sm:$0xf]
        %v6588 = vld [vmem:[%s6574 + $0x34] sm:$0xf]
        %v6589 = vld [vmem:[%s6574 + $0x38] sm:$0xf]
        %v6590 = vld [vmem:[%s6574 + $0x3c] sm:$0xf]
        %v6591 = vld [vmem:[%s6574 + $0x40] sm:$0xf]
        %v6592 = vld [vmem:[%s6574 + $0x44] sm:$0xf]
        %v6593 = vld [vmem:[%s6574 + $0x48] sm:$0xf]
        %v6594 = vld [vmem:[%s6574 + $0x4c] sm:$0xf]
        %v6595 = vld [vmem:[%s6574 + $0x50] sm:$0xf]
        %v6596 = vld [vmem:[%s6574 + $0x54] sm:$0xf]
        %v6597 = vld [vmem:[%s6574 + $0x58] sm:$0xf]
        %v6598 = vld [vmem:[%s6574 + $0x5c] sm:$0xf]
        %v6599 = vld [vmem:[%s6574 + $0x60] sm:$0xf]
        %v6600 = vld [vmem:[%s6574 + $0x64] sm:$0xf]
        %v6601 = vld [vmem:[%s6574 + $0x68] sm:$0xf]
        %v6602 = vld [vmem:[%s6574 + $0x6c] sm:$0xf]
        %v6603 = vld [vmem:[%s6574 + $0x70] sm:$0xf]
        %v6604 = vld [vmem:[%s6574 + $0x74] sm:$0xf]
        %v6605 = vld [vmem:[%s6574 + $0x78] sm:$0xf]
        %v6606 = vld [vmem:[%s6574 + $0x7c] sm:$0xf]
        %v6639 = vunpack.c.l.b16 %v6575
        %v6640 = vunpack.c.l.b16 %v6576
        %v6641 = vunpack.c.l.b16 %v6577
        %v6642 = vunpack.c.l.b16 %v6578
        %v6643 = vunpack.c.l.b16 %v6579
        %v6644 = vunpack.c.l.b16 %v6580
        %v6645 = vunpack.c.l.b16 %v6581
        %v6646 = vunpack.c.l.b16 %v6582
        %v6647 = vunpack.c.l.b16 %v6583
        %v6648 = vunpack.c.l.b16 %v6584
        %v6649 = vunpack.c.l.b16 %v6585
        %v6650 = vunpack.c.l.b16 %v6586
        %v6651 = vunpack.c.l.b16 %v6587
        %v6652 = vunpack.c.l.b16 %v6588
        %v6653 = vunpack.c.l.b16 %v6589
        %v6654 = vunpack.c.l.b16 %v6590
        %v6655 = vunpack.c.l.b16 %v6591
        %v6656 = vunpack.c.l.b16 %v6592
        %v6657 = vunpack.c.l.b16 %v6593
        %v6658 = vunpack.c.l.b16 %v6594
        %v6659 = vunpack.c.l.b16 %v6595
        %v6660 = vunpack.c.l.b16 %v6596
        %v6661 = vunpack.c.l.b16 %v6597
        %v6662 = vunpack.c.l.b16 %v6598
        %v6663 = vunpack.c.l.b16 %v6599
        %v6664 = vunpack.c.l.b16 %v6600
        %v6665 = vunpack.c.l.b16 %v6601
        %v6666 = vunpack.c.l.b16 %v6602
        %v6667 = vunpack.c.l.b16 %v6603
        %v6668 = vunpack.c.l.b16 %v6604
        %v6669 = vunpack.c.l.b16 %v6605
        %v6670 = vunpack.c.l.b16 %v6606
        %v6671 = vpack.c.b16 %v6640, %v6639
        %v6672 = vpack.c.b16 %v6642, %v6641
        %v6673 = vpack.c.b16 %v6644, %v6643
        %v6674 = vpack.c.b16 %v6646, %v6645
        %v6675 = vpack.c.b16 %v6648, %v6647
        %v6676 = vpack.c.b16 %v6650, %v6649
        %v6677 = vpack.c.b16 %v6652, %v6651
        %v6678 = vpack.c.b16 %v6654, %v6653
        %v6679 = vpack.c.b16 %v6656, %v6655
        %v6680 = vpack.c.b16 %v6658, %v6657
        %v6681 = vpack.c.b16 %v6660, %v6659
        %v6682 = vpack.c.b16 %v6662, %v6661
        %v6683 = vpack.c.b16 %v6664, %v6663
        %v6684 = vpack.c.b16 %v6666, %v6665
        %v6685 = vpack.c.b16 %v6668, %v6667
        %v6686 = vpack.c.b16 %v6670, %v6669
        %6703 = vmatpush.bf16.msra.mxu0 %v6678
        %6704 = vmatpush.bf16.msra.mxu0 %v6677
        %6705 = vmatpush.bf16.msra.mxu0 %v6676
        %6706 = vmatpush.bf16.msra.mxu0 %v6675
        %6707 = vmatpush.bf16.msra.mxu0 %v6674
        %6708 = vmatpush.bf16.msra.mxu0 %v6673
        %6709 = vmatpush.bf16.msra.mxu0 %v6672
        %6710 = vmatpush.bf16.msra.mxu0 %v6671
        %6711 = vmatmul.bf16.gmra.mxu0 %v6566
        %v6712 = vpop.f32.mrf.mxu0
        %v6713 = vadd.f32 0.0, %v6712
        %v6714 = vpop.f32.mrf.mxu0
        %v6715 = vadd.f32 0.0, %v6714
        %6716 = vmatmul.bf16.gmra.mxu0 %v6568
        %v6717 = vpop.f32.mrf.mxu0
        %v6718 = vadd.f32 0.0, %v6717
        %v6719 = vpop.f32.mrf.mxu0
        %v6720 = vadd.f32 0.0, %v6719
        %6721 = vmatmul.bf16.gmra.mxu0 %v6570
        %v6722 = vpop.f32.mrf.mxu0
        %v6723 = vadd.f32 0.0, %v6722
        %v6724 = vpop.f32.mrf.mxu0
        %v6725 = vadd.f32 0.0, %v6724
        %6726 = vmatmul.bf16.gmra.mxu0 %v6572
        %v6727 = vpop.f32.mrf.mxu0
        %v6728 = vadd.f32 0.0, %v6727
        %v6729 = vpop.f32.mrf.mxu0
        %v6730 = vadd.f32 0.0, %v6729
        %6731 = vdwg.mxu0
        %6732 = vmatpush.bf16.msra.mxu0 %v6686
        %6733 = vmatpush.bf16.msra.mxu0 %v6685
        %6734 = vmatpush.bf16.msra.mxu0 %v6684
        %6735 = vmatpush.bf16.msra.mxu0 %v6683
        %6736 = vmatpush.bf16.msra.mxu0 %v6682
        %6737 = vmatpush.bf16.msra.mxu0 %v6681
        %6738 = vmatpush.bf16.msra.mxu0 %v6680
        %6739 = vmatpush.bf16.msra.mxu0 %v6679
        %6740 = vmatmul.bf16.gmra.mxu0 %v6567
        %v6741 = vpop.f32.mrf.mxu0
        %v6742 = vadd.f32 %v6713, %v6741
        %v6743 = vpop.f32.mrf.mxu0
        %v6744 = vadd.f32 %v6715, %v6743
        %6745 = vmatmul.bf16.gmra.mxu0 %v6569
        %v6746 = vpop.f32.mrf.mxu0
        %v6747 = vadd.f32 %v6718, %v6746
        %v6748 = vpop.f32.mrf.mxu0
        %v6749 = vadd.f32 %v6720, %v6748
        %6750 = vmatmul.bf16.gmra.mxu0 %v6571
        %v6751 = vpop.f32.mrf.mxu0
        %v6752 = vadd.f32 %v6723, %v6751
        %v6753 = vpop.f32.mrf.mxu0
        %v6754 = vadd.f32 %v6725, %v6753
        %6755 = vmatmul.bf16.gmra.mxu0 %v6573
        %v6756 = vpop.f32.mrf.mxu0
        %v6757 = vadd.f32 %v6728, %v6756
        %v6758 = vpop.f32.mrf.mxu0
        %v6759 = vadd.f32 %v6730, %v6758
        %6760 = vdwg.mxu0
        %v6761 = vadd.f32 %v6419, %v6742
        %v6762 = vadd.f32 %v6421, %v6744
        %v6763 = vadd.f32 %v6424, %v6747
        %v6764 = vadd.f32 %v6426, %v6749
        %v6765 = vadd.f32 %v6429, %v6752
        %v6766 = vadd.f32 %v6431, %v6754
        %v6767 = vadd.f32 %v6434, %v6757
        %v6768 = vadd.f32 %v6436, %v6759
        %v6769 = vld [vmem:[%s5872] sm:$0xff]
        %v6770 = vld [vmem:[%s5872 + $0x8] sm:$0xff]
        %v6771 = vld [vmem:[%s5872 + $0x20] sm:$0xff]
        %v6772 = vld [vmem:[%s5872 + $0x28] sm:$0xff]
        %v6773 = vld [vmem:[%s5872 + $0x40] sm:$0xff]
        %v6774 = vld [vmem:[%s5872 + $0x48] sm:$0xff]
        %v6775 = vld [vmem:[%s5872 + $0x60] sm:$0xff]
        %v6776 = vld [vmem:[%s5872 + $0x68] sm:$0xff]
        %v6777 = vld [vmem:[%s5872 + $0x80] sm:$0xff]
        %v6778 = vld [vmem:[%s5872 + $0x88] sm:$0xff]
        %v6779 = vld [vmem:[%s5872 + $0xa0] sm:$0xff]
        %v6780 = vld [vmem:[%s5872 + $0xa8] sm:$0xff]
        %v6781 = vld [vmem:[%s5872 + $0xc0] sm:$0xff]
        %v6782 = vld [vmem:[%s5872 + $0xc8] sm:$0xff]
        %v6783 = vld [vmem:[%s5872 + $0xe0] sm:$0xff]
        %v6784 = vld [vmem:[%s5872 + $0xe8] sm:$0xff]
        %v6785 = vpack.c.bf16 %v6771, %v6769
        %v6786 = vpack.c.bf16 %v6772, %v6770
        %v6787 = vpack.c.bf16 %v6775, %v6773
        %v6788 = vpack.c.bf16 %v6776, %v6774
        %v6789 = vpack.c.bf16 %v6779, %v6777
        %v6790 = vpack.c.bf16 %v6780, %v6778
        %v6791 = vpack.c.bf16 %v6783, %v6781
        %v6792 = vpack.c.bf16 %v6784, %v6782
        %s6793 = scalar_lea.vmem %s8, 384
        %v6794 = vld [vmem:[%s6793] sm:$0xf]
        %v6795 = vld [vmem:[%s6793 + $0x4] sm:$0xf]
        %v6796 = vld [vmem:[%s6793 + $0x8] sm:$0xf]
        %v6797 = vld [vmem:[%s6793 + $0xc] sm:$0xf]
        %v6798 = vld [vmem:[%s6793 + $0x10] sm:$0xf]
        %v6799 = vld [vmem:[%s6793 + $0x14] sm:$0xf]
        %v6800 = vld [vmem:[%s6793 + $0x18] sm:$0xf]
        %v6801 = vld [vmem:[%s6793 + $0x1c] sm:$0xf]
        %v6802 = vld [vmem:[%s6793 + $0x20] sm:$0xf]
        %v6803 = vld [vmem:[%s6793 + $0x24] sm:$0xf]
        %v6804 = vld [vmem:[%s6793 + $0x28] sm:$0xf]
        %v6805 = vld [vmem:[%s6793 + $0x2c] sm:$0xf]
        %v6806 = vld [vmem:[%s6793 + $0x30] sm:$0xf]
        %v6807 = vld [vmem:[%s6793 + $0x34] sm:$0xf]
        %v6808 = vld [vmem:[%s6793 + $0x38] sm:$0xf]
        %v6809 = vld [vmem:[%s6793 + $0x3c] sm:$0xf]
        %v6810 = vld [vmem:[%s6793 + $0x40] sm:$0xf]
        %v6811 = vld [vmem:[%s6793 + $0x44] sm:$0xf]
        %v6812 = vld [vmem:[%s6793 + $0x48] sm:$0xf]
        %v6813 = vld [vmem:[%s6793 + $0x4c] sm:$0xf]
        %v6814 = vld [vmem:[%s6793 + $0x50] sm:$0xf]
        %v6815 = vld [vmem:[%s6793 + $0x54] sm:$0xf]
        %v6816 = vld [vmem:[%s6793 + $0x58] sm:$0xf]
        %v6817 = vld [vmem:[%s6793 + $0x5c] sm:$0xf]
        %v6818 = vld [vmem:[%s6793 + $0x60] sm:$0xf]
        %v6819 = vld [vmem:[%s6793 + $0x64] sm:$0xf]
        %v6820 = vld [vmem:[%s6793 + $0x68] sm:$0xf]
        %v6821 = vld [vmem:[%s6793 + $0x6c] sm:$0xf]
        %v6822 = vld [vmem:[%s6793 + $0x70] sm:$0xf]
        %v6823 = vld [vmem:[%s6793 + $0x74] sm:$0xf]
        %v6824 = vld [vmem:[%s6793 + $0x78] sm:$0xf]
        %v6825 = vld [vmem:[%s6793 + $0x7c] sm:$0xf]
        %v6858 = vunpack.c.l.b16 %v6794
        %v6859 = vunpack.c.l.b16 %v6795
        %v6860 = vunpack.c.l.b16 %v6796
        %v6861 = vunpack.c.l.b16 %v6797
        %v6862 = vunpack.c.l.b16 %v6798
        %v6863 = vunpack.c.l.b16 %v6799
        %v6864 = vunpack.c.l.b16 %v6800
        %v6865 = vunpack.c.l.b16 %v6801
        %v6866 = vunpack.c.l.b16 %v6802
        %v6867 = vunpack.c.l.b16 %v6803
        %v6868 = vunpack.c.l.b16 %v6804
        %v6869 = vunpack.c.l.b16 %v6805
        %v6870 = vunpack.c.l.b16 %v6806
        %v6871 = vunpack.c.l.b16 %v6807
        %v6872 = vunpack.c.l.b16 %v6808
        %v6873 = vunpack.c.l.b16 %v6809
        %v6874 = vunpack.c.l.b16 %v6810
        %v6875 = vunpack.c.l.b16 %v6811
        %v6876 = vunpack.c.l.b16 %v6812
        %v6877 = vunpack.c.l.b16 %v6813
        %v6878 = vunpack.c.l.b16 %v6814
        %v6879 = vunpack.c.l.b16 %v6815
        %v6880 = vunpack.c.l.b16 %v6816
        %v6881 = vunpack.c.l.b16 %v6817
        %v6882 = vunpack.c.l.b16 %v6818
        %v6883 = vunpack.c.l.b16 %v6819
        %v6884 = vunpack.c.l.b16 %v6820
        %v6885 = vunpack.c.l.b16 %v6821
        %v6886 = vunpack.c.l.b16 %v6822
        %v6887 = vunpack.c.l.b16 %v6823
        %v6888 = vunpack.c.l.b16 %v6824
        %v6889 = vunpack.c.l.b16 %v6825
        %v6890 = vpack.c.b16 %v6859, %v6858
        %v6891 = vpack.c.b16 %v6861, %v6860
        %v6892 = vpack.c.b16 %v6863, %v6862
        %v6893 = vpack.c.b16 %v6865, %v6864
        %v6894 = vpack.c.b16 %v6867, %v6866
        %v6895 = vpack.c.b16 %v6869, %v6868
        %v6896 = vpack.c.b16 %v6871, %v6870
        %v6897 = vpack.c.b16 %v6873, %v6872
        %v6898 = vpack.c.b16 %v6875, %v6874
        %v6899 = vpack.c.b16 %v6877, %v6876
        %v6900 = vpack.c.b16 %v6879, %v6878
        %v6901 = vpack.c.b16 %v6881, %v6880
        %v6902 = vpack.c.b16 %v6883, %v6882
        %v6903 = vpack.c.b16 %v6885, %v6884
        %v6904 = vpack.c.b16 %v6887, %v6886
        %v6905 = vpack.c.b16 %v6889, %v6888
        %6922 = vmatpush.bf16.msra.mxu0 %v6897
        %6923 = vmatpush.bf16.msra.mxu0 %v6896
        %6924 = vmatpush.bf16.msra.mxu0 %v6895
        %6925 = vmatpush.bf16.msra.mxu0 %v6894
        %6926 = vmatpush.bf16.msra.mxu0 %v6893
        %6927 = vmatpush.bf16.msra.mxu0 %v6892
        %6928 = vmatpush.bf16.msra.mxu0 %v6891
        %6929 = vmatpush.bf16.msra.mxu0 %v6890
        %6930 = vmatmul.bf16.gmra.mxu0 %v6785
        %v6931 = vpop.f32.mrf.mxu0
        %v6932 = vadd.f32 0.0, %v6931
        %v6933 = vpop.f32.mrf.mxu0
        %v6934 = vadd.f32 0.0, %v6933
        %6935 = vmatmul.bf16.gmra.mxu0 %v6787
        %v6936 = vpop.f32.mrf.mxu0
        %v6937 = vadd.f32 0.0, %v6936
        %v6938 = vpop.f32.mrf.mxu0
        %v6939 = vadd.f32 0.0, %v6938
        %6940 = vmatmul.bf16.gmra.mxu0 %v6789
        %v6941 = vpop.f32.mrf.mxu0
        %v6942 = vadd.f32 0.0, %v6941
        %v6943 = vpop.f32.mrf.mxu0
        %v6944 = vadd.f32 0.0, %v6943
        %6945 = vmatmul.bf16.gmra.mxu0 %v6791
        %v6946 = vpop.f32.mrf.mxu0
        %v6947 = vadd.f32 0.0, %v6946
        %v6948 = vpop.f32.mrf.mxu0
        %v6949 = vadd.f32 0.0, %v6948
        %6950 = vdwg.mxu0
        %6951 = vmatpush.bf16.msra.mxu0 %v6905
        %6952 = vmatpush.bf16.msra.mxu0 %v6904
        %6953 = vmatpush.bf16.msra.mxu0 %v6903
        %6954 = vmatpush.bf16.msra.mxu0 %v6902
        %6955 = vmatpush.bf16.msra.mxu0 %v6901
        %6956 = vmatpush.bf16.msra.mxu0 %v6900
        %6957 = vmatpush.bf16.msra.mxu0 %v6899
        %6958 = vmatpush.bf16.msra.mxu0 %v6898
        %6959 = vmatmul.bf16.gmra.mxu0 %v6786
        %v6960 = vpop.f32.mrf.mxu0
        %v6961 = vadd.f32 %v6932, %v6960
        %v6962 = vpop.f32.mrf.mxu0
        %v6963 = vadd.f32 %v6934, %v6962
        %6964 = vmatmul.bf16.gmra.mxu0 %v6788
        %v6965 = vpop.f32.mrf.mxu0
        %v6966 = vadd.f32 %v6937, %v6965
        %v6967 = vpop.f32.mrf.mxu0
        %v6968 = vadd.f32 %v6939, %v6967
        %6969 = vmatmul.bf16.gmra.mxu0 %v6790
        %v6970 = vpop.f32.mrf.mxu0
        %v6971 = vadd.f32 %v6942, %v6970
        %v6972 = vpop.f32.mrf.mxu0
        %v6973 = vadd.f32 %v6944, %v6972
        %6974 = vmatmul.bf16.gmra.mxu0 %v6792
        %v6975 = vpop.f32.mrf.mxu0
        %v6976 = vadd.f32 %v6947, %v6975
        %v6977 = vpop.f32.mrf.mxu0
        %v6978 = vadd.f32 %v6949, %v6977
        %6979 = vdwg.mxu0
        %v6980 = vadd.f32 %v6761, %v6961
        %v6981 = vadd.f32 %v6762, %v6963
        %v6982 = vadd.f32 %v6763, %v6966
        %v6983 = vadd.f32 %v6764, %v6968
        %v6984 = vadd.f32 %v6765, %v6971
        %v6985 = vadd.f32 %v6766, %v6973
        %v6986 = vadd.f32 %v6767, %v6976
        %v6987 = vadd.f32 %v6768, %v6978
        %v6988 = vld [vmem:[%s5872] sm:$0xfe]
        %v6989 = vld [vmem:[%s5872 + $0x8] sm:$0xfe]
        %v6990 = vld [vmem:[%s5872 + $0x10] sm:$0x1]
        %v6991 = vld [vmem:[%s5872 + $0x18] sm:$0x1]
        %v6992 = vld [vmem:[%s5872 + $0x20] sm:$0xfe]
        %v6993 = vld [vmem:[%s5872 + $0x28] sm:$0xfe]
        %v6994 = vld [vmem:[%s5872 + $0x30] sm:$0x1]
        %v6995 = vld [vmem:[%s5872 + $0x38] sm:$0x1]
        %v6996 = vld [vmem:[%s5872 + $0x40] sm:$0xfe]
        %v6997 = vld [vmem:[%s5872 + $0x48] sm:$0xfe]
        %v6998 = vld [vmem:[%s5872 + $0x50] sm:$0x1]
        %v6999 = vld [vmem:[%s5872 + $0x58] sm:$0x1]
        %v7000 = vld [vmem:[%s5872 + $0x60] sm:$0xfe]
        %v7001 = vld [vmem:[%s5872 + $0x68] sm:$0xfe]
        %v7002 = vld [vmem:[%s5872 + $0x70] sm:$0x1]
        %v7003 = vld [vmem:[%s5872 + $0x78] sm:$0x1]
        %v7004 = vld [vmem:[%s5872 + $0x80] sm:$0xfe]
        %v7005 = vld [vmem:[%s5872 + $0x88] sm:$0xfe]
        %v7006 = vld [vmem:[%s5872 + $0x90] sm:$0x1]
        %v7007 = vld [vmem:[%s5872 + $0x98] sm:$0x1]
        %v7008 = vld [vmem:[%s5872 + $0xa0] sm:$0xfe]
        %v7009 = vld [vmem:[%s5872 + $0xa8] sm:$0xfe]
        %v7010 = vld [vmem:[%s5872 + $0xb0] sm:$0x1]
        %v7011 = vld [vmem:[%s5872 + $0xb8] sm:$0x1]
        %v7012 = vld [vmem:[%s5872 + $0xc0] sm:$0xfe]
        %v7013 = vld [vmem:[%s5872 + $0xc8] sm:$0xfe]
        %v7014 = vld [vmem:[%s5872 + $0xd0] sm:$0x1]
        %v7015 = vld [vmem:[%s5872 + $0xd8] sm:$0x1]
        %v7016 = vld [vmem:[%s5872 + $0xe0] sm:$0xfe]
        %v7017 = vld [vmem:[%s5872 + $0xe8] sm:$0xfe]
        %v7018 = vld [vmem:[%s5872 + $0xf0] sm:$0x1]
        %v7019 = vld [vmem:[%s5872 + $0xf8] sm:$0x1]
        %v7052 = vrot.slane %v6988, 1
        %v7053 = vrot.slane %v6990, 1
        %v7054 = vsel %vm1262, %v7052, %v7053
        %v7055 = vrot.slane %v6989, 1
        %v7056 = vrot.slane %v6991, 1
        %v7057 = vsel %vm1262, %v7055, %v7056
        %v7058 = vrot.slane %v6992, 1
        %v7059 = vrot.slane %v6994, 1
        %v7060 = vsel %vm1262, %v7058, %v7059
        %v7061 = vrot.slane %v6993, 1
        %v7062 = vrot.slane %v6995, 1
        %v7063 = vsel %vm1262, %v7061, %v7062
        %v7064 = vrot.slane %v6996, 1
        %v7065 = vrot.slane %v6998, 1
        %v7066 = vsel %vm1262, %v7064, %v7065
        %v7067 = vrot.slane %v6997, 1
        %v7068 = vrot.slane %v6999, 1
        %v7069 = vsel %vm1262, %v7067, %v7068
        %v7070 = vrot.slane %v7000, 1
        %v7071 = vrot.slane %v7002, 1
        %v7072 = vsel %vm1262, %v7070, %v7071
        %v7073 = vrot.slane %v7001, 1
        %v7074 = vrot.slane %v7003, 1
        %v7075 = vsel %vm1262, %v7073, %v7074
        %v7076 = vrot.slane %v7004, 1
        %v7077 = vrot.slane %v7006, 1
        %v7078 = vsel %vm1262, %v7076, %v7077
        %v7079 = vrot.slane %v7005, 1
        %v7080 = vrot.slane %v7007, 1
        %v7081 = vsel %vm1262, %v7079, %v7080
        %v7082 = vrot.slane %v7008, 1
        %v7083 = vrot.slane %v7010, 1
        %v7084 = vsel %vm1262, %v7082, %v7083
        %v7085 = vrot.slane %v7009, 1
        %v7086 = vrot.slane %v7011, 1
        %v7087 = vsel %vm1262, %v7085, %v7086
        %v7088 = vrot.slane %v7012, 1
        %v7089 = vrot.slane %v7014, 1
        %v7090 = vsel %vm1262, %v7088, %v7089
        %v7091 = vrot.slane %v7013, 1
        %v7092 = vrot.slane %v7015, 1
        %v7093 = vsel %vm1262, %v7091, %v7092
        %v7094 = vrot.slane %v7016, 1
        %v7095 = vrot.slane %v7018, 1
        %v7096 = vsel %vm1262, %v7094, %v7095
        %v7097 = vrot.slane %v7017, 1
        %v7098 = vrot.slane %v7019, 1
        %v7099 = vsel %vm1262, %v7097, %v7098
        %v7116 = vpack.c.bf16 %v7060, %v7054
        %v7117 = vpack.c.bf16 %v7063, %v7057
        %v7118 = vpack.c.bf16 %v7072, %v7066
        %v7119 = vpack.c.bf16 %v7075, %v7069
        %v7120 = vpack.c.bf16 %v7084, %v7078
        %v7121 = vpack.c.bf16 %v7087, %v7081
        %v7122 = vpack.c.bf16 %v7096, %v7090
        %v7123 = vpack.c.bf16 %v7099, %v7093
        %s7124 = scalar_lea.vmem %s8, 512
        %v7125 = vld [vmem:[%s7124] sm:$0xf]
        %v7126 = vld [vmem:[%s7124 + $0x4] sm:$0xf]
        %v7127 = vld [vmem:[%s7124 + $0x8] sm:$0xf]
        %v7128 = vld [vmem:[%s7124 + $0xc] sm:$0xf]
        %v7129 = vld [vmem:[%s7124 + $0x10] sm:$0xf]
        %v7130 = vld [vmem:[%s7124 + $0x14] sm:$0xf]
        %v7131 = vld [vmem:[%s7124 + $0x18] sm:$0xf]
        %v7132 = vld [vmem:[%s7124 + $0x1c] sm:$0xf]
        %v7133 = vld [vmem:[%s7124 + $0x20] sm:$0xf]
        %v7134 = vld [vmem:[%s7124 + $0x24] sm:$0xf]
        %v7135 = vld [vmem:[%s7124 + $0x28] sm:$0xf]
        %v7136 = vld [vmem:[%s7124 + $0x2c] sm:$0xf]
        %v7137 = vld [vmem:[%s7124 + $0x30] sm:$0xf]
        %v7138 = vld [vmem:[%s7124 + $0x34] sm:$0xf]
        %v7139 = vld [vmem:[%s7124 + $0x38] sm:$0xf]
        %v7140 = vld [vmem:[%s7124 + $0x3c] sm:$0xf]
        %v7141 = vld [vmem:[%s7124 + $0x40] sm:$0xf]
        %v7142 = vld [vmem:[%s7124 + $0x44] sm:$0xf]
        %v7143 = vld [vmem:[%s7124 + $0x48] sm:$0xf]
        %v7144 = vld [vmem:[%s7124 + $0x4c] sm:$0xf]
        %v7145 = vld [vmem:[%s7124 + $0x50] sm:$0xf]
        %v7146 = vld [vmem:[%s7124 + $0x54] sm:$0xf]
        %v7147 = vld [vmem:[%s7124 + $0x58] sm:$0xf]
        %v7148 = vld [vmem:[%s7124 + $0x5c] sm:$0xf]
        %v7149 = vld [vmem:[%s7124 + $0x60] sm:$0xf]
        %v7150 = vld [vmem:[%s7124 + $0x64] sm:$0xf]
        %v7151 = vld [vmem:[%s7124 + $0x68] sm:$0xf]
        %v7152 = vld [vmem:[%s7124 + $0x6c] sm:$0xf]
        %v7153 = vld [vmem:[%s7124 + $0x70] sm:$0xf]
        %v7154 = vld [vmem:[%s7124 + $0x74] sm:$0xf]
        %v7155 = vld [vmem:[%s7124 + $0x78] sm:$0xf]
        %v7156 = vld [vmem:[%s7124 + $0x7c] sm:$0xf]
        %v7189 = vunpack.c.l.b16 %v7125
        %v7190 = vunpack.c.l.b16 %v7126
        %v7191 = vunpack.c.l.b16 %v7127
        %v7192 = vunpack.c.l.b16 %v7128
        %v7193 = vunpack.c.l.b16 %v7129
        %v7194 = vunpack.c.l.b16 %v7130
        %v7195 = vunpack.c.l.b16 %v7131
        %v7196 = vunpack.c.l.b16 %v7132
        %v7197 = vunpack.c.l.b16 %v7133
        %v7198 = vunpack.c.l.b16 %v7134
        %v7199 = vunpack.c.l.b16 %v7135
        %v7200 = vunpack.c.l.b16 %v7136
        %v7201 = vunpack.c.l.b16 %v7137
        %v7202 = vunpack.c.l.b16 %v7138
        %v7203 = vunpack.c.l.b16 %v7139
        %v7204 = vunpack.c.l.b16 %v7140
        %v7205 = vunpack.c.l.b16 %v7141
        %v7206 = vunpack.c.l.b16 %v7142
        %v7207 = vunpack.c.l.b16 %v7143
        %v7208 = vunpack.c.l.b16 %v7144
        %v7209 = vunpack.c.l.b16 %v7145
        %v7210 = vunpack.c.l.b16 %v7146
        %v7211 = vunpack.c.l.b16 %v7147
        %v7212 = vunpack.c.l.b16 %v7148
        %v7213 = vunpack.c.l.b16 %v7149
        %v7214 = vunpack.c.l.b16 %v7150
        %v7215 = vunpack.c.l.b16 %v7151
        %v7216 = vunpack.c.l.b16 %v7152
        %v7217 = vunpack.c.l.b16 %v7153
        %v7218 = vunpack.c.l.b16 %v7154
        %v7219 = vunpack.c.l.b16 %v7155
        %v7220 = vunpack.c.l.b16 %v7156
        %v7221 = vpack.c.b16 %v7190, %v7189
        %v7222 = vpack.c.b16 %v7192, %v7191
        %v7223 = vpack.c.b16 %v7194, %v7193
        %v7224 = vpack.c.b16 %v7196, %v7195
        %v7225 = vpack.c.b16 %v7198, %v7197
        %v7226 = vpack.c.b16 %v7200, %v7199
        %v7227 = vpack.c.b16 %v7202, %v7201
        %v7228 = vpack.c.b16 %v7204, %v7203
        %v7229 = vpack.c.b16 %v7206, %v7205
        %v7230 = vpack.c.b16 %v7208, %v7207
        %v7231 = vpack.c.b16 %v7210, %v7209
        %v7232 = vpack.c.b16 %v7212, %v7211
        %v7233 = vpack.c.b16 %v7214, %v7213
        %v7234 = vpack.c.b16 %v7216, %v7215
        %v7235 = vpack.c.b16 %v7218, %v7217
        %v7236 = vpack.c.b16 %v7220, %v7219
        %7253 = vmatpush.bf16.msra.mxu0 %v7228
        %7254 = vmatpush.bf16.msra.mxu0 %v7227
        %7255 = vmatpush.bf16.msra.mxu0 %v7226
        %7256 = vmatpush.bf16.msra.mxu0 %v7225
        %7257 = vmatpush.bf16.msra.mxu0 %v7224
        %7258 = vmatpush.bf16.msra.mxu0 %v7223
        %7259 = vmatpush.bf16.msra.mxu0 %v7222
        %7260 = vmatpush.bf16.msra.mxu0 %v7221
        %7261 = vmatmul.bf16.gmra.mxu0 %v7116
        %v7262 = vpop.f32.mrf.mxu0
        %v7263 = vadd.f32 0.0, %v7262
        %v7264 = vpop.f32.mrf.mxu0
        %v7265 = vadd.f32 0.0, %v7264
        %7266 = vmatmul.bf16.gmra.mxu0 %v7118
        %v7267 = vpop.f32.mrf.mxu0
        %v7268 = vadd.f32 0.0, %v7267
        %v7269 = vpop.f32.mrf.mxu0
        %v7270 = vadd.f32 0.0, %v7269
        %7271 = vmatmul.bf16.gmra.mxu0 %v7120
        %v7272 = vpop.f32.mrf.mxu0
        %v7273 = vadd.f32 0.0, %v7272
        %v7274 = vpop.f32.mrf.mxu0
        %v7275 = vadd.f32 0.0, %v7274
        %7276 = vmatmul.bf16.gmra.mxu0 %v7122
        %v7277 = vpop.f32.mrf.mxu0
        %v7278 = vadd.f32 0.0, %v7277
        %v7279 = vpop.f32.mrf.mxu0
        %v7280 = vadd.f32 0.0, %v7279
        %7281 = vdwg.mxu0
        %7282 = vmatpush.bf16.msra.mxu0 %v7236
        %7283 = vmatpush.bf16.msra.mxu0 %v7235
        %7284 = vmatpush.bf16.msra.mxu0 %v7234
        %7285 = vmatpush.bf16.msra.mxu0 %v7233
        %7286 = vmatpush.bf16.msra.mxu0 %v7232
        %7287 = vmatpush.bf16.msra.mxu0 %v7231
        %7288 = vmatpush.bf16.msra.mxu0 %v7230
        %7289 = vmatpush.bf16.msra.mxu0 %v7229
        %7290 = vmatmul.bf16.gmra.mxu0 %v7117
        %v7291 = vpop.f32.mrf.mxu0
        %v7292 = vadd.f32 %v7263, %v7291
        %v7293 = vpop.f32.mrf.mxu0
        %v7294 = vadd.f32 %v7265, %v7293
        %7295 = vmatmul.bf16.gmra.mxu0 %v7119
        %v7296 = vpop.f32.mrf.mxu0
        %v7297 = vadd.f32 %v7268, %v7296
        %v7298 = vpop.f32.mrf.mxu0
        %v7299 = vadd.f32 %v7270, %v7298
        %7300 = vmatmul.bf16.gmra.mxu0 %v7121
        %v7301 = vpop.f32.mrf.mxu0
        %v7302 = vadd.f32 %v7273, %v7301
        %v7303 = vpop.f32.mrf.mxu0
        %v7304 = vadd.f32 %v7275, %v7303
        %7305 = vmatmul.bf16.gmra.mxu0 %v7123
        %v7306 = vpop.f32.mrf.mxu0
        %v7307 = vadd.f32 %v7278, %v7306
        %v7308 = vpop.f32.mrf.mxu0
        %v7309 = vadd.f32 %v7280, %v7308
        %7310 = vdwg.mxu0
        %v7311 = vadd.f32 %v6980, %v7292
        %v7312 = vadd.f32 %v6981, %v7294
        %v7313 = vadd.f32 %v6982, %v7297
        %v7314 = vadd.f32 %v6983, %v7299
        %v7315 = vadd.f32 %v6984, %v7302
        %v7316 = vadd.f32 %v6985, %v7304
        %v7317 = vadd.f32 %v6986, %v7307
        %v7318 = vadd.f32 %v6987, %v7309
        %v7319 = vld [vmem:[%s5872] sm:$0xfc]
        %v7320 = vld [vmem:[%s5872 + $0x8] sm:$0xfc]
        %v7321 = vld [vmem:[%s5872 + $0x10] sm:$0x3]
        %v7322 = vld [vmem:[%s5872 + $0x18] sm:$0x3]
        %v7323 = vld [vmem:[%s5872 + $0x20] sm:$0xfc]
        %v7324 = vld [vmem:[%s5872 + $0x28] sm:$0xfc]
        %v7325 = vld [vmem:[%s5872 + $0x30] sm:$0x3]
        %v7326 = vld [vmem:[%s5872 + $0x38] sm:$0x3]
        %v7327 = vld [vmem:[%s5872 + $0x40] sm:$0xfc]
        %v7328 = vld [vmem:[%s5872 + $0x48] sm:$0xfc]
        %v7329 = vld [vmem:[%s5872 + $0x50] sm:$0x3]
        %v7330 = vld [vmem:[%s5872 + $0x58] sm:$0x3]
        %v7331 = vld [vmem:[%s5872 + $0x60] sm:$0xfc]
        %v7332 = vld [vmem:[%s5872 + $0x68] sm:$0xfc]
        %v7333 = vld [vmem:[%s5872 + $0x70] sm:$0x3]
        %v7334 = vld [vmem:[%s5872 + $0x78] sm:$0x3]
        %v7335 = vld [vmem:[%s5872 + $0x80] sm:$0xfc]
        %v7336 = vld [vmem:[%s5872 + $0x88] sm:$0xfc]
        %v7337 = vld [vmem:[%s5872 + $0x90] sm:$0x3]
        %v7338 = vld [vmem:[%s5872 + $0x98] sm:$0x3]
        %v7339 = vld [vmem:[%s5872 + $0xa0] sm:$0xfc]
        %v7340 = vld [vmem:[%s5872 + $0xa8] sm:$0xfc]
        %v7341 = vld [vmem:[%s5872 + $0xb0] sm:$0x3]
        %v7342 = vld [vmem:[%s5872 + $0xb8] sm:$0x3]
        %v7343 = vld [vmem:[%s5872 + $0xc0] sm:$0xfc]
        %v7344 = vld [vmem:[%s5872 + $0xc8] sm:$0xfc]
        %v7345 = vld [vmem:[%s5872 + $0xd0] sm:$0x3]
        %v7346 = vld [vmem:[%s5872 + $0xd8] sm:$0x3]
        %v7347 = vld [vmem:[%s5872 + $0xe0] sm:$0xfc]
        %v7348 = vld [vmem:[%s5872 + $0xe8] sm:$0xfc]
        %v7349 = vld [vmem:[%s5872 + $0xf0] sm:$0x3]
        %v7350 = vld [vmem:[%s5872 + $0xf8] sm:$0x3]
        %v7383 = vrot.slane %v7319, 2
        %v7384 = vrot.slane %v7321, 2
        %v7385 = vsel %vm1859, %v7383, %v7384
        %v7386 = vrot.slane %v7320, 2
        %v7387 = vrot.slane %v7322, 2
        %v7388 = vsel %vm1859, %v7386, %v7387
        %v7389 = vrot.slane %v7323, 2
        %v7390 = vrot.slane %v7325, 2
        %v7391 = vsel %vm1859, %v7389, %v7390
        %v7392 = vrot.slane %v7324, 2
        %v7393 = vrot.slane %v7326, 2
        %v7394 = vsel %vm1859, %v7392, %v7393
        %v7395 = vrot.slane %v7327, 2
        %v7396 = vrot.slane %v7329, 2
        %v7397 = vsel %vm1859, %v7395, %v7396
        %v7398 = vrot.slane %v7328, 2
        %v7399 = vrot.slane %v7330, 2
        %v7400 = vsel %vm1859, %v7398, %v7399
        %v7401 = vrot.slane %v7331, 2
        %v7402 = vrot.slane %v7333, 2
        %v7403 = vsel %vm1859, %v7401, %v7402
        %v7404 = vrot.slane %v7332, 2
        %v7405 = vrot.slane %v7334, 2
        %v7406 = vsel %vm1859, %v7404, %v7405
        %v7407 = vrot.slane %v7335, 2
        %v7408 = vrot.slane %v7337, 2
        %v7409 = vsel %vm1859, %v7407, %v7408
        %v7410 = vrot.slane %v7336, 2
        %v7411 = vrot.slane %v7338, 2
        %v7412 = vsel %vm1859, %v7410, %v7411
        %v7413 = vrot.slane %v7339, 2
        %v7414 = vrot.slane %v7341, 2
        %v7415 = vsel %vm1859, %v7413, %v7414
        %v7416 = vrot.slane %v7340, 2
        %v7417 = vrot.slane %v7342, 2
        %v7418 = vsel %vm1859, %v7416, %v7417
        %v7419 = vrot.slane %v7343, 2
        %v7420 = vrot.slane %v7345, 2
        %v7421 = vsel %vm1859, %v7419, %v7420
        %v7422 = vrot.slane %v7344, 2
        %v7423 = vrot.slane %v7346, 2
        %v7424 = vsel %vm1859, %v7422, %v7423
        %v7425 = vrot.slane %v7347, 2
        %v7426 = vrot.slane %v7349, 2
        %v7427 = vsel %vm1859, %v7425, %v7426
        %v7428 = vrot.slane %v7348, 2
        %v7429 = vrot.slane %v7350, 2
        %v7430 = vsel %vm1859, %v7428, %v7429
        %v7447 = vpack.c.bf16 %v7391, %v7385
        %v7448 = vpack.c.bf16 %v7394, %v7388
        %v7449 = vpack.c.bf16 %v7403, %v7397
        %v7450 = vpack.c.bf16 %v7406, %v7400
        %v7451 = vpack.c.bf16 %v7415, %v7409
        %v7452 = vpack.c.bf16 %v7418, %v7412
        %v7453 = vpack.c.bf16 %v7427, %v7421
        %v7454 = vpack.c.bf16 %v7430, %v7424
        %s7455 = scalar_lea.vmem %s8, 640
        %v7456 = vld [vmem:[%s7455] sm:$0xf]
        %v7457 = vld [vmem:[%s7455 + $0x4] sm:$0xf]
        %v7458 = vld [vmem:[%s7455 + $0x8] sm:$0xf]
        %v7459 = vld [vmem:[%s7455 + $0xc] sm:$0xf]
        %v7460 = vld [vmem:[%s7455 + $0x10] sm:$0xf]
        %v7461 = vld [vmem:[%s7455 + $0x14] sm:$0xf]
        %v7462 = vld [vmem:[%s7455 + $0x18] sm:$0xf]
        %v7463 = vld [vmem:[%s7455 + $0x1c] sm:$0xf]
        %v7464 = vld [vmem:[%s7455 + $0x20] sm:$0xf]
        %v7465 = vld [vmem:[%s7455 + $0x24] sm:$0xf]
        %v7466 = vld [vmem:[%s7455 + $0x28] sm:$0xf]
        %v7467 = vld [vmem:[%s7455 + $0x2c] sm:$0xf]
        %v7468 = vld [vmem:[%s7455 + $0x30] sm:$0xf]
        %v7469 = vld [vmem:[%s7455 + $0x34] sm:$0xf]
        %v7470 = vld [vmem:[%s7455 + $0x38] sm:$0xf]
        %v7471 = vld [vmem:[%s7455 + $0x3c] sm:$0xf]
        %v7472 = vld [vmem:[%s7455 + $0x40] sm:$0xf]
        %v7473 = vld [vmem:[%s7455 + $0x44] sm:$0xf]
        %v7474 = vld [vmem:[%s7455 + $0x48] sm:$0xf]
        %v7475 = vld [vmem:[%s7455 + $0x4c] sm:$0xf]
        %v7476 = vld [vmem:[%s7455 + $0x50] sm:$0xf]
        %v7477 = vld [vmem:[%s7455 + $0x54] sm:$0xf]
        %v7478 = vld [vmem:[%s7455 + $0x58] sm:$0xf]
        %v7479 = vld [vmem:[%s7455 + $0x5c] sm:$0xf]
        %v7480 = vld [vmem:[%s7455 + $0x60] sm:$0xf]
        %v7481 = vld [vmem:[%s7455 + $0x64] sm:$0xf]
        %v7482 = vld [vmem:[%s7455 + $0x68] sm:$0xf]
        %v7483 = vld [vmem:[%s7455 + $0x6c] sm:$0xf]
        %v7484 = vld [vmem:[%s7455 + $0x70] sm:$0xf]
        %v7485 = vld [vmem:[%s7455 + $0x74] sm:$0xf]
        %v7486 = vld [vmem:[%s7455 + $0x78] sm:$0xf]
        %v7487 = vld [vmem:[%s7455 + $0x7c] sm:$0xf]
        %v7520 = vunpack.c.l.b16 %v7456
        %v7521 = vunpack.c.l.b16 %v7457
        %v7522 = vunpack.c.l.b16 %v7458
        %v7523 = vunpack.c.l.b16 %v7459
        %v7524 = vunpack.c.l.b16 %v7460
        %v7525 = vunpack.c.l.b16 %v7461
        %v7526 = vunpack.c.l.b16 %v7462
        %v7527 = vunpack.c.l.b16 %v7463
        %v7528 = vunpack.c.l.b16 %v7464
        %v7529 = vunpack.c.l.b16 %v7465
        %v7530 = vunpack.c.l.b16 %v7466
        %v7531 = vunpack.c.l.b16 %v7467
        %v7532 = vunpack.c.l.b16 %v7468
        %v7533 = vunpack.c.l.b16 %v7469
        %v7534 = vunpack.c.l.b16 %v7470
        %v7535 = vunpack.c.l.b16 %v7471
        %v7536 = vunpack.c.l.b16 %v7472
        %v7537 = vunpack.c.l.b16 %v7473
        %v7538 = vunpack.c.l.b16 %v7474
        %v7539 = vunpack.c.l.b16 %v7475
        %v7540 = vunpack.c.l.b16 %v7476
        %v7541 = vunpack.c.l.b16 %v7477
        %v7542 = vunpack.c.l.b16 %v7478
        %v7543 = vunpack.c.l.b16 %v7479
        %v7544 = vunpack.c.l.b16 %v7480
        %v7545 = vunpack.c.l.b16 %v7481
        %v7546 = vunpack.c.l.b16 %v7482
        %v7547 = vunpack.c.l.b16 %v7483
        %v7548 = vunpack.c.l.b16 %v7484
        %v7549 = vunpack.c.l.b16 %v7485
        %v7550 = vunpack.c.l.b16 %v7486
        %v7551 = vunpack.c.l.b16 %v7487
        %v7552 = vpack.c.b16 %v7521, %v7520
        %v7553 = vpack.c.b16 %v7523, %v7522
        %v7554 = vpack.c.b16 %v7525, %v7524
        %v7555 = vpack.c.b16 %v7527, %v7526
        %v7556 = vpack.c.b16 %v7529, %v7528
        %v7557 = vpack.c.b16 %v7531, %v7530
        %v7558 = vpack.c.b16 %v7533, %v7532
        %v7559 = vpack.c.b16 %v7535, %v7534
        %v7560 = vpack.c.b16 %v7537, %v7536
        %v7561 = vpack.c.b16 %v7539, %v7538
        %v7562 = vpack.c.b16 %v7541, %v7540
        %v7563 = vpack.c.b16 %v7543, %v7542
        %v7564 = vpack.c.b16 %v7545, %v7544
        %v7565 = vpack.c.b16 %v7547, %v7546
        %v7566 = vpack.c.b16 %v7549, %v7548
        %v7567 = vpack.c.b16 %v7551, %v7550
        %7584 = vmatpush.bf16.msra.mxu0 %v7559
        %7585 = vmatpush.bf16.msra.mxu0 %v7558
        %7586 = vmatpush.bf16.msra.mxu0 %v7557
        %7587 = vmatpush.bf16.msra.mxu0 %v7556
        %7588 = vmatpush.bf16.msra.mxu0 %v7555
        %7589 = vmatpush.bf16.msra.mxu0 %v7554
        %7590 = vmatpush.bf16.msra.mxu0 %v7553
        %7591 = vmatpush.bf16.msra.mxu0 %v7552
        %7592 = vmatmul.bf16.gmra.mxu0 %v7447
        %v7593 = vpop.f32.mrf.mxu0
        %v7594 = vadd.f32 0.0, %v7593
        %v7595 = vpop.f32.mrf.mxu0
        %v7596 = vadd.f32 0.0, %v7595
        %7597 = vmatmul.bf16.gmra.mxu0 %v7449
        %v7598 = vpop.f32.mrf.mxu0
        %v7599 = vadd.f32 0.0, %v7598
        %v7600 = vpop.f32.mrf.mxu0
        %v7601 = vadd.f32 0.0, %v7600
        %7602 = vmatmul.bf16.gmra.mxu0 %v7451
        %v7603 = vpop.f32.mrf.mxu0
        %v7604 = vadd.f32 0.0, %v7603
        %v7605 = vpop.f32.mrf.mxu0
        %v7606 = vadd.f32 0.0, %v7605
        %7607 = vmatmul.bf16.gmra.mxu0 %v7453
        %v7608 = vpop.f32.mrf.mxu0
        %v7609 = vadd.f32 0.0, %v7608
        %v7610 = vpop.f32.mrf.mxu0
        %v7611 = vadd.f32 0.0, %v7610
        %7612 = vdwg.mxu0
        %7613 = vmatpush.bf16.msra.mxu0 %v7567
        %7614 = vmatpush.bf16.msra.mxu0 %v7566
        %7615 = vmatpush.bf16.msra.mxu0 %v7565
        %7616 = vmatpush.bf16.msra.mxu0 %v7564
        %7617 = vmatpush.bf16.msra.mxu0 %v7563
        %7618 = vmatpush.bf16.msra.mxu0 %v7562
        %7619 = vmatpush.bf16.msra.mxu0 %v7561
        %7620 = vmatpush.bf16.msra.mxu0 %v7560
        %7621 = vmatmul.bf16.gmra.mxu0 %v7448
        %v7622 = vpop.f32.mrf.mxu0
        %v7623 = vadd.f32 %v7594, %v7622
        %v7624 = vpop.f32.mrf.mxu0
        %v7625 = vadd.f32 %v7596, %v7624
        %7626 = vmatmul.bf16.gmra.mxu0 %v7450
        %v7627 = vpop.f32.mrf.mxu0
        %v7628 = vadd.f32 %v7599, %v7627
        %v7629 = vpop.f32.mrf.mxu0
        %v7630 = vadd.f32 %v7601, %v7629
        %7631 = vmatmul.bf16.gmra.mxu0 %v7452
        %v7632 = vpop.f32.mrf.mxu0
        %v7633 = vadd.f32 %v7604, %v7632
        %v7634 = vpop.f32.mrf.mxu0
        %v7635 = vadd.f32 %v7606, %v7634
        %7636 = vmatmul.bf16.gmra.mxu0 %v7454
        %v7637 = vpop.f32.mrf.mxu0
        %v7638 = vadd.f32 %v7609, %v7637
        %v7639 = vpop.f32.mrf.mxu0
        %v7640 = vadd.f32 %v7611, %v7639
        %7641 = vdwg.mxu0
        %v7642 = vadd.f32 %v7311, %v7623
        %v7643 = vadd.f32 %v7312, %v7625
        %v7644 = vadd.f32 %v7313, %v7628
        %v7645 = vadd.f32 %v7314, %v7630
        %v7646 = vadd.f32 %v7315, %v7633
        %v7647 = vadd.f32 %v7316, %v7635
        %v7648 = vadd.f32 %v7317, %v7638
        %v7649 = vadd.f32 %v7318, %v7640
        %s7650 = scalar_lea.vmem [#allocation4], 64
        %v7651 = vld [vmem:[%s7650] sm:$0xff]
        %v7652 = vld [vmem:[%s7650 + $0x8] sm:$0xff]
        %v7653 = vld [vmem:[%s7650 + $0x20] sm:$0xff]
        %v7654 = vld [vmem:[%s7650 + $0x28] sm:$0xff]
        %v7655 = vld [vmem:[%s7650 + $0x40] sm:$0xff]
        %v7656 = vld [vmem:[%s7650 + $0x48] sm:$0xff]
        %v7657 = vld [vmem:[%s7650 + $0x60] sm:$0xff]
        %v7658 = vld [vmem:[%s7650 + $0x68] sm:$0xff]
        %v7659 = vld [vmem:[%s7650 + $0x80] sm:$0xff]
        %v7660 = vld [vmem:[%s7650 + $0x88] sm:$0xff]
        %v7661 = vld [vmem:[%s7650 + $0xa0] sm:$0xff]
        %v7662 = vld [vmem:[%s7650 + $0xa8] sm:$0xff]
        %v7663 = vld [vmem:[%s7650 + $0xc0] sm:$0xff]
        %v7664 = vld [vmem:[%s7650 + $0xc8] sm:$0xff]
        %v7665 = vld [vmem:[%s7650 + $0xe0] sm:$0xff]
        %v7666 = vld [vmem:[%s7650 + $0xe8] sm:$0xff]
        %v7667 = vpack.c.bf16 %v7653, %v7651
        %v7668 = vpack.c.bf16 %v7654, %v7652
        %v7669 = vpack.c.bf16 %v7657, %v7655
        %v7670 = vpack.c.bf16 %v7658, %v7656
        %v7671 = vpack.c.bf16 %v7661, %v7659
        %v7672 = vpack.c.bf16 %v7662, %v7660
        %v7673 = vpack.c.bf16 %v7665, %v7663
        %v7674 = vpack.c.bf16 %v7666, %v7664
        %s7675 = scalar_lea.vmem %s8, 768
        %v7676 = vld [vmem:[%s7675] sm:$0xf]
        %v7677 = vld [vmem:[%s7675 + $0x4] sm:$0xf]
        %v7678 = vld [vmem:[%s7675 + $0x8] sm:$0xf]
        %v7679 = vld [vmem:[%s7675 + $0xc] sm:$0xf]
        %v7680 = vld [vmem:[%s7675 + $0x10] sm:$0xf]
        %v7681 = vld [vmem:[%s7675 + $0x14] sm:$0xf]
        %v7682 = vld [vmem:[%s7675 + $0x18] sm:$0xf]
        %v7683 = vld [vmem:[%s7675 + $0x1c] sm:$0xf]
        %v7684 = vld [vmem:[%s7675 + $0x20] sm:$0xf]
        %v7685 = vld [vmem:[%s7675 + $0x24] sm:$0xf]
        %v7686 = vld [vmem:[%s7675 + $0x28] sm:$0xf]
        %v7687 = vld [vmem:[%s7675 + $0x2c] sm:$0xf]
        %v7688 = vld [vmem:[%s7675 + $0x30] sm:$0xf]
        %v7689 = vld [vmem:[%s7675 + $0x34] sm:$0xf]
        %v7690 = vld [vmem:[%s7675 + $0x38] sm:$0xf]
        %v7691 = vld [vmem:[%s7675 + $0x3c] sm:$0xf]
        %v7692 = vld [vmem:[%s7675 + $0x40] sm:$0xf]
        %v7693 = vld [vmem:[%s7675 + $0x44] sm:$0xf]
        %v7694 = vld [vmem:[%s7675 + $0x48] sm:$0xf]
        %v7695 = vld [vmem:[%s7675 + $0x4c] sm:$0xf]
        %v7696 = vld [vmem:[%s7675 + $0x50] sm:$0xf]
        %v7697 = vld [vmem:[%s7675 + $0x54] sm:$0xf]
        %v7698 = vld [vmem:[%s7675 + $0x58] sm:$0xf]
        %v7699 = vld [vmem:[%s7675 + $0x5c] sm:$0xf]
        %v7700 = vld [vmem:[%s7675 + $0x60] sm:$0xf]
        %v7701 = vld [vmem:[%s7675 + $0x64] sm:$0xf]
        %v7702 = vld [vmem:[%s7675 + $0x68] sm:$0xf]
        %v7703 = vld [vmem:[%s7675 + $0x6c] sm:$0xf]
        %v7704 = vld [vmem:[%s7675 + $0x70] sm:$0xf]
        %v7705 = vld [vmem:[%s7675 + $0x74] sm:$0xf]
        %v7706 = vld [vmem:[%s7675 + $0x78] sm:$0xf]
        %v7707 = vld [vmem:[%s7675 + $0x7c] sm:$0xf]
        %v7740 = vunpack.c.l.b16 %v7676
        %v7741 = vunpack.c.l.b16 %v7677
        %v7742 = vunpack.c.l.b16 %v7678
        %v7743 = vunpack.c.l.b16 %v7679
        %v7744 = vunpack.c.l.b16 %v7680
        %v7745 = vunpack.c.l.b16 %v7681
        %v7746 = vunpack.c.l.b16 %v7682
        %v7747 = vunpack.c.l.b16 %v7683
        %v7748 = vunpack.c.l.b16 %v7684
        %v7749 = vunpack.c.l.b16 %v7685
        %v7750 = vunpack.c.l.b16 %v7686
        %v7751 = vunpack.c.l.b16 %v7687
        %v7752 = vunpack.c.l.b16 %v7688
        %v7753 = vunpack.c.l.b16 %v7689
        %v7754 = vunpack.c.l.b16 %v7690
        %v7755 = vunpack.c.l.b16 %v7691
        %v7756 = vunpack.c.l.b16 %v7692
        %v7757 = vunpack.c.l.b16 %v7693
        %v7758 = vunpack.c.l.b16 %v7694
        %v7759 = vunpack.c.l.b16 %v7695
        %v7760 = vunpack.c.l.b16 %v7696
        %v7761 = vunpack.c.l.b16 %v7697
        %v7762 = vunpack.c.l.b16 %v7698
        %v7763 = vunpack.c.l.b16 %v7699
        %v7764 = vunpack.c.l.b16 %v7700
        %v7765 = vunpack.c.l.b16 %v7701
        %v7766 = vunpack.c.l.b16 %v7702
        %v7767 = vunpack.c.l.b16 %v7703
        %v7768 = vunpack.c.l.b16 %v7704
        %v7769 = vunpack.c.l.b16 %v7705
        %v7770 = vunpack.c.l.b16 %v7706
        %v7771 = vunpack.c.l.b16 %v7707
        %v7772 = vpack.c.b16 %v7741, %v7740
        %v7773 = vpack.c.b16 %v7743, %v7742
        %v7774 = vpack.c.b16 %v7745, %v7744
        %v7775 = vpack.c.b16 %v7747, %v7746
        %v7776 = vpack.c.b16 %v7749, %v7748
        %v7777 = vpack.c.b16 %v7751, %v7750
        %v7778 = vpack.c.b16 %v7753, %v7752
        %v7779 = vpack.c.b16 %v7755, %v7754
        %v7780 = vpack.c.b16 %v7757, %v7756
        %v7781 = vpack.c.b16 %v7759, %v7758
        %v7782 = vpack.c.b16 %v7761, %v7760
        %v7783 = vpack.c.b16 %v7763, %v7762
        %v7784 = vpack.c.b16 %v7765, %v7764
        %v7785 = vpack.c.b16 %v7767, %v7766
        %v7786 = vpack.c.b16 %v7769, %v7768
        %v7787 = vpack.c.b16 %v7771, %v7770
        %7804 = vmatpush.bf16.msra.mxu0 %v7779
        %7805 = vmatpush.bf16.msra.mxu0 %v7778
        %7806 = vmatpush.bf16.msra.mxu0 %v7777
        %7807 = vmatpush.bf16.msra.mxu0 %v7776
        %7808 = vmatpush.bf16.msra.mxu0 %v7775
        %7809 = vmatpush.bf16.msra.mxu0 %v7774
        %7810 = vmatpush.bf16.msra.mxu0 %v7773
        %7811 = vmatpush.bf16.msra.mxu0 %v7772
        %7812 = vmatmul.bf16.gmra.mxu0 %v7667
        %v7813 = vpop.f32.mrf.mxu0
        %v7814 = vadd.f32 0.0, %v7813
        %v7815 = vpop.f32.mrf.mxu0
        %v7816 = vadd.f32 0.0, %v7815
        %7817 = vmatmul.bf16.gmra.mxu0 %v7669
        %v7818 = vpop.f32.mrf.mxu0
        %v7819 = vadd.f32 0.0, %v7818
        %v7820 = vpop.f32.mrf.mxu0
        %v7821 = vadd.f32 0.0, %v7820
        %7822 = vmatmul.bf16.gmra.mxu0 %v7671
        %v7823 = vpop.f32.mrf.mxu0
        %v7824 = vadd.f32 0.0, %v7823
        %v7825 = vpop.f32.mrf.mxu0
        %v7826 = vadd.f32 0.0, %v7825
        %7827 = vmatmul.bf16.gmra.mxu0 %v7673
        %v7828 = vpop.f32.mrf.mxu0
        %v7829 = vadd.f32 0.0, %v7828
        %v7830 = vpop.f32.mrf.mxu0
        %v7831 = vadd.f32 0.0, %v7830
        %7832 = vdwg.mxu0
        %7833 = vmatpush.bf16.msra.mxu0 %v7787
        %7834 = vmatpush.bf16.msra.mxu0 %v7786
        %7835 = vmatpush.bf16.msra.mxu0 %v7785
        %7836 = vmatpush.bf16.msra.mxu0 %v7784
        %7837 = vmatpush.bf16.msra.mxu0 %v7783
        %7838 = vmatpush.bf16.msra.mxu0 %v7782
        %7839 = vmatpush.bf16.msra.mxu0 %v7781
        %7840 = vmatpush.bf16.msra.mxu0 %v7780
        %7841 = vmatmul.bf16.gmra.mxu0 %v7668
        %v7842 = vpop.f32.mrf.mxu0
        %v7843 = vadd.f32 %v7814, %v7842
        %v7844 = vpop.f32.mrf.mxu0
        %v7845 = vadd.f32 %v7816, %v7844
        %7846 = vmatmul.bf16.gmra.mxu0 %v7670
        %v7847 = vpop.f32.mrf.mxu0
        %v7848 = vadd.f32 %v7819, %v7847
        %v7849 = vpop.f32.mrf.mxu0
        %v7850 = vadd.f32 %v7821, %v7849
        %7851 = vmatmul.bf16.gmra.mxu0 %v7672
        %v7852 = vpop.f32.mrf.mxu0
        %v7853 = vadd.f32 %v7824, %v7852
        %v7854 = vpop.f32.mrf.mxu0
        %v7855 = vadd.f32 %v7826, %v7854
        %7856 = vmatmul.bf16.gmra.mxu0 %v7674
        %v7857 = vpop.f32.mrf.mxu0
        %v7858 = vadd.f32 %v7829, %v7857
        %v7859 = vpop.f32.mrf.mxu0
        %v7860 = vadd.f32 %v7831, %v7859
        %7861 = vdwg.mxu0
        %v7862 = vadd.f32 %v7642, %v7843
        %v7863 = vadd.f32 %v7643, %v7845
        %v7864 = vadd.f32 %v7644, %v7848
        %v7865 = vadd.f32 %v7645, %v7850
        %v7866 = vadd.f32 %v7646, %v7853
        %v7867 = vadd.f32 %v7647, %v7855
        %v7868 = vadd.f32 %v7648, %v7858
        %v7869 = vadd.f32 %v7649, %v7860
        %v7870 = vld [vmem:[%s7650] sm:$0xfe]
        %v7871 = vld [vmem:[%s7650 + $0x8] sm:$0xfe]
        %v7872 = vld [vmem:[%s7650 + $0x10] sm:$0x1]
        %v7873 = vld [vmem:[%s7650 + $0x18] sm:$0x1]
        %v7874 = vld [vmem:[%s7650 + $0x20] sm:$0xfe]
        %v7875 = vld [vmem:[%s7650 + $0x28] sm:$0xfe]
        %v7876 = vld [vmem:[%s7650 + $0x30] sm:$0x1]
        %v7877 = vld [vmem:[%s7650 + $0x38] sm:$0x1]
        %v7878 = vld [vmem:[%s7650 + $0x40] sm:$0xfe]
        %v7879 = vld [vmem:[%s7650 + $0x48] sm:$0xfe]
        %v7880 = vld [vmem:[%s7650 + $0x50] sm:$0x1]
        %v7881 = vld [vmem:[%s7650 + $0x58] sm:$0x1]
        %v7882 = vld [vmem:[%s7650 + $0x60] sm:$0xfe]
        %v7883 = vld [vmem:[%s7650 + $0x68] sm:$0xfe]
        %v7884 = vld [vmem:[%s7650 + $0x70] sm:$0x1]
        %v7885 = vld [vmem:[%s7650 + $0x78] sm:$0x1]
        %v7886 = vld [vmem:[%s7650 + $0x80] sm:$0xfe]
        %v7887 = vld [vmem:[%s7650 + $0x88] sm:$0xfe]
        %v7888 = vld [vmem:[%s7650 + $0x90] sm:$0x1]
        %v7889 = vld [vmem:[%s7650 + $0x98] sm:$0x1]
        %v7890 = vld [vmem:[%s7650 + $0xa0] sm:$0xfe]
        %v7891 = vld [vmem:[%s7650 + $0xa8] sm:$0xfe]
        %v7892 = vld [vmem:[%s7650 + $0xb0] sm:$0x1]
        %v7893 = vld [vmem:[%s7650 + $0xb8] sm:$0x1]
        %v7894 = vld [vmem:[%s7650 + $0xc0] sm:$0xfe]
        %v7895 = vld [vmem:[%s7650 + $0xc8] sm:$0xfe]
        %v7896 = vld [vmem:[%s7650 + $0xd0] sm:$0x1]
        %v7897 = vld [vmem:[%s7650 + $0xd8] sm:$0x1]
        %v7898 = vld [vmem:[%s7650 + $0xe0] sm:$0xfe]
        %v7899 = vld [vmem:[%s7650 + $0xe8] sm:$0xfe]
        %v7900 = vld [vmem:[%s7650 + $0xf0] sm:$0x1]
        %v7901 = vld [vmem:[%s7650 + $0xf8] sm:$0x1]
        %v7934 = vrot.slane %v7870, 1
        %v7935 = vrot.slane %v7872, 1
        %v7936 = vsel %vm1262, %v7934, %v7935
        %v7937 = vrot.slane %v7871, 1
        %v7938 = vrot.slane %v7873, 1
        %v7939 = vsel %vm1262, %v7937, %v7938
        %v7940 = vrot.slane %v7874, 1
        %v7941 = vrot.slane %v7876, 1
        %v7942 = vsel %vm1262, %v7940, %v7941
        %v7943 = vrot.slane %v7875, 1
        %v7944 = vrot.slane %v7877, 1
        %v7945 = vsel %vm1262, %v7943, %v7944
        %v7946 = vrot.slane %v7878, 1
        %v7947 = vrot.slane %v7880, 1
        %v7948 = vsel %vm1262, %v7946, %v7947
        %v7949 = vrot.slane %v7879, 1
        %v7950 = vrot.slane %v7881, 1
        %v7951 = vsel %vm1262, %v7949, %v7950
        %v7952 = vrot.slane %v7882, 1
        %v7953 = vrot.slane %v7884, 1
        %v7954 = vsel %vm1262, %v7952, %v7953
        %v7955 = vrot.slane %v7883, 1
        %v7956 = vrot.slane %v7885, 1
        %v7957 = vsel %vm1262, %v7955, %v7956
        %v7958 = vrot.slane %v7886, 1
        %v7959 = vrot.slane %v7888, 1
        %v7960 = vsel %vm1262, %v7958, %v7959
        %v7961 = vrot.slane %v7887, 1
        %v7962 = vrot.slane %v7889, 1
        %v7963 = vsel %vm1262, %v7961, %v7962
        %v7964 = vrot.slane %v7890, 1
        %v7965 = vrot.slane %v7892, 1
        %v7966 = vsel %vm1262, %v7964, %v7965
        %v7967 = vrot.slane %v7891, 1
        %v7968 = vrot.slane %v7893, 1
        %v7969 = vsel %vm1262, %v7967, %v7968
        %v7970 = vrot.slane %v7894, 1
        %v7971 = vrot.slane %v7896, 1
        %v7972 = vsel %vm1262, %v7970, %v7971
        %v7973 = vrot.slane %v7895, 1
        %v7974 = vrot.slane %v7897, 1
        %v7975 = vsel %vm1262, %v7973, %v7974
        %v7976 = vrot.slane %v7898, 1
        %v7977 = vrot.slane %v7900, 1
        %v7978 = vsel %vm1262, %v7976, %v7977
        %v7979 = vrot.slane %v7899, 1
        %v7980 = vrot.slane %v7901, 1
        %v7981 = vsel %vm1262, %v7979, %v7980
        %v7998 = vpack.c.bf16 %v7942, %v7936
        %v7999 = vpack.c.bf16 %v7945, %v7939
        %v8000 = vpack.c.bf16 %v7954, %v7948
        %v8001 = vpack.c.bf16 %v7957, %v7951
        %v8002 = vpack.c.bf16 %v7966, %v7960
        %v8003 = vpack.c.bf16 %v7969, %v7963
        %v8004 = vpack.c.bf16 %v7978, %v7972
        %v8005 = vpack.c.bf16 %v7981, %v7975
        %s8006 = scalar_lea.vmem %s8, 896
        %v8007 = vld [vmem:[%s8006] sm:$0xf]
        %v8008 = vld [vmem:[%s8006 + $0x4] sm:$0xf]
        %v8009 = vld [vmem:[%s8006 + $0x8] sm:$0xf]
        %v8010 = vld [vmem:[%s8006 + $0xc] sm:$0xf]
        %v8011 = vld [vmem:[%s8006 + $0x10] sm:$0xf]
        %v8012 = vld [vmem:[%s8006 + $0x14] sm:$0xf]
        %v8013 = vld [vmem:[%s8006 + $0x18] sm:$0xf]
        %v8014 = vld [vmem:[%s8006 + $0x1c] sm:$0xf]
        %v8015 = vld [vmem:[%s8006 + $0x20] sm:$0xf]
        %v8016 = vld [vmem:[%s8006 + $0x24] sm:$0xf]
        %v8017 = vld [vmem:[%s8006 + $0x28] sm:$0xf]
        %v8018 = vld [vmem:[%s8006 + $0x2c] sm:$0xf]
        %v8019 = vld [vmem:[%s8006 + $0x30] sm:$0xf]
        %v8020 = vld [vmem:[%s8006 + $0x34] sm:$0xf]
        %v8021 = vld [vmem:[%s8006 + $0x38] sm:$0xf]
        %v8022 = vld [vmem:[%s8006 + $0x3c] sm:$0xf]
        %v8023 = vld [vmem:[%s8006 + $0x40] sm:$0xf]
        %v8024 = vld [vmem:[%s8006 + $0x44] sm:$0xf]
        %v8025 = vld [vmem:[%s8006 + $0x48] sm:$0xf]
        %v8026 = vld [vmem:[%s8006 + $0x4c] sm:$0xf]
        %v8027 = vld [vmem:[%s8006 + $0x50] sm:$0xf]
        %v8028 = vld [vmem:[%s8006 + $0x54] sm:$0xf]
        %v8029 = vld [vmem:[%s8006 + $0x58] sm:$0xf]
        %v8030 = vld [vmem:[%s8006 + $0x5c] sm:$0xf]
        %v8031 = vld [vmem:[%s8006 + $0x60] sm:$0xf]
        %v8032 = vld [vmem:[%s8006 + $0x64] sm:$0xf]
        %v8033 = vld [vmem:[%s8006 + $0x68] sm:$0xf]
        %v8034 = vld [vmem:[%s8006 + $0x6c] sm:$0xf]
        %v8035 = vld [vmem:[%s8006 + $0x70] sm:$0xf]
        %v8036 = vld [vmem:[%s8006 + $0x74] sm:$0xf]
        %v8037 = vld [vmem:[%s8006 + $0x78] sm:$0xf]
        %v8038 = vld [vmem:[%s8006 + $0x7c] sm:$0xf]
        %v8071 = vunpack.c.l.b16 %v8007
        %v8072 = vunpack.c.l.b16 %v8008
        %v8073 = vunpack.c.l.b16 %v8009
        %v8074 = vunpack.c.l.b16 %v8010
        %v8075 = vunpack.c.l.b16 %v8011
        %v8076 = vunpack.c.l.b16 %v8012
        %v8077 = vunpack.c.l.b16 %v8013
        %v8078 = vunpack.c.l.b16 %v8014
        %v8079 = vunpack.c.l.b16 %v8015
        %v8080 = vunpack.c.l.b16 %v8016
        %v8081 = vunpack.c.l.b16 %v8017
        %v8082 = vunpack.c.l.b16 %v8018
        %v8083 = vunpack.c.l.b16 %v8019
        %v8084 = vunpack.c.l.b16 %v8020
        %v8085 = vunpack.c.l.b16 %v8021
        %v8086 = vunpack.c.l.b16 %v8022
        %v8087 = vunpack.c.l.b16 %v8023
        %v8088 = vunpack.c.l.b16 %v8024
        %v8089 = vunpack.c.l.b16 %v8025
        %v8090 = vunpack.c.l.b16 %v8026
        %v8091 = vunpack.c.l.b16 %v8027
        %v8092 = vunpack.c.l.b16 %v8028
        %v8093 = vunpack.c.l.b16 %v8029
        %v8094 = vunpack.c.l.b16 %v8030
        %v8095 = vunpack.c.l.b16 %v8031
        %v8096 = vunpack.c.l.b16 %v8032
        %v8097 = vunpack.c.l.b16 %v8033
        %v8098 = vunpack.c.l.b16 %v8034
        %v8099 = vunpack.c.l.b16 %v8035
        %v8100 = vunpack.c.l.b16 %v8036
        %v8101 = vunpack.c.l.b16 %v8037
        %v8102 = vunpack.c.l.b16 %v8038
        %v8103 = vpack.c.b16 %v8072, %v8071
        %v8104 = vpack.c.b16 %v8074, %v8073
        %v8105 = vpack.c.b16 %v8076, %v8075
        %v8106 = vpack.c.b16 %v8078, %v8077
        %v8107 = vpack.c.b16 %v8080, %v8079
        %v8108 = vpack.c.b16 %v8082, %v8081
        %v8109 = vpack.c.b16 %v8084, %v8083
        %v8110 = vpack.c.b16 %v8086, %v8085
        %v8111 = vpack.c.b16 %v8088, %v8087
        %v8112 = vpack.c.b16 %v8090, %v8089
        %v8113 = vpack.c.b16 %v8092, %v8091
        %v8114 = vpack.c.b16 %v8094, %v8093
        %v8115 = vpack.c.b16 %v8096, %v8095
        %v8116 = vpack.c.b16 %v8098, %v8097
        %v8117 = vpack.c.b16 %v8100, %v8099
        %v8118 = vpack.c.b16 %v8102, %v8101
        %8135 = vmatpush.bf16.msra.mxu0 %v8110
        %8136 = vmatpush.bf16.msra.mxu0 %v8109
        %8137 = vmatpush.bf16.msra.mxu0 %v8108
        %8138 = vmatpush.bf16.msra.mxu0 %v8107
        %8139 = vmatpush.bf16.msra.mxu0 %v8106
        %8140 = vmatpush.bf16.msra.mxu0 %v8105
        %8141 = vmatpush.bf16.msra.mxu0 %v8104
        %8142 = vmatpush.bf16.msra.mxu0 %v8103
        %8143 = vmatmul.bf16.gmra.mxu0 %v7998
        %v8144 = vpop.f32.mrf.mxu0
        %v8145 = vadd.f32 0.0, %v8144
        %v8146 = vpop.f32.mrf.mxu0
        %v8147 = vadd.f32 0.0, %v8146
        %8148 = vmatmul.bf16.gmra.mxu0 %v8000
        %v8149 = vpop.f32.mrf.mxu0
        %v8150 = vadd.f32 0.0, %v8149
        %v8151 = vpop.f32.mrf.mxu0
        %v8152 = vadd.f32 0.0, %v8151
        %8153 = vmatmul.bf16.gmra.mxu0 %v8002
        %v8154 = vpop.f32.mrf.mxu0
        %v8155 = vadd.f32 0.0, %v8154
        %v8156 = vpop.f32.mrf.mxu0
        %v8157 = vadd.f32 0.0, %v8156
        %8158 = vmatmul.bf16.gmra.mxu0 %v8004
        %v8159 = vpop.f32.mrf.mxu0
        %v8160 = vadd.f32 0.0, %v8159
        %v8161 = vpop.f32.mrf.mxu0
        %v8162 = vadd.f32 0.0, %v8161
        %8163 = vdwg.mxu0
        %8164 = vmatpush.bf16.msra.mxu0 %v8118
        %8165 = vmatpush.bf16.msra.mxu0 %v8117
        %8166 = vmatpush.bf16.msra.mxu0 %v8116
        %8167 = vmatpush.bf16.msra.mxu0 %v8115
        %8168 = vmatpush.bf16.msra.mxu0 %v8114
        %8169 = vmatpush.bf16.msra.mxu0 %v8113
        %8170 = vmatpush.bf16.msra.mxu0 %v8112
        %8171 = vmatpush.bf16.msra.mxu0 %v8111
        %8172 = vmatmul.bf16.gmra.mxu0 %v7999
        %v8173 = vpop.f32.mrf.mxu0
        %v8174 = vadd.f32 %v8145, %v8173
        %v8175 = vpop.f32.mrf.mxu0
        %v8176 = vadd.f32 %v8147, %v8175
        %8177 = vmatmul.bf16.gmra.mxu0 %v8001
        %v8178 = vpop.f32.mrf.mxu0
        %v8179 = vadd.f32 %v8150, %v8178
        %v8180 = vpop.f32.mrf.mxu0
        %v8181 = vadd.f32 %v8152, %v8180
        %8182 = vmatmul.bf16.gmra.mxu0 %v8003
        %v8183 = vpop.f32.mrf.mxu0
        %v8184 = vadd.f32 %v8155, %v8183
        %v8185 = vpop.f32.mrf.mxu0
        %v8186 = vadd.f32 %v8157, %v8185
        %8187 = vmatmul.bf16.gmra.mxu0 %v8005
        %v8188 = vpop.f32.mrf.mxu0
        %v8189 = vadd.f32 %v8160, %v8188
        %v8190 = vpop.f32.mrf.mxu0
        %v8191 = vadd.f32 %v8162, %v8190
        %8192 = vdwg.mxu0
        %v8193 = vadd.f32 %v7862, %v8174
        %v8194 = vadd.f32 %v7863, %v8176
        %v8195 = vadd.f32 %v7864, %v8179
        %v8196 = vadd.f32 %v7865, %v8181
        %v8197 = vadd.f32 %v7866, %v8184
        %v8198 = vadd.f32 %v7867, %v8186
        %v8199 = vadd.f32 %v7868, %v8189
        %v8200 = vadd.f32 %v7869, %v8191
        %v8201 = vld [vmem:[%s7650] sm:$0xfc]
        %v8202 = vld [vmem:[%s7650 + $0x8] sm:$0xfc]
        %v8203 = vld [vmem:[%s7650 + $0x10] sm:$0x3]
        %v8204 = vld [vmem:[%s7650 + $0x18] sm:$0x3]
        %v8205 = vld [vmem:[%s7650 + $0x20] sm:$0xfc]
        %v8206 = vld [vmem:[%s7650 + $0x28] sm:$0xfc]
        %v8207 = vld [vmem:[%s7650 + $0x30] sm:$0x3]
        %v8208 = vld [vmem:[%s7650 + $0x38] sm:$0x3]
        %v8209 = vld [vmem:[%s7650 + $0x40] sm:$0xfc]
        %v8210 = vld [vmem:[%s7650 + $0x48] sm:$0xfc]
        %v8211 = vld [vmem:[%s7650 + $0x50] sm:$0x3]
        %v8212 = vld [vmem:[%s7650 + $0x58] sm:$0x3]
        %v8213 = vld [vmem:[%s7650 + $0x60] sm:$0xfc]
        %v8214 = vld [vmem:[%s7650 + $0x68] sm:$0xfc]
        %v8215 = vld [vmem:[%s7650 + $0x70] sm:$0x3]
        %v8216 = vld [vmem:[%s7650 + $0x78] sm:$0x3]
        %v8217 = vld [vmem:[%s7650 + $0x80] sm:$0xfc]
        %v8218 = vld [vmem:[%s7650 + $0x88] sm:$0xfc]
        %v8219 = vld [vmem:[%s7650 + $0x90] sm:$0x3]
        %v8220 = vld [vmem:[%s7650 + $0x98] sm:$0x3]
        %v8221 = vld [vmem:[%s7650 + $0xa0] sm:$0xfc]
        %v8222 = vld [vmem:[%s7650 + $0xa8] sm:$0xfc]
        %v8223 = vld [vmem:[%s7650 + $0xb0] sm:$0x3]
        %v8224 = vld [vmem:[%s7650 + $0xb8] sm:$0x3]
        %v8225 = vld [vmem:[%s7650 + $0xc0] sm:$0xfc]
        %v8226 = vld [vmem:[%s7650 + $0xc8] sm:$0xfc]
        %v8227 = vld [vmem:[%s7650 + $0xd0] sm:$0x3]
        %v8228 = vld [vmem:[%s7650 + $0xd8] sm:$0x3]
        %v8229 = vld [vmem:[%s7650 + $0xe0] sm:$0xfc]
        %v8230 = vld [vmem:[%s7650 + $0xe8] sm:$0xfc]
        %v8231 = vld [vmem:[%s7650 + $0xf0] sm:$0x3]
        %v8232 = vld [vmem:[%s7650 + $0xf8] sm:$0x3]
        %v8265 = vrot.slane %v8201, 2
        %v8266 = vrot.slane %v8203, 2
        %v8267 = vsel %vm1859, %v8265, %v8266
        %v8268 = vrot.slane %v8202, 2
        %v8269 = vrot.slane %v8204, 2
        %v8270 = vsel %vm1859, %v8268, %v8269
        %v8271 = vrot.slane %v8205, 2
        %v8272 = vrot.slane %v8207, 2
        %v8273 = vsel %vm1859, %v8271, %v8272
        %v8274 = vrot.slane %v8206, 2
        %v8275 = vrot.slane %v8208, 2
        %v8276 = vsel %vm1859, %v8274, %v8275
        %v8277 = vrot.slane %v8209, 2
        %v8278 = vrot.slane %v8211, 2
        %v8279 = vsel %vm1859, %v8277, %v8278
        %v8280 = vrot.slane %v8210, 2
        %v8281 = vrot.slane %v8212, 2
        %v8282 = vsel %vm1859, %v8280, %v8281
        %v8283 = vrot.slane %v8213, 2
        %v8284 = vrot.slane %v8215, 2
        %v8285 = vsel %vm1859, %v8283, %v8284
        %v8286 = vrot.slane %v8214, 2
        %v8287 = vrot.slane %v8216, 2
        %v8288 = vsel %vm1859, %v8286, %v8287
        %v8289 = vrot.slane %v8217, 2
        %v8290 = vrot.slane %v8219, 2
        %v8291 = vsel %vm1859, %v8289, %v8290
        %v8292 = vrot.slane %v8218, 2
        %v8293 = vrot.slane %v8220, 2
        %v8294 = vsel %vm1859, %v8292, %v8293
        %v8295 = vrot.slane %v8221, 2
        %v8296 = vrot.slane %v8223, 2
        %v8297 = vsel %vm1859, %v8295, %v8296
        %v8298 = vrot.slane %v8222, 2
        %v8299 = vrot.slane %v8224, 2
        %v8300 = vsel %vm1859, %v8298, %v8299
        %v8301 = vrot.slane %v8225, 2
        %v8302 = vrot.slane %v8227, 2
        %v8303 = vsel %vm1859, %v8301, %v8302
        %v8304 = vrot.slane %v8226, 2
        %v8305 = vrot.slane %v8228, 2
        %v8306 = vsel %vm1859, %v8304, %v8305
        %v8307 = vrot.slane %v8229, 2
        %v8308 = vrot.slane %v8231, 2
        %v8309 = vsel %vm1859, %v8307, %v8308
        %v8310 = vrot.slane %v8230, 2
        %v8311 = vrot.slane %v8232, 2
        %v8312 = vsel %vm1859, %v8310, %v8311
        %v8329 = vpack.c.bf16 %v8273, %v8267
        %v8330 = vpack.c.bf16 %v8276, %v8270
        %v8331 = vpack.c.bf16 %v8285, %v8279
        %v8332 = vpack.c.bf16 %v8288, %v8282
        %v8333 = vpack.c.bf16 %v8297, %v8291
        %v8334 = vpack.c.bf16 %v8300, %v8294
        %v8335 = vpack.c.bf16 %v8309, %v8303
        %v8336 = vpack.c.bf16 %v8312, %v8306
        %s8337 = scalar_lea.vmem %s8, 1024
        %v8338 = vld [vmem:[%s8337] sm:$0xf]
        %v8339 = vld [vmem:[%s8337 + $0x4] sm:$0xf]
        %v8340 = vld [vmem:[%s8337 + $0x8] sm:$0xf]
        %v8341 = vld [vmem:[%s8337 + $0xc] sm:$0xf]
        %v8342 = vld [vmem:[%s8337 + $0x10] sm:$0xf]
        %v8343 = vld [vmem:[%s8337 + $0x14] sm:$0xf]
        %v8344 = vld [vmem:[%s8337 + $0x18] sm:$0xf]
        %v8345 = vld [vmem:[%s8337 + $0x1c] sm:$0xf]
        %v8346 = vld [vmem:[%s8337 + $0x20] sm:$0xf]
        %v8347 = vld [vmem:[%s8337 + $0x24] sm:$0xf]
        %v8348 = vld [vmem:[%s8337 + $0x28] sm:$0xf]
        %v8349 = vld [vmem:[%s8337 + $0x2c] sm:$0xf]
        %v8350 = vld [vmem:[%s8337 + $0x30] sm:$0xf]
        %v8351 = vld [vmem:[%s8337 + $0x34] sm:$0xf]
        %v8352 = vld [vmem:[%s8337 + $0x38] sm:$0xf]
        %v8353 = vld [vmem:[%s8337 + $0x3c] sm:$0xf]
        %v8354 = vld [vmem:[%s8337 + $0x40] sm:$0xf]
        %v8355 = vld [vmem:[%s8337 + $0x44] sm:$0xf]
        %v8356 = vld [vmem:[%s8337 + $0x48] sm:$0xf]
        %v8357 = vld [vmem:[%s8337 + $0x4c] sm:$0xf]
        %v8358 = vld [vmem:[%s8337 + $0x50] sm:$0xf]
        %v8359 = vld [vmem:[%s8337 + $0x54] sm:$0xf]
        %v8360 = vld [vmem:[%s8337 + $0x58] sm:$0xf]
        %v8361 = vld [vmem:[%s8337 + $0x5c] sm:$0xf]
        %v8362 = vld [vmem:[%s8337 + $0x60] sm:$0xf]
        %v8363 = vld [vmem:[%s8337 + $0x64] sm:$0xf]
        %v8364 = vld [vmem:[%s8337 + $0x68] sm:$0xf]
        %v8365 = vld [vmem:[%s8337 + $0x6c] sm:$0xf]
        %v8366 = vld [vmem:[%s8337 + $0x70] sm:$0xf]
        %v8367 = vld [vmem:[%s8337 + $0x74] sm:$0xf]
        %v8368 = vld [vmem:[%s8337 + $0x78] sm:$0xf]
        %v8369 = vld [vmem:[%s8337 + $0x7c] sm:$0xf]
        %v8402 = vunpack.c.l.b16 %v8338
        %v8403 = vunpack.c.l.b16 %v8339
        %v8404 = vunpack.c.l.b16 %v8340
        %v8405 = vunpack.c.l.b16 %v8341
        %v8406 = vunpack.c.l.b16 %v8342
        %v8407 = vunpack.c.l.b16 %v8343
        %v8408 = vunpack.c.l.b16 %v8344
        %v8409 = vunpack.c.l.b16 %v8345
        %v8410 = vunpack.c.l.b16 %v8346
        %v8411 = vunpack.c.l.b16 %v8347
        %v8412 = vunpack.c.l.b16 %v8348
        %v8413 = vunpack.c.l.b16 %v8349
        %v8414 = vunpack.c.l.b16 %v8350
        %v8415 = vunpack.c.l.b16 %v8351
        %v8416 = vunpack.c.l.b16 %v8352
        %v8417 = vunpack.c.l.b16 %v8353
        %v8418 = vunpack.c.l.b16 %v8354
        %v8419 = vunpack.c.l.b16 %v8355
        %v8420 = vunpack.c.l.b16 %v8356
        %v8421 = vunpack.c.l.b16 %v8357
        %v8422 = vunpack.c.l.b16 %v8358
        %v8423 = vunpack.c.l.b16 %v8359
        %v8424 = vunpack.c.l.b16 %v8360
        %v8425 = vunpack.c.l.b16 %v8361
        %v8426 = vunpack.c.l.b16 %v8362
        %v8427 = vunpack.c.l.b16 %v8363
        %v8428 = vunpack.c.l.b16 %v8364
        %v8429 = vunpack.c.l.b16 %v8365
        %v8430 = vunpack.c.l.b16 %v8366
        %v8431 = vunpack.c.l.b16 %v8367
        %v8432 = vunpack.c.l.b16 %v8368
        %v8433 = vunpack.c.l.b16 %v8369
        %v8434 = vpack.c.b16 %v8403, %v8402
        %v8435 = vpack.c.b16 %v8405, %v8404
        %v8436 = vpack.c.b16 %v8407, %v8406
        %v8437 = vpack.c.b16 %v8409, %v8408
        %v8438 = vpack.c.b16 %v8411, %v8410
        %v8439 = vpack.c.b16 %v8413, %v8412
        %v8440 = vpack.c.b16 %v8415, %v8414
        %v8441 = vpack.c.b16 %v8417, %v8416
        %v8442 = vpack.c.b16 %v8419, %v8418
        %v8443 = vpack.c.b16 %v8421, %v8420
        %v8444 = vpack.c.b16 %v8423, %v8422
        %v8445 = vpack.c.b16 %v8425, %v8424
        %v8446 = vpack.c.b16 %v8427, %v8426
        %v8447 = vpack.c.b16 %v8429, %v8428
        %v8448 = vpack.c.b16 %v8431, %v8430
        %v8449 = vpack.c.b16 %v8433, %v8432
        %8466 = vmatpush.bf16.msra.mxu0 %v8441
        %8467 = vmatpush.bf16.msra.mxu0 %v8440
        %8468 = vmatpush.bf16.msra.mxu0 %v8439
        %8469 = vmatpush.bf16.msra.mxu0 %v8438
        %8470 = vmatpush.bf16.msra.mxu0 %v8437
        %8471 = vmatpush.bf16.msra.mxu0 %v8436
        %8472 = vmatpush.bf16.msra.mxu0 %v8435
        %8473 = vmatpush.bf16.msra.mxu0 %v8434
        %8474 = vmatmul.bf16.gmra.mxu0 %v8329
        %v8475 = vpop.f32.mrf.mxu0
        %v8476 = vadd.f32 0.0, %v8475
        %v8477 = vpop.f32.mrf.mxu0
        %v8478 = vadd.f32 0.0, %v8477
        %8479 = vmatmul.bf16.gmra.mxu0 %v8331
        %v8480 = vpop.f32.mrf.mxu0
        %v8481 = vadd.f32 0.0, %v8480
        %v8482 = vpop.f32.mrf.mxu0
        %v8483 = vadd.f32 0.0, %v8482
        %8484 = vmatmul.bf16.gmra.mxu0 %v8333
        %v8485 = vpop.f32.mrf.mxu0
        %v8486 = vadd.f32 0.0, %v8485
        %v8487 = vpop.f32.mrf.mxu0
        %v8488 = vadd.f32 0.0, %v8487
        %8489 = vmatmul.bf16.gmra.mxu0 %v8335
        %v8490 = vpop.f32.mrf.mxu0
        %v8491 = vadd.f32 0.0, %v8490
        %v8492 = vpop.f32.mrf.mxu0
        %v8493 = vadd.f32 0.0, %v8492
        %8494 = vdwg.mxu0
        %8495 = vmatpush.bf16.msra.mxu0 %v8449
        %8496 = vmatpush.bf16.msra.mxu0 %v8448
        %8497 = vmatpush.bf16.msra.mxu0 %v8447
        %8498 = vmatpush.bf16.msra.mxu0 %v8446
        %8499 = vmatpush.bf16.msra.mxu0 %v8445
        %8500 = vmatpush.bf16.msra.mxu0 %v8444
        %8501 = vmatpush.bf16.msra.mxu0 %v8443
        %8502 = vmatpush.bf16.msra.mxu0 %v8442
        %8503 = vmatmul.bf16.gmra.mxu0 %v8330
        %v8504 = vpop.f32.mrf.mxu0
        %v8505 = vadd.f32 %v8476, %v8504
        %v8506 = vpop.f32.mrf.mxu0
        %v8507 = vadd.f32 %v8478, %v8506
        %8508 = vmatmul.bf16.gmra.mxu0 %v8332
        %v8509 = vpop.f32.mrf.mxu0
        %v8510 = vadd.f32 %v8481, %v8509
        %v8511 = vpop.f32.mrf.mxu0
        %v8512 = vadd.f32 %v8483, %v8511
        %8513 = vmatmul.bf16.gmra.mxu0 %v8334
        %v8514 = vpop.f32.mrf.mxu0
        %v8515 = vadd.f32 %v8486, %v8514
        %v8516 = vpop.f32.mrf.mxu0
        %v8517 = vadd.f32 %v8488, %v8516
        %8518 = vmatmul.bf16.gmra.mxu0 %v8336
        %v8519 = vpop.f32.mrf.mxu0
        %v8520 = vadd.f32 %v8491, %v8519
        %v8521 = vpop.f32.mrf.mxu0
        %v8522 = vadd.f32 %v8493, %v8521
        %8523 = vdwg.mxu0
        %v8524 = vadd.f32 %v8193, %v8505
        %v8525 = vadd.f32 %v8194, %v8507
        %v8526 = vadd.f32 %v8195, %v8510
        %v8527 = vadd.f32 %v8196, %v8512
        %v8528 = vadd.f32 %v8197, %v8515
        %v8529 = vadd.f32 %v8198, %v8517
        %v8530 = vadd.f32 %v8199, %v8520
        %v8531 = vadd.f32 %v8200, %v8522
        %v8532 = vld [vmem:[%s9] sm:$0x1]
        %v8534 = vperm.slane %v8532, 0
        %v8536 = vadd.f32 %v8524, %v8534
        %v8537 = vadd.f32 %v8525, %v8534
        %v8538 = vadd.f32 %v8526, %v8534
        %v8539 = vadd.f32 %v8527, %v8534
        %v8540 = vadd.f32 %v8528, %v8534
        %v8541 = vadd.f32 %v8529, %v8534
        %v8542 = vadd.f32 %v8530, %v8534
        %v8543 = vadd.f32 %v8531, %v8534
        %v8544 = vmax.f32 %v8536, 0.0
        %v8545 = vmax.f32 %v8537, 0.0
        %v8546 = vmax.f32 %v8538, 0.0
        %v8547 = vmax.f32 %v8539, 0.0
        %v8548 = vmax.f32 %v8540, 0.0
        %v8549 = vmax.f32 %v8541, 0.0
        %v8550 = vmax.f32 %v8542, 0.0
        %v8551 = vmax.f32 %v8543, 0.0
        %8552 = vst [vmem:[%s396] sm:$0xff] %v8544
        %8553 = vst [vmem:[%s396 + $0x8] sm:$0xff] %v8545
        %8554 = vst [vmem:[%s396 + $0x10] sm:$0xff] %v8546
        %8555 = vst [vmem:[%s396 + $0x18] sm:$0xff] %v8547
        %8556 = vst [vmem:[%s396 + $0x20] sm:$0xff] %v8548
        %8557 = vst [vmem:[%s396 + $0x28] sm:$0xff] %v8549
        %8558 = vst [vmem:[%s396 + $0x30] sm:$0xff] %v8550
        %8559 = vst [vmem:[%s396 + $0x38] sm:$0xff] %v8551
        %p8560 = scmp.lt.s32.totalorder %s22, 1
        %s8561 = scalar_select %p8560, %s22, 1
        %s8562 = smul.addr %s8561, 8
        %s8563 = smul.addr %s8562, 8
        %s8564 = scalar_lea.vmem %s10, %s8563
        // Predicated region
        $region65: #{deeplabv3p_forward.7} parent=59 // pred_check
          %p8565 = pneg %p260
        $region66: #{deeplabv3p_forward.7} parent=59 // pred_check_branch
          %8567 = sbr.rel (%p8565) target = $region68
        $region67: #{deeplabv3p_forward.7} parent=59 // pred_region
          _
        $region68: #{deeplabv3p_forward.7} parent=59 // pred_fallthru
          _
      $region60: #{deeplabv3p_forward.7} parent=5 // pred_fallthru
        _
      %p8568 = scmp.le.s32.totalorder 2, %s17
      // Predicated region
      $region69: #{deeplabv3p_forward.7} parent=5 // pred_check
        %p8569 = pneg %p8568
      $region70: #{deeplabv3p_forward.7} parent=5 // pred_check_branch
        %8571 = sbr.rel (%p8569) target = $region72
      $region71: #{deeplabv3p_forward.7} parent=5 // pred_region
        %s8572 = ssub.s32 %s17, 2
        // Predicated region
        $region73: #{deeplabv3p_forward.7} parent=71 // pred_check
          %p8573 = pneg %p266
        $region74: #{deeplabv3p_forward.7} parent=71 // pred_check_branch
          %8575 = sbr.rel (%p8573) target = $region76
        $region75: #{deeplabv3p_forward.7} parent=71 // pred_region
          %p8576 = scmp.lt.s32.totalorder %s23, 1
          %s8577 = scalar_select %p8576, %s23, 1
          %s8578 = smul.addr %s8577, 8
          %s8579 = smul.addr %s8578, 8
          %s8580 = scalar_lea.vmem %s10, %s8579
        $region76: #{deeplabv3p_forward.7} parent=71 // pred_fallthru
          _
      $region72: #{deeplabv3p_forward.7} parent=5 // pred_fallthru
        _
    $region6: #{deeplabv3p_forward.7} parent=1 // loop_footer
      %s21 = sadd.s32 1, %s17
    $region7: #{deeplabv3p_forward.7} parent=1 // loop_footer_branch
      %16 = sbr.rel target = $region3
    $region8: #{deeplabv3p_forward.7} parent=1 // loop_exit
      _
    %8581 = vsyncpa [#allocation6], 1
    %s8582 = scalar_lea.sflag [#allocation6], 1
    %8583 = vsyncpa %s8582, 1

</llo_original>
